<compile_context>
chip_gen: v7x
topology: tpu7x:2x2x1
jax: 0.10.0
libtpu: 0.0.40
codegen_flags: <defaults>
</compile_context>

<pallas_src>
import functools

import jax
import jax.numpy as jnp
import numpy as np
from jax import lax
from jax.experimental import pallas as pl
from jax.experimental.pallas import tpu as pltpu

# Matmul-operand dtype (MXU path). Accumulation and all gate math remain f32.
MATMUL_DTYPE = jnp.bfloat16


# ---------------------------------------------------------------------------
# Fused recurrence kernel. One grid step = (batch block, time block):
#   a) time-parallel input projection (one MXU matmul) into a VMEM scratch
#   b) partially-unrolled serial scan over the time block
# ---------------------------------------------------------------------------
def _cerebral_fused_kernel(
    x_ref,       # (T_BLK, B_BLK, I)   layer input block, f32
    h0_ref,      # (B_BLK, H)          initial hidden state
    uc0_ref,     # (B_BLK, H)          initial upper cell state
    lc0_ref,     # (B_BLK, H)          initial lower cell state
    wx_ref,      # (I, 8H)             input  -> gates weights (bf16)
    wh_ref,      # (H, 8H)             hidden -> gates weights (bf16)
    b_ref,       # (1, 8H)             bias, f32
    out_ref,     # (T_BLK, B_BLK, H)   per-step outputs
    hT_ref,      # (B_BLK, H)          final hidden      (written once per batch block)
    ucT_ref,     # (B_BLK, H)          final upper cell
    lcT_ref,     # (B_BLK, H)          final lower cell
    gx_sc,       # VMEM (T_BLK, B_BLK, 8H) f32: block input projection (never hits HBM)
    h_sc,        # VMEM (B_BLK, H)     carried hidden state across time blocks
    uc_sc,       # VMEM (B_BLK, H)
    lc_sc,       # VMEM (B_BLK, H)
    *,
    unroll,
):
    t_idx = pl.program_id(1)            # time-block axis (inner, sequential)

    @pl.when(t_idx == 0)
    def _():
        h_sc[...] = h0_ref[...]
        uc_sc[...] = uc0_ref[...]
        lc_sc[...] = lc0_ref[...]

    T, Bb, I = x_ref.shape
    H = h_sc.shape[-1]
    G = wx_ref.shape[-1]
    mxu_dtype = wh_ref.dtype

    # --- time-parallel input projection for this block (off the serial path) ---
    # One (T*Bb, I) @ (I, 8H) MXU pass.  Reshape is tile-aligned (free) when Bb % 8 == 0.
    x2 = x_ref[...].reshape(T * Bb, I).astype(mxu_dtype)
    gx = jnp.dot(x2, wx_ref[...], preferred_element_type=jnp.float32) + b_ref[...]
    gx_sc[...] = gx.reshape(T, Bb, G)

    wh = wh_ref[...]   # load once per grid step; reused by every timestep

    def step(i, carry):
        h, uc, lc = carry
        # Only h_prev @ W_h stays on the serial critical path.
        gates = jnp.dot(h.astype(mxu_dtype), wh,
                        preferred_element_type=jnp.float32) + gx_sc[i]

        uf = jax.nn.sigmoid(gates[:, 0 * H:1 * H])
        ui = jax.nn.sigmoid(gates[:, 1 * H:2 * H])
        uc_tmp = jnp.tanh(gates[:, 2 * H:3 * H])
        uo = jax.nn.sigmoid(gates[:, 3 * H:4 * H])
        lf = jax.nn.sigmoid(gates[:, 4 * H:5 * H])
        li = jax.nn.sigmoid(gates[:, 5 * H:6 * H])
        lc_tmp = jnp.tanh(gates[:, 6 * H:7 * H])
        lo = jax.nn.sigmoid(gates[:, 7 * H:8 * H])

        UC = uf * uc + ui * uc_tmp
        LC = lf * lc + li * lc_tmp
        h_next = uo * jnp.tanh(UC) + lo * jnp.tanh(LC)

        out_ref[i] = h_next
        return (h_next, UC, LC)

    # Partial unroll keeps LLO scheduling visibility without spilling vregs at large T.
    h, uc, lc = lax.fori_loop(
        0, T, step, (h_sc[...], uc_sc[...], lc_sc[...]), unroll=unroll)

    h_sc[...] = h
    uc_sc[...] = uc
    lc_sc[...] = lc

    @pl.when(t_idx == pl.num_programs(1) - 1)
    def _():
        hT_ref[...] = h
        ucT_ref[...] = uc
        lcT_ref[...] = lc


# ---------------------------------------------------------------------------
# VMEM-aware sizing
# ---------------------------------------------------------------------------
def _vmem_capacity_bytes():
    try:
        return int(pltpu.get_tpu_info().vmem_capacity_bytes)
    except Exception:
        return None


def _recurrence_vmem_bytes(t_blk, b_blk, in_size, hidden, w_bytes):
    """Conservative footprint estimate (pipeline blocks counted double-buffered)."""
    G = 8 * hidden
    f32 = 4
    x_blocks = 2 * t_blk * b_blk * in_size * f32
    out_blocks = 2 * t_blk * b_blk * hidden * f32
    weights = 2 * (in_size + hidden) * G * w_bytes
    bias = 2 * G * f32
    init_states = 2 * 3 * b_blk * hidden * f32
    final_states = 2 * 3 * b_blk * hidden * f32
    scratch = (t_blk * b_blk * G + 3 * b_blk * hidden) * f32   # gx + carried state
    return (x_blocks + out_blocks + weights + bias
            + init_states + final_states + scratch)


def _pick_t_block(seq_len, b_blk, in_size, hidden, w_bytes, vmem_budget, max_t_blk=64):
    """Largest divisor of seq_len (<= max_t_blk) whose footprint fits the budget."""
    best = 1
    for t in range(1, min(seq_len, max_t_blk) + 1):
        if seq_len % t != 0:
            continue
        if _recurrence_vmem_bytes(t, b_blk, in_size, hidden, w_bytes) <= vmem_budget:
            best = t
    return best


def _pick_batch_blocks(batch):
    # Two batch blocks so a v7x megacore can run one per TensorCore during the serial
    # recurrence; only when each half stays sublane-aligned (multiple of 8 rows).
    # TODO(synk): query the actual TensorCore count instead of assuming <= 2.
    if batch % 2 == 0 and (batch // 2) % 8 == 0:
        return 2
    return 1


# ---------------------------------------------------------------------------
# One layer = one fused pallas_call over grid (batch_blocks, time_blocks).
# ---------------------------------------------------------------------------
def _layer_scan(x, h0, uc0, lc0, w_x, w_h, bias, *, t_blk, batch_blocks, vmem_limit):
    S, B, I = x.shape
    H = h0.shape[-1]
    G = 8 * H
    b_blk = B // batch_blocks
    unroll = max(1, min(t_blk, 8))

    kernel = functools.partial(_cerebral_fused_kernel, unroll=unroll)

    out_shapes = (
        jax.ShapeDtypeStruct((S, B, H), jnp.float32),  # per-step outputs
        jax.ShapeDtypeStruct((B, H), jnp.float32),      # h_T
        jax.ShapeDtypeStruct((B, H), jnp.float32),      # UC_T
        jax.ShapeDtypeStruct((B, H), jnp.float32),      # LC_T
    )

    grid_spec = pltpu.PrefetchScalarGridSpec(
        num_scalar_prefetch=0,
        grid=(batch_blocks, S // t_blk),
        in_specs=[
            pl.BlockSpec((t_blk, b_blk, I), lambda bb, t: (t, bb, 0)),   # x (default dbl-buffered)
            pl.BlockSpec((b_blk, H), lambda bb, t: (bb, 0)),             # h0
            pl.BlockSpec((b_blk, H), lambda bb, t: (bb, 0)),             # uc0
            pl.BlockSpec((b_blk, H), lambda bb, t: (bb, 0)),             # lc0
            pl.BlockSpec((I, G), lambda bb, t: (0, 0)),                  # W_x (resident, bf16)
            pl.BlockSpec((H, G), lambda bb, t: (0, 0)),                  # W_h (resident, bf16)
            pl.BlockSpec((1, G), lambda bb, t: (0, 0)),                  # bias (resident)
        ],
        out_specs=[
            pl.BlockSpec((t_blk, b_blk, H), lambda bb, t: (t, bb, 0)),   # outputs (lane-dense)
            pl.BlockSpec((b_blk, H), lambda bb, t: (bb, 0)),             # h_T
            pl.BlockSpec((b_blk, H), lambda bb, t: (bb, 0)),             # UC_T
            pl.BlockSpec((b_blk, H), lambda bb, t: (bb, 0)),             # LC_T
        ],
        scratch_shapes=[
            pltpu.VMEM((t_blk, b_blk, G), jnp.float32),   # gx (block projection)
            pltpu.VMEM((b_blk, H), jnp.float32),          # h carry
            pltpu.VMEM((b_blk, H), jnp.float32),          # UC carry
            pltpu.VMEM((b_blk, H), jnp.float32),          # LC carry
        ],
    )

    return pl.pallas_call(
        kernel,
        out_shape=out_shapes,
        grid_spec=grid_spec,
        compiler_params=pltpu.CompilerParams(
            # batch blocks are independent (megacore-shardable); time must stay ordered.
            dimension_semantics=("parallel", "arbitrary"),
            vmem_limit_bytes=vmem_limit,
        ),
    )(x, h0, uc0, lc0, w_x, w_h, bias)


# ---------------------------------------------------------------------------
# Parameter init (deterministic, mirrors the PyTorch __init__ shapes).
# ---------------------------------------------------------------------------
def init_cerebral_lstm_params(key, input_size, hidden_size, num_layers):
    """Returns a list of per-layer dicts with packed (W_h, W_x, b)."""
    params = []
    gate_names = ["uf", "ui", "uc", "uo", "lf", "li", "lc", "lo"]
    for layer in range(num_layers):
        in_sz = input_size if layer == 0 else hidden_size
        fan_in = in_sz + hidden_size
        fan_out = hidden_size
        ws = []
        for g in gate_names:
            key, sub = jax.random.split(key)
            if g in ("uc", "lc"):
                # xavier_normal_, gain = calculate_gain('tanh') = 5/3
                std = (5.0 / 3.0) * np.sqrt(2.0 / (fan_in + fan_out))
            else:
                # kaiming_normal_(mode='fan_in', nonlinearity='sigmoid'), gain = 1
                std = 1.0 / np.sqrt(fan_in)
            w = jax.random.normal(sub, (fan_in, hidden_size), jnp.float32) * std
            ws.append(w)
        # The PyTorch "+0.1*randn" complementarity nudge only triggers when upper and
        # lower weights are ~equal; with independent draws it never does, so skipped.
        W = jnp.concatenate(ws, axis=1)               # (hidden+input, 8*hidden)
        W_h = W[:hidden_size, :]                      # rows multiplying h_prev
        W_x = W[hidden_size:, :]                      # rows multiplying x
        b = jnp.zeros((1, 8 * hidden_size), jnp.float32)
        params.append({"W_h": W_h, "W_x": W_x, "b": b})
    return params


# ---------------------------------------------------------------------------
# Full model forward (stack of layers; dropout=0.0 so it is a no-op).
# ---------------------------------------------------------------------------
@jax.jit
def cerebral_lstm_forward(x, params_Wh, params_Wx, params_b):
    """x: (seq_len, batch, input_size) -> (outputs (S,B,H), [(h_T, UC_T, LC_T)] per layer)."""
    S, B, _ = x.shape
    batch_blocks = _pick_batch_blocks(B)
    b_blk = B // batch_blocks

    cap = _vmem_capacity_bytes()
    if cap is None:
        budget = 16 * 1024 * 1024           # conservative: fits every generation
        vmem_limit = None
    else:
        budget = int(0.45 * cap)            # headroom for compiler-internal scratch
        vmem_limit = int(0.9 * cap)

    w_bytes = np.dtype(MATMUL_DTYPE).itemsize

    layer_input = x
    finals = []
    for W_h, W_x, bias in zip(params_Wh, params_Wx, params_b):
        H = W_h.shape[0]
        I = W_x.shape[0]
        t_blk = _pick_t_block(S, b_blk, I, H, w_bytes, budget)
        h0 = jnp.zeros((B, H), jnp.float32)
        uc0 = jnp.zeros((B, H), jnp.float32)
        lc0 = jnp.zeros((B, H), jnp.float32)
        outs, hT, ucT, lcT = _layer_scan(
            layer_input, h0, uc0, lc0,
            W_x.astype(MATMUL_DTYPE), W_h.astype(MATMUL_DTYPE), bias,
            t_blk=t_blk, batch_blocks=batch_blocks, vmem_limit=vmem_limit)
        finals.append((hT, ucT, lcT))
        layer_input = outs
        # TODO(synk): inter-layer dropout not implemented (module default dropout=0.0).
        # TODO(synk): for very large H (8H weight slab > VMEM budget even at t_blk=1),
        #             additionally tile the 8H gate axis inside the kernel.
    return layer_input, finals


# ---------------------------------------------------------------------------
# Pure-JAX reference (same math, same matmul-operand dtype) for correctness check.
# ---------------------------------------------------------------------------
def reference_forward(x, params, matmul_dtype=jnp.float32):
    seq_len, B, _ = x.shape
    layer_input = x
    for p in params:
        W_h = p["W_h"].astype(matmul_dtype)
        W_x = p["W_x"].astype(matmul_dtype)
        b = p["b"]
        H = p["W_h"].shape[0]
        h = jnp.zeros((B, H), jnp.float32)
        uc = jnp.zeros((B, H), jnp.float32)
        lc = jnp.zeros((B, H), jnp.float32)
        outs = []
        for t in range(seq_len):
            g = (jnp.dot(h.astype(matmul_dtype), W_h, preferred_element_type=jnp.float32)
                 + jnp.dot(layer_input[t].astype(matmul_dtype), W_x,
                           preferred_element_type=jnp.float32)
                 + b)
            uf, ui, uc_t, uo, lf, li, lc_t, lo = [
                g[:, i * H:(i + 1) * H] for i in range(8)
            ]
            UC = jax.nn.sigmoid(uf) * uc + jax.nn.sigmoid(ui) * jnp.tanh(uc_t)
            LC = jax.nn.sigmoid(lf) * lc + jax.nn.sigmoid(li) * jnp.tanh(lc_t)
            h = jax.nn.sigmoid(uo) * jnp.tanh(UC) + jax.nn.sigmoid(lo) * jnp.tanh(LC)
            uc, lc = UC, LC
            outs.append(h)
        layer_input = jnp.stack(outs)
    return layer_input


if __name__ == "__main__":
    # Small but alignment-friendly shapes: H=128 keeps the gate axis lane-dense and
    # B=16 exercises the 2-way batch split (sublane-aligned halves of 8 rows).
    SEQ, BATCH, INPUT, HIDDEN, LAYERS = 8, 16, 16, 128, 2

    key = jax.random.PRNGKey(0)
    key, xkey = jax.random.split(key)
    x = jax.random.normal(xkey, (SEQ, BATCH, INPUT), jnp.float32)

    params = init_cerebral_lstm_params(key, INPUT, HIDDEN, LAYERS)
    params_Wh = tuple(p["W_h"] for p in params)
    params_Wx = tuple(p["W_x"] for p in params)
    params_b = tuple(p["b"] for p in params)

    outputs, finals = cerebral_lstm_forward(x, params_Wh, params_Wx, params_b)
    outputs = jax.block_until_ready(outputs)

    # Reference uses the same bf16-operand / f32-accumulate matmuls as the kernel, so
    # the remaining difference is only accumulation-order noise.
    ref = reference_forward(x, params, matmul_dtype=MATMUL_DTYPE)
    np.testing.assert_allclose(np.asarray(outputs), np.asarray(ref),
                               rtol=1e-3, atol=1e-3)

    # Final hidden state of the last layer must equal its last output.
    np.testing.assert_allclose(np.asarray(finals[-1][0]), np.asarray(ref[-1]),
                               rtol=1e-3, atol=1e-3)

    print("KERNEL_OK")
</pallas_src>

<mosaic_0001>
module attributes {stable_mosaic.version = 11 : i64} {
  func.func @_cerebral_fused_kernel(%arg0: i32, %arg1: i32, %arg2: memref<8x8x16xf32, #tpu.memory_space<vmem>>, %arg3: memref<8x128xf32, #tpu.memory_space<vmem>>, %arg4: memref<8x128xf32, #tpu.memory_space<vmem>>, %arg5: memref<8x128xf32, #tpu.memory_space<vmem>>, %arg6: memref<16x1024xbf16, #tpu.memory_space<vmem>>, %arg7: memref<128x1024xbf16, #tpu.memory_space<vmem>>, %arg8: memref<1x1024xf32, #tpu.memory_space<vmem>>, %arg9: memref<8x8x128xf32, #tpu.memory_space<vmem>>, %arg10: memref<8x128xf32, #tpu.memory_space<vmem>>, %arg11: memref<8x128xf32, #tpu.memory_space<vmem>>, %arg12: memref<8x128xf32, #tpu.memory_space<vmem>>, %arg13: memref<8x8x1024xf32, #tpu.memory_space<vmem>>, %arg14: memref<8x128xf32, #tpu.memory_space<vmem>>, %arg15: memref<8x128xf32, #tpu.memory_space<vmem>>, %arg16: memref<8x128xf32, #tpu.memory_space<vmem>>) attributes {dimension_semantics = [#tpu.dimension_semantics<parallel>, #tpu.dimension_semantics<arbitrary>], iteration_bounds = array<i64: 2, 1>, scalar_prefetch = 0 : i64, scratch_operands = 4 : i64, tpu.core_type = #tpu.core_type<tc>, window_params = [{transform_indices = @transform_0, window_bounds = array<i64: 8, 8, 16>}, {transform_indices = @transform_1, window_bounds = array<i64: 8, 128>}, {transform_indices = @transform_2, window_bounds = array<i64: 8, 128>}, {transform_indices = @transform_3, window_bounds = array<i64: 8, 128>}, {pipeline_mode = #tpu.pipeline_mode<synchronous>, transform_indices = @transform_4, window_bounds = array<i64: 16, 1024>}, {pipeline_mode = #tpu.pipeline_mode<synchronous>, transform_indices = @transform_5, window_bounds = array<i64: 128, 1024>}, {pipeline_mode = #tpu.pipeline_mode<synchronous>, transform_indices = @transform_6, window_bounds = array<i64: 1, 1024>}, {transform_indices = @transform_7, window_bounds = array<i64: 8, 8, 128>}, {transform_indices = @transform_8, window_bounds = array<i64: 8, 128>}, {transform_indices = @transform_9, window_bounds = array<i64: 8, 128>}, {transform_indices = @transform_10, window_bounds = array<i64: 8, 128>}]} {
    %c0_i32 = arith.constant 0 : i32
    %0 = arith.cmpi eq, %arg1, %c0_i32 : i32
    %1 = arith.extui %0 : i1 to i32
    %c0_i32_0 = arith.constant 0 : i32
    %2 = arith.cmpi ne, %1, %c0_i32_0 : i32
    scf.if %2 {
      %c0_115 = arith.constant 0 : index
      %c0_116 = arith.constant 0 : index
      %511 = vector.load %arg3[%c0_115, %c0_116] : memref<8x128xf32, #tpu.memory_space<vmem>>, vector<8x128xf32>
      %c0_117 = arith.constant 0 : index
      %c0_118 = arith.constant 0 : index
      %512 = vector.load %arg14[%c0_117, %c0_118] : memref<8x128xf32, #tpu.memory_space<vmem>>, vector<8x128xf32>
      tpu.vector_store %arg14[%c0_117, %c0_118], %511 {strides = array<i32>} : memref<8x128xf32, #tpu.memory_space<vmem>>, vector<8x128xf32>,
      %c0_119 = arith.constant 0 : index
      %c0_120 = arith.constant 0 : index
      %513 = vector.load %arg4[%c0_119, %c0_120] : memref<8x128xf32, #tpu.memory_space<vmem>>, vector<8x128xf32>
      %c0_121 = arith.constant 0 : index
      %c0_122 = arith.constant 0 : index
      %514 = vector.load %arg15[%c0_121, %c0_122] : memref<8x128xf32, #tpu.memory_space<vmem>>, vector<8x128xf32>
      tpu.vector_store %arg15[%c0_121, %c0_122], %513 {strides = array<i32>} : memref<8x128xf32, #tpu.memory_space<vmem>>, vector<8x128xf32>,
      %c0_123 = arith.constant 0 : index
      %c0_124 = arith.constant 0 : index
      %515 = vector.load %arg5[%c0_123, %c0_124] : memref<8x128xf32, #tpu.memory_space<vmem>>, vector<8x128xf32>
      %c0_125 = arith.constant 0 : index
      %c0_126 = arith.constant 0 : index
      %516 = vector.load %arg16[%c0_125, %c0_126] : memref<8x128xf32, #tpu.memory_space<vmem>>, vector<8x128xf32>
      tpu.vector_store %arg16[%c0_125, %c0_126], %515 {strides = array<i32>} : memref<8x128xf32, #tpu.memory_space<vmem>>, vector<8x128xf32>,
    } else {
    }
    %c0 = arith.constant 0 : index
    %c0_1 = arith.constant 0 : index
    %c0_2 = arith.constant 0 : index
    %3 = vector.load %arg2[%c0, %c0_1, %c0_2] : memref<8x8x16xf32, #tpu.memory_space<vmem>>, vector<8x8x16xf32>
    %4 = vector.shape_cast %3 : vector<8x8x16xf32> to vector<64x16xf32>
    %5 = arith.truncf %4 : vector<64x16xf32> to vector<64x16xbf16>
    %c0_3 = arith.constant 0 : index
    %c0_4 = arith.constant 0 : index
    %6 = vector.load %arg6[%c0_3, %c0_4] : memref<16x1024xbf16, #tpu.memory_space<vmem>>, vector<16x1024xbf16>
    %cst = arith.constant dense<0.000000e+00> : vector<64x1024xf32>
    %7 = tpu.matmul %5, %6, %cst {dimension_numbers = #tpu.dot_dimension_numbers<[1], [0], [0], [1], [0, 0, 1, 1], [], []>} : vector<64x16xbf16>, vector<16x1024xbf16>, vector<64x1024xf32> -> vector<64x1024xf32>
    %c0_5 = arith.constant 0 : index
    %c0_6 = arith.constant 0 : index
    %8 = vector.load %arg8[%c0_5, %c0_6] : memref<1x1024xf32, #tpu.memory_space<vmem>>, vector<1x1024xf32>
    %9 = vector.broadcast %8 : vector<1x1024xf32> to vector<64x1024xf32>
    %10 = arith.addf %7, %9 : vector<64x1024xf32>
    %11 = vector.shape_cast %10 : vector<64x1024xf32> to vector<8x8x1024xf32>
    %c0_7 = arith.constant 0 : index
    %c0_8 = arith.constant 0 : index
    %c0_9 = arith.constant 0 : index
    %12 = vector.load %arg13[%c0_7, %c0_8, %c0_9] : memref<8x8x1024xf32, #tpu.memory_space<vmem>>, vector<8x8x1024xf32>
    tpu.vector_store %arg13[%c0_7, %c0_8, %c0_9], %11 {strides = array<i32>} : memref<8x8x1024xf32, #tpu.memory_space<vmem>>, vector<8x8x1024xf32>,
    %c0_10 = arith.constant 0 : index
    %c0_11 = arith.constant 0 : index
    %13 = vector.load %arg7[%c0_10, %c0_11] : memref<128x1024xbf16, #tpu.memory_space<vmem>>, vector<128x1024xbf16>
    %c0_12 = arith.constant 0 : index
    %c0_13 = arith.constant 0 : index
    %14 = vector.load %arg14[%c0_12, %c0_13] : memref<8x128xf32, #tpu.memory_space<vmem>>, vector<8x128xf32>
    %c0_14 = arith.constant 0 : index
    %c0_15 = arith.constant 0 : index
    %15 = vector.load %arg15[%c0_14, %c0_15] : memref<8x128xf32, #tpu.memory_space<vmem>>, vector<8x128xf32>
    %c0_16 = arith.constant 0 : index
    %c0_17 = arith.constant 0 : index
    %16 = vector.load %arg16[%c0_16, %c0_17] : memref<8x128xf32, #tpu.memory_space<vmem>>, vector<8x128xf32>
    %c0_i32_18 = arith.constant 0 : i32
    %17 = arith.truncf %14 : vector<8x128xf32> to vector<8x128xbf16>
    %cst_19 = arith.constant dense<0.000000e+00> : vector<8x1024xf32>
    %18 = tpu.matmul %17, %13, %cst_19 {dimension_numbers = #tpu.dot_dimension_numbers<[1], [0], [0], [1], [0, 0, 1, 1], [], []>} : vector<8x128xbf16>, vector<128x1024xbf16>, vector<8x1024xf32> -> vector<8x1024xf32>
    %19 = arith.index_cast %c0_i32_18 : i32 to index
    %c0_20 = arith.constant 0 : index
    %c0_21 = arith.constant 0 : index
    %20 = vector.load %arg13[%19, %c0_20, %c0_21] : memref<8x8x1024xf32, #tpu.memory_space<vmem>>, vector<1x8x1024xf32>
    %21 = vector.shape_cast %20 : vector<1x8x1024xf32> to vector<8x1024xf32>
    %22 = arith.addf %18, %21 : vector<8x1024xf32>
    %23 = vector.extract_strided_slice %22 {offsets = [0, 0], sizes = [8, 128], strides = [1, 1]} : vector<8x1024xf32> to vector<8x128xf32>
    %24 = arith.negf %23 : vector<8x128xf32>
    %25 = math.exp %24 : vector<8x128xf32>
    %cst_22 = arith.constant 1.000000e+00 : f32
    %26 = vector.broadcast %cst_22 : f32 to vector<8x128xf32>
    %27 = arith.addf %26, %25 : vector<8x128xf32>
    %28 = arith.divf %26, %27 : vector<8x128xf32>
    %29 = vector.extract_strided_slice %22 {offsets = [0, 128], sizes = [8, 128], strides = [1, 1]} : vector<8x1024xf32> to vector<8x128xf32>
    %30 = arith.negf %29 : vector<8x128xf32>
    %31 = math.exp %30 : vector<8x128xf32>
    %cst_23 = arith.constant 1.000000e+00 : f32
    %32 = vector.broadcast %cst_23 : f32 to vector<8x128xf32>
    %33 = arith.addf %32, %31 : vector<8x128xf32>
    %34 = arith.divf %32, %33 : vector<8x128xf32>
    %35 = vector.extract_strided_slice %22 {offsets = [0, 256], sizes = [8, 128], strides = [1, 1]} : vector<8x1024xf32> to vector<8x128xf32>
    %36 = math.tanh %35 : vector<8x128xf32>
    %37 = vector.extract_strided_slice %22 {offsets = [0, 384], sizes = [8, 128], strides = [1, 1]} : vector<8x1024xf32> to vector<8x128xf32>
    %38 = arith.negf %37 : vector<8x128xf32>
    %39 = math.exp %38 : vector<8x128xf32>
    %cst_24 = arith.constant 1.000000e+00 : f32
    %40 = vector.broadcast %cst_24 : f32 to vector<8x128xf32>
    %41 = arith.addf %40, %39 : vector<8x128xf32>
    %42 = arith.divf %40, %41 : vector<8x128xf32>
    %43 = vector.extract_strided_slice %22 {offsets = [0, 512], sizes = [8, 128], strides = [1, 1]} : vector<8x1024xf32> to vector<8x128xf32>
    %44 = arith.negf %43 : vector<8x128xf32>
    %45 = math.exp %44 : vector<8x128xf32>
    %cst_25 = arith.constant 1.000000e+00 : f32
    %46 = vector.broadcast %cst_25 : f32 to vector<8x128xf32>
    %47 = arith.addf %46, %45 : vector<8x128xf32>
    %48 = arith.divf %46, %47 : vector<8x128xf32>
    %49 = vector.extract_strided_slice %22 {offsets = [0, 640], sizes = [8, 128], strides = [1, 1]} : vector<8x1024xf32> to vector<8x128xf32>
    %50 = arith.negf %49 : vector<8x128xf32>
    %51 = math.exp %50 : vector<8x128xf32>
    %cst_26 = arith.constant 1.000000e+00 : f32
    %52 = vector.broadcast %cst_26 : f32 to vector<8x128xf32>
    %53 = arith.addf %52, %51 : vector<8x128xf32>
    %54 = arith.divf %52, %53 : vector<8x128xf32>
    %55 = vector.extract_strided_slice %22 {offsets = [0, 768], sizes = [8, 128], strides = [1, 1]} : vector<8x1024xf32> to vector<8x128xf32>
    %56 = math.tanh %55 : vector<8x128xf32>
    %57 = vector.extract_strided_slice %22 {offsets = [0, 896], sizes = [8, 128], strides = [1, 1]} : vector<8x1024xf32> to vector<8x128xf32>
    %58 = arith.negf %57 : vector<8x128xf32>
    %59 = math.exp %58 : vector<8x128xf32>
    %cst_27 = arith.constant 1.000000e+00 : f32
    %60 = vector.broadcast %cst_27 : f32 to vector<8x128xf32>
    %61 = arith.addf %60, %59 : vector<8x128xf32>
    %62 = arith.divf %60, %61 : vector<8x128xf32>
    %63 = arith.mulf %28, %15 : vector<8x128xf32>
    %64 = arith.mulf %34, %36 : vector<8x128xf32>
    %65 = arith.addf %63, %64 : vector<8x128xf32>
    %66 = arith.mulf %48, %16 : vector<8x128xf32>
    %67 = arith.mulf %54, %56 : vector<8x128xf32>
    %68 = arith.addf %66, %67 : vector<8x128xf32>
    %69 = math.tanh %65 : vector<8x128xf32>
    %70 = arith.mulf %42, %69 : vector<8x128xf32>
    %71 = math.tanh %68 : vector<8x128xf32>
    %72 = arith.mulf %62, %71 : vector<8x128xf32>
    %73 = arith.addf %70, %72 : vector<8x128xf32>
    %74 = arith.index_cast %c0_i32_18 : i32 to index
    %c0_28 = arith.constant 0 : index
    %c0_29 = arith.constant 0 : index
    %75 = vector.load %arg9[%74, %c0_28, %c0_29] : memref<8x8x128xf32, #tpu.memory_space<vmem>>, vector<1x8x128xf32>
    %76 = vector.shape_cast %75 : vector<1x8x128xf32> to vector<8x128xf32>
    %77 = vector.shape_cast %73 : vector<8x128xf32> to vector<1x8x128xf32>
    tpu.vector_store %arg9[%74, %c0_28, %c0_29], %77 {strides = array<i32>} : memref<8x8x128xf32, #tpu.memory_space<vmem>>, vector<1x8x128xf32>,
    %c1_i32 = arith.constant 1 : i32
    %78 = arith.truncf %73 : vector<8x128xf32> to vector<8x128xbf16>
    %cst_30 = arith.constant dense<0.000000e+00> : vector<8x1024xf32>
    %79 = tpu.matmul %78, %13, %cst_30 {dimension_numbers = #tpu.dot_dimension_numbers<[1], [0], [0], [1], [0, 0, 1, 1], [], []>} : vector<8x128xbf16>, vector<128x1024xbf16>, vector<8x1024xf32> -> vector<8x1024xf32>
    %80 = arith.index_cast %c1_i32 : i32 to index
    %c0_31 = arith.constant 0 : index
    %c0_32 = arith.constant 0 : index
    %81 = vector.load %arg13[%80, %c0_31, %c0_32] : memref<8x8x1024xf32, #tpu.memory_space<vmem>>, vector<1x8x1024xf32>
    %82 = vector.shape_cast %81 : vector<1x8x1024xf32> to vector<8x1024xf32>
    %83 = arith.addf %79, %82 : vector<8x1024xf32>
    %84 = vector.extract_strided_slice %83 {offsets = [0, 0], sizes = [8, 128], strides = [1, 1]} : vector<8x1024xf32> to vector<8x128xf32>
    %85 = arith.negf %84 : vector<8x128xf32>
    %86 = math.exp %85 : vector<8x128xf32>
    %cst_33 = arith.constant 1.000000e+00 : f32
    %87 = vector.broadcast %cst_33 : f32 to vector<8x128xf32>
    %88 = arith.addf %87, %86 : vector<8x128xf32>
    %89 = arith.divf %87, %88 : vector<8x128xf32>
    %90 = vector.extract_strided_slice %83 {offsets = [0, 128], sizes = [8, 128], strides = [1, 1]} : vector<8x1024xf32> to vector<8x128xf32>
    %91 = arith.negf %90 : vector<8x128xf32>
    %92 = math.exp %91 : vector<8x128xf32>
    %cst_34 = arith.constant 1.000000e+00 : f32
    %93 = vector.broadcast %cst_34 : f32 to vector<8x128xf32>
    %94 = arith.addf %93, %92 : vector<8x128xf32>
    %95 = arith.divf %93, %94 : vector<8x128xf32>
    %96 = vector.extract_strided_slice %83 {offsets = [0, 256], sizes = [8, 128], strides = [1, 1]} : vector<8x1024xf32> to vector<8x128xf32>
    %97 = math.tanh %96 : vector<8x128xf32>
    %98 = vector.extract_strided_slice %83 {offsets = [0, 384], sizes = [8, 128], strides = [1, 1]} : vector<8x1024xf32> to vector<8x128xf32>
    %99 = arith.negf %98 : vector<8x128xf32>
    %100 = math.exp %99 : vector<8x128xf32>
    %cst_35 = arith.constant 1.000000e+00 : f32
    %101 = vector.broadcast %cst_35 : f32 to vector<8x128xf32>
    %102 = arith.addf %101, %100 : vector<8x128xf32>
    %103 = arith.divf %101, %102 : vector<8x128xf32>
    %104 = vector.extract_strided_slice %83 {offsets = [0, 512], sizes = [8, 128], strides = [1, 1]} : vector<8x1024xf32> to vector<8x128xf32>
    %105 = arith.negf %104 : vector<8x128xf32>
    %106 = math.exp %105 : vector<8x128xf32>
    %cst_36 = arith.constant 1.000000e+00 : f32
    %107 = vector.broadcast %cst_36 : f32 to vector<8x128xf32>
    %108 = arith.addf %107, %106 : vector<8x128xf32>
    %109 = arith.divf %107, %108 : vector<8x128xf32>
    %110 = vector.extract_strided_slice %83 {offsets = [0, 640], sizes = [8, 128], strides = [1, 1]} : vector<8x1024xf32> to vector<8x128xf32>
    %111 = arith.negf %110 : vector<8x128xf32>
    %112 = math.exp %111 : vector<8x128xf32>
    %cst_37 = arith.constant 1.000000e+00 : f32
    %113 = vector.broadcast %cst_37 : f32 to vector<8x128xf32>
    %114 = arith.addf %113, %112 : vector<8x128xf32>
    %115 = arith.divf %113, %114 : vector<8x128xf32>
    %116 = vector.extract_strided_slice %83 {offsets = [0, 768], sizes = [8, 128], strides = [1, 1]} : vector<8x1024xf32> to vector<8x128xf32>
    %117 = math.tanh %116 : vector<8x128xf32>
    %118 = vector.extract_strided_slice %83 {offsets = [0, 896], sizes = [8, 128], strides = [1, 1]} : vector<8x1024xf32> to vector<8x128xf32>
    %119 = arith.negf %118 : vector<8x128xf32>
    %120 = math.exp %119 : vector<8x128xf32>
    %cst_38 = arith.constant 1.000000e+00 : f32
    %121 = vector.broadcast %cst_38 : f32 to vector<8x128xf32>
    %122 = arith.addf %121, %120 : vector<8x128xf32>
    %123 = arith.divf %121, %122 : vector<8x128xf32>
    %124 = arith.mulf %89, %65 : vector<8x128xf32>
    %125 = arith.mulf %95, %97 : vector<8x128xf32>
    %126 = arith.addf %124, %125 : vector<8x128xf32>
    %127 = arith.mulf %109, %68 : vector<8x128xf32>
    %128 = arith.mulf %115, %117 : vector<8x128xf32>
    %129 = arith.addf %127, %128 : vector<8x128xf32>
    %130 = math.tanh %126 : vector<8x128xf32>
    %131 = arith.mulf %103, %130 : vector<8x128xf32>
    %132 = math.tanh %129 : vector<8x128xf32>
    %133 = arith.mulf %123, %132 : vector<8x128xf32>
    %134 = arith.addf %131, %133 : vector<8x128xf32>
    %135 = arith.index_cast %c1_i32 : i32 to index
    %c0_39 = arith.constant 0 : index
    %c0_40 = arith.constant 0 : index
    %136 = vector.load %arg9[%135, %c0_39, %c0_40] : memref<8x8x128xf32, #tpu.memory_space<vmem>>, vector<1x8x128xf32>
    %137 = vector.shape_cast %136 : vector<1x8x128xf32> to vector<8x128xf32>
    %138 = vector.shape_cast %134 : vector<8x128xf32> to vector<1x8x128xf32>
    tpu.vector_store %arg9[%135, %c0_39, %c0_40], %138 {strides = array<i32>} : memref<8x8x128xf32, #tpu.memory_space<vmem>>, vector<1x8x128xf32>,
    %c2_i32 = arith.constant 2 : i32
    %139 = arith.truncf %134 : vector<8x128xf32> to vector<8x128xbf16>
    %cst_41 = arith.constant dense<0.000000e+00> : vector<8x1024xf32>
    %140 = tpu.matmul %139, %13, %cst_41 {dimension_numbers = #tpu.dot_dimension_numbers<[1], [0], [0], [1], [0, 0, 1, 1], [], []>} : vector<8x128xbf16>, vector<128x1024xbf16>, vector<8x1024xf32> -> vector<8x1024xf32>
    %141 = arith.index_cast %c2_i32 : i32 to index
    %c0_42 = arith.constant 0 : index
    %c0_43 = arith.constant 0 : index
    %142 = vector.load %arg13[%141, %c0_42, %c0_43] : memref<8x8x1024xf32, #tpu.memory_space<vmem>>, vector<1x8x1024xf32>
    %143 = vector.shape_cast %142 : vector<1x8x1024xf32> to vector<8x1024xf32>
    %144 = arith.addf %140, %143 : vector<8x1024xf32>
    %145 = vector.extract_strided_slice %144 {offsets = [0, 0], sizes = [8, 128], strides = [1, 1]} : vector<8x1024xf32> to vector<8x128xf32>
    %146 = arith.negf %145 : vector<8x128xf32>
    %147 = math.exp %146 : vector<8x128xf32>
    %cst_44 = arith.constant 1.000000e+00 : f32
    %148 = vector.broadcast %cst_44 : f32 to vector<8x128xf32>
    %149 = arith.addf %148, %147 : vector<8x128xf32>
    %150 = arith.divf %148, %149 : vector<8x128xf32>
    %151 = vector.extract_strided_slice %144 {offsets = [0, 128], sizes = [8, 128], strides = [1, 1]} : vector<8x1024xf32> to vector<8x128xf32>
    %152 = arith.negf %151 : vector<8x128xf32>
    %153 = math.exp %152 : vector<8x128xf32>
    %cst_45 = arith.constant 1.000000e+00 : f32
    %154 = vector.broadcast %cst_45 : f32 to vector<8x128xf32>
    %155 = arith.addf %154, %153 : vector<8x128xf32>
    %156 = arith.divf %154, %155 : vector<8x128xf32>
    %157 = vector.extract_strided_slice %144 {offsets = [0, 256], sizes = [8, 128], strides = [1, 1]} : vector<8x1024xf32> to vector<8x128xf32>
    %158 = math.tanh %157 : vector<8x128xf32>
    %159 = vector.extract_strided_slice %144 {offsets = [0, 384], sizes = [8, 128], strides = [1, 1]} : vector<8x1024xf32> to vector<8x128xf32>
    %160 = arith.negf %159 : vector<8x128xf32>
    %161 = math.exp %160 : vector<8x128xf32>
    %cst_46 = arith.constant 1.000000e+00 : f32
    %162 = vector.broadcast %cst_46 : f32 to vector<8x128xf32>
    %163 = arith.addf %162, %161 : vector<8x128xf32>
    %164 = arith.divf %162, %163 : vector<8x128xf32>
    %165 = vector.extract_strided_slice %144 {offsets = [0, 512], sizes = [8, 128], strides = [1, 1]} : vector<8x1024xf32> to vector<8x128xf32>
    %166 = arith.negf %165 : vector<8x128xf32>
    %167 = math.exp %166 : vector<8x128xf32>
    %cst_47 = arith.constant 1.000000e+00 : f32
    %168 = vector.broadcast %cst_47 : f32 to vector<8x128xf32>
    %169 = arith.addf %168, %167 : vector<8x128xf32>
    %170 = arith.divf %168, %169 : vector<8x128xf32>
    %171 = vector.extract_strided_slice %144 {offsets = [0, 640], sizes = [8, 128], strides = [1, 1]} : vector<8x1024xf32> to vector<8x128xf32>
    %172 = arith.negf %171 : vector<8x128xf32>
    %173 = math.exp %172 : vector<8x128xf32>
    %cst_48 = arith.constant 1.000000e+00 : f32
    %174 = vector.broadcast %cst_48 : f32 to vector<8x128xf32>
    %175 = arith.addf %174, %173 : vector<8x128xf32>
    %176 = arith.divf %174, %175 : vector<8x128xf32>
    %177 = vector.extract_strided_slice %144 {offsets = [0, 768], sizes = [8, 128], strides = [1, 1]} : vector<8x1024xf32> to vector<8x128xf32>
    %178 = math.tanh %177 : vector<8x128xf32>
    %179 = vector.extract_strided_slice %144 {offsets = [0, 896], sizes = [8, 128], strides = [1, 1]} : vector<8x1024xf32> to vector<8x128xf32>
    %180 = arith.negf %179 : vector<8x128xf32>
    %181 = math.exp %180 : vector<8x128xf32>
    %cst_49 = arith.constant 1.000000e+00 : f32
    %182 = vector.broadcast %cst_49 : f32 to vector<8x128xf32>
    %183 = arith.addf %182, %181 : vector<8x128xf32>
    %184 = arith.divf %182, %183 : vector<8x128xf32>
    %185 = arith.mulf %150, %126 : vector<8x128xf32>
    %186 = arith.mulf %156, %158 : vector<8x128xf32>
    %187 = arith.addf %185, %186 : vector<8x128xf32>
    %188 = arith.mulf %170, %129 : vector<8x128xf32>
    %189 = arith.mulf %176, %178 : vector<8x128xf32>
    %190 = arith.addf %188, %189 : vector<8x128xf32>
    %191 = math.tanh %187 : vector<8x128xf32>
    %192 = arith.mulf %164, %191 : vector<8x128xf32>
    %193 = math.tanh %190 : vector<8x128xf32>
    %194 = arith.mulf %184, %193 : vector<8x128xf32>
    %195 = arith.addf %192, %194 : vector<8x128xf32>
    %196 = arith.index_cast %c2_i32 : i32 to index
    %c0_50 = arith.constant 0 : index
    %c0_51 = arith.constant 0 : index
    %197 = vector.load %arg9[%196, %c0_50, %c0_51] : memref<8x8x128xf32, #tpu.memory_space<vmem>>, vector<1x8x128xf32>
    %198 = vector.shape_cast %197 : vector<1x8x128xf32> to vector<8x128xf32>
    %199 = vector.shape_cast %195 : vector<8x128xf32> to vector<1x8x128xf32>
    tpu.vector_store %arg9[%196, %c0_50, %c0_51], %199 {strides = array<i32>} : memref<8x8x128xf32, #tpu.memory_space<vmem>>, vector<1x8x128xf32>,
    %c3_i32 = arith.constant 3 : i32
    %200 = arith.truncf %195 : vector<8x128xf32> to vector<8x128xbf16>
    %cst_52 = arith.constant dense<0.000000e+00> : vector<8x1024xf32>
    %201 = tpu.matmul %200, %13, %cst_52 {dimension_numbers = #tpu.dot_dimension_numbers<[1], [0], [0], [1], [0, 0, 1, 1], [], []>} : vector<8x128xbf16>, vector<128x1024xbf16>, vector<8x1024xf32> -> vector<8x1024xf32>
    %202 = arith.index_cast %c3_i32 : i32 to index
    %c0_53 = arith.constant 0 : index
    %c0_54 = arith.constant 0 : index
    %203 = vector.load %arg13[%202, %c0_53, %c0_54] : memref<8x8x1024xf32, #tpu.memory_space<vmem>>, vector<1x8x1024xf32>
    %204 = vector.shape_cast %203 : vector<1x8x1024xf32> to vector<8x1024xf32>
    %205 = arith.addf %201, %204 : vector<8x1024xf32>
    %206 = vector.extract_strided_slice %205 {offsets = [0, 0], sizes = [8, 128], strides = [1, 1]} : vector<8x1024xf32> to vector<8x128xf32>
    %207 = arith.negf %206 : vector<8x128xf32>
    %208 = math.exp %207 : vector<8x128xf32>
    %cst_55 = arith.constant 1.000000e+00 : f32
    %209 = vector.broadcast %cst_55 : f32 to vector<8x128xf32>
    %210 = arith.addf %209, %208 : vector<8x128xf32>
    %211 = arith.divf %209, %210 : vector<8x128xf32>
    %212 = vector.extract_strided_slice %205 {offsets = [0, 128], sizes = [8, 128], strides = [1, 1]} : vector<8x1024xf32> to vector<8x128xf32>
    %213 = arith.negf %212 : vector<8x128xf32>
    %214 = math.exp %213 : vector<8x128xf32>
    %cst_56 = arith.constant 1.000000e+00 : f32
    %215 = vector.broadcast %cst_56 : f32 to vector<8x128xf32>
    %216 = arith.addf %215, %214 : vector<8x128xf32>
    %217 = arith.divf %215, %216 : vector<8x128xf32>
    %218 = vector.extract_strided_slice %205 {offsets = [0, 256], sizes = [8, 128], strides = [1, 1]} : vector<8x1024xf32> to vector<8x128xf32>
    %219 = math.tanh %218 : vector<8x128xf32>
    %220 = vector.extract_strided_slice %205 {offsets = [0, 384], sizes = [8, 128], strides = [1, 1]} : vector<8x1024xf32> to vector<8x128xf32>
    %221 = arith.negf %220 : vector<8x128xf32>
    %222 = math.exp %221 : vector<8x128xf32>
    %cst_57 = arith.constant 1.000000e+00 : f32
    %223 = vector.broadcast %cst_57 : f32 to vector<8x128xf32>
    %224 = arith.addf %223, %222 : vector<8x128xf32>
    %225 = arith.divf %223, %224 : vector<8x128xf32>
    %226 = vector.extract_strided_slice %205 {offsets = [0, 512], sizes = [8, 128], strides = [1, 1]} : vector<8x1024xf32> to vector<8x128xf32>
    %227 = arith.negf %226 : vector<8x128xf32>
    %228 = math.exp %227 : vector<8x128xf32>
    %cst_58 = arith.constant 1.000000e+00 : f32
    %229 = vector.broadcast %cst_58 : f32 to vector<8x128xf32>
    %230 = arith.addf %229, %228 : vector<8x128xf32>
    %231 = arith.divf %229, %230 : vector<8x128xf32>
    %232 = vector.extract_strided_slice %205 {offsets = [0, 640], sizes = [8, 128], strides = [1, 1]} : vector<8x1024xf32> to vector<8x128xf32>
    %233 = arith.negf %232 : vector<8x128xf32>
    %234 = math.exp %233 : vector<8x128xf32>
    %cst_59 = arith.constant 1.000000e+00 : f32
    %235 = vector.broadcast %cst_59 : f32 to vector<8x128xf32>
    %236 = arith.addf %235, %234 : vector<8x128xf32>
    %237 = arith.divf %235, %236 : vector<8x128xf32>
    %238 = vector.extract_strided_slice %205 {offsets = [0, 768], sizes = [8, 128], strides = [1, 1]} : vector<8x1024xf32> to vector<8x128xf32>
    %239 = math.tanh %238 : vector<8x128xf32>
    %240 = vector.extract_strided_slice %205 {offsets = [0, 896], sizes = [8, 128], strides = [1, 1]} : vector<8x1024xf32> to vector<8x128xf32>
    %241 = arith.negf %240 : vector<8x128xf32>
    %242 = math.exp %241 : vector<8x128xf32>
    %cst_60 = arith.constant 1.000000e+00 : f32
    %243 = vector.broadcast %cst_60 : f32 to vector<8x128xf32>
    %244 = arith.addf %243, %242 : vector<8x128xf32>
    %245 = arith.divf %243, %244 : vector<8x128xf32>
    %246 = arith.mulf %211, %187 : vector<8x128xf32>
    %247 = arith.mulf %217, %219 : vector<8x128xf32>
    %248 = arith.addf %246, %247 : vector<8x128xf32>
    %249 = arith.mulf %231, %190 : vector<8x128xf32>
    %250 = arith.mulf %237, %239 : vector<8x128xf32>
    %251 = arith.addf %249, %250 : vector<8x128xf32>
    %252 = math.tanh %248 : vector<8x128xf32>
    %253 = arith.mulf %225, %252 : vector<8x128xf32>
    %254 = math.tanh %251 : vector<8x128xf32>
    %255 = arith.mulf %245, %254 : vector<8x128xf32>
    %256 = arith.addf %253, %255 : vector<8x128xf32>
    %257 = arith.index_cast %c3_i32 : i32 to index
    %c0_61 = arith.constant 0 : index
    %c0_62 = arith.constant 0 : index
    %258 = vector.load %arg9[%257, %c0_61, %c0_62] : memref<8x8x128xf32, #tpu.memory_space<vmem>>, vector<1x8x128xf32>
    %259 = vector.shape_cast %258 : vector<1x8x128xf32> to vector<8x128xf32>
    %260 = vector.shape_cast %256 : vector<8x128xf32> to vector<1x8x128xf32>
    tpu.vector_store %arg9[%257, %c0_61, %c0_62], %260 {strides = array<i32>} : memref<8x8x128xf32, #tpu.memory_space<vmem>>, vector<1x8x128xf32>,
    %c4_i32 = arith.constant 4 : i32
    %261 = arith.truncf %256 : vector<8x128xf32> to vector<8x128xbf16>
    %cst_63 = arith.constant dense<0.000000e+00> : vector<8x1024xf32>
    %262 = tpu.matmul %261, %13, %cst_63 {dimension_numbers = #tpu.dot_dimension_numbers<[1], [0], [0], [1], [0, 0, 1, 1], [], []>} : vector<8x128xbf16>, vector<128x1024xbf16>, vector<8x1024xf32> -> vector<8x1024xf32>
    %263 = arith.index_cast %c4_i32 : i32 to index
    %c0_64 = arith.constant 0 : index
    %c0_65 = arith.constant 0 : index
    %264 = vector.load %arg13[%263, %c0_64, %c0_65] : memref<8x8x1024xf32, #tpu.memory_space<vmem>>, vector<1x8x1024xf32>
    %265 = vector.shape_cast %264 : vector<1x8x1024xf32> to vector<8x1024xf32>
    %266 = arith.addf %262, %265 : vector<8x1024xf32>
    %267 = vector.extract_strided_slice %266 {offsets = [0, 0], sizes = [8, 128], strides = [1, 1]} : vector<8x1024xf32> to vector<8x128xf32>
    %268 = arith.negf %267 : vector<8x128xf32>
    %269 = math.exp %268 : vector<8x128xf32>
    %cst_66 = arith.constant 1.000000e+00 : f32
    %270 = vector.broadcast %cst_66 : f32 to vector<8x128xf32>
    %271 = arith.addf %270, %269 : vector<8x128xf32>
    %272 = arith.divf %270, %271 : vector<8x128xf32>
    %273 = vector.extract_strided_slice %266 {offsets = [0, 128], sizes = [8, 128], strides = [1, 1]} : vector<8x1024xf32> to vector<8x128xf32>
    %274 = arith.negf %273 : vector<8x128xf32>
    %275 = math.exp %274 : vector<8x128xf32>
    %cst_67 = arith.constant 1.000000e+00 : f32
    %276 = vector.broadcast %cst_67 : f32 to vector<8x128xf32>
    %277 = arith.addf %276, %275 : vector<8x128xf32>
    %278 = arith.divf %276, %277 : vector<8x128xf32>
    %279 = vector.extract_strided_slice %266 {offsets = [0, 256], sizes = [8, 128], strides = [1, 1]} : vector<8x1024xf32> to vector<8x128xf32>
    %280 = math.tanh %279 : vector<8x128xf32>
    %281 = vector.extract_strided_slice %266 {offsets = [0, 384], sizes = [8, 128], strides = [1, 1]} : vector<8x1024xf32> to vector<8x128xf32>
    %282 = arith.negf %281 : vector<8x128xf32>
    %283 = math.exp %282 : vector<8x128xf32>
    %cst_68 = arith.constant 1.000000e+00 : f32
    %284 = vector.broadcast %cst_68 : f32 to vector<8x128xf32>
    %285 = arith.addf %284, %283 : vector<8x128xf32>
    %286 = arith.divf %284, %285 : vector<8x128xf32>
    %287 = vector.extract_strided_slice %266 {offsets = [0, 512], sizes = [8, 128], strides = [1, 1]} : vector<8x1024xf32> to vector<8x128xf32>
    %288 = arith.negf %287 : vector<8x128xf32>
    %289 = math.exp %288 : vector<8x128xf32>
    %cst_69 = arith.constant 1.000000e+00 : f32
    %290 = vector.broadcast %cst_69 : f32 to vector<8x128xf32>
    %291 = arith.addf %290, %289 : vector<8x128xf32>
    %292 = arith.divf %290, %291 : vector<8x128xf32>
    %293 = vector.extract_strided_slice %266 {offsets = [0, 640], sizes = [8, 128], strides = [1, 1]} : vector<8x1024xf32> to vector<8x128xf32>
    %294 = arith.negf %293 : vector<8x128xf32>
    %295 = math.exp %294 : vector<8x128xf32>
    %cst_70 = arith.constant 1.000000e+00 : f32
    %296 = vector.broadcast %cst_70 : f32 to vector<8x128xf32>
    %297 = arith.addf %296, %295 : vector<8x128xf32>
    %298 = arith.divf %296, %297 : vector<8x128xf32>
    %299 = vector.extract_strided_slice %266 {offsets = [0, 768], sizes = [8, 128], strides = [1, 1]} : vector<8x1024xf32> to vector<8x128xf32>
    %300 = math.tanh %299 : vector<8x128xf32>
    %301 = vector.extract_strided_slice %266 {offsets = [0, 896], sizes = [8, 128], strides = [1, 1]} : vector<8x1024xf32> to vector<8x128xf32>
    %302 = arith.negf %301 : vector<8x128xf32>
    %303 = math.exp %302 : vector<8x128xf32>
    %cst_71 = arith.constant 1.000000e+00 : f32
    %304 = vector.broadcast %cst_71 : f32 to vector<8x128xf32>
    %305 = arith.addf %304, %303 : vector<8x128xf32>
    %306 = arith.divf %304, %305 : vector<8x128xf32>
    %307 = arith.mulf %272, %248 : vector<8x128xf32>
    %308 = arith.mulf %278, %280 : vector<8x128xf32>
    %309 = arith.addf %307, %308 : vector<8x128xf32>
    %310 = arith.mulf %292, %251 : vector<8x128xf32>
    %311 = arith.mulf %298, %300 : vector<8x128xf32>
    %312 = arith.addf %310, %311 : vector<8x128xf32>
    %313 = math.tanh %309 : vector<8x128xf32>
    %314 = arith.mulf %286, %313 : vector<8x128xf32>
    %315 = math.tanh %312 : vector<8x128xf32>
    %316 = arith.mulf %306, %315 : vector<8x128xf32>
    %317 = arith.addf %314, %316 : vector<8x128xf32>
    %318 = arith.index_cast %c4_i32 : i32 to index
    %c0_72 = arith.constant 0 : index
    %c0_73 = arith.constant 0 : index
    %319 = vector.load %arg9[%318, %c0_72, %c0_73] : memref<8x8x128xf32, #tpu.memory_space<vmem>>, vector<1x8x128xf32>
    %320 = vector.shape_cast %319 : vector<1x8x128xf32> to vector<8x128xf32>
    %321 = vector.shape_cast %317 : vector<8x128xf32> to vector<1x8x128xf32>
    tpu.vector_store %arg9[%318, %c0_72, %c0_73], %321 {strides = array<i32>} : memref<8x8x128xf32, #tpu.memory_space<vmem>>, vector<1x8x128xf32>,
    %c5_i32 = arith.constant 5 : i32
    %322 = arith.truncf %317 : vector<8x128xf32> to vector<8x128xbf16>
    %cst_74 = arith.constant dense<0.000000e+00> : vector<8x1024xf32>
    %323 = tpu.matmul %322, %13, %cst_74 {dimension_numbers = #tpu.dot_dimension_numbers<[1], [0], [0], [1], [0, 0, 1, 1], [], []>} : vector<8x128xbf16>, vector<128x1024xbf16>, vector<8x1024xf32> -> vector<8x1024xf32>
    %324 = arith.index_cast %c5_i32 : i32 to index
    %c0_75 = arith.constant 0 : index
    %c0_76 = arith.constant 0 : index
    %325 = vector.load %arg13[%324, %c0_75, %c0_76] : memref<8x8x1024xf32, #tpu.memory_space<vmem>>, vector<1x8x1024xf32>
    %326 = vector.shape_cast %325 : vector<1x8x1024xf32> to vector<8x1024xf32>
    %327 = arith.addf %323, %326 : vector<8x1024xf32>
    %328 = vector.extract_strided_slice %327 {offsets = [0, 0], sizes = [8, 128], strides = [1, 1]} : vector<8x1024xf32> to vector<8x128xf32>
    %329 = arith.negf %328 : vector<8x128xf32>
    %330 = math.exp %329 : vector<8x128xf32>
    %cst_77 = arith.constant 1.000000e+00 : f32
    %331 = vector.broadcast %cst_77 : f32 to vector<8x128xf32>
    %332 = arith.addf %331, %330 : vector<8x128xf32>
    %333 = arith.divf %331, %332 : vector<8x128xf32>
    %334 = vector.extract_strided_slice %327 {offsets = [0, 128], sizes = [8, 128], strides = [1, 1]} : vector<8x1024xf32> to vector<8x128xf32>
    %335 = arith.negf %334 : vector<8x128xf32>
    %336 = math.exp %335 : vector<8x128xf32>
    %cst_78 = arith.constant 1.000000e+00 : f32
    %337 = vector.broadcast %cst_78 : f32 to vector<8x128xf32>
    %338 = arith.addf %337, %336 : vector<8x128xf32>
    %339 = arith.divf %337, %338 : vector<8x128xf32>
    %340 = vector.extract_strided_slice %327 {offsets = [0, 256], sizes = [8, 128], strides = [1, 1]} : vector<8x1024xf32> to vector<8x128xf32>
    %341 = math.tanh %340 : vector<8x128xf32>
    %342 = vector.extract_strided_slice %327 {offsets = [0, 384], sizes = [8, 128], strides = [1, 1]} : vector<8x1024xf32> to vector<8x128xf32>
    %343 = arith.negf %342 : vector<8x128xf32>
    %344 = math.exp %343 : vector<8x128xf32>
    %cst_79 = arith.constant 1.000000e+00 : f32
    %345 = vector.broadcast %cst_79 : f32 to vector<8x128xf32>
    %346 = arith.addf %345, %344 : vector<8x128xf32>
    %347 = arith.divf %345, %346 : vector<8x128xf32>
    %348 = vector.extract_strided_slice %327 {offsets = [0, 512], sizes = [8, 128], strides = [1, 1]} : vector<8x1024xf32> to vector<8x128xf32>
    %349 = arith.negf %348 : vector<8x128xf32>
    %350 = math.exp %349 : vector<8x128xf32>
    %cst_80 = arith.constant 1.000000e+00 : f32
    %351 = vector.broadcast %cst_80 : f32 to vector<8x128xf32>
    %352 = arith.addf %351, %350 : vector<8x128xf32>
    %353 = arith.divf %351, %352 : vector<8x128xf32>
    %354 = vector.extract_strided_slice %327 {offsets = [0, 640], sizes = [8, 128], strides = [1, 1]} : vector<8x1024xf32> to vector<8x128xf32>
    %355 = arith.negf %354 : vector<8x128xf32>
    %356 = math.exp %355 : vector<8x128xf32>
    %cst_81 = arith.constant 1.000000e+00 : f32
    %357 = vector.broadcast %cst_81 : f32 to vector<8x128xf32>
    %358 = arith.addf %357, %356 : vector<8x128xf32>
    %359 = arith.divf %357, %358 : vector<8x128xf32>
    %360 = vector.extract_strided_slice %327 {offsets = [0, 768], sizes = [8, 128], strides = [1, 1]} : vector<8x1024xf32> to vector<8x128xf32>
    %361 = math.tanh %360 : vector<8x128xf32>
    %362 = vector.extract_strided_slice %327 {offsets = [0, 896], sizes = [8, 128], strides = [1, 1]} : vector<8x1024xf32> to vector<8x128xf32>
    %363 = arith.negf %362 : vector<8x128xf32>
    %364 = math.exp %363 : vector<8x128xf32>
    %cst_82 = arith.constant 1.000000e+00 : f32
    %365 = vector.broadcast %cst_82 : f32 to vector<8x128xf32>
    %366 = arith.addf %365, %364 : vector<8x128xf32>
    %367 = arith.divf %365, %366 : vector<8x128xf32>
    %368 = arith.mulf %333, %309 : vector<8x128xf32>
    %369 = arith.mulf %339, %341 : vector<8x128xf32>
    %370 = arith.addf %368, %369 : vector<8x128xf32>
    %371 = arith.mulf %353, %312 : vector<8x128xf32>
    %372 = arith.mulf %359, %361 : vector<8x128xf32>
    %373 = arith.addf %371, %372 : vector<8x128xf32>
    %374 = math.tanh %370 : vector<8x128xf32>
    %375 = arith.mulf %347, %374 : vector<8x128xf32>
    %376 = math.tanh %373 : vector<8x128xf32>
    %377 = arith.mulf %367, %376 : vector<8x128xf32>
    %378 = arith.addf %375, %377 : vector<8x128xf32>
    %379 = arith.index_cast %c5_i32 : i32 to index
    %c0_83 = arith.constant 0 : index
    %c0_84 = arith.constant 0 : index
    %380 = vector.load %arg9[%379, %c0_83, %c0_84] : memref<8x8x128xf32, #tpu.memory_space<vmem>>, vector<1x8x128xf32>
    %381 = vector.shape_cast %380 : vector<1x8x128xf32> to vector<8x128xf32>
    %382 = vector.shape_cast %378 : vector<8x128xf32> to vector<1x8x128xf32>
    tpu.vector_store %arg9[%379, %c0_83, %c0_84], %382 {strides = array<i32>} : memref<8x8x128xf32, #tpu.memory_space<vmem>>, vector<1x8x128xf32>,
    %c6_i32 = arith.constant 6 : i32
    %383 = arith.truncf %378 : vector<8x128xf32> to vector<8x128xbf16>
    %cst_85 = arith.constant dense<0.000000e+00> : vector<8x1024xf32>
    %384 = tpu.matmul %383, %13, %cst_85 {dimension_numbers = #tpu.dot_dimension_numbers<[1], [0], [0], [1], [0, 0, 1, 1], [], []>} : vector<8x128xbf16>, vector<128x1024xbf16>, vector<8x1024xf32> -> vector<8x1024xf32>
    %385 = arith.index_cast %c6_i32 : i32 to index
    %c0_86 = arith.constant 0 : index
    %c0_87 = arith.constant 0 : index
    %386 = vector.load %arg13[%385, %c0_86, %c0_87] : memref<8x8x1024xf32, #tpu.memory_space<vmem>>, vector<1x8x1024xf32>
    %387 = vector.shape_cast %386 : vector<1x8x1024xf32> to vector<8x1024xf32>
    %388 = arith.addf %384, %387 : vector<8x1024xf32>
    %389 = vector.extract_strided_slice %388 {offsets = [0, 0], sizes = [8, 128], strides = [1, 1]} : vector<8x1024xf32> to vector<8x128xf32>
    %390 = arith.negf %389 : vector<8x128xf32>
    %391 = math.exp %390 : vector<8x128xf32>
    %cst_88 = arith.constant 1.000000e+00 : f32
    %392 = vector.broadcast %cst_88 : f32 to vector<8x128xf32>
    %393 = arith.addf %392, %391 : vector<8x128xf32>
    %394 = arith.divf %392, %393 : vector<8x128xf32>
    %395 = vector.extract_strided_slice %388 {offsets = [0, 128], sizes = [8, 128], strides = [1, 1]} : vector<8x1024xf32> to vector<8x128xf32>
    %396 = arith.negf %395 : vector<8x128xf32>
    %397 = math.exp %396 : vector<8x128xf32>
    %cst_89 = arith.constant 1.000000e+00 : f32
    %398 = vector.broadcast %cst_89 : f32 to vector<8x128xf32>
    %399 = arith.addf %398, %397 : vector<8x128xf32>
    %400 = arith.divf %398, %399 : vector<8x128xf32>
    %401 = vector.extract_strided_slice %388 {offsets = [0, 256], sizes = [8, 128], strides = [1, 1]} : vector<8x1024xf32> to vector<8x128xf32>
    %402 = math.tanh %401 : vector<8x128xf32>
    %403 = vector.extract_strided_slice %388 {offsets = [0, 384], sizes = [8, 128], strides = [1, 1]} : vector<8x1024xf32> to vector<8x128xf32>
    %404 = arith.negf %403 : vector<8x128xf32>
    %405 = math.exp %404 : vector<8x128xf32>
    %cst_90 = arith.constant 1.000000e+00 : f32
    %406 = vector.broadcast %cst_90 : f32 to vector<8x128xf32>
    %407 = arith.addf %406, %405 : vector<8x128xf32>
    %408 = arith.divf %406, %407 : vector<8x128xf32>
    %409 = vector.extract_strided_slice %388 {offsets = [0, 512], sizes = [8, 128], strides = [1, 1]} : vector<8x1024xf32> to vector<8x128xf32>
    %410 = arith.negf %409 : vector<8x128xf32>
    %411 = math.exp %410 : vector<8x128xf32>
    %cst_91 = arith.constant 1.000000e+00 : f32
    %412 = vector.broadcast %cst_91 : f32 to vector<8x128xf32>
    %413 = arith.addf %412, %411 : vector<8x128xf32>
    %414 = arith.divf %412, %413 : vector<8x128xf32>
    %415 = vector.extract_strided_slice %388 {offsets = [0, 640], sizes = [8, 128], strides = [1, 1]} : vector<8x1024xf32> to vector<8x128xf32>
    %416 = arith.negf %415 : vector<8x128xf32>
    %417 = math.exp %416 : vector<8x128xf32>
    %cst_92 = arith.constant 1.000000e+00 : f32
    %418 = vector.broadcast %cst_92 : f32 to vector<8x128xf32>
    %419 = arith.addf %418, %417 : vector<8x128xf32>
    %420 = arith.divf %418, %419 : vector<8x128xf32>
    %421 = vector.extract_strided_slice %388 {offsets = [0, 768], sizes = [8, 128], strides = [1, 1]} : vector<8x1024xf32> to vector<8x128xf32>
    %422 = math.tanh %421 : vector<8x128xf32>
    %423 = vector.extract_strided_slice %388 {offsets = [0, 896], sizes = [8, 128], strides = [1, 1]} : vector<8x1024xf32> to vector<8x128xf32>
    %424 = arith.negf %423 : vector<8x128xf32>
    %425 = math.exp %424 : vector<8x128xf32>
    %cst_93 = arith.constant 1.000000e+00 : f32
    %426 = vector.broadcast %cst_93 : f32 to vector<8x128xf32>
    %427 = arith.addf %426, %425 : vector<8x128xf32>
    %428 = arith.divf %426, %427 : vector<8x128xf32>
    %429 = arith.mulf %394, %370 : vector<8x128xf32>
    %430 = arith.mulf %400, %402 : vector<8x128xf32>
    %431 = arith.addf %429, %430 : vector<8x128xf32>
    %432 = arith.mulf %414, %373 : vector<8x128xf32>
    %433 = arith.mulf %420, %422 : vector<8x128xf32>
    %434 = arith.addf %432, %433 : vector<8x128xf32>
    %435 = math.tanh %431 : vector<8x128xf32>
    %436 = arith.mulf %408, %435 : vector<8x128xf32>
    %437 = math.tanh %434 : vector<8x128xf32>
    %438 = arith.mulf %428, %437 : vector<8x128xf32>
    %439 = arith.addf %436, %438 : vector<8x128xf32>
    %440 = arith.index_cast %c6_i32 : i32 to index
    %c0_94 = arith.constant 0 : index
    %c0_95 = arith.constant 0 : index
    %441 = vector.load %arg9[%440, %c0_94, %c0_95] : memref<8x8x128xf32, #tpu.memory_space<vmem>>, vector<1x8x128xf32>
    %442 = vector.shape_cast %441 : vector<1x8x128xf32> to vector<8x128xf32>
    %443 = vector.shape_cast %439 : vector<8x128xf32> to vector<1x8x128xf32>
    tpu.vector_store %arg9[%440, %c0_94, %c0_95], %443 {strides = array<i32>} : memref<8x8x128xf32, #tpu.memory_space<vmem>>, vector<1x8x128xf32>,
    %c7_i32 = arith.constant 7 : i32
    %444 = arith.truncf %439 : vector<8x128xf32> to vector<8x128xbf16>
    %cst_96 = arith.constant dense<0.000000e+00> : vector<8x1024xf32>
    %445 = tpu.matmul %444, %13, %cst_96 {dimension_numbers = #tpu.dot_dimension_numbers<[1], [0], [0], [1], [0, 0, 1, 1], [], []>} : vector<8x128xbf16>, vector<128x1024xbf16>, vector<8x1024xf32> -> vector<8x1024xf32>
    %446 = arith.index_cast %c7_i32 : i32 to index
    %c0_97 = arith.constant 0 : index
    %c0_98 = arith.constant 0 : index
    %447 = vector.load %arg13[%446, %c0_97, %c0_98] : memref<8x8x1024xf32, #tpu.memory_space<vmem>>, vector<1x8x1024xf32>
    %448 = vector.shape_cast %447 : vector<1x8x1024xf32> to vector<8x1024xf32>
    %449 = arith.addf %445, %448 : vector<8x1024xf32>
    %450 = vector.extract_strided_slice %449 {offsets = [0, 0], sizes = [8, 128], strides = [1, 1]} : vector<8x1024xf32> to vector<8x128xf32>
    %451 = arith.negf %450 : vector<8x128xf32>
    %452 = math.exp %451 : vector<8x128xf32>
    %cst_99 = arith.constant 1.000000e+00 : f32
    %453 = vector.broadcast %cst_99 : f32 to vector<8x128xf32>
    %454 = arith.addf %453, %452 : vector<8x128xf32>
    %455 = arith.divf %453, %454 : vector<8x128xf32>
    %456 = vector.extract_strided_slice %449 {offsets = [0, 128], sizes = [8, 128], strides = [1, 1]} : vector<8x1024xf32> to vector<8x128xf32>
    %457 = arith.negf %456 : vector<8x128xf32>
    %458 = math.exp %457 : vector<8x128xf32>
    %cst_100 = arith.constant 1.000000e+00 : f32
    %459 = vector.broadcast %cst_100 : f32 to vector<8x128xf32>
    %460 = arith.addf %459, %458 : vector<8x128xf32>
    %461 = arith.divf %459, %460 : vector<8x128xf32>
    %462 = vector.extract_strided_slice %449 {offsets = [0, 256], sizes = [8, 128], strides = [1, 1]} : vector<8x1024xf32> to vector<8x128xf32>
    %463 = math.tanh %462 : vector<8x128xf32>
    %464 = vector.extract_strided_slice %449 {offsets = [0, 384], sizes = [8, 128], strides = [1, 1]} : vector<8x1024xf32> to vector<8x128xf32>
    %465 = arith.negf %464 : vector<8x128xf32>
    %466 = math.exp %465 : vector<8x128xf32>
    %cst_101 = arith.constant 1.000000e+00 : f32
    %467 = vector.broadcast %cst_101 : f32 to vector<8x128xf32>
    %468 = arith.addf %467, %466 : vector<8x128xf32>
    %469 = arith.divf %467, %468 : vector<8x128xf32>
    %470 = vector.extract_strided_slice %449 {offsets = [0, 512], sizes = [8, 128], strides = [1, 1]} : vector<8x1024xf32> to vector<8x128xf32>
    %471 = arith.negf %470 : vector<8x128xf32>
    %472 = math.exp %471 : vector<8x128xf32>
    %cst_102 = arith.constant 1.000000e+00 : f32
    %473 = vector.broadcast %cst_102 : f32 to vector<8x128xf32>
    %474 = arith.addf %473, %472 : vector<8x128xf32>
    %475 = arith.divf %473, %474 : vector<8x128xf32>
    %476 = vector.extract_strided_slice %449 {offsets = [0, 640], sizes = [8, 128], strides = [1, 1]} : vector<8x1024xf32> to vector<8x128xf32>
    %477 = arith.negf %476 : vector<8x128xf32>
    %478 = math.exp %477 : vector<8x128xf32>
    %cst_103 = arith.constant 1.000000e+00 : f32
    %479 = vector.broadcast %cst_103 : f32 to vector<8x128xf32>
    %480 = arith.addf %479, %478 : vector<8x128xf32>
    %481 = arith.divf %479, %480 : vector<8x128xf32>
    %482 = vector.extract_strided_slice %449 {offsets = [0, 768], sizes = [8, 128], strides = [1, 1]} : vector<8x1024xf32> to vector<8x128xf32>
    %483 = math.tanh %482 : vector<8x128xf32>
    %484 = vector.extract_strided_slice %449 {offsets = [0, 896], sizes = [8, 128], strides = [1, 1]} : vector<8x1024xf32> to vector<8x128xf32>
    %485 = arith.negf %484 : vector<8x128xf32>
    %486 = math.exp %485 : vector<8x128xf32>
    %cst_104 = arith.constant 1.000000e+00 : f32
    %487 = vector.broadcast %cst_104 : f32 to vector<8x128xf32>
    %488 = arith.addf %487, %486 : vector<8x128xf32>
    %489 = arith.divf %487, %488 : vector<8x128xf32>
    %490 = arith.mulf %455, %431 : vector<8x128xf32>
    %491 = arith.mulf %461, %463 : vector<8x128xf32>
    %492 = arith.addf %490, %491 : vector<8x128xf32>
    %493 = arith.mulf %475, %434 : vector<8x128xf32>
    %494 = arith.mulf %481, %483 : vector<8x128xf32>
    %495 = arith.addf %493, %494 : vector<8x128xf32>
    %496 = math.tanh %492 : vector<8x128xf32>
    %497 = arith.mulf %469, %496 : vector<8x128xf32>
    %498 = math.tanh %495 : vector<8x128xf32>
    %499 = arith.mulf %489, %498 : vector<8x128xf32>
    %500 = arith.addf %497, %499 : vector<8x128xf32>
    %501 = arith.index_cast %c7_i32 : i32 to index
    %c0_105 = arith.constant 0 : index
    %c0_106 = arith.constant 0 : index
    %502 = vector.load %arg9[%501, %c0_105, %c0_106] : memref<8x8x128xf32, #tpu.memory_space<vmem>>, vector<1x8x128xf32>
    %503 = vector.shape_cast %502 : vector<1x8x128xf32> to vector<8x128xf32>
    %504 = vector.shape_cast %500 : vector<8x128xf32> to vector<1x8x128xf32>
    tpu.vector_store %arg9[%501, %c0_105, %c0_106], %504 {strides = array<i32>} : memref<8x8x128xf32, #tpu.memory_space<vmem>>, vector<1x8x128xf32>,
    %c8_i32 = arith.constant 8 : i32
    %c0_107 = arith.constant 0 : index
    %c0_108 = arith.constant 0 : index
    %505 = vector.load %arg14[%c0_107, %c0_108] : memref<8x128xf32, #tpu.memory_space<vmem>>, vector<8x128xf32>
    tpu.vector_store %arg14[%c0_107, %c0_108], %500 {strides = array<i32>} : memref<8x128xf32, #tpu.memory_space<vmem>>, vector<8x128xf32>,
    %c0_109 = arith.constant 0 : index
    %c0_110 = arith.constant 0 : index
    %506 = vector.load %arg15[%c0_109, %c0_110] : memref<8x128xf32, #tpu.memory_space<vmem>>, vector<8x128xf32>
    tpu.vector_store %arg15[%c0_109, %c0_110], %492 {strides = array<i32>} : memref<8x128xf32, #tpu.memory_space<vmem>>, vector<8x128xf32>,
    %c0_111 = arith.constant 0 : index
    %c0_112 = arith.constant 0 : index
    %507 = vector.load %arg16[%c0_111, %c0_112] : memref<8x128xf32, #tpu.memory_space<vmem>>, vector<8x128xf32>
    tpu.vector_store %arg16[%c0_111, %c0_112], %495 {strides = array<i32>} : memref<8x128xf32, #tpu.memory_space<vmem>>, vector<8x128xf32>,
    %c0_i32_113 = arith.constant 0 : i32
    %508 = arith.cmpi eq, %arg1, %c0_i32_113 : i32
    %509 = arith.extui %508 : i1 to i32
    %c0_i32_114 = arith.constant 0 : i32
    %510 = arith.cmpi ne, %509, %c0_i32_114 : i32
    scf.if %510 {
      %c0_115 = arith.constant 0 : index
      %c0_116 = arith.constant 0 : index
      %511 = vector.load %arg10[%c0_115, %c0_116] : memref<8x128xf32, #tpu.memory_space<vmem>>, vector<8x128xf32>
      tpu.vector_store %arg10[%c0_115, %c0_116], %500 {strides = array<i32>} : memref<8x128xf32, #tpu.memory_space<vmem>>, vector<8x128xf32>,
      %c0_117 = arith.constant 0 : index
      %c0_118 = arith.constant 0 : index
      %512 = vector.load %arg11[%c0_117, %c0_118] : memref<8x128xf32, #tpu.memory_space<vmem>>, vector<8x128xf32>
      tpu.vector_store %arg11[%c0_117, %c0_118], %492 {strides = array<i32>} : memref<8x128xf32, #tpu.memory_space<vmem>>, vector<8x128xf32>,
      %c0_119 = arith.constant 0 : index
      %c0_120 = arith.constant 0 : index
      %513 = vector.load %arg12[%c0_119, %c0_120] : memref<8x128xf32, #tpu.memory_space<vmem>>, vector<8x128xf32>
      tpu.vector_store %arg12[%c0_119, %c0_120], %495 {strides = array<i32>} : memref<8x128xf32, #tpu.memory_space<vmem>>, vector<8x128xf32>,
    } else {
    }
    return
  }
  func.func @transform_0(%arg0: i32, %arg1: i32) -> (i32, i32, i32) {
    %c0_i32 = arith.constant 0 : i32
    %c0_i32_0 = arith.constant 0 : i32
    return %arg1, %arg0, %c0_i32 : i32, i32, i32
  }
  func.func @transform_1(%arg0: i32, %arg1: i32) -> (i32, i32) {
    %c0_i32 = arith.constant 0 : i32
    %c0_i32_0 = arith.constant 0 : i32
    return %arg0, %c0_i32 : i32, i32
  }
  func.func @transform_2(%arg0: i32, %arg1: i32) -> (i32, i32) {
    %c0_i32 = arith.constant 0 : i32
    %c0_i32_0 = arith.constant 0 : i32
    return %arg0, %c0_i32 : i32, i32
  }
  func.func @transform_3(%arg0: i32, %arg1: i32) -> (i32, i32) {
    %c0_i32 = arith.constant 0 : i32
    %c0_i32_0 = arith.constant 0 : i32
    return %arg0, %c0_i32 : i32, i32
  }
  func.func @transform_4(%arg0: i32, %arg1: i32) -> (i32, i32) {
    %c0_i32 = arith.constant 0 : i32
    %c0_i32_0 = arith.constant 0 : i32
    %c0_i32_1 = arith.constant 0 : i32
    return %c0_i32, %c0_i32_0 : i32, i32
  }
  func.func @transform_5(%arg0: i32, %arg1: i32) -> (i32, i32) {
    %c0_i32 = arith.constant 0 : i32
    %c0_i32_0 = arith.constant 0 : i32
    %c0_i32_1 = arith.constant 0 : i32
    return %c0_i32, %c0_i32_0 : i32, i32
  }
  func.func @transform_6(%arg0: i32, %arg1: i32) -> (i32, i32) {
    %c0_i32 = arith.constant 0 : i32
    %c0_i32_0 = arith.constant 0 : i32
    %c0_i32_1 = arith.constant 0 : i32
    return %c0_i32, %c0_i32_0 : i32, i32
  }
  func.func @transform_7(%arg0: i32, %arg1: i32) -> (i32, i32, i32) {
    %c0_i32 = arith.constant 0 : i32
    %c0_i32_0 = arith.constant 0 : i32
    return %arg1, %arg0, %c0_i32 : i32, i32, i32
  }
  func.func @transform_8(%arg0: i32, %arg1: i32) -> (i32, i32) {
    %c0_i32 = arith.constant 0 : i32
    %c0_i32_0 = arith.constant 0 : i32
    return %arg0, %c0_i32 : i32, i32
  }
  func.func @transform_9(%arg0: i32, %arg1: i32) -> (i32, i32) {
    %c0_i32 = arith.constant 0 : i32
    %c0_i32_0 = arith.constant 0 : i32
    return %arg0, %c0_i32 : i32, i32
  }
  func.func @transform_10(%arg0: i32, %arg1: i32) -> (i32, i32) {
    %c0_i32 = arith.constant 0 : i32
    %c0_i32_0 = arith.constant 0 : i32
    return %arg0, %c0_i32 : i32, i32
  }
}

module attributes {stable_mosaic.version = 11 : i64} {
  func.func @_cerebral_fused_kernel(%arg0: i32, %arg1: i32, %arg2: memref<8x8x128xf32, #tpu.memory_space<vmem>>, %arg3: memref<8x128xf32, #tpu.memory_space<vmem>>, %arg4: memref<8x128xf32, #tpu.memory_space<vmem>>, %arg5: memref<8x128xf32, #tpu.memory_space<vmem>>, %arg6: memref<128x1024xbf16, #tpu.memory_space<vmem>>, %arg7: memref<128x1024xbf16, #tpu.memory_space<vmem>>, %arg8: memref<1x1024xf32, #tpu.memory_space<vmem>>, %arg9: memref<8x8x128xf32, #tpu.memory_space<vmem>>, %arg10: memref<8x128xf32, #tpu.memory_space<vmem>>, %arg11: memref<8x128xf32, #tpu.memory_space<vmem>>, %arg12: memref<8x128xf32, #tpu.memory_space<vmem>>, %arg13: memref<8x8x1024xf32, #tpu.memory_space<vmem>>, %arg14: memref<8x128xf32, #tpu.memory_space<vmem>>, %arg15: memref<8x128xf32, #tpu.memory_space<vmem>>, %arg16: memref<8x128xf32, #tpu.memory_space<vmem>>) attributes {dimension_semantics = [#tpu.dimension_semantics<parallel>, #tpu.dimension_semantics<arbitrary>], iteration_bounds = array<i64: 2, 1>, scalar_prefetch = 0 : i64, scratch_operands = 4 : i64, tpu.core_type = #tpu.core_type<tc>, window_params = [{transform_indices = @transform_0, window_bounds = array<i64: 8, 8, 128>}, {transform_indices = @transform_1, window_bounds = array<i64: 8, 128>}, {transform_indices = @transform_2, window_bounds = array<i64: 8, 128>}, {transform_indices = @transform_3, window_bounds = array<i64: 8, 128>}, {pipeline_mode = #tpu.pipeline_mode<synchronous>, transform_indices = @transform_4, window_bounds = array<i64: 128, 1024>}, {pipeline_mode = #tpu.pipeline_mode<synchronous>, transform_indices = @transform_5, window_bounds = array<i64: 128, 1024>}, {pipeline_mode = #tpu.pipeline_mode<synchronous>, transform_indices = @transform_6, window_bounds = array<i64: 1, 1024>}, {transform_indices = @transform_7, window_bounds = array<i64: 8, 8, 128>}, {transform_indices = @transform_8, window_bounds = array<i64: 8, 128>}, {transform_indices = @transform_9, window_bounds = array<i64: 8, 128>}, {transform_indices = @transform_10, window_bounds = array<i64: 8, 128>}]} {
    %c0_i32 = arith.constant 0 : i32
    %0 = arith.cmpi eq, %arg1, %c0_i32 : i32
    %1 = arith.extui %0 : i1 to i32
    %c0_i32_0 = arith.constant 0 : i32
    %2 = arith.cmpi ne, %1, %c0_i32_0 : i32
    scf.if %2 {
      %c0_115 = arith.constant 0 : index
      %c0_116 = arith.constant 0 : index
      %511 = vector.load %arg3[%c0_115, %c0_116] : memref<8x128xf32, #tpu.memory_space<vmem>>, vector<8x128xf32>
      %c0_117 = arith.constant 0 : index
      %c0_118 = arith.constant 0 : index
      %512 = vector.load %arg14[%c0_117, %c0_118] : memref<8x128xf32, #tpu.memory_space<vmem>>, vector<8x128xf32>
      tpu.vector_store %arg14[%c0_117, %c0_118], %511 {strides = array<i32>} : memref<8x128xf32, #tpu.memory_space<vmem>>, vector<8x128xf32>,
      %c0_119 = arith.constant 0 : index
      %c0_120 = arith.constant 0 : index
      %513 = vector.load %arg4[%c0_119, %c0_120] : memref<8x128xf32, #tpu.memory_space<vmem>>, vector<8x128xf32>
      %c0_121 = arith.constant 0 : index
      %c0_122 = arith.constant 0 : index
      %514 = vector.load %arg15[%c0_121, %c0_122] : memref<8x128xf32, #tpu.memory_space<vmem>>, vector<8x128xf32>
      tpu.vector_store %arg15[%c0_121, %c0_122], %513 {strides = array<i32>} : memref<8x128xf32, #tpu.memory_space<vmem>>, vector<8x128xf32>,
      %c0_123 = arith.constant 0 : index
      %c0_124 = arith.constant 0 : index
      %515 = vector.load %arg5[%c0_123, %c0_124] : memref<8x128xf32, #tpu.memory_space<vmem>>, vector<8x128xf32>
      %c0_125 = arith.constant 0 : index
      %c0_126 = arith.constant 0 : index
      %516 = vector.load %arg16[%c0_125, %c0_126] : memref<8x128xf32, #tpu.memory_space<vmem>>, vector<8x128xf32>
      tpu.vector_store %arg16[%c0_125, %c0_126], %515 {strides = array<i32>} : memref<8x128xf32, #tpu.memory_space<vmem>>, vector<8x128xf32>,
    } else {
    }
    %c0 = arith.constant 0 : index
    %c0_1 = arith.constant 0 : index
    %c0_2 = arith.constant 0 : index
    %3 = vector.load %arg2[%c0, %c0_1, %c0_2] : memref<8x8x128xf32, #tpu.memory_space<vmem>>, vector<8x8x128xf32>
    %4 = vector.shape_cast %3 : vector<8x8x128xf32> to vector<64x128xf32>
    %5 = arith.truncf %4 : vector<64x128xf32> to vector<64x128xbf16>
    %c0_3 = arith.constant 0 : index
    %c0_4 = arith.constant 0 : index
    %6 = vector.load %arg6[%c0_3, %c0_4] : memref<128x1024xbf16, #tpu.memory_space<vmem>>, vector<128x1024xbf16>
    %cst = arith.constant dense<0.000000e+00> : vector<64x1024xf32>
    %7 = tpu.matmul %5, %6, %cst {dimension_numbers = #tpu.dot_dimension_numbers<[1], [0], [0], [1], [0, 0, 1, 1], [], []>} : vector<64x128xbf16>, vector<128x1024xbf16>, vector<64x1024xf32> -> vector<64x1024xf32>
    %c0_5 = arith.constant 0 : index
    %c0_6 = arith.constant 0 : index
    %8 = vector.load %arg8[%c0_5, %c0_6] : memref<1x1024xf32, #tpu.memory_space<vmem>>, vector<1x1024xf32>
    %9 = vector.broadcast %8 : vector<1x1024xf32> to vector<64x1024xf32>
    %10 = arith.addf %7, %9 : vector<64x1024xf32>
    %11 = vector.shape_cast %10 : vector<64x1024xf32> to vector<8x8x1024xf32>
    %c0_7 = arith.constant 0 : index
    %c0_8 = arith.constant 0 : index
    %c0_9 = arith.constant 0 : index
    %12 = vector.load %arg13[%c0_7, %c0_8, %c0_9] : memref<8x8x1024xf32, #tpu.memory_space<vmem>>, vector<8x8x1024xf32>
    tpu.vector_store %arg13[%c0_7, %c0_8, %c0_9], %11 {strides = array<i32>} : memref<8x8x1024xf32, #tpu.memory_space<vmem>>, vector<8x8x1024xf32>,
    %c0_10 = arith.constant 0 : index
    %c0_11 = arith.constant 0 : index
    %13 = vector.load %arg7[%c0_10, %c0_11] : memref<128x1024xbf16, #tpu.memory_space<vmem>>, vector<128x1024xbf16>
    %c0_12 = arith.constant 0 : index
    %c0_13 = arith.constant 0 : index
    %14 = vector.load %arg14[%c0_12, %c0_13] : memref<8x128xf32, #tpu.memory_space<vmem>>, vector<8x128xf32>
    %c0_14 = arith.constant 0 : index
    %c0_15 = arith.constant 0 : index
    %15 = vector.load %arg15[%c0_14, %c0_15] : memref<8x128xf32, #tpu.memory_space<vmem>>, vector<8x128xf32>
    %c0_16 = arith.constant 0 : index
    %c0_17 = arith.constant 0 : index
    %16 = vector.load %arg16[%c0_16, %c0_17] : memref<8x128xf32, #tpu.memory_space<vmem>>, vector<8x128xf32>
    %c0_i32_18 = arith.constant 0 : i32
    %17 = arith.truncf %14 : vector<8x128xf32> to vector<8x128xbf16>
    %cst_19 = arith.constant dense<0.000000e+00> : vector<8x1024xf32>
    %18 = tpu.matmul %17, %13, %cst_19 {dimension_numbers = #tpu.dot_dimension_numbers<[1], [0], [0], [1], [0, 0, 1, 1], [], []>} : vector<8x128xbf16>, vector<128x1024xbf16>, vector<8x1024xf32> -> vector<8x1024xf32>
    %19 = arith.index_cast %c0_i32_18 : i32 to index
    %c0_20 = arith.constant 0 : index
    %c0_21 = arith.constant 0 : index
    %20 = vector.load %arg13[%19, %c0_20, %c0_21] : memref<8x8x1024xf32, #tpu.memory_space<vmem>>, vector<1x8x1024xf32>
    %21 = vector.shape_cast %20 : vector<1x8x1024xf32> to vector<8x1024xf32>
    %22 = arith.addf %18, %21 : vector<8x1024xf32>
    %23 = vector.extract_strided_slice %22 {offsets = [0, 0], sizes = [8, 128], strides = [1, 1]} : vector<8x1024xf32> to vector<8x128xf32>
    %24 = arith.negf %23 : vector<8x128xf32>
    %25 = math.exp %24 : vector<8x128xf32>
    %cst_22 = arith.constant 1.000000e+00 : f32
    %26 = vector.broadcast %cst_22 : f32 to vector<8x128xf32>
    %27 = arith.addf %26, %25 : vector<8x128xf32>
    %28 = arith.divf %26, %27 : vector<8x128xf32>
    %29 = vector.extract_strided_slice %22 {offsets = [0, 128], sizes = [8, 128], strides = [1, 1]} : vector<8x1024xf32> to vector<8x128xf32>
    %30 = arith.negf %29 : vector<8x128xf32>
    %31 = math.exp %30 : vector<8x128xf32>
    %cst_23 = arith.constant 1.000000e+00 : f32
    %32 = vector.broadcast %cst_23 : f32 to vector<8x128xf32>
    %33 = arith.addf %32, %31 : vector<8x128xf32>
    %34 = arith.divf %32, %33 : vector<8x128xf32>
    %35 = vector.extract_strided_slice %22 {offsets = [0, 256], sizes = [8, 128], strides = [1, 1]} : vector<8x1024xf32> to vector<8x128xf32>
    %36 = math.tanh %35 : vector<8x128xf32>
    %37 = vector.extract_strided_slice %22 {offsets = [0, 384], sizes = [8, 128], strides = [1, 1]} : vector<8x1024xf32> to vector<8x128xf32>
    %38 = arith.negf %37 : vector<8x128xf32>
    %39 = math.exp %38 : vector<8x128xf32>
    %cst_24 = arith.constant 1.000000e+00 : f32
    %40 = vector.broadcast %cst_24 : f32 to vector<8x128xf32>
    %41 = arith.addf %40, %39 : vector<8x128xf32>
    %42 = arith.divf %40, %41 : vector<8x128xf32>
    %43 = vector.extract_strided_slice %22 {offsets = [0, 512], sizes = [8, 128], strides = [1, 1]} : vector<8x1024xf32> to vector<8x128xf32>
    %44 = arith.negf %43 : vector<8x128xf32>
    %45 = math.exp %44 : vector<8x128xf32>
    %cst_25 = arith.constant 1.000000e+00 : f32
    %46 = vector.broadcast %cst_25 : f32 to vector<8x128xf32>
    %47 = arith.addf %46, %45 : vector<8x128xf32>
    %48 = arith.divf %46, %47 : vector<8x128xf32>
    %49 = vector.extract_strided_slice %22 {offsets = [0, 640], sizes = [8, 128], strides = [1, 1]} : vector<8x1024xf32> to vector<8x128xf32>
    %50 = arith.negf %49 : vector<8x128xf32>
    %51 = math.exp %50 : vector<8x128xf32>
    %cst_26 = arith.constant 1.000000e+00 : f32
    %52 = vector.broadcast %cst_26 : f32 to vector<8x128xf32>
    %53 = arith.addf %52, %51 : vector<8x128xf32>
    %54 = arith.divf %52, %53 : vector<8x128xf32>
    %55 = vector.extract_strided_slice %22 {offsets = [0, 768], sizes = [8, 128], strides = [1, 1]} : vector<8x1024xf32> to vector<8x128xf32>
    %56 = math.tanh %55 : vector<8x128xf32>
    %57 = vector.extract_strided_slice %22 {offsets = [0, 896], sizes = [8, 128], strides = [1, 1]} : vector<8x1024xf32> to vector<8x128xf32>
    %58 = arith.negf %57 : vector<8x128xf32>
    %59 = math.exp %58 : vector<8x128xf32>
    %cst_27 = arith.constant 1.000000e+00 : f32
    %60 = vector.broadcast %cst_27 : f32 to vector<8x128xf32>
    %61 = arith.addf %60, %59 : vector<8x128xf32>
    %62 = arith.divf %60, %61 : vector<8x128xf32>
    %63 = arith.mulf %28, %15 : vector<8x128xf32>
    %64 = arith.mulf %34, %36 : vector<8x128xf32>
    %65 = arith.addf %63, %64 : vector<8x128xf32>
    %66 = arith.mulf %48, %16 : vector<8x128xf32>
    %67 = arith.mulf %54, %56 : vector<8x128xf32>
    %68 = arith.addf %66, %67 : vector<8x128xf32>
    %69 = math.tanh %65 : vector<8x128xf32>
    %70 = arith.mulf %42, %69 : vector<8x128xf32>
    %71 = math.tanh %68 : vector<8x128xf32>
    %72 = arith.mulf %62, %71 : vector<8x128xf32>
    %73 = arith.addf %70, %72 : vector<8x128xf32>
    %74 = arith.index_cast %c0_i32_18 : i32 to index
    %c0_28 = arith.constant 0 : index
    %c0_29 = arith.constant 0 : index
    %75 = vector.load %arg9[%74, %c0_28, %c0_29] : memref<8x8x128xf32, #tpu.memory_space<vmem>>, vector<1x8x128xf32>
    %76 = vector.shape_cast %75 : vector<1x8x128xf32> to vector<8x128xf32>
    %77 = vector.shape_cast %73 : vector<8x128xf32> to vector<1x8x128xf32>
    tpu.vector_store %arg9[%74, %c0_28, %c0_29], %77 {strides = array<i32>} : memref<8x8x128xf32, #tpu.memory_space<vmem>>, vector<1x8x128xf32>,
    %c1_i32 = arith.constant 1 : i32
    %78 = arith.truncf %73 : vector<8x128xf32> to vector<8x128xbf16>
    %cst_30 = arith.constant dense<0.000000e+00> : vector<8x1024xf32>
    %79 = tpu.matmul %78, %13, %cst_30 {dimension_numbers = #tpu.dot_dimension_numbers<[1], [0], [0], [1], [0, 0, 1, 1], [], []>} : vector<8x128xbf16>, vector<128x1024xbf16>, vector<8x1024xf32> -> vector<8x1024xf32>
    %80 = arith.index_cast %c1_i32 : i32 to index
    %c0_31 = arith.constant 0 : index
    %c0_32 = arith.constant 0 : index
    %81 = vector.load %arg13[%80, %c0_31, %c0_32] : memref<8x8x1024xf32, #tpu.memory_space<vmem>>, vector<1x8x1024xf32>
    %82 = vector.shape_cast %81 : vector<1x8x1024xf32> to vector<8x1024xf32>
    %83 = arith.addf %79, %82 : vector<8x1024xf32>
    %84 = vector.extract_strided_slice %83 {offsets = [0, 0], sizes = [8, 128], strides = [1, 1]} : vector<8x1024xf32> to vector<8x128xf32>
    %85 = arith.negf %84 : vector<8x128xf32>
    %86 = math.exp %85 : vector<8x128xf32>
    %cst_33 = arith.constant 1.000000e+00 : f32
    %87 = vector.broadcast %cst_33 : f32 to vector<8x128xf32>
    %88 = arith.addf %87, %86 : vector<8x128xf32>
    %89 = arith.divf %87, %88 : vector<8x128xf32>
    %90 = vector.extract_strided_slice %83 {offsets = [0, 128], sizes = [8, 128], strides = [1, 1]} : vector<8x1024xf32> to vector<8x128xf32>
    %91 = arith.negf %90 : vector<8x128xf32>
    %92 = math.exp %91 : vector<8x128xf32>
    %cst_34 = arith.constant 1.000000e+00 : f32
    %93 = vector.broadcast %cst_34 : f32 to vector<8x128xf32>
    %94 = arith.addf %93, %92 : vector<8x128xf32>
    %95 = arith.divf %93, %94 : vector<8x128xf32>
    %96 = vector.extract_strided_slice %83 {offsets = [0, 256], sizes = [8, 128], strides = [1, 1]} : vector<8x1024xf32> to vector<8x128xf32>
    %97 = math.tanh %96 : vector<8x128xf32>
    %98 = vector.extract_strided_slice %83 {offsets = [0, 384], sizes = [8, 128], strides = [1, 1]} : vector<8x1024xf32> to vector<8x128xf32>
    %99 = arith.negf %98 : vector<8x128xf32>
    %100 = math.exp %99 : vector<8x128xf32>
    %cst_35 = arith.constant 1.000000e+00 : f32
    %101 = vector.broadcast %cst_35 : f32 to vector<8x128xf32>
    %102 = arith.addf %101, %100 : vector<8x128xf32>
    %103 = arith.divf %101, %102 : vector<8x128xf32>
    %104 = vector.extract_strided_slice %83 {offsets = [0, 512], sizes = [8, 128], strides = [1, 1]} : vector<8x1024xf32> to vector<8x128xf32>
    %105 = arith.negf %104 : vector<8x128xf32>
    %106 = math.exp %105 : vector<8x128xf32>
    %cst_36 = arith.constant 1.000000e+00 : f32
    %107 = vector.broadcast %cst_36 : f32 to vector<8x128xf32>
    %108 = arith.addf %107, %106 : vector<8x128xf32>
    %109 = arith.divf %107, %108 : vector<8x128xf32>
    %110 = vector.extract_strided_slice %83 {offsets = [0, 640], sizes = [8, 128], strides = [1, 1]} : vector<8x1024xf32> to vector<8x128xf32>
    %111 = arith.negf %110 : vector<8x128xf32>
    %112 = math.exp %111 : vector<8x128xf32>
    %cst_37 = arith.constant 1.000000e+00 : f32
    %113 = vector.broadcast %cst_37 : f32 to vector<8x128xf32>
    %114 = arith.addf %113, %112 : vector<8x128xf32>
    %115 = arith.divf %113, %114 : vector<8x128xf32>
    %116 = vector.extract_strided_slice %83 {offsets = [0, 768], sizes = [8, 128], strides = [1, 1]} : vector<8x1024xf32> to vector<8x128xf32>
    %117 = math.tanh %116 : vector<8x128xf32>
    %118 = vector.extract_strided_slice %83 {offsets = [0, 896], sizes = [8, 128], strides = [1, 1]} : vector<8x1024xf32> to vector<8x128xf32>
    %119 = arith.negf %118 : vector<8x128xf32>
    %120 = math.exp %119 : vector<8x128xf32>
    %cst_38 = arith.constant 1.000000e+00 : f32
    %121 = vector.broadcast %cst_38 : f32 to vector<8x128xf32>
    %122 = arith.addf %121, %120 : vector<8x128xf32>
    %123 = arith.divf %121, %122 : vector<8x128xf32>
    %124 = arith.mulf %89, %65 : vector<8x128xf32>
    %125 = arith.mulf %95, %97 : vector<8x128xf32>
    %126 = arith.addf %124, %125 : vector<8x128xf32>
    %127 = arith.mulf %109, %68 : vector<8x128xf32>
    %128 = arith.mulf %115, %117 : vector<8x128xf32>
    %129 = arith.addf %127, %128 : vector<8x128xf32>
    %130 = math.tanh %126 : vector<8x128xf32>
    %131 = arith.mulf %103, %130 : vector<8x128xf32>
    %132 = math.tanh %129 : vector<8x128xf32>
    %133 = arith.mulf %123, %132 : vector<8x128xf32>
    %134 = arith.addf %131, %133 : vector<8x128xf32>
    %135 = arith.index_cast %c1_i32 : i32 to index
    %c0_39 = arith.constant 0 : index
    %c0_40 = arith.constant 0 : index
    %136 = vector.load %arg9[%135, %c0_39, %c0_40] : memref<8x8x128xf32, #tpu.memory_space<vmem>>, vector<1x8x128xf32>
    %137 = vector.shape_cast %136 : vector<1x8x128xf32> to vector<8x128xf32>
    %138 = vector.shape_cast %134 : vector<8x128xf32> to vector<1x8x128xf32>
    tpu.vector_store %arg9[%135, %c0_39, %c0_40], %138 {strides = array<i32>} : memref<8x8x128xf32, #tpu.memory_space<vmem>>, vector<1x8x128xf32>,
    %c2_i32 = arith.constant 2 : i32
    %139 = arith.truncf %134 : vector<8x128xf32> to vector<8x128xbf16>
    %cst_41 = arith.constant dense<0.000000e+00> : vector<8x1024xf32>
    %140 = tpu.matmul %139, %13, %cst_41 {dimension_numbers = #tpu.dot_dimension_numbers<[1], [0], [0], [1], [0, 0, 1, 1], [], []>} : vector<8x128xbf16>, vector<128x1024xbf16>, vector<8x1024xf32> -> vector<8x1024xf32>
    %141 = arith.index_cast %c2_i32 : i32 to index
    %c0_42 = arith.constant 0 : index
    %c0_43 = arith.constant 0 : index
    %142 = vector.load %arg13[%141, %c0_42, %c0_43] : memref<8x8x1024xf32, #tpu.memory_space<vmem>>, vector<1x8x1024xf32>
    %143 = vector.shape_cast %142 : vector<1x8x1024xf32> to vector<8x1024xf32>
    %144 = arith.addf %140, %143 : vector<8x1024xf32>
    %145 = vector.extract_strided_slice %144 {offsets = [0, 0], sizes = [8, 128], strides = [1, 1]} : vector<8x1024xf32> to vector<8x128xf32>
    %146 = arith.negf %145 : vector<8x128xf32>
    %147 = math.exp %146 : vector<8x128xf32>
    %cst_44 = arith.constant 1.000000e+00 : f32
    %148 = vector.broadcast %cst_44 : f32 to vector<8x128xf32>
    %149 = arith.addf %148, %147 : vector<8x128xf32>
    %150 = arith.divf %148, %149 : vector<8x128xf32>
    %151 = vector.extract_strided_slice %144 {offsets = [0, 128], sizes = [8, 128], strides = [1, 1]} : vector<8x1024xf32> to vector<8x128xf32>
    %152 = arith.negf %151 : vector<8x128xf32>
    %153 = math.exp %152 : vector<8x128xf32>
    %cst_45 = arith.constant 1.000000e+00 : f32
    %154 = vector.broadcast %cst_45 : f32 to vector<8x128xf32>
    %155 = arith.addf %154, %153 : vector<8x128xf32>
    %156 = arith.divf %154, %155 : vector<8x128xf32>
    %157 = vector.extract_strided_slice %144 {offsets = [0, 256], sizes = [8, 128], strides = [1, 1]} : vector<8x1024xf32> to vector<8x128xf32>
    %158 = math.tanh %157 : vector<8x128xf32>
    %159 = vector.extract_strided_slice %144 {offsets = [0, 384], sizes = [8, 128], strides = [1, 1]} : vector<8x1024xf32> to vector<8x128xf32>
    %160 = arith.negf %159 : vector<8x128xf32>
    %161 = math.exp %160 : vector<8x128xf32>
    %cst_46 = arith.constant 1.000000e+00 : f32
    %162 = vector.broadcast %cst_46 : f32 to vector<8x128xf32>
    %163 = arith.addf %162, %161 : vector<8x128xf32>
    %164 = arith.divf %162, %163 : vector<8x128xf32>
    %165 = vector.extract_strided_slice %144 {offsets = [0, 512], sizes = [8, 128], strides = [1, 1]} : vector<8x1024xf32> to vector<8x128xf32>
    %166 = arith.negf %165 : vector<8x128xf32>
    %167 = math.exp %166 : vector<8x128xf32>
    %cst_47 = arith.constant 1.000000e+00 : f32
    %168 = vector.broadcast %cst_47 : f32 to vector<8x128xf32>
    %169 = arith.addf %168, %167 : vector<8x128xf32>
    %170 = arith.divf %168, %169 : vector<8x128xf32>
    %171 = vector.extract_strided_slice %144 {offsets = [0, 640], sizes = [8, 128], strides = [1, 1]} : vector<8x1024xf32> to vector<8x128xf32>
    %172 = arith.negf %171 : vector<8x128xf32>
    %173 = math.exp %172 : vector<8x128xf32>
    %cst_48 = arith.constant 1.000000e+00 : f32
    %174 = vector.broadcast %cst_48 : f32 to vector<8x128xf32>
    %175 = arith.addf %174, %173 : vector<8x128xf32>
    %176 = arith.divf %174, %175 : vector<8x128xf32>
    %177 = vector.extract_strided_slice %144 {offsets = [0, 768], sizes = [8, 128], strides = [1, 1]} : vector<8x1024xf32> to vector<8x128xf32>
    %178 = math.tanh %177 : vector<8x128xf32>
    %179 = vector.extract_strided_slice %144 {offsets = [0, 896], sizes = [8, 128], strides = [1, 1]} : vector<8x1024xf32> to vector<8x128xf32>
    %180 = arith.negf %179 : vector<8x128xf32>
    %181 = math.exp %180 : vector<8x128xf32>
    %cst_49 = arith.constant 1.000000e+00 : f32
    %182 = vector.broadcast %cst_49 : f32 to vector<8x128xf32>
    %183 = arith.addf %182, %181 : vector<8x128xf32>
    %184 = arith.divf %182, %183 : vector<8x128xf32>
    %185 = arith.mulf %150, %126 : vector<8x128xf32>
    %186 = arith.mulf %156, %158 : vector<8x128xf32>
    %187 = arith.addf %185, %186 : vector<8x128xf32>
    %188 = arith.mulf %170, %129 : vector<8x128xf32>
    %189 = arith.mulf %176, %178 : vector<8x128xf32>
    %190 = arith.addf %188, %189 : vector<8x128xf32>
    %191 = math.tanh %187 : vector<8x128xf32>
    %192 = arith.mulf %164, %191 : vector<8x128xf32>
    %193 = math.tanh %190 : vector<8x128xf32>
    %194 = arith.mulf %184, %193 : vector<8x128xf32>
    %195 = arith.addf %192, %194 : vector<8x128xf32>
    %196 = arith.index_cast %c2_i32 : i32 to index
    %c0_50 = arith.constant 0 : index
    %c0_51 = arith.constant 0 : index
    %197 = vector.load %arg9[%196, %c0_50, %c0_51] : memref<8x8x128xf32, #tpu.memory_space<vmem>>, vector<1x8x128xf32>
    %198 = vector.shape_cast %197 : vector<1x8x128xf32> to vector<8x128xf32>
    %199 = vector.shape_cast %195 : vector<8x128xf32> to vector<1x8x128xf32>
    tpu.vector_store %arg9[%196, %c0_50, %c0_51], %199 {strides = array<i32>} : memref<8x8x128xf32, #tpu.memory_space<vmem>>, vector<1x8x128xf32>,
    %c3_i32 = arith.constant 3 : i32
    %200 = arith.truncf %195 : vector<8x128xf32> to vector<8x128xbf16>
    %cst_52 = arith.constant dense<0.000000e+00> : vector<8x1024xf32>
    %201 = tpu.matmul %200, %13, %cst_52 {dimension_numbers = #tpu.dot_dimension_numbers<[1], [0], [0], [1], [0, 0, 1, 1], [], []>} : vector<8x128xbf16>, vector<128x1024xbf16>, vector<8x1024xf32> -> vector<8x1024xf32>
    %202 = arith.index_cast %c3_i32 : i32 to index
    %c0_53 = arith.constant 0 : index
    %c0_54 = arith.constant 0 : index
    %203 = vector.load %arg13[%202, %c0_53, %c0_54] : memref<8x8x1024xf32, #tpu.memory_space<vmem>>, vector<1x8x1024xf32>
    %204 = vector.shape_cast %203 : vector<1x8x1024xf32> to vector<8x1024xf32>
    %205 = arith.addf %201, %204 : vector<8x1024xf32>
    %206 = vector.extract_strided_slice %205 {offsets = [0, 0], sizes = [8, 128], strides = [1, 1]} : vector<8x1024xf32> to vector<8x128xf32>
    %207 = arith.negf %206 : vector<8x128xf32>
    %208 = math.exp %207 : vector<8x128xf32>
    %cst_55 = arith.constant 1.000000e+00 : f32
    %209 = vector.broadcast %cst_55 : f32 to vector<8x128xf32>
    %210 = arith.addf %209, %208 : vector<8x128xf32>
    %211 = arith.divf %209, %210 : vector<8x128xf32>
    %212 = vector.extract_strided_slice %205 {offsets = [0, 128], sizes = [8, 128], strides = [1, 1]} : vector<8x1024xf32> to vector<8x128xf32>
    %213 = arith.negf %212 : vector<8x128xf32>
    %214 = math.exp %213 : vector<8x128xf32>
    %cst_56 = arith.constant 1.000000e+00 : f32
    %215 = vector.broadcast %cst_56 : f32 to vector<8x128xf32>
    %216 = arith.addf %215, %214 : vector<8x128xf32>
    %217 = arith.divf %215, %216 : vector<8x128xf32>
    %218 = vector.extract_strided_slice %205 {offsets = [0, 256], sizes = [8, 128], strides = [1, 1]} : vector<8x1024xf32> to vector<8x128xf32>
    %219 = math.tanh %218 : vector<8x128xf32>
    %220 = vector.extract_strided_slice %205 {offsets = [0, 384], sizes = [8, 128], strides = [1, 1]} : vector<8x1024xf32> to vector<8x128xf32>
    %221 = arith.negf %220 : vector<8x128xf32>
    %222 = math.exp %221 : vector<8x128xf32>
    %cst_57 = arith.constant 1.000000e+00 : f32
    %223 = vector.broadcast %cst_57 : f32 to vector<8x128xf32>
    %224 = arith.addf %223, %222 : vector<8x128xf32>
    %225 = arith.divf %223, %224 : vector<8x128xf32>
    %226 = vector.extract_strided_slice %205 {offsets = [0, 512], sizes = [8, 128], strides = [1, 1]} : vector<8x1024xf32> to vector<8x128xf32>
    %227 = arith.negf %226 : vector<8x128xf32>
    %228 = math.exp %227 : vector<8x128xf32>
    %cst_58 = arith.constant 1.000000e+00 : f32
    %229 = vector.broadcast %cst_58 : f32 to vector<8x128xf32>
    %230 = arith.addf %229, %228 : vector<8x128xf32>
    %231 = arith.divf %229, %230 : vector<8x128xf32>
    %232 = vector.extract_strided_slice %205 {offsets = [0, 640], sizes = [8, 128], strides = [1, 1]} : vector<8x1024xf32> to vector<8x128xf32>
    %233 = arith.negf %232 : vector<8x128xf32>
    %234 = math.exp %233 : vector<8x128xf32>
    %cst_59 = arith.constant 1.000000e+00 : f32
    %235 = vector.broadcast %cst_59 : f32 to vector<8x128xf32>
    %236 = arith.addf %235, %234 : vector<8x128xf32>
    %237 = arith.divf %235, %236 : vector<8x128xf32>
    %238 = vector.extract_strided_slice %205 {offsets = [0, 768], sizes = [8, 128], strides = [1, 1]} : vector<8x1024xf32> to vector<8x128xf32>
    %239 = math.tanh %238 : vector<8x128xf32>
    %240 = vector.extract_strided_slice %205 {offsets = [0, 896], sizes = [8, 128], strides = [1, 1]} : vector<8x1024xf32> to vector<8x128xf32>
    %241 = arith.negf %240 : vector<8x128xf32>
    %242 = math.exp %241 : vector<8x128xf32>
    %cst_60 = arith.constant 1.000000e+00 : f32
    %243 = vector.broadcast %cst_60 : f32 to vector<8x128xf32>
    %244 = arith.addf %243, %242 : vector<8x128xf32>
    %245 = arith.divf %243, %244 : vector<8x128xf32>
    %246 = arith.mulf %211, %187 : vector<8x128xf32>
    %247 = arith.mulf %217, %219 : vector<8x128xf32>
    %248 = arith.addf %246, %247 : vector<8x128xf32>
    %249 = arith.mulf %231, %190 : vector<8x128xf32>
    %250 = arith.mulf %237, %239 : vector<8x128xf32>
    %251 = arith.addf %249, %250 : vector<8x128xf32>
    %252 = math.tanh %248 : vector<8x128xf32>
    %253 = arith.mulf %225, %252 : vector<8x128xf32>
    %254 = math.tanh %251 : vector<8x128xf32>
    %255 = arith.mulf %245, %254 : vector<8x128xf32>
    %256 = arith.addf %253, %255 : vector<8x128xf32>
    %257 = arith.index_cast %c3_i32 : i32 to index
    %c0_61 = arith.constant 0 : index
    %c0_62 = arith.constant 0 : index
    %258 = vector.load %arg9[%257, %c0_61, %c0_62] : memref<8x8x128xf32, #tpu.memory_space<vmem>>, vector<1x8x128xf32>
    %259 = vector.shape_cast %258 : vector<1x8x128xf32> to vector<8x128xf32>
    %260 = vector.shape_cast %256 : vector<8x128xf32> to vector<1x8x128xf32>
    tpu.vector_store %arg9[%257, %c0_61, %c0_62], %260 {strides = array<i32>} : memref<8x8x128xf32, #tpu.memory_space<vmem>>, vector<1x8x128xf32>,
    %c4_i32 = arith.constant 4 : i32
    %261 = arith.truncf %256 : vector<8x128xf32> to vector<8x128xbf16>
    %cst_63 = arith.constant dense<0.000000e+00> : vector<8x1024xf32>
    %262 = tpu.matmul %261, %13, %cst_63 {dimension_numbers = #tpu.dot_dimension_numbers<[1], [0], [0], [1], [0, 0, 1, 1], [], []>} : vector<8x128xbf16>, vector<128x1024xbf16>, vector<8x1024xf32> -> vector<8x1024xf32>
    %263 = arith.index_cast %c4_i32 : i32 to index
    %c0_64 = arith.constant 0 : index
    %c0_65 = arith.constant 0 : index
    %264 = vector.load %arg13[%263, %c0_64, %c0_65] : memref<8x8x1024xf32, #tpu.memory_space<vmem>>, vector<1x8x1024xf32>
    %265 = vector.shape_cast %264 : vector<1x8x1024xf32> to vector<8x1024xf32>
    %266 = arith.addf %262, %265 : vector<8x1024xf32>
    %267 = vector.extract_strided_slice %266 {offsets = [0, 0], sizes = [8, 128], strides = [1, 1]} : vector<8x1024xf32> to vector<8x128xf32>
    %268 = arith.negf %267 : vector<8x128xf32>
    %269 = math.exp %268 : vector<8x128xf32>
    %cst_66 = arith.constant 1.000000e+00 : f32
    %270 = vector.broadcast %cst_66 : f32 to vector<8x128xf32>
    %271 = arith.addf %270, %269 : vector<8x128xf32>
    %272 = arith.divf %270, %271 : vector<8x128xf32>
    %273 = vector.extract_strided_slice %266 {offsets = [0, 128], sizes = [8, 128], strides = [1, 1]} : vector<8x1024xf32> to vector<8x128xf32>
    %274 = arith.negf %273 : vector<8x128xf32>
    %275 = math.exp %274 : vector<8x128xf32>
    %cst_67 = arith.constant 1.000000e+00 : f32
    %276 = vector.broadcast %cst_67 : f32 to vector<8x128xf32>
    %277 = arith.addf %276, %275 : vector<8x128xf32>
    %278 = arith.divf %276, %277 : vector<8x128xf32>
    %279 = vector.extract_strided_slice %266 {offsets = [0, 256], sizes = [8, 128], strides = [1, 1]} : vector<8x1024xf32> to vector<8x128xf32>
    %280 = math.tanh %279 : vector<8x128xf32>
    %281 = vector.extract_strided_slice %266 {offsets = [0, 384], sizes = [8, 128], strides = [1, 1]} : vector<8x1024xf32> to vector<8x128xf32>
    %282 = arith.negf %281 : vector<8x128xf32>
    %283 = math.exp %282 : vector<8x128xf32>
    %cst_68 = arith.constant 1.000000e+00 : f32
    %284 = vector.broadcast %cst_68 : f32 to vector<8x128xf32>
    %285 = arith.addf %284, %283 : vector<8x128xf32>
    %286 = arith.divf %284, %285 : vector<8x128xf32>
    %287 = vector.extract_strided_slice %266 {offsets = [0, 512], sizes = [8, 128], strides = [1, 1]} : vector<8x1024xf32> to vector<8x128xf32>
    %288 = arith.negf %287 : vector<8x128xf32>
    %289 = math.exp %288 : vector<8x128xf32>
    %cst_69 = arith.constant 1.000000e+00 : f32
    %290 = vector.broadcast %cst_69 : f32 to vector<8x128xf32>
    %291 = arith.addf %290, %289 : vector<8x128xf32>
    %292 = arith.divf %290, %291 : vector<8x128xf32>
    %293 = vector.extract_strided_slice %266 {offsets = [0, 640], sizes = [8, 128], strides = [1, 1]} : vector<8x1024xf32> to vector<8x128xf32>
    %294 = arith.negf %293 : vector<8x128xf32>
    %295 = math.exp %294 : vector<8x128xf32>
    %cst_70 = arith.constant 1.000000e+00 : f32
    %296 = vector.broadcast %cst_70 : f32 to vector<8x128xf32>
    %297 = arith.addf %296, %295 : vector<8x128xf32>
    %298 = arith.divf %296, %297 : vector<8x128xf32>
    %299 = vector.extract_strided_slice %266 {offsets = [0, 768], sizes = [8, 128], strides = [1, 1]} : vector<8x1024xf32> to vector<8x128xf32>
    %300 = math.tanh %299 : vector<8x128xf32>
    %301 = vector.extract_strided_slice %266 {offsets = [0, 896], sizes = [8, 128], strides = [1, 1]} : vector<8x1024xf32> to vector<8x128xf32>
    %302 = arith.negf %301 : vector<8x128xf32>
    %303 = math.exp %302 : vector<8x128xf32>
    %cst_71 = arith.constant 1.000000e+00 : f32
    %304 = vector.broadcast %cst_71 : f32 to vector<8x128xf32>
    %305 = arith.addf %304, %303 : vector<8x128xf32>
    %306 = arith.divf %304, %305 : vector<8x128xf32>
    %307 = arith.mulf %272, %248 : vector<8x128xf32>
    %308 = arith.mulf %278, %280 : vector<8x128xf32>
    %309 = arith.addf %307, %308 : vector<8x128xf32>
    %310 = arith.mulf %292, %251 : vector<8x128xf32>
    %311 = arith.mulf %298, %300 : vector<8x128xf32>
    %312 = arith.addf %310, %311 : vector<8x128xf32>
    %313 = math.tanh %309 : vector<8x128xf32>
    %314 = arith.mulf %286, %313 : vector<8x128xf32>
    %315 = math.tanh %312 : vector<8x128xf32>
    %316 = arith.mulf %306, %315 : vector<8x128xf32>
    %317 = arith.addf %314, %316 : vector<8x128xf32>
    %318 = arith.index_cast %c4_i32 : i32 to index
    %c0_72 = arith.constant 0 : index
    %c0_73 = arith.constant 0 : index
    %319 = vector.load %arg9[%318, %c0_72, %c0_73] : memref<8x8x128xf32, #tpu.memory_space<vmem>>, vector<1x8x128xf32>
    %320 = vector.shape_cast %319 : vector<1x8x128xf32> to vector<8x128xf32>
    %321 = vector.shape_cast %317 : vector<8x128xf32> to vector<1x8x128xf32>
    tpu.vector_store %arg9[%318, %c0_72, %c0_73], %321 {strides = array<i32>} : memref<8x8x128xf32, #tpu.memory_space<vmem>>, vector<1x8x128xf32>,
    %c5_i32 = arith.constant 5 : i32
    %322 = arith.truncf %317 : vector<8x128xf32> to vector<8x128xbf16>
    %cst_74 = arith.constant dense<0.000000e+00> : vector<8x1024xf32>
    %323 = tpu.matmul %322, %13, %cst_74 {dimension_numbers = #tpu.dot_dimension_numbers<[1], [0], [0], [1], [0, 0, 1, 1], [], []>} : vector<8x128xbf16>, vector<128x1024xbf16>, vector<8x1024xf32> -> vector<8x1024xf32>
    %324 = arith.index_cast %c5_i32 : i32 to index
    %c0_75 = arith.constant 0 : index
    %c0_76 = arith.constant 0 : index
    %325 = vector.load %arg13[%324, %c0_75, %c0_76] : memref<8x8x1024xf32, #tpu.memory_space<vmem>>, vector<1x8x1024xf32>
    %326 = vector.shape_cast %325 : vector<1x8x1024xf32> to vector<8x1024xf32>
    %327 = arith.addf %323, %326 : vector<8x1024xf32>
    %328 = vector.extract_strided_slice %327 {offsets = [0, 0], sizes = [8, 128], strides = [1, 1]} : vector<8x1024xf32> to vector<8x128xf32>
    %329 = arith.negf %328 : vector<8x128xf32>
    %330 = math.exp %329 : vector<8x128xf32>
    %cst_77 = arith.constant 1.000000e+00 : f32
    %331 = vector.broadcast %cst_77 : f32 to vector<8x128xf32>
    %332 = arith.addf %331, %330 : vector<8x128xf32>
    %333 = arith.divf %331, %332 : vector<8x128xf32>
    %334 = vector.extract_strided_slice %327 {offsets = [0, 128], sizes = [8, 128], strides = [1, 1]} : vector<8x1024xf32> to vector<8x128xf32>
    %335 = arith.negf %334 : vector<8x128xf32>
    %336 = math.exp %335 : vector<8x128xf32>
    %cst_78 = arith.constant 1.000000e+00 : f32
    %337 = vector.broadcast %cst_78 : f32 to vector<8x128xf32>
    %338 = arith.addf %337, %336 : vector<8x128xf32>
    %339 = arith.divf %337, %338 : vector<8x128xf32>
    %340 = vector.extract_strided_slice %327 {offsets = [0, 256], sizes = [8, 128], strides = [1, 1]} : vector<8x1024xf32> to vector<8x128xf32>
    %341 = math.tanh %340 : vector<8x128xf32>
    %342 = vector.extract_strided_slice %327 {offsets = [0, 384], sizes = [8, 128], strides = [1, 1]} : vector<8x1024xf32> to vector<8x128xf32>
    %343 = arith.negf %342 : vector<8x128xf32>
    %344 = math.exp %343 : vector<8x128xf32>
    %cst_79 = arith.constant 1.000000e+00 : f32
    %345 = vector.broadcast %cst_79 : f32 to vector<8x128xf32>
    %346 = arith.addf %345, %344 : vector<8x128xf32>
    %347 = arith.divf %345, %346 : vector<8x128xf32>
    %348 = vector.extract_strided_slice %327 {offsets = [0, 512], sizes = [8, 128], strides = [1, 1]} : vector<8x1024xf32> to vector<8x128xf32>
    %349 = arith.negf %348 : vector<8x128xf32>
    %350 = math.exp %349 : vector<8x128xf32>
    %cst_80 = arith.constant 1.000000e+00 : f32
    %351 = vector.broadcast %cst_80 : f32 to vector<8x128xf32>
    %352 = arith.addf %351, %350 : vector<8x128xf32>
    %353 = arith.divf %351, %352 : vector<8x128xf32>
    %354 = vector.extract_strided_slice %327 {offsets = [0, 640], sizes = [8, 128], strides = [1, 1]} : vector<8x1024xf32> to vector<8x128xf32>
    %355 = arith.negf %354 : vector<8x128xf32>
    %356 = math.exp %355 : vector<8x128xf32>
    %cst_81 = arith.constant 1.000000e+00 : f32
    %357 = vector.broadcast %cst_81 : f32 to vector<8x128xf32>
    %358 = arith.addf %357, %356 : vector<8x128xf32>
    %359 = arith.divf %357, %358 : vector<8x128xf32>
    %360 = vector.extract_strided_slice %327 {offsets = [0, 768], sizes = [8, 128], strides = [1, 1]} : vector<8x1024xf32> to vector<8x128xf32>
    %361 = math.tanh %360 : vector<8x128xf32>
    %362 = vector.extract_strided_slice %327 {offsets = [0, 896], sizes = [8, 128], strides = [1, 1]} : vector<8x1024xf32> to vector<8x128xf32>
    %363 = arith.negf %362 : vector<8x128xf32>
    %364 = math.exp %363 : vector<8x128xf32>
    %cst_82 = arith.constant 1.000000e+00 : f32
    %365 = vector.broadcast %cst_82 : f32 to vector<8x128xf32>
    %366 = arith.addf %365, %364 : vector<8x128xf32>
    %367 = arith.divf %365, %366 : vector<8x128xf32>
    %368 = arith.mulf %333, %309 : vector<8x128xf32>
    %369 = arith.mulf %339, %341 : vector<8x128xf32>
    %370 = arith.addf %368, %369 : vector<8x128xf32>
    %371 = arith.mulf %353, %312 : vector<8x128xf32>
    %372 = arith.mulf %359, %361 : vector<8x128xf32>
    %373 = arith.addf %371, %372 : vector<8x128xf32>
    %374 = math.tanh %370 : vector<8x128xf32>
    %375 = arith.mulf %347, %374 : vector<8x128xf32>
    %376 = math.tanh %373 : vector<8x128xf32>
    %377 = arith.mulf %367, %376 : vector<8x128xf32>
    %378 = arith.addf %375, %377 : vector<8x128xf32>
    %379 = arith.index_cast %c5_i32 : i32 to index
    %c0_83 = arith.constant 0 : index
    %c0_84 = arith.constant 0 : index
    %380 = vector.load %arg9[%379, %c0_83, %c0_84] : memref<8x8x128xf32, #tpu.memory_space<vmem>>, vector<1x8x128xf32>
    %381 = vector.shape_cast %380 : vector<1x8x128xf32> to vector<8x128xf32>
    %382 = vector.shape_cast %378 : vector<8x128xf32> to vector<1x8x128xf32>
    tpu.vector_store %arg9[%379, %c0_83, %c0_84], %382 {strides = array<i32>} : memref<8x8x128xf32, #tpu.memory_space<vmem>>, vector<1x8x128xf32>,
    %c6_i32 = arith.constant 6 : i32
    %383 = arith.truncf %378 : vector<8x128xf32> to vector<8x128xbf16>
    %cst_85 = arith.constant dense<0.000000e+00> : vector<8x1024xf32>
    %384 = tpu.matmul %383, %13, %cst_85 {dimension_numbers = #tpu.dot_dimension_numbers<[1], [0], [0], [1], [0, 0, 1, 1], [], []>} : vector<8x128xbf16>, vector<128x1024xbf16>, vector<8x1024xf32> -> vector<8x1024xf32>
    %385 = arith.index_cast %c6_i32 : i32 to index
    %c0_86 = arith.constant 0 : index
    %c0_87 = arith.constant 0 : index
    %386 = vector.load %arg13[%385, %c0_86, %c0_87] : memref<8x8x1024xf32, #tpu.memory_space<vmem>>, vector<1x8x1024xf32>
    %387 = vector.shape_cast %386 : vector<1x8x1024xf32> to vector<8x1024xf32>
    %388 = arith.addf %384, %387 : vector<8x1024xf32>
    %389 = vector.extract_strided_slice %388 {offsets = [0, 0], sizes = [8, 128], strides = [1, 1]} : vector<8x1024xf32> to vector<8x128xf32>
    %390 = arith.negf %389 : vector<8x128xf32>
    %391 = math.exp %390 : vector<8x128xf32>
    %cst_88 = arith.constant 1.000000e+00 : f32
    %392 = vector.broadcast %cst_88 : f32 to vector<8x128xf32>
    %393 = arith.addf %392, %391 : vector<8x128xf32>
    %394 = arith.divf %392, %393 : vector<8x128xf32>
    %395 = vector.extract_strided_slice %388 {offsets = [0, 128], sizes = [8, 128], strides = [1, 1]} : vector<8x1024xf32> to vector<8x128xf32>
    %396 = arith.negf %395 : vector<8x128xf32>
    %397 = math.exp %396 : vector<8x128xf32>
    %cst_89 = arith.constant 1.000000e+00 : f32
    %398 = vector.broadcast %cst_89 : f32 to vector<8x128xf32>
    %399 = arith.addf %398, %397 : vector<8x128xf32>
    %400 = arith.divf %398, %399 : vector<8x128xf32>
    %401 = vector.extract_strided_slice %388 {offsets = [0, 256], sizes = [8, 128], strides = [1, 1]} : vector<8x1024xf32> to vector<8x128xf32>
    %402 = math.tanh %401 : vector<8x128xf32>
    %403 = vector.extract_strided_slice %388 {offsets = [0, 384], sizes = [8, 128], strides = [1, 1]} : vector<8x1024xf32> to vector<8x128xf32>
    %404 = arith.negf %403 : vector<8x128xf32>
    %405 = math.exp %404 : vector<8x128xf32>
    %cst_90 = arith.constant 1.000000e+00 : f32
    %406 = vector.broadcast %cst_90 : f32 to vector<8x128xf32>
    %407 = arith.addf %406, %405 : vector<8x128xf32>
    %408 = arith.divf %406, %407 : vector<8x128xf32>
    %409 = vector.extract_strided_slice %388 {offsets = [0, 512], sizes = [8, 128], strides = [1, 1]} : vector<8x1024xf32> to vector<8x128xf32>
    %410 = arith.negf %409 : vector<8x128xf32>
    %411 = math.exp %410 : vector<8x128xf32>
    %cst_91 = arith.constant 1.000000e+00 : f32
    %412 = vector.broadcast %cst_91 : f32 to vector<8x128xf32>
    %413 = arith.addf %412, %411 : vector<8x128xf32>
    %414 = arith.divf %412, %413 : vector<8x128xf32>
    %415 = vector.extract_strided_slice %388 {offsets = [0, 640], sizes = [8, 128], strides = [1, 1]} : vector<8x1024xf32> to vector<8x128xf32>
    %416 = arith.negf %415 : vector<8x128xf32>
    %417 = math.exp %416 : vector<8x128xf32>
    %cst_92 = arith.constant 1.000000e+00 : f32
    %418 = vector.broadcast %cst_92 : f32 to vector<8x128xf32>
    %419 = arith.addf %418, %417 : vector<8x128xf32>
    %420 = arith.divf %418, %419 : vector<8x128xf32>
    %421 = vector.extract_strided_slice %388 {offsets = [0, 768], sizes = [8, 128], strides = [1, 1]} : vector<8x1024xf32> to vector<8x128xf32>
    %422 = math.tanh %421 : vector<8x128xf32>
    %423 = vector.extract_strided_slice %388 {offsets = [0, 896], sizes = [8, 128], strides = [1, 1]} : vector<8x1024xf32> to vector<8x128xf32>
    %424 = arith.negf %423 : vector<8x128xf32>
    %425 = math.exp %424 : vector<8x128xf32>
    %cst_93 = arith.constant 1.000000e+00 : f32
    %426 = vector.broadcast %cst_93 : f32 to vector<8x128xf32>
    %427 = arith.addf %426, %425 : vector<8x128xf32>
    %428 = arith.divf %426, %427 : vector<8x128xf32>
    %429 = arith.mulf %394, %370 : vector<8x128xf32>
    %430 = arith.mulf %400, %402 : vector<8x128xf32>
    %431 = arith.addf %429, %430 : vector<8x128xf32>
    %432 = arith.mulf %414, %373 : vector<8x128xf32>
    %433 = arith.mulf %420, %422 : vector<8x128xf32>
    %434 = arith.addf %432, %433 : vector<8x128xf32>
    %435 = math.tanh %431 : vector<8x128xf32>
    %436 = arith.mulf %408, %435 : vector<8x128xf32>
    %437 = math.tanh %434 : vector<8x128xf32>
    %438 = arith.mulf %428, %437 : vector<8x128xf32>
    %439 = arith.addf %436, %438 : vector<8x128xf32>
    %440 = arith.index_cast %c6_i32 : i32 to index
    %c0_94 = arith.constant 0 : index
    %c0_95 = arith.constant 0 : index
    %441 = vector.load %arg9[%440, %c0_94, %c0_95] : memref<8x8x128xf32, #tpu.memory_space<vmem>>, vector<1x8x128xf32>
    %442 = vector.shape_cast %441 : vector<1x8x128xf32> to vector<8x128xf32>
    %443 = vector.shape_cast %439 : vector<8x128xf32> to vector<1x8x128xf32>
    tpu.vector_store %arg9[%440, %c0_94, %c0_95], %443 {strides = array<i32>} : memref<8x8x128xf32, #tpu.memory_space<vmem>>, vector<1x8x128xf32>,
    %c7_i32 = arith.constant 7 : i32
    %444 = arith.truncf %439 : vector<8x128xf32> to vector<8x128xbf16>
    %cst_96 = arith.constant dense<0.000000e+00> : vector<8x1024xf32>
    %445 = tpu.matmul %444, %13, %cst_96 {dimension_numbers = #tpu.dot_dimension_numbers<[1], [0], [0], [1], [0, 0, 1, 1], [], []>} : vector<8x128xbf16>, vector<128x1024xbf16>, vector<8x1024xf32> -> vector<8x1024xf32>
    %446 = arith.index_cast %c7_i32 : i32 to index
    %c0_97 = arith.constant 0 : index
    %c0_98 = arith.constant 0 : index
    %447 = vector.load %arg13[%446, %c0_97, %c0_98] : memref<8x8x1024xf32, #tpu.memory_space<vmem>>, vector<1x8x1024xf32>
    %448 = vector.shape_cast %447 : vector<1x8x1024xf32> to vector<8x1024xf32>
    %449 = arith.addf %445, %448 : vector<8x1024xf32>
    %450 = vector.extract_strided_slice %449 {offsets = [0, 0], sizes = [8, 128], strides = [1, 1]} : vector<8x1024xf32> to vector<8x128xf32>
    %451 = arith.negf %450 : vector<8x128xf32>
    %452 = math.exp %451 : vector<8x128xf32>
    %cst_99 = arith.constant 1.000000e+00 : f32
    %453 = vector.broadcast %cst_99 : f32 to vector<8x128xf32>
    %454 = arith.addf %453, %452 : vector<8x128xf32>
    %455 = arith.divf %453, %454 : vector<8x128xf32>
    %456 = vector.extract_strided_slice %449 {offsets = [0, 128], sizes = [8, 128], strides = [1, 1]} : vector<8x1024xf32> to vector<8x128xf32>
    %457 = arith.negf %456 : vector<8x128xf32>
    %458 = math.exp %457 : vector<8x128xf32>
    %cst_100 = arith.constant 1.000000e+00 : f32
    %459 = vector.broadcast %cst_100 : f32 to vector<8x128xf32>
    %460 = arith.addf %459, %458 : vector<8x128xf32>
    %461 = arith.divf %459, %460 : vector<8x128xf32>
    %462 = vector.extract_strided_slice %449 {offsets = [0, 256], sizes = [8, 128], strides = [1, 1]} : vector<8x1024xf32> to vector<8x128xf32>
    %463 = math.tanh %462 : vector<8x128xf32>
    %464 = vector.extract_strided_slice %449 {offsets = [0, 384], sizes = [8, 128], strides = [1, 1]} : vector<8x1024xf32> to vector<8x128xf32>
    %465 = arith.negf %464 : vector<8x128xf32>
    %466 = math.exp %465 : vector<8x128xf32>
    %cst_101 = arith.constant 1.000000e+00 : f32
    %467 = vector.broadcast %cst_101 : f32 to vector<8x128xf32>
    %468 = arith.addf %467, %466 : vector<8x128xf32>
    %469 = arith.divf %467, %468 : vector<8x128xf32>
    %470 = vector.extract_strided_slice %449 {offsets = [0, 512], sizes = [8, 128], strides = [1, 1]} : vector<8x1024xf32> to vector<8x128xf32>
    %471 = arith.negf %470 : vector<8x128xf32>
    %472 = math.exp %471 : vector<8x128xf32>
    %cst_102 = arith.constant 1.000000e+00 : f32
    %473 = vector.broadcast %cst_102 : f32 to vector<8x128xf32>
    %474 = arith.addf %473, %472 : vector<8x128xf32>
    %475 = arith.divf %473, %474 : vector<8x128xf32>
    %476 = vector.extract_strided_slice %449 {offsets = [0, 640], sizes = [8, 128], strides = [1, 1]} : vector<8x1024xf32> to vector<8x128xf32>
    %477 = arith.negf %476 : vector<8x128xf32>
    %478 = math.exp %477 : vector<8x128xf32>
    %cst_103 = arith.constant 1.000000e+00 : f32
    %479 = vector.broadcast %cst_103 : f32 to vector<8x128xf32>
    %480 = arith.addf %479, %478 : vector<8x128xf32>
    %481 = arith.divf %479, %480 : vector<8x128xf32>
    %482 = vector.extract_strided_slice %449 {offsets = [0, 768], sizes = [8, 128], strides = [1, 1]} : vector<8x1024xf32> to vector<8x128xf32>
    %483 = math.tanh %482 : vector<8x128xf32>
    %484 = vector.extract_strided_slice %449 {offsets = [0, 896], sizes = [8, 128], strides = [1, 1]} : vector<8x1024xf32> to vector<8x128xf32>
    %485 = arith.negf %484 : vector<8x128xf32>
    %486 = math.exp %485 : vector<8x128xf32>
    %cst_104 = arith.constant 1.000000e+00 : f32
    %487 = vector.broadcast %cst_104 : f32 to vector<8x128xf32>
    %488 = arith.addf %487, %486 : vector<8x128xf32>
    %489 = arith.divf %487, %488 : vector<8x128xf32>
    %490 = arith.mulf %455, %431 : vector<8x128xf32>
    %491 = arith.mulf %461, %463 : vector<8x128xf32>
    %492 = arith.addf %490, %491 : vector<8x128xf32>
    %493 = arith.mulf %475, %434 : vector<8x128xf32>
    %494 = arith.mulf %481, %483 : vector<8x128xf32>
    %495 = arith.addf %493, %494 : vector<8x128xf32>
    %496 = math.tanh %492 : vector<8x128xf32>
    %497 = arith.mulf %469, %496 : vector<8x128xf32>
    %498 = math.tanh %495 : vector<8x128xf32>
    %499 = arith.mulf %489, %498 : vector<8x128xf32>
    %500 = arith.addf %497, %499 : vector<8x128xf32>
    %501 = arith.index_cast %c7_i32 : i32 to index
    %c0_105 = arith.constant 0 : index
    %c0_106 = arith.constant 0 : index
    %502 = vector.load %arg9[%501, %c0_105, %c0_106] : memref<8x8x128xf32, #tpu.memory_space<vmem>>, vector<1x8x128xf32>
    %503 = vector.shape_cast %502 : vector<1x8x128xf32> to vector<8x128xf32>
    %504 = vector.shape_cast %500 : vector<8x128xf32> to vector<1x8x128xf32>
    tpu.vector_store %arg9[%501, %c0_105, %c0_106], %504 {strides = array<i32>} : memref<8x8x128xf32, #tpu.memory_space<vmem>>, vector<1x8x128xf32>,
    %c8_i32 = arith.constant 8 : i32
    %c0_107 = arith.constant 0 : index
    %c0_108 = arith.constant 0 : index
    %505 = vector.load %arg14[%c0_107, %c0_108] : memref<8x128xf32, #tpu.memory_space<vmem>>, vector<8x128xf32>
    tpu.vector_store %arg14[%c0_107, %c0_108], %500 {strides = array<i32>} : memref<8x128xf32, #tpu.memory_space<vmem>>, vector<8x128xf32>,
    %c0_109 = arith.constant 0 : index
    %c0_110 = arith.constant 0 : index
    %506 = vector.load %arg15[%c0_109, %c0_110] : memref<8x128xf32, #tpu.memory_space<vmem>>, vector<8x128xf32>
    tpu.vector_store %arg15[%c0_109, %c0_110], %492 {strides = array<i32>} : memref<8x128xf32, #tpu.memory_space<vmem>>, vector<8x128xf32>,
    %c0_111 = arith.constant 0 : index
    %c0_112 = arith.constant 0 : index
    %507 = vector.load %arg16[%c0_111, %c0_112] : memref<8x128xf32, #tpu.memory_space<vmem>>, vector<8x128xf32>
    tpu.vector_store %arg16[%c0_111, %c0_112], %495 {strides = array<i32>} : memref<8x128xf32, #tpu.memory_space<vmem>>, vector<8x128xf32>,
    %c0_i32_113 = arith.constant 0 : i32
    %508 = arith.cmpi eq, %arg1, %c0_i32_113 : i32
    %509 = arith.extui %508 : i1 to i32
    %c0_i32_114 = arith.constant 0 : i32
    %510 = arith.cmpi ne, %509, %c0_i32_114 : i32
    scf.if %510 {
      %c0_115 = arith.constant 0 : index
      %c0_116 = arith.constant 0 : index
      %511 = vector.load %arg10[%c0_115, %c0_116] : memref<8x128xf32, #tpu.memory_space<vmem>>, vector<8x128xf32>
      tpu.vector_store %arg10[%c0_115, %c0_116], %500 {strides = array<i32>} : memref<8x128xf32, #tpu.memory_space<vmem>>, vector<8x128xf32>,
      %c0_117 = arith.constant 0 : index
      %c0_118 = arith.constant 0 : index
      %512 = vector.load %arg11[%c0_117, %c0_118] : memref<8x128xf32, #tpu.memory_space<vmem>>, vector<8x128xf32>
      tpu.vector_store %arg11[%c0_117, %c0_118], %492 {strides = array<i32>} : memref<8x128xf32, #tpu.memory_space<vmem>>, vector<8x128xf32>,
      %c0_119 = arith.constant 0 : index
      %c0_120 = arith.constant 0 : index
      %513 = vector.load %arg12[%c0_119, %c0_120] : memref<8x128xf32, #tpu.memory_space<vmem>>, vector<8x128xf32>
      tpu.vector_store %arg12[%c0_119, %c0_120], %495 {strides = array<i32>} : memref<8x128xf32, #tpu.memory_space<vmem>>, vector<8x128xf32>,
    } else {
    }
    return
  }
  func.func @transform_0(%arg0: i32, %arg1: i32) -> (i32, i32, i32) {
    %c0_i32 = arith.constant 0 : i32
    %c0_i32_0 = arith.constant 0 : i32
    return %arg1, %arg0, %c0_i32 : i32, i32, i32
  }
  func.func @transform_1(%arg0: i32, %arg1: i32) -> (i32, i32) {
    %c0_i32 = arith.constant 0 : i32
    %c0_i32_0 = arith.constant 0 : i32
    return %arg0, %c0_i32 : i32, i32
  }
  func.func @transform_2(%arg0: i32, %arg1: i32) -> (i32, i32) {
    %c0_i32 = arith.constant 0 : i32
    %c0_i32_0 = arith.constant 0 : i32
    return %arg0, %c0_i32 : i32, i32
  }
  func.func @transform_3(%arg0: i32, %arg1: i32) -> (i32, i32) {
    %c0_i32 = arith.constant 0 : i32
    %c0_i32_0 = arith.constant 0 : i32
    return %arg0, %c0_i32 : i32, i32
  }
  func.func @transform_4(%arg0: i32, %arg1: i32) -> (i32, i32) {
    %c0_i32 = arith.constant 0 : i32
    %c0_i32_0 = arith.constant 0 : i32
    %c0_i32_1 = arith.constant 0 : i32
    return %c0_i32, %c0_i32_0 : i32, i32
  }
  func.func @transform_5(%arg0: i32, %arg1: i32) -> (i32, i32) {
    %c0_i32 = arith.constant 0 : i32
    %c0_i32_0 = arith.constant 0 : i32
    %c0_i32_1 = arith.constant 0 : i32
    return %c0_i32, %c0_i32_0 : i32, i32
  }
  func.func @transform_6(%arg0: i32, %arg1: i32) -> (i32, i32) {
    %c0_i32 = arith.constant 0 : i32
    %c0_i32_0 = arith.constant 0 : i32
    %c0_i32_1 = arith.constant 0 : i32
    return %c0_i32, %c0_i32_0 : i32, i32
  }
  func.func @transform_7(%arg0: i32, %arg1: i32) -> (i32, i32, i32) {
    %c0_i32 = arith.constant 0 : i32
    %c0_i32_0 = arith.constant 0 : i32
    return %arg1, %arg0, %c0_i32 : i32, i32, i32
  }
  func.func @transform_8(%arg0: i32, %arg1: i32) -> (i32, i32) {
    %c0_i32 = arith.constant 0 : i32
    %c0_i32_0 = arith.constant 0 : i32
    return %arg0, %c0_i32 : i32, i32
  }
  func.func @transform_9(%arg0: i32, %arg1: i32) -> (i32, i32) {
    %c0_i32 = arith.constant 0 : i32
    %c0_i32_0 = arith.constant 0 : i32
    return %arg0, %c0_i32 : i32, i32
  }
  func.func @transform_10(%arg0: i32, %arg1: i32) -> (i32, i32) {
    %c0_i32 = arith.constant 0 : i32
    %c0_i32_0 = arith.constant 0 : i32
    return %arg0, %c0_i32 : i32, i32
  }
}

</mosaic_0001>

<llo_original>
// kernel: cerebral_lstm_forward.2
$region0: #{cerebral_lstm_forward.2}
  #allocation0 [shape = 'u32[]', space=smem, size = 0x4, offset = 0x4, fixed_abs, tag = 'smem constant byte address 0x4 - core index']
  #allocation1 [shape = 'u32[144,128]{1,0:T(1,128)}', space=vmem, size = 0x12000, scoped, tag = 'internal scratch']
  #allocation2 [shape = 'f32[8,8,1024]{2,1,0:T(8,128)}', space=vmem, size = 0x40000, scoped, tag = 'scratch operand']
  #allocation3 [shape = 'f32[8,128]{1,0:T(8,128)}', space=vmem, size = 0x1000, scoped, tag = 'scratch operand']
  #allocation4 [shape = 'f32[8,128]{1,0:T(8,128)}', space=vmem, size = 0x1000, scoped, tag = 'scratch operand']
  #allocation5 [shape = 'f32[8,128]{1,0:T(8,128)}', space=vmem, size = 0x1000, scoped, tag = 'scratch operand']
  %s0 = inlined_call_operand.vmem [shape: f32[8,16,16], index: 0, kind: input, shape index: {}]
  %s1 = inlined_call_operand.vmem [shape: f32[16,128], index: 1, kind: input, shape index: {}, may-alias: {1,2,3}]
  %s2 = inlined_call_operand.vmem [shape: f32[16,128], index: 2, kind: input, shape index: {}, may-alias: {1,2,3}]
  %s3 = inlined_call_operand.vmem [shape: f32[16,128], index: 3, kind: input, shape index: {}, may-alias: {1,2,3}]
  %s4 = inlined_call_operand.vmem [shape: bf16[16,1024], index: 4, kind: input, shape index: {}]
  %s5 = inlined_call_operand.vmem [shape: bf16[128,1024], index: 5, kind: input, shape index: {}]
  %s6 = inlined_call_operand.vmem [shape: f32[1,1024], index: 6, kind: input, shape index: {}]
  %s7 = inlined_call_operand.vmem [shape: f32[8,16,128], index: 7, kind: output, shape index: {0}]
  %s8 = inlined_call_operand.hbm [shape: f32[16,128], index: 8, kind: output, shape index: {1}]
  %s9 = inlined_call_operand.hbm [shape: f32[16,128], index: 9, kind: output, shape index: {2}]
  %s10 = inlined_call_operand.hbm [shape: f32[16,128], index: 10, kind: output, shape index: {3}]
  %11 = xla_tuple %s7, %s8, %s9, %s10
  %s12 = sld [smem:[#allocation0]]
  $region165: #{cerebral_lstm_forward.2} parent=0
    _
  %s14 = ssub.s32 1, %s12
  %s15 = scalar_select 0, %s14, %s12
  $region1: #{cerebral_lstm_forward.2} parent=0
    #allocation6 [shape = 'u8[65536]{0}', space=vmem, size = 0x10000, scoped, tag = 'input window, operand 0']
    #allocation7 [shape = 'u8[65536]{0}', space=vmem, size = 0x10000, scoped, tag = 'output window, operand 0']
    #allocation8 [shape = 'u8[8192]{0}', space=vmem, size = 0x2000, scoped, tag = 'output window, operand 1']
    #allocation9 [shape = 's32[2]{0}', space=sflag, size = 0x8, scoped, tag = 'scoped memory for cerebral_lstm_forward.2']
    #allocation10 [shape = 'u8[8192]{0}', space=vmem, size = 0x2000, scoped, tag = 'output window, operand 2']
    #allocation11 [shape = 's32[2]{0}', space=sflag, size = 0x8, scoped, tag = 'scoped memory for cerebral_lstm_forward.2']
    #allocation12 [shape = 'u8[8192]{0}', space=vmem, size = 0x2000, scoped, tag = 'output window, operand 3']
    %16 = vsyncpa [#allocation9], 0
    %s17 = scalar_lea.sflag [#allocation9], 1
    %18 = vsyncpa %s17, 0
    %19 = vsyncpa [#allocation11], 0
    %s20 = scalar_lea.sflag [#allocation11], 1
    %21 = vsyncpa %s20, 0
    loop: start=0, step=1, limit=4
    $region2: #{cerebral_lstm_forward.2} parent=1 // loop_pre_header
      _
    $region3: #{cerebral_lstm_forward.2} parent=1 // loop_header
      %s23 = sphi 0, %s27
      %p24 = scmp.ge.s32.totalorder %s23, 4
      %s30 = sphi 0, %s42
      %s31 = sphi 0, %s38
      %s32 = sphi 0, %s30
      %s33 = sphi 0, %s31
      %s34 = sphi 0, %s32
      %s35 = sphi 0, %s33
      %s47 = sphi 0, %s49
      %s50 = sphi 0, %s47
      %s51 = sphi 0, %s50
      %s67 = sphi 0, %s51
      %s73 = sphi 0, %s75
      %s76 = sphi 0, %s73
      %s77 = sphi 0, %s76
      %s93 = sphi 0, %s77
      %s99 = sphi 0, %s101
      %s102 = sphi 0, %s99
      %s103 = sphi 0, %s102
      %s119 = sphi 0, %s103
      %s125 = sphi 0, %s127
      %s128 = sphi 0, %s125
      %s129 = sphi 0, %s128
      %s145 = sphi 0, %s129
      %s149 = sphi 0, %s149
      %s151 = sphi 0, %s149
      %s152 = sphi 0, %s151
      %s166 = sphi 0, %s152
      %s170 = sphi 0, %s170
      %s172 = sphi 0, %s170
      %s173 = sphi 0, %s172
      %s187 = sphi 0, %s173
      %s191 = sphi 0, %s191
      %s193 = sphi 0, %s191
      %s194 = sphi 0, %s193
      %s208 = sphi 0, %s194
      %s216 = sphi 0, %s218
      %s219 = sphi 0, %s216
      %s220 = sphi 0, %s219
      %s236 = sphi 0, %s220
      %s242 = sphi 0, %s244
      %s245 = sphi 0, %s242
      %s246 = sphi 0, %s245
      %s262 = sphi 0, %s246
      %s268 = sphi 0, %s270
      %s271 = sphi 0, %s268
      %s272 = sphi 0, %s271
      %s288 = sphi 0, %s272
      %s294 = sphi 0, %s296
      %s297 = sphi 0, %s294
      %s298 = sphi 0, %s297
      %s314 = sphi 0, %s298
    $region4: #{cerebral_lstm_forward.2} parent=1 // loop_header_branch
      %26 = sbr.rel (%p24) target = $region8
    $region5: #{cerebral_lstm_forward.2} parent=1 // loop_body
      %s28 = ssub.s32 %s23, 1
      %s29 = ssub.s32 %s23, 2
      %s36 = sadd.s32 1, %s31
      %p37 = scmp.ge.s32.totalorder %s36, 1
      %s38 = scalar_select %p37, 0, %s36
      %s39 = sadd.s32 1, %s30
      %s40 = scalar_select %p37, %s39, %s30
      %p41 = scmp.ge.s32.totalorder %s40, 2
      %s42 = scalar_select %p41, 0, %s40
      %s43 = ssub.s32 %s31, %s38
      %s44 = ssub.s32 %s30, %s42
      %s45 = sor.u32 %s43, %s44
      %p46 = scmp.eq.s32.totalorder %s45, 0
      %s48 = sadd.s32 %s47, 1
      %s49 = scalar_select %p46, %s47, %s48
      %p52 = pneg %p46
      %p53 = scmp.eq.s32.totalorder %s23, 1
      %p54 = por %p52, %p53
      %p55 = scmp.ne.s32.totalorder %s47, %s50
      %p56 = scmp.eq.s32.totalorder %s23, 0
      %p57 = por %p55, %p56
      %p58 = scmp.ne.s32.totalorder %s47, %s50
      %p59 = scmp.eq.s32.totalorder %s28, 1
      %p60 = por %p58, %p59
      %p61 = scmp.ne.s32.totalorder %s50, %s51
      %p62 = scmp.eq.s32.totalorder %s28, 0
      %p63 = por %p61, %p62
      %p64 = scmp.ne.s32.totalorder %s50, %s51
      %p65 = scmp.eq.s32.totalorder %s29, 1
      %p66 = por %p64, %p65
      %p68 = scmp.ne.s32.totalorder %s51, %s67
      %p69 = scmp.eq.s32.totalorder %s29, 0
      %p70 = por %p68, %p69
      %s71 = ssub.s32 %s30, %s42
      %p72 = scmp.eq.s32.totalorder %s71, 0
      %s74 = sadd.s32 %s73, 1
      %s75 = scalar_select %p72, %s73, %s74
      %p78 = pneg %p72
      %p79 = scmp.eq.s32.totalorder %s23, 1
      %p80 = por %p78, %p79
      %p81 = scmp.ne.s32.totalorder %s73, %s76
      %p82 = scmp.eq.s32.totalorder %s23, 0
      %p83 = por %p81, %p82
      %p84 = scmp.ne.s32.totalorder %s73, %s76
      %p85 = scmp.eq.s32.totalorder %s28, 1
      %p86 = por %p84, %p85
      %p87 = scmp.ne.s32.totalorder %s76, %s77
      %p88 = scmp.eq.s32.totalorder %s28, 0
      %p89 = por %p87, %p88
      %p90 = scmp.ne.s32.totalorder %s76, %s77
      %p91 = scmp.eq.s32.totalorder %s29, 1
      %p92 = por %p90, %p91
      %p94 = scmp.ne.s32.totalorder %s77, %s93
      %p95 = scmp.eq.s32.totalorder %s29, 0
      %p96 = por %p94, %p95
      %s97 = ssub.s32 %s30, %s42
      %p98 = scmp.eq.s32.totalorder %s97, 0
      %s100 = sadd.s32 %s99, 1
      %s101 = scalar_select %p98, %s99, %s100
      %p104 = pneg %p98
      %p105 = scmp.eq.s32.totalorder %s23, 1
      %p106 = por %p104, %p105
      %p107 = scmp.ne.s32.totalorder %s99, %s102
      %p108 = scmp.eq.s32.totalorder %s23, 0
      %p109 = por %p107, %p108
      %p110 = scmp.ne.s32.totalorder %s99, %s102
      %p111 = scmp.eq.s32.totalorder %s28, 1
      %p112 = por %p110, %p111
      %p113 = scmp.ne.s32.totalorder %s102, %s103
      %p114 = scmp.eq.s32.totalorder %s28, 0
      %p115 = por %p113, %p114
      %p116 = scmp.ne.s32.totalorder %s102, %s103
      %p117 = scmp.eq.s32.totalorder %s29, 1
      %p118 = por %p116, %p117
      %p120 = scmp.ne.s32.totalorder %s103, %s119
      %p121 = scmp.eq.s32.totalorder %s29, 0
      %p122 = por %p120, %p121
      %s123 = ssub.s32 %s30, %s42
      %p124 = scmp.eq.s32.totalorder %s123, 0
      %s126 = sadd.s32 %s125, 1
      %s127 = scalar_select %p124, %s125, %s126
      %p130 = pneg %p124
      %p131 = scmp.eq.s32.totalorder %s23, 1
      %p132 = por %p130, %p131
      %p133 = scmp.ne.s32.totalorder %s125, %s128
      %p134 = scmp.eq.s32.totalorder %s23, 0
      %p135 = por %p133, %p134
      %p136 = scmp.ne.s32.totalorder %s125, %s128
      %p137 = scmp.eq.s32.totalorder %s28, 1
      %p138 = por %p136, %p137
      %p139 = scmp.ne.s32.totalorder %s128, %s129
      %p140 = scmp.eq.s32.totalorder %s28, 0
      %p141 = por %p139, %p140
      %p142 = scmp.ne.s32.totalorder %s128, %s129
      %p143 = scmp.eq.s32.totalorder %s29, 1
      %p144 = por %p142, %p143
      %p146 = scmp.ne.s32.totalorder %s129, %s145
      %p147 = scmp.eq.s32.totalorder %s29, 0
      %p148 = por %p146, %p147
      %s150 = sadd.s32 %s149, 1
      %p153 = scmp.eq.s32.totalorder %s23, 1
      %p154 = scmp.ne.s32.totalorder %s149, %s151
      %p155 = scmp.eq.s32.totalorder %s23, 0
      %p156 = por %p154, %p155
      %p157 = scmp.ne.s32.totalorder %s149, %s151
      %p158 = scmp.eq.s32.totalorder %s28, 1
      %p159 = por %p157, %p158
      %p160 = scmp.ne.s32.totalorder %s151, %s152
      %p161 = scmp.eq.s32.totalorder %s28, 0
      %p162 = por %p160, %p161
      %p163 = scmp.ne.s32.totalorder %s151, %s152
      %p164 = scmp.eq.s32.totalorder %s29, 1
      %p165 = por %p163, %p164
      %p167 = scmp.ne.s32.totalorder %s152, %s166
      %p168 = scmp.eq.s32.totalorder %s29, 0
      %p169 = por %p167, %p168
      %s171 = sadd.s32 %s170, 1
      %p174 = scmp.eq.s32.totalorder %s23, 1
      %p175 = scmp.ne.s32.totalorder %s170, %s172
      %p176 = scmp.eq.s32.totalorder %s23, 0
      %p177 = por %p175, %p176
      %p178 = scmp.ne.s32.totalorder %s170, %s172
      %p179 = scmp.eq.s32.totalorder %s28, 1
      %p180 = por %p178, %p179
      %p181 = scmp.ne.s32.totalorder %s172, %s173
      %p182 = scmp.eq.s32.totalorder %s28, 0
      %p183 = por %p181, %p182
      %p184 = scmp.ne.s32.totalorder %s172, %s173
      %p185 = scmp.eq.s32.totalorder %s29, 1
      %p186 = por %p184, %p185
      %p188 = scmp.ne.s32.totalorder %s173, %s187
      %p189 = scmp.eq.s32.totalorder %s29, 0
      %p190 = por %p188, %p189
      %s192 = sadd.s32 %s191, 1
      %p195 = scmp.eq.s32.totalorder %s23, 1
      %p196 = scmp.ne.s32.totalorder %s191, %s193
      %p197 = scmp.eq.s32.totalorder %s23, 0
      %p198 = por %p196, %p197
      %p199 = scmp.ne.s32.totalorder %s191, %s193
      %p200 = scmp.eq.s32.totalorder %s28, 1
      %p201 = por %p199, %p200
      %p202 = scmp.ne.s32.totalorder %s193, %s194
      %p203 = scmp.eq.s32.totalorder %s28, 0
      %p204 = por %p202, %p203
      %p205 = scmp.ne.s32.totalorder %s193, %s194
      %p206 = scmp.eq.s32.totalorder %s29, 1
      %p207 = por %p205, %p206
      %p209 = scmp.ne.s32.totalorder %s194, %s208
      %p210 = scmp.eq.s32.totalorder %s29, 0
      %p211 = por %p209, %p210
      %s212 = ssub.s32 %s31, %s38
      %s213 = ssub.s32 %s30, %s42
      %s214 = sor.u32 %s212, %s213
      %p215 = scmp.eq.s32.totalorder %s214, 0
      %s217 = sadd.s32 %s216, 1
      %s218 = scalar_select %p215, %s216, %s217
      %p221 = pneg %p215
      %p222 = scmp.eq.s32.totalorder %s23, 1
      %p223 = por %p221, %p222
      %p224 = scmp.ne.s32.totalorder %s216, %s219
      %p225 = scmp.eq.s32.totalorder %s23, 0
      %p226 = por %p224, %p225
      %p227 = scmp.ne.s32.totalorder %s216, %s219
      %p228 = scmp.eq.s32.totalorder %s28, 1
      %p229 = por %p227, %p228
      %p230 = scmp.ne.s32.totalorder %s219, %s220
      %p231 = scmp.eq.s32.totalorder %s28, 0
      %p232 = por %p230, %p231
      %p233 = scmp.ne.s32.totalorder %s219, %s220
      %p234 = scmp.eq.s32.totalorder %s29, 1
      %p235 = por %p233, %p234
      %p237 = scmp.ne.s32.totalorder %s220, %s236
      %p238 = scmp.eq.s32.totalorder %s29, 0
      %p239 = por %p237, %p238
      %s240 = ssub.s32 %s30, %s42
      %p241 = scmp.eq.s32.totalorder %s240, 0
      %s243 = sadd.s32 %s242, 1
      %s244 = scalar_select %p241, %s242, %s243
      %p247 = pneg %p241
      %p248 = scmp.eq.s32.totalorder %s23, 1
      %p249 = por %p247, %p248
      %p250 = scmp.ne.s32.totalorder %s242, %s245
      %p251 = scmp.eq.s32.totalorder %s23, 0
      %p252 = por %p250, %p251
      %p253 = scmp.ne.s32.totalorder %s242, %s245
      %p254 = scmp.eq.s32.totalorder %s28, 1
      %p255 = por %p253, %p254
      %p256 = scmp.ne.s32.totalorder %s245, %s246
      %p257 = scmp.eq.s32.totalorder %s28, 0
      %p258 = por %p256, %p257
      %p259 = scmp.ne.s32.totalorder %s245, %s246
      %p260 = scmp.eq.s32.totalorder %s29, 1
      %p261 = por %p259, %p260
      %p263 = scmp.ne.s32.totalorder %s246, %s262
      %p264 = scmp.eq.s32.totalorder %s29, 0
      %p265 = por %p263, %p264
      %s266 = ssub.s32 %s30, %s42
      %p267 = scmp.eq.s32.totalorder %s266, 0
      %s269 = sadd.s32 %s268, 1
      %s270 = scalar_select %p267, %s268, %s269
      %p273 = pneg %p267
      %p274 = scmp.eq.s32.totalorder %s23, 1
      %p275 = por %p273, %p274
      %p276 = scmp.ne.s32.totalorder %s268, %s271
      %p277 = scmp.eq.s32.totalorder %s23, 0
      %p278 = por %p276, %p277
      %p279 = scmp.ne.s32.totalorder %s268, %s271
      %p280 = scmp.eq.s32.totalorder %s28, 1
      %p281 = por %p279, %p280
      %p282 = scmp.ne.s32.totalorder %s271, %s272
      %p283 = scmp.eq.s32.totalorder %s28, 0
      %p284 = por %p282, %p283
      %p285 = scmp.ne.s32.totalorder %s271, %s272
      %p286 = scmp.eq.s32.totalorder %s29, 1
      %p287 = por %p285, %p286
      %p289 = scmp.ne.s32.totalorder %s272, %s288
      %p290 = scmp.eq.s32.totalorder %s29, 0
      %p291 = por %p289, %p290
      %s292 = ssub.s32 %s30, %s42
      %p293 = scmp.eq.s32.totalorder %s292, 0
      %s295 = sadd.s32 %s294, 1
      %s296 = scalar_select %p293, %s294, %s295
      %p299 = pneg %p293
      %p300 = scmp.eq.s32.totalorder %s23, 1
      %p301 = por %p299, %p300
      %p302 = scmp.ne.s32.totalorder %s294, %s297
      %p303 = scmp.eq.s32.totalorder %s23, 0
      %p304 = por %p302, %p303
      %p305 = scmp.ne.s32.totalorder %s294, %s297
      %p306 = scmp.eq.s32.totalorder %s28, 1
      %p307 = por %p305, %p306
      %p308 = scmp.ne.s32.totalorder %s297, %s298
      %p309 = scmp.eq.s32.totalorder %s28, 0
      %p310 = por %p308, %p309
      %p311 = scmp.ne.s32.totalorder %s297, %s298
      %p312 = scmp.eq.s32.totalorder %s29, 1
      %p313 = por %p311, %p312
      %p315 = scmp.ne.s32.totalorder %s298, %s314
      %p316 = scmp.eq.s32.totalorder %s29, 0
      %p317 = por %p315, %p316
      %p318 = scmp.le.s32.totalorder 1, %s23
      %p319 = scmp.lt.s32.totalorder %s23, 3
      %p320 = pnand %p318, %p319
      %p321 = pneg %p320
      // Predicated region
      $region9: #{cerebral_lstm_forward.2} parent=5 // pred_check
        _
      $region10: #{cerebral_lstm_forward.2} parent=5 // pred_check_branch
        %323 = sbr.rel (%p320) target = $region12
      $region11: #{cerebral_lstm_forward.2} parent=5 // pred_region
        %s324 = ssub.s32 %s23, 1
        // Predicated region
        $region13: #{cerebral_lstm_forward.2} parent=11 // pred_check
          %p325 = pneg %p162
        $region14: #{cerebral_lstm_forward.2} parent=11 // pred_check_branch
          %327 = sbr.rel (%p325) target = $region16
        $region15: #{cerebral_lstm_forward.2} parent=11 // pred_region
          _
        $region16: #{cerebral_lstm_forward.2} parent=11 // pred_fallthru
          _
        // Predicated region
        $region17: #{cerebral_lstm_forward.2} parent=11 // pred_check
          %p328 = pneg %p183
        $region18: #{cerebral_lstm_forward.2} parent=11 // pred_check_branch
          %330 = sbr.rel (%p328) target = $region20
        $region19: #{cerebral_lstm_forward.2} parent=11 // pred_region
          _
        $region20: #{cerebral_lstm_forward.2} parent=11 // pred_fallthru
          _
        // Predicated region
        $region21: #{cerebral_lstm_forward.2} parent=11 // pred_check
          %p331 = pneg %p204
        $region22: #{cerebral_lstm_forward.2} parent=11 // pred_check_branch
          %333 = sbr.rel (%p331) target = $region24
        $region23: #{cerebral_lstm_forward.2} parent=11 // pred_region
          _
        $region24: #{cerebral_lstm_forward.2} parent=11 // pred_fallthru
          _
      $region12: #{cerebral_lstm_forward.2} parent=5 // pred_fallthru
        _
      %p334 = scmp.lt.s32.totalorder %s23, 2
      // Predicated region
      $region25: #{cerebral_lstm_forward.2} parent=5 // pred_check
        %p335 = pneg %p334
      $region26: #{cerebral_lstm_forward.2} parent=5 // pred_check_branch
        %337 = sbr.rel (%p335) target = $region28
      $region27: #{cerebral_lstm_forward.2} parent=5 // pred_region
        // Predicated region
        $region29: #{cerebral_lstm_forward.2} parent=27 // pred_check
          %p338 = pneg %p57
        $region30: #{cerebral_lstm_forward.2} parent=27 // pred_check_branch
          %340 = sbr.rel (%p338) target = $region32
        $region31: #{cerebral_lstm_forward.2} parent=27 // pred_region
          %s341 = sand.u32 %s47, 1
          %s342 = sand.u32 %s47, 1
          %s343 = smul.addr %s342, 64
          %s344 = scalar_lea.vmem [#allocation6], %s343
          %s345 = smul.u32 8, %s31
          %s346 = smul.addr %s345, 2
          %s347 = sadd.s32 %s30, %s346
          %s348 = smul.addr %s347, 8
          %s349 = scalar_lea.vmem %s0, %s348
          // Predicated region
          $region33: #{cerebral_lstm_forward.2} parent=31 // pred_check
            _
          $region34: #{cerebral_lstm_forward.2} parent=31 // pred_check_branch
            %351 = sbr.rel (0) target = $region36
          $region35: #{cerebral_lstm_forward.2} parent=31 // pred_region
            // Predicated region
            $region37: #{cerebral_lstm_forward.2} parent=35 // pred_check
              _
            $region38: #{cerebral_lstm_forward.2} parent=35 // pred_check_branch
              %353 = sbr.rel (0) target = $region40
            $region39: #{cerebral_lstm_forward.2} parent=35 // pred_region
              // Predicated region
              $region52: #{cerebral_lstm_forward.2} parent=39 // pred_check
                _
              $region53: #{cerebral_lstm_forward.2} parent=39 // pred_check_branch
                %382 = sbr.rel (0) target = $region55
              $region54: #{cerebral_lstm_forward.2} parent=39 // pred_region
                loop: start=0, step=1, limit=1
                $region56: #{cerebral_lstm_forward.2} parent=54 // loop_pre_header
                  _
                $region57: #{cerebral_lstm_forward.2} parent=54 // loop_header
                  %s384 = sphi 0, %s388
                  %p385 = scmp.ge.s32.totalorder %s384, 1
                  %s389 = sphi %s349, %s349
                  %s390 = sphi %s344, %s344
                $region58: #{cerebral_lstm_forward.2} parent=54 // loop_header_branch
                  %387 = sbr.rel (%p385) target = $region62
                $region59: #{cerebral_lstm_forward.2} parent=54 // loop_body
                  %v391 = vld [vmem:[%s389] sm:$0xff]
                  %392 = vst [vmem:[%s390] sm:$0xff] %v391
                  %v393 = vld [vmem:[%s389 + $0x10] sm:$0xff]
                  %394 = vst [vmem:[%s390 + $0x8] sm:$0xff] %v393
                  %v395 = vld [vmem:[%s389 + $0x20] sm:$0xff]
                  %396 = vst [vmem:[%s390 + $0x10] sm:$0xff] %v395
                  %v397 = vld [vmem:[%s389 + $0x30] sm:$0xff]
                  %398 = vst [vmem:[%s390 + $0x18] sm:$0xff] %v397
                  %v399 = vld [vmem:[%s389 + $0x40] sm:$0xff]
                  %400 = vst [vmem:[%s390 + $0x20] sm:$0xff] %v399
                  %v401 = vld [vmem:[%s389 + $0x50] sm:$0xff]
                  %402 = vst [vmem:[%s390 + $0x28] sm:$0xff] %v401
                  %v403 = vld [vmem:[%s389 + $0x60] sm:$0xff]
                  %404 = vst [vmem:[%s390 + $0x30] sm:$0xff] %v403
                  %v405 = vld [vmem:[%s389 + $0x70] sm:$0xff]
                  %406 = vst [vmem:[%s390 + $0x38] sm:$0xff] %v405
                $region60: #{cerebral_lstm_forward.2} parent=54 // loop_footer
                  %s388 = sadd.s32 1, %s384
                $region61: #{cerebral_lstm_forward.2} parent=54 // loop_footer_branch
                  %383 = sbr.rel target = $region57
                $region62: #{cerebral_lstm_forward.2} parent=54 // loop_exit
                  _
              $region55: #{cerebral_lstm_forward.2} parent=39 // pred_fallthru
                _
              // Predicated region
              $region63: #{cerebral_lstm_forward.2} parent=39 // pred_check
                _
              $region64: #{cerebral_lstm_forward.2} parent=39 // pred_check_branch
                %408 = sbr.rel target = $region66
              $region65: #{cerebral_lstm_forward.2} parent=39 // pred_region
                _
              $region66: #{cerebral_lstm_forward.2} parent=39 // pred_fallthru
                _
            $region40: #{cerebral_lstm_forward.2} parent=35 // pred_fallthru
              _
            // Predicated region
            $region41: #{cerebral_lstm_forward.2} parent=35 // pred_check
              _
            $region42: #{cerebral_lstm_forward.2} parent=35 // pred_check_branch
              %355 = sbr.rel target = $region44
            $region43: #{cerebral_lstm_forward.2} parent=35 // pred_region
              loop: start=0, step=1, limit=1
              $region45: #{cerebral_lstm_forward.2} parent=43 // loop_pre_header
                _
              $region46: #{cerebral_lstm_forward.2} parent=43 // loop_header
                %s358 = sphi 0, %s362
                %p359 = scmp.ge.s32.totalorder %s358, 1
                %s363 = sphi %s349, %s349
                %s364 = sphi %s344, %s344
              $region47: #{cerebral_lstm_forward.2} parent=43 // loop_header_branch
                %361 = sbr.rel (%p359) target = $region51
              $region48: #{cerebral_lstm_forward.2} parent=43 // loop_body
                %v365 = vld [vmem:[%s363] sm:$0xff]
                %366 = vst [vmem:[%s364] sm:$0xff] %v365
                %v367 = vld [vmem:[%s363 + $0x10] sm:$0xff]
                %368 = vst [vmem:[%s364 + $0x8] sm:$0xff] %v367
                %v369 = vld [vmem:[%s363 + $0x20] sm:$0xff]
                %370 = vst [vmem:[%s364 + $0x10] sm:$0xff] %v369
                %v371 = vld [vmem:[%s363 + $0x30] sm:$0xff]
                %372 = vst [vmem:[%s364 + $0x18] sm:$0xff] %v371
                %v373 = vld [vmem:[%s363 + $0x40] sm:$0xff]
                %374 = vst [vmem:[%s364 + $0x20] sm:$0xff] %v373
                %v375 = vld [vmem:[%s363 + $0x50] sm:$0xff]
                %376 = vst [vmem:[%s364 + $0x28] sm:$0xff] %v375
                %v377 = vld [vmem:[%s363 + $0x60] sm:$0xff]
                %378 = vst [vmem:[%s364 + $0x30] sm:$0xff] %v377
                %v379 = vld [vmem:[%s363 + $0x70] sm:$0xff]
                %380 = vst [vmem:[%s364 + $0x38] sm:$0xff] %v379
              $region49: #{cerebral_lstm_forward.2} parent=43 // loop_footer
                %s362 = sadd.s32 1, %s358
              $region50: #{cerebral_lstm_forward.2} parent=43 // loop_footer_branch
                %357 = sbr.rel target = $region46
              $region51: #{cerebral_lstm_forward.2} parent=43 // loop_exit
                _
            $region44: #{cerebral_lstm_forward.2} parent=35 // pred_fallthru
              _
          $region36: #{cerebral_lstm_forward.2} parent=31 // pred_fallthru
            _
          %409 = vnop
        $region32: #{cerebral_lstm_forward.2} parent=27 // pred_fallthru
          _
        // Predicated region
        $region67: #{cerebral_lstm_forward.2} parent=27 // pred_check
          %p410 = pneg %p83
        $region68: #{cerebral_lstm_forward.2} parent=27 // pred_check_branch
          %412 = sbr.rel (%p410) target = $region70
        $region69: #{cerebral_lstm_forward.2} parent=27 // pred_region
          %p413 = scmp.lt.s32.totalorder %s30, 1
          %s414 = scalar_select %p413, %s30, 1
          %s415 = smul.addr %s414, 8
          %s416 = scalar_lea.vmem %s1, %s415
        $region70: #{cerebral_lstm_forward.2} parent=27 // pred_fallthru
          _
        // Predicated region
        $region71: #{cerebral_lstm_forward.2} parent=27 // pred_check
          %p417 = pneg %p109
        $region72: #{cerebral_lstm_forward.2} parent=27 // pred_check_branch
          %419 = sbr.rel (%p417) target = $region74
        $region73: #{cerebral_lstm_forward.2} parent=27 // pred_region
          %p420 = scmp.lt.s32.totalorder %s30, 1
          %s421 = scalar_select %p420, %s30, 1
          %s422 = smul.addr %s421, 8
          %s423 = scalar_lea.vmem %s2, %s422
        $region74: #{cerebral_lstm_forward.2} parent=27 // pred_fallthru
          _
        // Predicated region
        $region75: #{cerebral_lstm_forward.2} parent=27 // pred_check
          %p424 = pneg %p135
        $region76: #{cerebral_lstm_forward.2} parent=27 // pred_check_branch
          %426 = sbr.rel (%p424) target = $region78
        $region77: #{cerebral_lstm_forward.2} parent=27 // pred_region
          %p427 = scmp.lt.s32.totalorder %s30, 1
          %s428 = scalar_select %p427, %s30, 1
          %s429 = smul.addr %s428, 8
          %s430 = scalar_lea.vmem %s3, %s429
        $region78: #{cerebral_lstm_forward.2} parent=27 // pred_fallthru
          _
      $region28: #{cerebral_lstm_forward.2} parent=5 // pred_fallthru
        _
      %p431 = scmp.le.s32.totalorder 1, %s23
      %p432 = scmp.lt.s32.totalorder %s23, 3
      %p433 = pnand %p431, %p432
      %p434 = pneg %p433
      // Predicated region
      $region79: #{cerebral_lstm_forward.2} parent=5 // pred_check
        _
      $region80: #{cerebral_lstm_forward.2} parent=5 // pred_check_branch
        %436 = sbr.rel (%p433) target = $region82
      $region81: #{cerebral_lstm_forward.2} parent=5 // pred_region
        %s437 = ssub.s32 %s23, 1
        %s438 = sand.u32 %s50, 1
        %s439 = sand.u32 %s50, 1
        %s440 = smul.addr %s439, 64
        %s441 = scalar_lea.vmem [#allocation6], %s440
        // Predicated region
        $region83: #{cerebral_lstm_forward.2} parent=81 // pred_check
          %p442 = pneg %p63
        $region84: #{cerebral_lstm_forward.2} parent=81 // pred_check_branch
          %444 = sbr.rel (%p442) target = $region86
        $region85: #{cerebral_lstm_forward.2} parent=81 // pred_region
          _
        $region86: #{cerebral_lstm_forward.2} parent=81 // pred_fallthru
          _
        %s445 = sand.u32 %s50, 1
        %s446 = sand.u32 %s50, 1
        %s447 = smul.addr %s446, 64
        %s448 = scalar_lea.vmem [#allocation6], %s447
        %p449 = pneg %p63
        %p450 = pneg %p60
        %p451 = scmp.lt.s32.totalorder %s32, 1
        %s452 = scalar_select %p451, %s32, 1
        %s453 = smul.addr %s452, 8
        %s454 = scalar_lea.vmem %s1, %s453
        %p455 = pneg %p89
        %p456 = pneg %p86
        %p457 = scmp.lt.s32.totalorder %s32, 1
        %s458 = scalar_select %p457, %s32, 1
        %s459 = smul.addr %s458, 8
        %s460 = scalar_lea.vmem %s2, %s459
        %p461 = pneg %p115
        %p462 = pneg %p112
        %p463 = scmp.lt.s32.totalorder %s32, 1
        %s464 = scalar_select %p463, %s32, 1
        %s465 = smul.addr %s464, 8
        %s466 = scalar_lea.vmem %s3, %s465
        %p467 = pneg %p141
        %p468 = pneg %p138
        %p469 = pneg %p162
        %p470 = pneg %p159
        %p471 = pneg %p183
        %p472 = pneg %p180
        %p473 = pneg %p204
        %p474 = pneg %p201
        %p475 = pneg %p232
        %p476 = pneg %p229
        %s477 = sand.u32 %s219, 1
        %s478 = sand.u32 %s219, 1
        %s479 = smul.addr %s478, 64
        %s480 = scalar_lea.vmem [#allocation7], %s479
        %p481 = pneg %p258
        %p482 = pneg %p255
        %s483 = sand.u32 %s245, 1
        %s484 = scalar_lea.sflag [#allocation9], %s483
        %s485 = sand.u32 %s245, 1
        %s486 = smul.addr %s485, 8
        %s487 = scalar_lea.vmem [#allocation8], %s486
        %p488 = pneg %p284
        %p489 = pneg %p281
        %s490 = sand.u32 %s28, 1
        %s491 = scalar_lea.sflag [#allocation11], %s490
        %s492 = sand.u32 %s271, 1
        %s493 = smul.addr %s492, 8
        %s494 = scalar_lea.vmem [#allocation10], %s493
        %p495 = pneg %p310
        %p496 = pneg %p307
        %s497 = sand.u32 %s28, 1
        %s498 = scalar_lea.sflag [#allocation11], %s497
        %s499 = sand.u32 %s297, 1
        %s500 = smul.addr %s499, 8
        %s501 = scalar_lea.vmem [#allocation12], %s500
        %s502 = smul.u32 8, %s33
        %p503 = scmp.lt.s32.totalorder %s32, 1
        %s504 = scalar_select %p503, %s32, 1
        %s505 = smul.addr %s504, 8
        %s506 = scalar_lea.vmem %s1, %s505
        %p507 = scmp.lt.s32.totalorder %s32, 1
        %s508 = scalar_select %p507, %s32, 1
        %s509 = smul.addr %s508, 8
        %s510 = scalar_lea.vmem %s2, %s509
        %p511 = scmp.lt.s32.totalorder %s32, 1
        %s512 = scalar_select %p511, %s32, 1
        %s513 = smul.addr %s512, 8
        %s514 = scalar_lea.vmem %s3, %s513
        %s515 = smul.u32 8, %s33
        %p517 = scmp.eq.s32.totalorder %s33, 0
        // Predicated region
        $region87: #{cerebral_lstm_forward.2} parent=81 // pred_check
          %p518 = pneg %p517
        $region88: #{cerebral_lstm_forward.2} parent=81 // pred_check_branch
          %520 = sbr.rel (%p518) target = $region90
        $region89: #{cerebral_lstm_forward.2} parent=81 // pred_region
          %v521 = vld [vmem:[%s506] sm:$0xff]
          %522 = vst [vmem:[#allocation3] sm:$0xff] %v521
          %v523 = vld [vmem:[%s510] sm:$0xff]
          %524 = vst [vmem:[#allocation4] sm:$0xff] %v523
          %v525 = vld [vmem:[%s514] sm:$0xff]
          %526 = vst [vmem:[#allocation5] sm:$0xff] %v525
        $region90: #{cerebral_lstm_forward.2} parent=81 // pred_fallthru
          _
        %v527 = vld [vmem:[%s441] sm:$0xff]
        %v528 = vld [vmem:[%s441 + $0x8] sm:$0xff]
        %v529 = vld [vmem:[%s441 + $0x10] sm:$0xff]
        %v530 = vld [vmem:[%s441 + $0x18] sm:$0xff]
        %v531 = vld [vmem:[%s441 + $0x20] sm:$0xff]
        %v532 = vld [vmem:[%s441 + $0x28] sm:$0xff]
        %v533 = vld [vmem:[%s441 + $0x30] sm:$0xff]
        %v534 = vld [vmem:[%s441 + $0x38] sm:$0xff]
        %v535 = vpack.c.bf16 %v528, %v527
        %v536 = vpack.c.bf16 %v530, %v529
        %v537 = vpack.c.bf16 %v532, %v531
        %v538 = vpack.c.bf16 %v534, %v533
        %v539 = vld [vmem:[%s4] sm:$0xff]
        %v540 = vld [vmem:[%s4 + $0x8] sm:$0xff]
        %v541 = vld [vmem:[%s4 + $0x10] sm:$0xff]
        %v542 = vld [vmem:[%s4 + $0x18] sm:$0xff]
        %v543 = vld [vmem:[%s4 + $0x20] sm:$0xff]
        %v544 = vld [vmem:[%s4 + $0x28] sm:$0xff]
        %v545 = vld [vmem:[%s4 + $0x30] sm:$0xff]
        %v546 = vld [vmem:[%s4 + $0x38] sm:$0xff]
        %v547 = vld [vmem:[%s6] sm:$0xff]
        %v549 = vlaneseq
        %v550 = vshrl.u32 %v549, 7
        %v551 = vsub.s32 0, %v550
        %v552 = vrot.slane %v547, %v551
        %v553 = vlaneseq
        %v554 = vshrl.u32 %v553, 7
        %v555 = vsub.s32 1, %v554
        %v556 = vrot.slane %v547, %v555
        %v557 = vlaneseq
        %v558 = vshrl.u32 %v557, 7
        %v559 = vsub.s32 2, %v558
        %v560 = vrot.slane %v547, %v559
        %v561 = vlaneseq
        %v562 = vshrl.u32 %v561, 7
        %v563 = vsub.s32 3, %v562
        %v564 = vrot.slane %v547, %v563
        %v565 = vlaneseq
        %v566 = vshrl.u32 %v565, 7
        %v567 = vsub.s32 4, %v566
        %v568 = vrot.slane %v547, %v567
        %v569 = vlaneseq
        %v570 = vshrl.u32 %v569, 7
        %v571 = vsub.s32 5, %v570
        %v572 = vrot.slane %v547, %v571
        %v573 = vlaneseq
        %v574 = vshrl.u32 %v573, 7
        %v575 = vsub.s32 6, %v574
        %v576 = vrot.slane %v547, %v575
        %v577 = vlaneseq
        %v578 = vshrl.u32 %v577, 7
        %v579 = vsub.s32 7, %v578
        %v580 = vrot.slane %v547, %v579
        %v597 = vunpack.c.l.b16 %v539
        %v598 = vunpack.c.h.b16 %v539
        %v599 = vunpack.c.l.b16 %v540
        %v600 = vunpack.c.h.b16 %v540
        %v601 = vunpack.c.l.b16 %v541
        %v602 = vunpack.c.h.b16 %v541
        %v603 = vunpack.c.l.b16 %v542
        %v604 = vunpack.c.h.b16 %v542
        %v605 = vunpack.c.l.b16 %v543
        %v606 = vunpack.c.h.b16 %v543
        %v607 = vunpack.c.l.b16 %v544
        %v608 = vunpack.c.h.b16 %v544
        %v609 = vunpack.c.l.b16 %v545
        %v610 = vunpack.c.h.b16 %v545
        %v611 = vunpack.c.l.b16 %v546
        %v612 = vunpack.c.h.b16 %v546
        %v613 = vpack.c.b16 %v605, %v597
        %v614 = vpack.c.b16 %v606, %v598
        %v615 = vpack.c.b16 %v607, %v599
        %v616 = vpack.c.b16 %v608, %v600
        %v617 = vpack.c.b16 %v609, %v601
        %v618 = vpack.c.b16 %v610, %v602
        %v619 = vpack.c.b16 %v611, %v603
        %v620 = vpack.c.b16 %v612, %v604
        %vm629 = vcmask 130048
        %v631 = vsel %vm629, %v535, 0
        %v634 = vsel %vm629, %v536, 0
        %v637 = vsel %vm629, %v537, 0
        %v640 = vsel %vm629, %v538, 0
        %642 = vmatprep.subr.bf16.mxu0 %v614
        %643 = vmatpush1.bf16.msra.mxu0 %v613
        %644 = vmatprep.subr.bf16.mxu0 0
        %645 = vmatpush1.bf16.msra.mxu0 0
        %646 = vmatprep.subr.bf16.mxu0 0
        %647 = vmatpush1.bf16.msra.mxu0 0
        %648 = vmatprep.subr.bf16.mxu0 0
        %649 = vmatpush1.bf16.msra.mxu0 0
        %650 = vmatprep.subr.bf16.mxu0 0
        %651 = vmatpush1.bf16.msra.mxu0 0
        %652 = vmatprep.subr.bf16.mxu0 0
        %653 = vmatpush1.bf16.msra.mxu0 0
        %654 = vmatprep.subr.bf16.mxu0 0
        %655 = vmatpush1.bf16.msra.mxu0 0
        %656 = vmatprep.subr.bf16.mxu0 0
        %657 = vmatpush1.bf16.msra.mxu0 0
        %658 = vmatprep.subr.bf16.mxu0 0
        %659 = vmatpush1.bf16.msra.mxu0 0
        %660 = vmatprep.subr.bf16.mxu0 0
        %661 = vmatpush1.bf16.msra.mxu0 0
        %662 = vmatprep.subr.bf16.mxu0 0
        %663 = vmatpush1.bf16.msra.mxu0 0
        %664 = vmatprep.subr.bf16.mxu0 0
        %665 = vmatpush1.bf16.msra.mxu0 0
        %666 = vmatprep.subr.bf16.mxu0 0
        %667 = vmatpush1.bf16.msra.mxu0 0
        %668 = vmatprep.subr.bf16.mxu0 0
        %669 = vmatpush1.bf16.msra.mxu0 0
        %670 = vmatprep.subr.bf16.mxu0 0
        %671 = vmatpush1.bf16.msra.mxu0 0
        %672 = vmatprep.subr.bf16.mxu0 0
        %673 = vmatpush1.bf16.msra.mxu0 0
        %674 = vmatprep.mubr.bf16.mxu0 0
        %675 = vmatmul.mubr.bf16.gmra.mrb[0].mxu0 %v631
        %v676 = vpop.f32.mrb[0].mxu0
        %v677 = vadd.f32 %v552, %v676
        %v678 = vpop.f32.mrb[0].mxu0
        %v679 = vadd.f32 %v556, %v678
        %v680 = vpop.f32.mrb[0].mxu0
        %v681 = vadd.f32 %v552, %v680
        %v682 = vpop.f32.mrb[0].mxu0
        %v683 = vadd.f32 %v556, %v682
        %684 = vmatprep.mubr.bf16.mxu0 0
        %685 = vmatmul.mubr.bf16.gmra.mrb[0].mxu0 %v634
        %v686 = vpop.f32.mrb[0].mxu0
        %v687 = vadd.f32 %v552, %v686
        %v688 = vpop.f32.mrb[0].mxu0
        %v689 = vadd.f32 %v556, %v688
        %v690 = vpop.f32.mrb[0].mxu0
        %v691 = vadd.f32 %v552, %v690
        %v692 = vpop.f32.mrb[0].mxu0
        %v693 = vadd.f32 %v556, %v692
        %694 = vmatprep.mubr.bf16.mxu0 0
        %695 = vmatmul.mubr.bf16.gmra.mrb[0].mxu0 %v637
        %v696 = vpop.f32.mrb[0].mxu0
        %v697 = vadd.f32 %v552, %v696
        %v698 = vpop.f32.mrb[0].mxu0
        %v699 = vadd.f32 %v556, %v698
        %v700 = vpop.f32.mrb[0].mxu0
        %v701 = vadd.f32 %v552, %v700
        %v702 = vpop.f32.mrb[0].mxu0
        %v703 = vadd.f32 %v556, %v702
        %704 = vmatprep.mubr.bf16.mxu0 0
        %705 = vmatmul.mubr.bf16.gmra.mrb[0].mxu0 %v640
        %v706 = vpop.f32.mrb[0].mxu0
        %v707 = vadd.f32 %v552, %v706
        %v708 = vpop.f32.mrb[0].mxu0
        %v709 = vadd.f32 %v556, %v708
        %v710 = vpop.f32.mrb[0].mxu0
        %v711 = vadd.f32 %v552, %v710
        %v712 = vpop.f32.mrb[0].mxu0
        %v713 = vadd.f32 %v556, %v712
        %714 = vdwg.mxu0
        %715 = vmatprep.subr.bf16.mxu0 %v616
        %716 = vmatpush1.bf16.msra.mxu0 %v615
        %717 = vmatprep.subr.bf16.mxu0 0
        %718 = vmatpush1.bf16.msra.mxu0 0
        %719 = vmatprep.subr.bf16.mxu0 0
        %720 = vmatpush1.bf16.msra.mxu0 0
        %721 = vmatprep.subr.bf16.mxu0 0
        %722 = vmatpush1.bf16.msra.mxu0 0
        %723 = vmatprep.subr.bf16.mxu0 0
        %724 = vmatpush1.bf16.msra.mxu0 0
        %725 = vmatprep.subr.bf16.mxu0 0
        %726 = vmatpush1.bf16.msra.mxu0 0
        %727 = vmatprep.subr.bf16.mxu0 0
        %728 = vmatpush1.bf16.msra.mxu0 0
        %729 = vmatprep.subr.bf16.mxu0 0
        %730 = vmatpush1.bf16.msra.mxu0 0
        %731 = vmatprep.subr.bf16.mxu0 0
        %732 = vmatpush1.bf16.msra.mxu0 0
        %733 = vmatprep.subr.bf16.mxu0 0
        %734 = vmatpush1.bf16.msra.mxu0 0
        %735 = vmatprep.subr.bf16.mxu0 0
        %736 = vmatpush1.bf16.msra.mxu0 0
        %737 = vmatprep.subr.bf16.mxu0 0
        %738 = vmatpush1.bf16.msra.mxu0 0
        %739 = vmatprep.subr.bf16.mxu0 0
        %740 = vmatpush1.bf16.msra.mxu0 0
        %741 = vmatprep.subr.bf16.mxu0 0
        %742 = vmatpush1.bf16.msra.mxu0 0
        %743 = vmatprep.subr.bf16.mxu0 0
        %744 = vmatpush1.bf16.msra.mxu0 0
        %745 = vmatprep.subr.bf16.mxu0 0
        %746 = vmatpush1.bf16.msra.mxu0 0
        %747 = vmatprep.mubr.bf16.mxu0 0
        %748 = vmatmul.mubr.bf16.gmra.mrb[0].mxu0 %v631
        %v749 = vpop.f32.mrb[0].mxu0
        %v750 = vadd.f32 %v560, %v749
        %v751 = vpop.f32.mrb[0].mxu0
        %v752 = vadd.f32 %v564, %v751
        %v753 = vpop.f32.mrb[0].mxu0
        %v754 = vadd.f32 %v560, %v753
        %v755 = vpop.f32.mrb[0].mxu0
        %v756 = vadd.f32 %v564, %v755
        %757 = vmatprep.mubr.bf16.mxu0 0
        %758 = vmatmul.mubr.bf16.gmra.mrb[0].mxu0 %v634
        %v759 = vpop.f32.mrb[0].mxu0
        %v760 = vadd.f32 %v560, %v759
        %v761 = vpop.f32.mrb[0].mxu0
        %v762 = vadd.f32 %v564, %v761
        %v763 = vpop.f32.mrb[0].mxu0
        %v764 = vadd.f32 %v560, %v763
        %v765 = vpop.f32.mrb[0].mxu0
        %v766 = vadd.f32 %v564, %v765
        %767 = vmatprep.mubr.bf16.mxu0 0
        %768 = vmatmul.mubr.bf16.gmra.mrb[0].mxu0 %v637
        %v769 = vpop.f32.mrb[0].mxu0
        %v770 = vadd.f32 %v560, %v769
        %v771 = vpop.f32.mrb[0].mxu0
        %v772 = vadd.f32 %v564, %v771
        %v773 = vpop.f32.mrb[0].mxu0
        %v774 = vadd.f32 %v560, %v773
        %v775 = vpop.f32.mrb[0].mxu0
        %v776 = vadd.f32 %v564, %v775
        %777 = vmatprep.mubr.bf16.mxu0 0
        %778 = vmatmul.mubr.bf16.gmra.mrb[0].mxu0 %v640
        %v779 = vpop.f32.mrb[0].mxu0
        %v780 = vadd.f32 %v560, %v779
        %v781 = vpop.f32.mrb[0].mxu0
        %v782 = vadd.f32 %v564, %v781
        %v783 = vpop.f32.mrb[0].mxu0
        %v784 = vadd.f32 %v560, %v783
        %v785 = vpop.f32.mrb[0].mxu0
        %v786 = vadd.f32 %v564, %v785
        %787 = vdwg.mxu0
        %788 = vmatprep.subr.bf16.mxu0 %v618
        %789 = vmatpush1.bf16.msra.mxu0 %v617
        %790 = vmatprep.subr.bf16.mxu0 0
        %791 = vmatpush1.bf16.msra.mxu0 0
        %792 = vmatprep.subr.bf16.mxu0 0
        %793 = vmatpush1.bf16.msra.mxu0 0
        %794 = vmatprep.subr.bf16.mxu0 0
        %795 = vmatpush1.bf16.msra.mxu0 0
        %796 = vmatprep.subr.bf16.mxu0 0
        %797 = vmatpush1.bf16.msra.mxu0 0
        %798 = vmatprep.subr.bf16.mxu0 0
        %799 = vmatpush1.bf16.msra.mxu0 0
        %800 = vmatprep.subr.bf16.mxu0 0
        %801 = vmatpush1.bf16.msra.mxu0 0
        %802 = vmatprep.subr.bf16.mxu0 0
        %803 = vmatpush1.bf16.msra.mxu0 0
        %804 = vmatprep.subr.bf16.mxu0 0
        %805 = vmatpush1.bf16.msra.mxu0 0
        %806 = vmatprep.subr.bf16.mxu0 0
        %807 = vmatpush1.bf16.msra.mxu0 0
        %808 = vmatprep.subr.bf16.mxu0 0
        %809 = vmatpush1.bf16.msra.mxu0 0
        %810 = vmatprep.subr.bf16.mxu0 0
        %811 = vmatpush1.bf16.msra.mxu0 0
        %812 = vmatprep.subr.bf16.mxu0 0
        %813 = vmatpush1.bf16.msra.mxu0 0
        %814 = vmatprep.subr.bf16.mxu0 0
        %815 = vmatpush1.bf16.msra.mxu0 0
        %816 = vmatprep.subr.bf16.mxu0 0
        %817 = vmatpush1.bf16.msra.mxu0 0
        %818 = vmatprep.subr.bf16.mxu0 0
        %819 = vmatpush1.bf16.msra.mxu0 0
        %820 = vmatprep.mubr.bf16.mxu0 0
        %821 = vmatmul.mubr.bf16.gmra.mrb[0].mxu0 %v631
        %v822 = vpop.f32.mrb[0].mxu0
        %v823 = vadd.f32 %v568, %v822
        %v824 = vpop.f32.mrb[0].mxu0
        %v825 = vadd.f32 %v572, %v824
        %v826 = vpop.f32.mrb[0].mxu0
        %v827 = vadd.f32 %v568, %v826
        %v828 = vpop.f32.mrb[0].mxu0
        %v829 = vadd.f32 %v572, %v828
        %830 = vmatprep.mubr.bf16.mxu0 0
        %831 = vmatmul.mubr.bf16.gmra.mrb[0].mxu0 %v634
        %v832 = vpop.f32.mrb[0].mxu0
        %v833 = vadd.f32 %v568, %v832
        %v834 = vpop.f32.mrb[0].mxu0
        %v835 = vadd.f32 %v572, %v834
        %v836 = vpop.f32.mrb[0].mxu0
        %v837 = vadd.f32 %v568, %v836
        %v838 = vpop.f32.mrb[0].mxu0
        %v839 = vadd.f32 %v572, %v838
        %840 = vmatprep.mubr.bf16.mxu0 0
        %841 = vmatmul.mubr.bf16.gmra.mrb[0].mxu0 %v637
        %v842 = vpop.f32.mrb[0].mxu0
        %v843 = vadd.f32 %v568, %v842
        %v844 = vpop.f32.mrb[0].mxu0
        %v845 = vadd.f32 %v572, %v844
        %v846 = vpop.f32.mrb[0].mxu0
        %v847 = vadd.f32 %v568, %v846
        %v848 = vpop.f32.mrb[0].mxu0
        %v849 = vadd.f32 %v572, %v848
        %850 = vmatprep.mubr.bf16.mxu0 0
        %851 = vmatmul.mubr.bf16.gmra.mrb[0].mxu0 %v640
        %v852 = vpop.f32.mrb[0].mxu0
        %v853 = vadd.f32 %v568, %v852
        %v854 = vpop.f32.mrb[0].mxu0
        %v855 = vadd.f32 %v572, %v854
        %v856 = vpop.f32.mrb[0].mxu0
        %v857 = vadd.f32 %v568, %v856
        %v858 = vpop.f32.mrb[0].mxu0
        %v859 = vadd.f32 %v572, %v858
        %860 = vdwg.mxu0
        %861 = vmatprep.subr.bf16.mxu0 %v620
        %862 = vmatpush1.bf16.msra.mxu0 %v619
        %863 = vmatprep.subr.bf16.mxu0 0
        %864 = vmatpush1.bf16.msra.mxu0 0
        %865 = vmatprep.subr.bf16.mxu0 0
        %866 = vmatpush1.bf16.msra.mxu0 0
        %867 = vmatprep.subr.bf16.mxu0 0
        %868 = vmatpush1.bf16.msra.mxu0 0
        %869 = vmatprep.subr.bf16.mxu0 0
        %870 = vmatpush1.bf16.msra.mxu0 0
        %871 = vmatprep.subr.bf16.mxu0 0
        %872 = vmatpush1.bf16.msra.mxu0 0
        %873 = vmatprep.subr.bf16.mxu0 0
        %874 = vmatpush1.bf16.msra.mxu0 0
        %875 = vmatprep.subr.bf16.mxu0 0
        %876 = vmatpush1.bf16.msra.mxu0 0
        %877 = vmatprep.subr.bf16.mxu0 0
        %878 = vmatpush1.bf16.msra.mxu0 0
        %879 = vmatprep.subr.bf16.mxu0 0
        %880 = vmatpush1.bf16.msra.mxu0 0
        %881 = vmatprep.subr.bf16.mxu0 0
        %882 = vmatpush1.bf16.msra.mxu0 0
        %883 = vmatprep.subr.bf16.mxu0 0
        %884 = vmatpush1.bf16.msra.mxu0 0
        %885 = vmatprep.subr.bf16.mxu0 0
        %886 = vmatpush1.bf16.msra.mxu0 0
        %887 = vmatprep.subr.bf16.mxu0 0
        %888 = vmatpush1.bf16.msra.mxu0 0
        %889 = vmatprep.subr.bf16.mxu0 0
        %890 = vmatpush1.bf16.msra.mxu0 0
        %891 = vmatprep.subr.bf16.mxu0 0
        %892 = vmatpush1.bf16.msra.mxu0 0
        %893 = vmatprep.mubr.bf16.mxu0 0
        %894 = vmatmul.mubr.bf16.gmra.mrb[0].mxu0 %v631
        %v895 = vpop.f32.mrb[0].mxu0
        %v896 = vadd.f32 %v576, %v895
        %v897 = vpop.f32.mrb[0].mxu0
        %v898 = vadd.f32 %v580, %v897
        %v899 = vpop.f32.mrb[0].mxu0
        %v900 = vadd.f32 %v576, %v899
        %v901 = vpop.f32.mrb[0].mxu0
        %v902 = vadd.f32 %v580, %v901
        %903 = vmatprep.mubr.bf16.mxu0 0
        %904 = vmatmul.mubr.bf16.gmra.mrb[0].mxu0 %v634
        %v905 = vpop.f32.mrb[0].mxu0
        %v906 = vadd.f32 %v576, %v905
        %v907 = vpop.f32.mrb[0].mxu0
        %v908 = vadd.f32 %v580, %v907
        %v909 = vpop.f32.mrb[0].mxu0
        %v910 = vadd.f32 %v576, %v909
        %v911 = vpop.f32.mrb[0].mxu0
        %v912 = vadd.f32 %v580, %v911
        %913 = vmatprep.mubr.bf16.mxu0 0
        %914 = vmatmul.mubr.bf16.gmra.mrb[0].mxu0 %v637
        %v915 = vpop.f32.mrb[0].mxu0
        %v916 = vadd.f32 %v576, %v915
        %v917 = vpop.f32.mrb[0].mxu0
        %v918 = vadd.f32 %v580, %v917
        %v919 = vpop.f32.mrb[0].mxu0
        %v920 = vadd.f32 %v576, %v919
        %v921 = vpop.f32.mrb[0].mxu0
        %v922 = vadd.f32 %v580, %v921
        %923 = vmatprep.mubr.bf16.mxu0 0
        %924 = vmatmul.mubr.bf16.gmra.mrb[0].mxu0 %v640
        %v925 = vpop.f32.mrb[0].mxu0
        %v926 = vadd.f32 %v576, %v925
        %v927 = vpop.f32.mrb[0].mxu0
        %v928 = vadd.f32 %v580, %v927
        %v929 = vpop.f32.mrb[0].mxu0
        %v930 = vadd.f32 %v576, %v929
        %v931 = vpop.f32.mrb[0].mxu0
        %v932 = vadd.f32 %v580, %v931
        %933 = vdwg.mxu0
        %934 = vst [vmem:[#allocation2] sm:$0xff] %v677
        %935 = vst [vmem:[#allocation2 + $0x8] sm:$0xff] %v679
        %936 = vst [vmem:[#allocation2 + $0x10] sm:$0xff] %v750
        %937 = vst [vmem:[#allocation2 + $0x18] sm:$0xff] %v752
        %938 = vst [vmem:[#allocation2 + $0x20] sm:$0xff] %v823
        %939 = vst [vmem:[#allocation2 + $0x28] sm:$0xff] %v825
        %940 = vst [vmem:[#allocation2 + $0x30] sm:$0xff] %v896
        %941 = vst [vmem:[#allocation2 + $0x38] sm:$0xff] %v898
        %942 = vst [vmem:[#allocation2 + $0x40] sm:$0xff] %v681
        %943 = vst [vmem:[#allocation2 + $0x48] sm:$0xff] %v683
        %944 = vst [vmem:[#allocation2 + $0x50] sm:$0xff] %v754
        %945 = vst [vmem:[#allocation2 + $0x58] sm:$0xff] %v756
        %946 = vst [vmem:[#allocation2 + $0x60] sm:$0xff] %v827
        %947 = vst [vmem:[#allocation2 + $0x68] sm:$0xff] %v829
        %948 = vst [vmem:[#allocation2 + $0x70] sm:$0xff] %v900
        %949 = vst [vmem:[#allocation2 + $0x78] sm:$0xff] %v902
        %950 = vst [vmem:[#allocation2 + $0x80] sm:$0xff] %v687
        %951 = vst [vmem:[#allocation2 + $0x88] sm:$0xff] %v689
        %952 = vst [vmem:[#allocation2 + $0x90] sm:$0xff] %v760
        %953 = vst [vmem:[#allocation2 + $0x98] sm:$0xff] %v762
        %954 = vst [vmem:[#allocation2 + $0xa0] sm:$0xff] %v833
        %955 = vst [vmem:[#allocation2 + $0xa8] sm:$0xff] %v835
        %956 = vst [vmem:[#allocation2 + $0xb0] sm:$0xff] %v906
        %957 = vst [vmem:[#allocation2 + $0xb8] sm:$0xff] %v908
        %958 = vst [vmem:[#allocation2 + $0xc0] sm:$0xff] %v691
        %959 = vst [vmem:[#allocation2 + $0xc8] sm:$0xff] %v693
        %960 = vst [vmem:[#allocation2 + $0xd0] sm:$0xff] %v764
        %961 = vst [vmem:[#allocation2 + $0xd8] sm:$0xff] %v766
        %962 = vst [vmem:[#allocation2 + $0xe0] sm:$0xff] %v837
        %963 = vst [vmem:[#allocation2 + $0xe8] sm:$0xff] %v839
        %964 = vst [vmem:[#allocation2 + $0xf0] sm:$0xff] %v910
        %965 = vst [vmem:[#allocation2 + $0xf8] sm:$0xff] %v912
        %966 = vst [vmem:[#allocation2 + $0x100] sm:$0xff] %v697
        %967 = vst [vmem:[#allocation2 + $0x108] sm:$0xff] %v699
        %968 = vst [vmem:[#allocation2 + $0x110] sm:$0xff] %v770
        %969 = vst [vmem:[#allocation2 + $0x118] sm:$0xff] %v772
        %970 = vst [vmem:[#allocation2 + $0x120] sm:$0xff] %v843
        %971 = vst [vmem:[#allocation2 + $0x128] sm:$0xff] %v845
        %972 = vst [vmem:[#allocation2 + $0x130] sm:$0xff] %v916
        %973 = vst [vmem:[#allocation2 + $0x138] sm:$0xff] %v918
        %974 = vst [vmem:[#allocation2 + $0x140] sm:$0xff] %v701
        %975 = vst [vmem:[#allocation2 + $0x148] sm:$0xff] %v703
        %976 = vst [vmem:[#allocation2 + $0x150] sm:$0xff] %v774
        %977 = vst [vmem:[#allocation2 + $0x158] sm:$0xff] %v776
        %978 = vst [vmem:[#allocation2 + $0x160] sm:$0xff] %v847
        %979 = vst [vmem:[#allocation2 + $0x168] sm:$0xff] %v849
        %980 = vst [vmem:[#allocation2 + $0x170] sm:$0xff] %v920
        %981 = vst [vmem:[#allocation2 + $0x178] sm:$0xff] %v922
        %982 = vst [vmem:[#allocation2 + $0x180] sm:$0xff] %v707
        %983 = vst [vmem:[#allocation2 + $0x188] sm:$0xff] %v709
        %984 = vst [vmem:[#allocation2 + $0x190] sm:$0xff] %v780
        %985 = vst [vmem:[#allocation2 + $0x198] sm:$0xff] %v782
        %986 = vst [vmem:[#allocation2 + $0x1a0] sm:$0xff] %v853
        %987 = vst [vmem:[#allocation2 + $0x1a8] sm:$0xff] %v855
        %988 = vst [vmem:[#allocation2 + $0x1b0] sm:$0xff] %v926
        %989 = vst [vmem:[#allocation2 + $0x1b8] sm:$0xff] %v928
        %990 = vst [vmem:[#allocation2 + $0x1c0] sm:$0xff] %v711
        %991 = vst [vmem:[#allocation2 + $0x1c8] sm:$0xff] %v713
        %992 = vst [vmem:[#allocation2 + $0x1d0] sm:$0xff] %v784
        %993 = vst [vmem:[#allocation2 + $0x1d8] sm:$0xff] %v786
        %994 = vst [vmem:[#allocation2 + $0x1e0] sm:$0xff] %v857
        %995 = vst [vmem:[#allocation2 + $0x1e8] sm:$0xff] %v859
        %996 = vst [vmem:[#allocation2 + $0x1f0] sm:$0xff] %v930
        %997 = vst [vmem:[#allocation2 + $0x1f8] sm:$0xff] %v932
        %v998 = vld [vmem:[%s5] sm:$0xff]
        %v999 = vld [vmem:[%s5 + $0x8] sm:$0xff]
        %v1000 = vld [vmem:[%s5 + $0x10] sm:$0xff]
        %v1001 = vld [vmem:[%s5 + $0x18] sm:$0xff]
        %v1002 = vld [vmem:[%s5 + $0x20] sm:$0xff]
        %v1003 = vld [vmem:[%s5 + $0x28] sm:$0xff]
        %v1004 = vld [vmem:[%s5 + $0x30] sm:$0xff]
        %v1005 = vld [vmem:[%s5 + $0x38] sm:$0xff]
        %v1006 = vld [vmem:[%s5 + $0x40] sm:$0xff]
        %v1007 = vld [vmem:[%s5 + $0x48] sm:$0xff]
        %v1008 = vld [vmem:[%s5 + $0x50] sm:$0xff]
        %v1009 = vld [vmem:[%s5 + $0x58] sm:$0xff]
        %v1010 = vld [vmem:[%s5 + $0x60] sm:$0xff]
        %v1011 = vld [vmem:[%s5 + $0x68] sm:$0xff]
        %v1012 = vld [vmem:[%s5 + $0x70] sm:$0xff]
        %v1013 = vld [vmem:[%s5 + $0x78] sm:$0xff]
        %v1014 = vld [vmem:[%s5 + $0x80] sm:$0xff]
        %v1015 = vld [vmem:[%s5 + $0x88] sm:$0xff]
        %v1016 = vld [vmem:[%s5 + $0x90] sm:$0xff]
        %v1017 = vld [vmem:[%s5 + $0x98] sm:$0xff]
        %v1018 = vld [vmem:[%s5 + $0xa0] sm:$0xff]
        %v1019 = vld [vmem:[%s5 + $0xa8] sm:$0xff]
        %v1020 = vld [vmem:[%s5 + $0xb0] sm:$0xff]
        %v1021 = vld [vmem:[%s5 + $0xb8] sm:$0xff]
        %v1022 = vld [vmem:[%s5 + $0xc0] sm:$0xff]
        %v1023 = vld [vmem:[%s5 + $0xc8] sm:$0xff]
        %v1024 = vld [vmem:[%s5 + $0xd0] sm:$0xff]
        %v1025 = vld [vmem:[%s5 + $0xd8] sm:$0xff]
        %v1026 = vld [vmem:[%s5 + $0xe0] sm:$0xff]
        %v1027 = vld [vmem:[%s5 + $0xe8] sm:$0xff]
        %v1028 = vld [vmem:[%s5 + $0xf0] sm:$0xff]
        %v1029 = vld [vmem:[%s5 + $0xf8] sm:$0xff]
        %v1030 = vld [vmem:[%s5 + $0x100] sm:$0xff]
        %v1031 = vld [vmem:[%s5 + $0x108] sm:$0xff]
        %v1032 = vld [vmem:[%s5 + $0x110] sm:$0xff]
        %v1033 = vld [vmem:[%s5 + $0x118] sm:$0xff]
        %v1034 = vld [vmem:[%s5 + $0x120] sm:$0xff]
        %v1035 = vld [vmem:[%s5 + $0x128] sm:$0xff]
        %v1036 = vld [vmem:[%s5 + $0x130] sm:$0xff]
        %v1037 = vld [vmem:[%s5 + $0x138] sm:$0xff]
        %v1038 = vld [vmem:[%s5 + $0x140] sm:$0xff]
        %v1039 = vld [vmem:[%s5 + $0x148] sm:$0xff]
        %v1040 = vld [vmem:[%s5 + $0x150] sm:$0xff]
        %v1041 = vld [vmem:[%s5 + $0x158] sm:$0xff]
        %v1042 = vld [vmem:[%s5 + $0x160] sm:$0xff]
        %v1043 = vld [vmem:[%s5 + $0x168] sm:$0xff]
        %v1044 = vld [vmem:[%s5 + $0x170] sm:$0xff]
        %v1045 = vld [vmem:[%s5 + $0x178] sm:$0xff]
        %v1046 = vld [vmem:[%s5 + $0x180] sm:$0xff]
        %v1047 = vld [vmem:[%s5 + $0x188] sm:$0xff]
        %v1048 = vld [vmem:[%s5 + $0x190] sm:$0xff]
        %v1049 = vld [vmem:[%s5 + $0x198] sm:$0xff]
        %v1050 = vld [vmem:[%s5 + $0x1a0] sm:$0xff]
        %v1051 = vld [vmem:[%s5 + $0x1a8] sm:$0xff]
        %v1052 = vld [vmem:[%s5 + $0x1b0] sm:$0xff]
        %v1053 = vld [vmem:[%s5 + $0x1b8] sm:$0xff]
        %v1054 = vld [vmem:[%s5 + $0x1c0] sm:$0xff]
        %v1055 = vld [vmem:[%s5 + $0x1c8] sm:$0xff]
        %v1056 = vld [vmem:[%s5 + $0x1d0] sm:$0xff]
        %v1057 = vld [vmem:[%s5 + $0x1d8] sm:$0xff]
        %v1058 = vld [vmem:[%s5 + $0x1e0] sm:$0xff]
        %v1059 = vld [vmem:[%s5 + $0x1e8] sm:$0xff]
        %v1060 = vld [vmem:[%s5 + $0x1f0] sm:$0xff]
        %v1061 = vld [vmem:[%s5 + $0x1f8] sm:$0xff]
        %v1062 = vld [vmem:[#allocation3] sm:$0xff]
        %v1063 = vld [vmem:[#allocation4] sm:$0xff]
        %v1064 = vld [vmem:[#allocation5] sm:$0xff]
        %v1065 = vpack.c.bf16 %v1062, %v1062
        %v1066 = vld [vmem:[#allocation2] sm:$0xff]
        %v1067 = vld [vmem:[#allocation2 + $0x8] sm:$0xff]
        %v1068 = vld [vmem:[#allocation2 + $0x10] sm:$0xff]
        %v1069 = vld [vmem:[#allocation2 + $0x18] sm:$0xff]
        %v1070 = vld [vmem:[#allocation2 + $0x20] sm:$0xff]
        %v1071 = vld [vmem:[#allocation2 + $0x28] sm:$0xff]
        %v1072 = vld [vmem:[#allocation2 + $0x30] sm:$0xff]
        %v1073 = vld [vmem:[#allocation2 + $0x38] sm:$0xff]
        %v1138 = vunpack.c.l.b16 %v998
        %v1139 = vunpack.c.h.b16 %v998
        %v1140 = vunpack.c.l.b16 %v999
        %v1141 = vunpack.c.h.b16 %v999
        %v1142 = vunpack.c.l.b16 %v1000
        %v1143 = vunpack.c.h.b16 %v1000
        %v1144 = vunpack.c.l.b16 %v1001
        %v1145 = vunpack.c.h.b16 %v1001
        %v1146 = vunpack.c.l.b16 %v1002
        %v1147 = vunpack.c.h.b16 %v1002
        %v1148 = vunpack.c.l.b16 %v1003
        %v1149 = vunpack.c.h.b16 %v1003
        %v1150 = vunpack.c.l.b16 %v1004
        %v1151 = vunpack.c.h.b16 %v1004
        %v1152 = vunpack.c.l.b16 %v1005
        %v1153 = vunpack.c.h.b16 %v1005
        %v1154 = vunpack.c.l.b16 %v1006
        %v1155 = vunpack.c.h.b16 %v1006
        %v1156 = vunpack.c.l.b16 %v1007
        %v1157 = vunpack.c.h.b16 %v1007
        %v1158 = vunpack.c.l.b16 %v1008
        %v1159 = vunpack.c.h.b16 %v1008
        %v1160 = vunpack.c.l.b16 %v1009
        %v1161 = vunpack.c.h.b16 %v1009
        %v1162 = vunpack.c.l.b16 %v1010
        %v1163 = vunpack.c.h.b16 %v1010
        %v1164 = vunpack.c.l.b16 %v1011
        %v1165 = vunpack.c.h.b16 %v1011
        %v1166 = vunpack.c.l.b16 %v1012
        %v1167 = vunpack.c.h.b16 %v1012
        %v1168 = vunpack.c.l.b16 %v1013
        %v1169 = vunpack.c.h.b16 %v1013
        %v1170 = vunpack.c.l.b16 %v1014
        %v1171 = vunpack.c.h.b16 %v1014
        %v1172 = vunpack.c.l.b16 %v1015
        %v1173 = vunpack.c.h.b16 %v1015
        %v1174 = vunpack.c.l.b16 %v1016
        %v1175 = vunpack.c.h.b16 %v1016
        %v1176 = vunpack.c.l.b16 %v1017
        %v1177 = vunpack.c.h.b16 %v1017
        %v1178 = vunpack.c.l.b16 %v1018
        %v1179 = vunpack.c.h.b16 %v1018
        %v1180 = vunpack.c.l.b16 %v1019
        %v1181 = vunpack.c.h.b16 %v1019
        %v1182 = vunpack.c.l.b16 %v1020
        %v1183 = vunpack.c.h.b16 %v1020
        %v1184 = vunpack.c.l.b16 %v1021
        %v1185 = vunpack.c.h.b16 %v1021
        %v1186 = vunpack.c.l.b16 %v1022
        %v1187 = vunpack.c.h.b16 %v1022
        %v1188 = vunpack.c.l.b16 %v1023
        %v1189 = vunpack.c.h.b16 %v1023
        %v1190 = vunpack.c.l.b16 %v1024
        %v1191 = vunpack.c.h.b16 %v1024
        %v1192 = vunpack.c.l.b16 %v1025
        %v1193 = vunpack.c.h.b16 %v1025
        %v1194 = vunpack.c.l.b16 %v1026
        %v1195 = vunpack.c.h.b16 %v1026
        %v1196 = vunpack.c.l.b16 %v1027
        %v1197 = vunpack.c.h.b16 %v1027
        %v1198 = vunpack.c.l.b16 %v1028
        %v1199 = vunpack.c.h.b16 %v1028
        %v1200 = vunpack.c.l.b16 %v1029
        %v1201 = vunpack.c.h.b16 %v1029
        %v1202 = vunpack.c.l.b16 %v1030
        %v1203 = vunpack.c.h.b16 %v1030
        %v1204 = vunpack.c.l.b16 %v1031
        %v1205 = vunpack.c.h.b16 %v1031
        %v1206 = vunpack.c.l.b16 %v1032
        %v1207 = vunpack.c.h.b16 %v1032
        %v1208 = vunpack.c.l.b16 %v1033
        %v1209 = vunpack.c.h.b16 %v1033
        %v1210 = vunpack.c.l.b16 %v1034
        %v1211 = vunpack.c.h.b16 %v1034
        %v1212 = vunpack.c.l.b16 %v1035
        %v1213 = vunpack.c.h.b16 %v1035
        %v1214 = vunpack.c.l.b16 %v1036
        %v1215 = vunpack.c.h.b16 %v1036
        %v1216 = vunpack.c.l.b16 %v1037
        %v1217 = vunpack.c.h.b16 %v1037
        %v1218 = vunpack.c.l.b16 %v1038
        %v1219 = vunpack.c.h.b16 %v1038
        %v1220 = vunpack.c.l.b16 %v1039
        %v1221 = vunpack.c.h.b16 %v1039
        %v1222 = vunpack.c.l.b16 %v1040
        %v1223 = vunpack.c.h.b16 %v1040
        %v1224 = vunpack.c.l.b16 %v1041
        %v1225 = vunpack.c.h.b16 %v1041
        %v1226 = vunpack.c.l.b16 %v1042
        %v1227 = vunpack.c.h.b16 %v1042
        %v1228 = vunpack.c.l.b16 %v1043
        %v1229 = vunpack.c.h.b16 %v1043
        %v1230 = vunpack.c.l.b16 %v1044
        %v1231 = vunpack.c.h.b16 %v1044
        %v1232 = vunpack.c.l.b16 %v1045
        %v1233 = vunpack.c.h.b16 %v1045
        %v1234 = vunpack.c.l.b16 %v1046
        %v1235 = vunpack.c.h.b16 %v1046
        %v1236 = vunpack.c.l.b16 %v1047
        %v1237 = vunpack.c.h.b16 %v1047
        %v1238 = vunpack.c.l.b16 %v1048
        %v1239 = vunpack.c.h.b16 %v1048
        %v1240 = vunpack.c.l.b16 %v1049
        %v1241 = vunpack.c.h.b16 %v1049
        %v1242 = vunpack.c.l.b16 %v1050
        %v1243 = vunpack.c.h.b16 %v1050
        %v1244 = vunpack.c.l.b16 %v1051
        %v1245 = vunpack.c.h.b16 %v1051
        %v1246 = vunpack.c.l.b16 %v1052
        %v1247 = vunpack.c.h.b16 %v1052
        %v1248 = vunpack.c.l.b16 %v1053
        %v1249 = vunpack.c.h.b16 %v1053
        %v1250 = vunpack.c.l.b16 %v1054
        %v1251 = vunpack.c.h.b16 %v1054
        %v1252 = vunpack.c.l.b16 %v1055
        %v1253 = vunpack.c.h.b16 %v1055
        %v1254 = vunpack.c.l.b16 %v1056
        %v1255 = vunpack.c.h.b16 %v1056
        %v1256 = vunpack.c.l.b16 %v1057
        %v1257 = vunpack.c.h.b16 %v1057
        %v1258 = vunpack.c.l.b16 %v1058
        %v1259 = vunpack.c.h.b16 %v1058
        %v1260 = vunpack.c.l.b16 %v1059
        %v1261 = vunpack.c.h.b16 %v1059
        %v1262 = vunpack.c.l.b16 %v1060
        %v1263 = vunpack.c.h.b16 %v1060
        %v1264 = vunpack.c.l.b16 %v1061
        %v1265 = vunpack.c.h.b16 %v1061
        %v1266 = vpack.c.b16 %v1146, %v1138
        %v1267 = vpack.c.b16 %v1147, %v1139
        %v1268 = vpack.c.b16 %v1148, %v1140
        %v1269 = vpack.c.b16 %v1149, %v1141
        %v1270 = vpack.c.b16 %v1150, %v1142
        %v1271 = vpack.c.b16 %v1151, %v1143
        %v1272 = vpack.c.b16 %v1152, %v1144
        %v1273 = vpack.c.b16 %v1153, %v1145
        %v1274 = vpack.c.b16 %v1162, %v1154
        %v1275 = vpack.c.b16 %v1163, %v1155
        %v1276 = vpack.c.b16 %v1164, %v1156
        %v1277 = vpack.c.b16 %v1165, %v1157
        %v1278 = vpack.c.b16 %v1166, %v1158
        %v1279 = vpack.c.b16 %v1167, %v1159
        %v1280 = vpack.c.b16 %v1168, %v1160
        %v1281 = vpack.c.b16 %v1169, %v1161
        %v1282 = vpack.c.b16 %v1178, %v1170
        %v1283 = vpack.c.b16 %v1179, %v1171
        %v1284 = vpack.c.b16 %v1180, %v1172
        %v1285 = vpack.c.b16 %v1181, %v1173
        %v1286 = vpack.c.b16 %v1182, %v1174
        %v1287 = vpack.c.b16 %v1183, %v1175
        %v1288 = vpack.c.b16 %v1184, %v1176
        %v1289 = vpack.c.b16 %v1185, %v1177
        %v1290 = vpack.c.b16 %v1194, %v1186
        %v1291 = vpack.c.b16 %v1195, %v1187
        %v1292 = vpack.c.b16 %v1196, %v1188
        %v1293 = vpack.c.b16 %v1197, %v1189
        %v1294 = vpack.c.b16 %v1198, %v1190
        %v1295 = vpack.c.b16 %v1199, %v1191
        %v1296 = vpack.c.b16 %v1200, %v1192
        %v1297 = vpack.c.b16 %v1201, %v1193
        %v1298 = vpack.c.b16 %v1210, %v1202
        %v1299 = vpack.c.b16 %v1211, %v1203
        %v1300 = vpack.c.b16 %v1212, %v1204
        %v1301 = vpack.c.b16 %v1213, %v1205
        %v1302 = vpack.c.b16 %v1214, %v1206
        %v1303 = vpack.c.b16 %v1215, %v1207
        %v1304 = vpack.c.b16 %v1216, %v1208
        %v1305 = vpack.c.b16 %v1217, %v1209
        %v1306 = vpack.c.b16 %v1226, %v1218
        %v1307 = vpack.c.b16 %v1227, %v1219
        %v1308 = vpack.c.b16 %v1228, %v1220
        %v1309 = vpack.c.b16 %v1229, %v1221
        %v1310 = vpack.c.b16 %v1230, %v1222
        %v1311 = vpack.c.b16 %v1231, %v1223
        %v1312 = vpack.c.b16 %v1232, %v1224
        %v1313 = vpack.c.b16 %v1233, %v1225
        %v1314 = vpack.c.b16 %v1242, %v1234
        %v1315 = vpack.c.b16 %v1243, %v1235
        %v1316 = vpack.c.b16 %v1244, %v1236
        %v1317 = vpack.c.b16 %v1245, %v1237
        %v1318 = vpack.c.b16 %v1246, %v1238
        %v1319 = vpack.c.b16 %v1247, %v1239
        %v1320 = vpack.c.b16 %v1248, %v1240
        %v1321 = vpack.c.b16 %v1249, %v1241
        %v1322 = vpack.c.b16 %v1258, %v1250
        %v1323 = vpack.c.b16 %v1259, %v1251
        %v1324 = vpack.c.b16 %v1260, %v1252
        %v1325 = vpack.c.b16 %v1261, %v1253
        %v1326 = vpack.c.b16 %v1262, %v1254
        %v1327 = vpack.c.b16 %v1263, %v1255
        %v1328 = vpack.c.b16 %v1264, %v1256
        %v1329 = vpack.c.b16 %v1265, %v1257
        %1394 = vmatprep.subr.bf16.mxu0 %v1267
        %1395 = vmatpush1.bf16.msra.mxu0 %v1266
        %1396 = vmatprep.subr.bf16.mxu0 %v1275
        %1397 = vmatpush1.bf16.msra.mxu0 %v1274
        %1398 = vmatprep.subr.bf16.mxu0 %v1283
        %1399 = vmatpush1.bf16.msra.mxu0 %v1282
        %1400 = vmatprep.subr.bf16.mxu0 %v1291
        %1401 = vmatpush1.bf16.msra.mxu0 %v1290
        %1402 = vmatprep.subr.bf16.mxu0 %v1299
        %1403 = vmatpush1.bf16.msra.mxu0 %v1298
        %1404 = vmatprep.subr.bf16.mxu0 %v1307
        %1405 = vmatpush1.bf16.msra.mxu0 %v1306
        %1406 = vmatprep.subr.bf16.mxu0 %v1315
        %1407 = vmatpush1.bf16.msra.mxu0 %v1314
        %1408 = vmatprep.subr.bf16.mxu0 %v1323
        %1409 = vmatpush1.bf16.msra.mxu0 %v1322
        %1410 = vmatprep.subr.bf16.mxu0 0
        %1411 = vmatpush1.bf16.msra.mxu0 0
        %1412 = vmatprep.subr.bf16.mxu0 0
        %1413 = vmatpush1.bf16.msra.mxu0 0
        %1414 = vmatprep.subr.bf16.mxu0 0
        %1415 = vmatpush1.bf16.msra.mxu0 0
        %1416 = vmatprep.subr.bf16.mxu0 0
        %1417 = vmatpush1.bf16.msra.mxu0 0
        %1418 = vmatprep.subr.bf16.mxu0 0
        %1419 = vmatpush1.bf16.msra.mxu0 0
        %1420 = vmatprep.subr.bf16.mxu0 0
        %1421 = vmatpush1.bf16.msra.mxu0 0
        %1422 = vmatprep.subr.bf16.mxu0 0
        %1423 = vmatpush1.bf16.msra.mxu0 0
        %1424 = vmatprep.subr.bf16.mxu0 0
        %1425 = vmatpush1.bf16.msra.mxu0 0
        %1426 = vmatprep.mubr.bf16.mxu0 0
        %1427 = vmatmul.mubr.bf16.gmra.mrb[0].mxu0 %v1065
        %v1428 = vpop.f32.mrb[0].mxu0
        %v1429 = vadd.f32 %v1066, %v1428
        %v1430 = vpop.f32.mrb[0].mxu0
        %v1431 = vadd.f32 %v1067, %v1430
        %v1432 = vpop.f32.mrb[0].mxu0
        %v1433 = vpop.f32.mrb[0].mxu0
        %1434 = vdwg.mxu0
        %1435 = vmatprep.subr.bf16.mxu0 %v1269
        %1436 = vmatpush1.bf16.msra.mxu0 %v1268
        %1437 = vmatprep.subr.bf16.mxu0 %v1277
        %1438 = vmatpush1.bf16.msra.mxu0 %v1276
        %1439 = vmatprep.subr.bf16.mxu0 %v1285
        %1440 = vmatpush1.bf16.msra.mxu0 %v1284
        %1441 = vmatprep.subr.bf16.mxu0 %v1293
        %1442 = vmatpush1.bf16.msra.mxu0 %v1292
        %1443 = vmatprep.subr.bf16.mxu0 %v1301
        %1444 = vmatpush1.bf16.msra.mxu0 %v1300
        %1445 = vmatprep.subr.bf16.mxu0 %v1309
        %1446 = vmatpush1.bf16.msra.mxu0 %v1308
        %1447 = vmatprep.subr.bf16.mxu0 %v1317
        %1448 = vmatpush1.bf16.msra.mxu0 %v1316
        %1449 = vmatprep.subr.bf16.mxu0 %v1325
        %1450 = vmatpush1.bf16.msra.mxu0 %v1324
        %1451 = vmatprep.subr.bf16.mxu0 0
        %1452 = vmatpush1.bf16.msra.mxu0 0
        %1453 = vmatprep.subr.bf16.mxu0 0
        %1454 = vmatpush1.bf16.msra.mxu0 0
        %1455 = vmatprep.subr.bf16.mxu0 0
        %1456 = vmatpush1.bf16.msra.mxu0 0
        %1457 = vmatprep.subr.bf16.mxu0 0
        %1458 = vmatpush1.bf16.msra.mxu0 0
        %1459 = vmatprep.subr.bf16.mxu0 0
        %1460 = vmatpush1.bf16.msra.mxu0 0
        %1461 = vmatprep.subr.bf16.mxu0 0
        %1462 = vmatpush1.bf16.msra.mxu0 0
        %1463 = vmatprep.subr.bf16.mxu0 0
        %1464 = vmatpush1.bf16.msra.mxu0 0
        %1465 = vmatprep.subr.bf16.mxu0 0
        %1466 = vmatpush1.bf16.msra.mxu0 0
        %1467 = vmatprep.mubr.bf16.mxu0 0
        %1468 = vmatmul.mubr.bf16.gmra.mrb[0].mxu0 %v1065
        %v1469 = vpop.f32.mrb[0].mxu0
        %v1470 = vadd.f32 %v1068, %v1469
        %v1471 = vpop.f32.mrb[0].mxu0
        %v1472 = vadd.f32 %v1069, %v1471
        %v1473 = vpop.f32.mrb[0].mxu0
        %v1474 = vpop.f32.mrb[0].mxu0
        %1475 = vdwg.mxu0
        %1476 = vmatprep.subr.bf16.mxu0 %v1271
        %1477 = vmatpush1.bf16.msra.mxu0 %v1270
        %1478 = vmatprep.subr.bf16.mxu0 %v1279
        %1479 = vmatpush1.bf16.msra.mxu0 %v1278
        %1480 = vmatprep.subr.bf16.mxu0 %v1287
        %1481 = vmatpush1.bf16.msra.mxu0 %v1286
        %1482 = vmatprep.subr.bf16.mxu0 %v1295
        %1483 = vmatpush1.bf16.msra.mxu0 %v1294
        %1484 = vmatprep.subr.bf16.mxu0 %v1303
        %1485 = vmatpush1.bf16.msra.mxu0 %v1302
        %1486 = vmatprep.subr.bf16.mxu0 %v1311
        %1487 = vmatpush1.bf16.msra.mxu0 %v1310
        %1488 = vmatprep.subr.bf16.mxu0 %v1319
        %1489 = vmatpush1.bf16.msra.mxu0 %v1318
        %1490 = vmatprep.subr.bf16.mxu0 %v1327
        %1491 = vmatpush1.bf16.msra.mxu0 %v1326
        %1492 = vmatprep.subr.bf16.mxu0 0
        %1493 = vmatpush1.bf16.msra.mxu0 0
        %1494 = vmatprep.subr.bf16.mxu0 0
        %1495 = vmatpush1.bf16.msra.mxu0 0
        %1496 = vmatprep.subr.bf16.mxu0 0
        %1497 = vmatpush1.bf16.msra.mxu0 0
        %1498 = vmatprep.subr.bf16.mxu0 0
        %1499 = vmatpush1.bf16.msra.mxu0 0
        %1500 = vmatprep.subr.bf16.mxu0 0
        %1501 = vmatpush1.bf16.msra.mxu0 0
        %1502 = vmatprep.subr.bf16.mxu0 0
        %1503 = vmatpush1.bf16.msra.mxu0 0
        %1504 = vmatprep.subr.bf16.mxu0 0
        %1505 = vmatpush1.bf16.msra.mxu0 0
        %1506 = vmatprep.subr.bf16.mxu0 0
        %1507 = vmatpush1.bf16.msra.mxu0 0
        %1508 = vmatprep.mubr.bf16.mxu0 0
        %1509 = vmatmul.mubr.bf16.gmra.mrb[0].mxu0 %v1065
        %v1510 = vpop.f32.mrb[0].mxu0
        %v1511 = vadd.f32 %v1070, %v1510
        %v1512 = vpop.f32.mrb[0].mxu0
        %v1513 = vadd.f32 %v1071, %v1512
        %v1514 = vpop.f32.mrb[0].mxu0
        %v1515 = vpop.f32.mrb[0].mxu0
        %1516 = vdwg.mxu0
        %1517 = vmatprep.subr.bf16.mxu0 %v1273
        %1518 = vmatpush1.bf16.msra.mxu0 %v1272
        %1519 = vmatprep.subr.bf16.mxu0 %v1281
        %1520 = vmatpush1.bf16.msra.mxu0 %v1280
        %1521 = vmatprep.subr.bf16.mxu0 %v1289
        %1522 = vmatpush1.bf16.msra.mxu0 %v1288
        %1523 = vmatprep.subr.bf16.mxu0 %v1297
        %1524 = vmatpush1.bf16.msra.mxu0 %v1296
        %1525 = vmatprep.subr.bf16.mxu0 %v1305
        %1526 = vmatpush1.bf16.msra.mxu0 %v1304
        %1527 = vmatprep.subr.bf16.mxu0 %v1313
        %1528 = vmatpush1.bf16.msra.mxu0 %v1312
        %1529 = vmatprep.subr.bf16.mxu0 %v1321
        %1530 = vmatpush1.bf16.msra.mxu0 %v1320
        %1531 = vmatprep.subr.bf16.mxu0 %v1329
        %1532 = vmatpush1.bf16.msra.mxu0 %v1328
        %1533 = vmatprep.subr.bf16.mxu0 0
        %1534 = vmatpush1.bf16.msra.mxu0 0
        %1535 = vmatprep.subr.bf16.mxu0 0
        %1536 = vmatpush1.bf16.msra.mxu0 0
        %1537 = vmatprep.subr.bf16.mxu0 0
        %1538 = vmatpush1.bf16.msra.mxu0 0
        %1539 = vmatprep.subr.bf16.mxu0 0
        %1540 = vmatpush1.bf16.msra.mxu0 0
        %1541 = vmatprep.subr.bf16.mxu0 0
        %1542 = vmatpush1.bf16.msra.mxu0 0
        %1543 = vmatprep.subr.bf16.mxu0 0
        %1544 = vmatpush1.bf16.msra.mxu0 0
        %1545 = vmatprep.subr.bf16.mxu0 0
        %1546 = vmatpush1.bf16.msra.mxu0 0
        %1547 = vmatprep.subr.bf16.mxu0 0
        %1548 = vmatpush1.bf16.msra.mxu0 0
        %1549 = vmatprep.mubr.bf16.mxu0 0
        %1550 = vmatmul.mubr.bf16.gmra.mrb[0].mxu0 %v1065
        %v1551 = vpop.f32.mrb[0].mxu0
        %v1552 = vadd.f32 %v1072, %v1551
        %v1553 = vpop.f32.mrb[0].mxu0
        %v1554 = vadd.f32 %v1073, %v1553
        %v1555 = vpop.f32.mrb[0].mxu0
        %v1556 = vpop.f32.mrb[0].mxu0
        %1557 = vdwg.mxu0
        %v1558 = vxor.u32 %v1429, 2147483648
        %v1559 = vmul.f32 %v1558, 1.442695
        %v1560 = vpow.pop %v1559
        %v1561 = vadd.f32 %v1560, 1.0
        %v1562 = vrcp.pop %v1561
        %v1563 = vmul.f32 1.0, %v1562
        %v1564 = vxor.u32 %v1431, 2147483648
        %v1565 = vmul.f32 %v1564, 1.442695
        %v1566 = vpow.pop %v1565
        %v1567 = vadd.f32 %v1566, 1.0
        %v1568 = vrcp.pop %v1567
        %v1569 = vmul.f32 1.0, %v1568
        %v1570 = vtanh.pop %v1470
        %v1571 = vxor.u32 %v1472, 2147483648
        %v1572 = vmul.f32 %v1571, 1.442695
        %v1573 = vpow.pop %v1572
        %v1574 = vadd.f32 %v1573, 1.0
        %v1575 = vrcp.pop %v1574
        %v1576 = vmul.f32 1.0, %v1575
        %v1577 = vxor.u32 %v1511, 2147483648
        %v1578 = vmul.f32 %v1577, 1.442695
        %v1579 = vpow.pop %v1578
        %v1580 = vadd.f32 %v1579, 1.0
        %v1581 = vrcp.pop %v1580
        %v1582 = vmul.f32 1.0, %v1581
        %v1583 = vxor.u32 %v1513, 2147483648
        %v1584 = vmul.f32 %v1583, 1.442695
        %v1585 = vpow.pop %v1584
        %v1586 = vadd.f32 %v1585, 1.0
        %v1587 = vrcp.pop %v1586
        %v1588 = vmul.f32 1.0, %v1587
        %v1589 = vtanh.pop %v1552
        %v1590 = vxor.u32 %v1554, 2147483648
        %v1591 = vmul.f32 %v1590, 1.442695
        %v1592 = vpow.pop %v1591
        %v1593 = vadd.f32 %v1592, 1.0
        %v1594 = vrcp.pop %v1593
        %v1595 = vmul.f32 1.0, %v1594
        %v1596 = vmul.f32 %v1563, %v1063
        %v1597 = vmul.f32 %v1569, %v1570
        %v1598 = vadd.f32 %v1596, %v1597
        %v1599 = vmul.f32 %v1582, %v1064
        %v1600 = vmul.f32 %v1588, %v1589
        %v1601 = vadd.f32 %v1599, %v1600
        %v1602 = vtanh.pop %v1598
        %v1603 = vmul.f32 %v1576, %v1602
        %v1604 = vtanh.pop %v1601
        %v1605 = vmul.f32 %v1595, %v1604
        %v1606 = vadd.f32 %v1603, %v1605
        %1607 = vst [vmem:[%s480] sm:$0xff] %v1606
        %v1608 = vpack.c.bf16 %v1606, %v1606
        %s1609 = scalar_lea.vmem [#allocation2], 64
        %v1610 = vld [vmem:[%s1609] sm:$0xff]
        %v1611 = vld [vmem:[%s1609 + $0x8] sm:$0xff]
        %v1612 = vld [vmem:[%s1609 + $0x10] sm:$0xff]
        %v1613 = vld [vmem:[%s1609 + $0x18] sm:$0xff]
        %v1614 = vld [vmem:[%s1609 + $0x20] sm:$0xff]
        %v1615 = vld [vmem:[%s1609 + $0x28] sm:$0xff]
        %v1616 = vld [vmem:[%s1609 + $0x30] sm:$0xff]
        %v1617 = vld [vmem:[%s1609 + $0x38] sm:$0xff]
        %1618 = vmatprep.subr.bf16.mxu0 %v1267
        %1619 = vmatpush1.bf16.msra.mxu0 %v1266
        %1620 = vmatprep.subr.bf16.mxu0 %v1275
        %1621 = vmatpush1.bf16.msra.mxu0 %v1274
        %1622 = vmatprep.subr.bf16.mxu0 %v1283
        %1623 = vmatpush1.bf16.msra.mxu0 %v1282
        %1624 = vmatprep.subr.bf16.mxu0 %v1291
        %1625 = vmatpush1.bf16.msra.mxu0 %v1290
        %1626 = vmatprep.subr.bf16.mxu0 %v1299
        %1627 = vmatpush1.bf16.msra.mxu0 %v1298
        %1628 = vmatprep.subr.bf16.mxu0 %v1307
        %1629 = vmatpush1.bf16.msra.mxu0 %v1306
        %1630 = vmatprep.subr.bf16.mxu0 %v1315
        %1631 = vmatpush1.bf16.msra.mxu0 %v1314
        %1632 = vmatprep.subr.bf16.mxu0 %v1323
        %1633 = vmatpush1.bf16.msra.mxu0 %v1322
        %1634 = vmatprep.subr.bf16.mxu0 0
        %1635 = vmatpush1.bf16.msra.mxu0 0
        %1636 = vmatprep.subr.bf16.mxu0 0
        %1637 = vmatpush1.bf16.msra.mxu0 0
        %1638 = vmatprep.subr.bf16.mxu0 0
        %1639 = vmatpush1.bf16.msra.mxu0 0
        %1640 = vmatprep.subr.bf16.mxu0 0
        %1641 = vmatpush1.bf16.msra.mxu0 0
        %1642 = vmatprep.subr.bf16.mxu0 0
        %1643 = vmatpush1.bf16.msra.mxu0 0
        %1644 = vmatprep.subr.bf16.mxu0 0
        %1645 = vmatpush1.bf16.msra.mxu0 0
        %1646 = vmatprep.subr.bf16.mxu0 0
        %1647 = vmatpush1.bf16.msra.mxu0 0
        %1648 = vmatprep.subr.bf16.mxu0 0
        %1649 = vmatpush1.bf16.msra.mxu0 0
        %1650 = vmatprep.mubr.bf16.mxu0 0
        %1651 = vmatmul.mubr.bf16.gmra.mrb[0].mxu0 %v1608
        %v1652 = vpop.f32.mrb[0].mxu0
        %v1653 = vadd.f32 %v1610, %v1652
        %v1654 = vpop.f32.mrb[0].mxu0
        %v1655 = vadd.f32 %v1611, %v1654
        %v1656 = vpop.f32.mrb[0].mxu0
        %v1657 = vpop.f32.mrb[0].mxu0
        %1658 = vdwg.mxu0
        %1659 = vmatprep.subr.bf16.mxu0 %v1269
        %1660 = vmatpush1.bf16.msra.mxu0 %v1268
        %1661 = vmatprep.subr.bf16.mxu0 %v1277
        %1662 = vmatpush1.bf16.msra.mxu0 %v1276
        %1663 = vmatprep.subr.bf16.mxu0 %v1285
        %1664 = vmatpush1.bf16.msra.mxu0 %v1284
        %1665 = vmatprep.subr.bf16.mxu0 %v1293
        %1666 = vmatpush1.bf16.msra.mxu0 %v1292
        %1667 = vmatprep.subr.bf16.mxu0 %v1301
        %1668 = vmatpush1.bf16.msra.mxu0 %v1300
        %1669 = vmatprep.subr.bf16.mxu0 %v1309
        %1670 = vmatpush1.bf16.msra.mxu0 %v1308
        %1671 = vmatprep.subr.bf16.mxu0 %v1317
        %1672 = vmatpush1.bf16.msra.mxu0 %v1316
        %1673 = vmatprep.subr.bf16.mxu0 %v1325
        %1674 = vmatpush1.bf16.msra.mxu0 %v1324
        %1675 = vmatprep.subr.bf16.mxu0 0
        %1676 = vmatpush1.bf16.msra.mxu0 0
        %1677 = vmatprep.subr.bf16.mxu0 0
        %1678 = vmatpush1.bf16.msra.mxu0 0
        %1679 = vmatprep.subr.bf16.mxu0 0
        %1680 = vmatpush1.bf16.msra.mxu0 0
        %1681 = vmatprep.subr.bf16.mxu0 0
        %1682 = vmatpush1.bf16.msra.mxu0 0
        %1683 = vmatprep.subr.bf16.mxu0 0
        %1684 = vmatpush1.bf16.msra.mxu0 0
        %1685 = vmatprep.subr.bf16.mxu0 0
        %1686 = vmatpush1.bf16.msra.mxu0 0
        %1687 = vmatprep.subr.bf16.mxu0 0
        %1688 = vmatpush1.bf16.msra.mxu0 0
        %1689 = vmatprep.subr.bf16.mxu0 0
        %1690 = vmatpush1.bf16.msra.mxu0 0
        %1691 = vmatprep.mubr.bf16.mxu0 0
        %1692 = vmatmul.mubr.bf16.gmra.mrb[0].mxu0 %v1608
        %v1693 = vpop.f32.mrb[0].mxu0
        %v1694 = vadd.f32 %v1612, %v1693
        %v1695 = vpop.f32.mrb[0].mxu0
        %v1696 = vadd.f32 %v1613, %v1695
        %v1697 = vpop.f32.mrb[0].mxu0
        %v1698 = vpop.f32.mrb[0].mxu0
        %1699 = vdwg.mxu0
        %1700 = vmatprep.subr.bf16.mxu0 %v1271
        %1701 = vmatpush1.bf16.msra.mxu0 %v1270
        %1702 = vmatprep.subr.bf16.mxu0 %v1279
        %1703 = vmatpush1.bf16.msra.mxu0 %v1278
        %1704 = vmatprep.subr.bf16.mxu0 %v1287
        %1705 = vmatpush1.bf16.msra.mxu0 %v1286
        %1706 = vmatprep.subr.bf16.mxu0 %v1295
        %1707 = vmatpush1.bf16.msra.mxu0 %v1294
        %1708 = vmatprep.subr.bf16.mxu0 %v1303
        %1709 = vmatpush1.bf16.msra.mxu0 %v1302
        %1710 = vmatprep.subr.bf16.mxu0 %v1311
        %1711 = vmatpush1.bf16.msra.mxu0 %v1310
        %1712 = vmatprep.subr.bf16.mxu0 %v1319
        %1713 = vmatpush1.bf16.msra.mxu0 %v1318
        %1714 = vmatprep.subr.bf16.mxu0 %v1327
        %1715 = vmatpush1.bf16.msra.mxu0 %v1326
        %1716 = vmatprep.subr.bf16.mxu0 0
        %1717 = vmatpush1.bf16.msra.mxu0 0
        %1718 = vmatprep.subr.bf16.mxu0 0
        %1719 = vmatpush1.bf16.msra.mxu0 0
        %1720 = vmatprep.subr.bf16.mxu0 0
        %1721 = vmatpush1.bf16.msra.mxu0 0
        %1722 = vmatprep.subr.bf16.mxu0 0
        %1723 = vmatpush1.bf16.msra.mxu0 0
        %1724 = vmatprep.subr.bf16.mxu0 0
        %1725 = vmatpush1.bf16.msra.mxu0 0
        %1726 = vmatprep.subr.bf16.mxu0 0
        %1727 = vmatpush1.bf16.msra.mxu0 0
        %1728 = vmatprep.subr.bf16.mxu0 0
        %1729 = vmatpush1.bf16.msra.mxu0 0
        %1730 = vmatprep.subr.bf16.mxu0 0
        %1731 = vmatpush1.bf16.msra.mxu0 0
        %1732 = vmatprep.mubr.bf16.mxu0 0
        %1733 = vmatmul.mubr.bf16.gmra.mrb[0].mxu0 %v1608
        %v1734 = vpop.f32.mrb[0].mxu0
        %v1735 = vadd.f32 %v1614, %v1734
        %v1736 = vpop.f32.mrb[0].mxu0
        %v1737 = vadd.f32 %v1615, %v1736
        %v1738 = vpop.f32.mrb[0].mxu0
        %v1739 = vpop.f32.mrb[0].mxu0
        %1740 = vdwg.mxu0
        %1741 = vmatprep.subr.bf16.mxu0 %v1273
        %1742 = vmatpush1.bf16.msra.mxu0 %v1272
        %1743 = vmatprep.subr.bf16.mxu0 %v1281
        %1744 = vmatpush1.bf16.msra.mxu0 %v1280
        %1745 = vmatprep.subr.bf16.mxu0 %v1289
        %1746 = vmatpush1.bf16.msra.mxu0 %v1288
        %1747 = vmatprep.subr.bf16.mxu0 %v1297
        %1748 = vmatpush1.bf16.msra.mxu0 %v1296
        %1749 = vmatprep.subr.bf16.mxu0 %v1305
        %1750 = vmatpush1.bf16.msra.mxu0 %v1304
        %1751 = vmatprep.subr.bf16.mxu0 %v1313
        %1752 = vmatpush1.bf16.msra.mxu0 %v1312
        %1753 = vmatprep.subr.bf16.mxu0 %v1321
        %1754 = vmatpush1.bf16.msra.mxu0 %v1320
        %1755 = vmatprep.subr.bf16.mxu0 %v1329
        %1756 = vmatpush1.bf16.msra.mxu0 %v1328
        %1757 = vmatprep.subr.bf16.mxu0 0
        %1758 = vmatpush1.bf16.msra.mxu0 0
        %1759 = vmatprep.subr.bf16.mxu0 0
        %1760 = vmatpush1.bf16.msra.mxu0 0
        %1761 = vmatprep.subr.bf16.mxu0 0
        %1762 = vmatpush1.bf16.msra.mxu0 0
        %1763 = vmatprep.subr.bf16.mxu0 0
        %1764 = vmatpush1.bf16.msra.mxu0 0
        %1765 = vmatprep.subr.bf16.mxu0 0
        %1766 = vmatpush1.bf16.msra.mxu0 0
        %1767 = vmatprep.subr.bf16.mxu0 0
        %1768 = vmatpush1.bf16.msra.mxu0 0
        %1769 = vmatprep.subr.bf16.mxu0 0
        %1770 = vmatpush1.bf16.msra.mxu0 0
        %1771 = vmatprep.subr.bf16.mxu0 0
        %1772 = vmatpush1.bf16.msra.mxu0 0
        %1773 = vmatprep.mubr.bf16.mxu0 0
        %1774 = vmatmul.mubr.bf16.gmra.mrb[0].mxu0 %v1608
        %v1775 = vpop.f32.mrb[0].mxu0
        %v1776 = vadd.f32 %v1616, %v1775
        %v1777 = vpop.f32.mrb[0].mxu0
        %v1778 = vadd.f32 %v1617, %v1777
        %v1779 = vpop.f32.mrb[0].mxu0
        %v1780 = vpop.f32.mrb[0].mxu0
        %1781 = vdwg.mxu0
        %v1782 = vxor.u32 %v1653, 2147483648
        %v1783 = vmul.f32 %v1782, 1.442695
        %v1784 = vpow.pop %v1783
        %v1785 = vadd.f32 %v1784, 1.0
        %v1786 = vrcp.pop %v1785
        %v1787 = vmul.f32 1.0, %v1786
        %v1788 = vxor.u32 %v1655, 2147483648
        %v1789 = vmul.f32 %v1788, 1.442695
        %v1790 = vpow.pop %v1789
        %v1791 = vadd.f32 %v1790, 1.0
        %v1792 = vrcp.pop %v1791
        %v1793 = vmul.f32 1.0, %v1792
        %v1794 = vtanh.pop %v1694
        %v1795 = vxor.u32 %v1696, 2147483648
        %v1796 = vmul.f32 %v1795, 1.442695
        %v1797 = vpow.pop %v1796
        %v1798 = vadd.f32 %v1797, 1.0
        %v1799 = vrcp.pop %v1798
        %v1800 = vmul.f32 1.0, %v1799
        %v1801 = vxor.u32 %v1735, 2147483648
        %v1802 = vmul.f32 %v1801, 1.442695
        %v1803 = vpow.pop %v1802
        %v1804 = vadd.f32 %v1803, 1.0
        %v1805 = vrcp.pop %v1804
        %v1806 = vmul.f32 1.0, %v1805
        %v1807 = vxor.u32 %v1737, 2147483648
        %v1808 = vmul.f32 %v1807, 1.442695
        %v1809 = vpow.pop %v1808
        %v1810 = vadd.f32 %v1809, 1.0
        %v1811 = vrcp.pop %v1810
        %v1812 = vmul.f32 1.0, %v1811
        %v1813 = vtanh.pop %v1776
        %v1814 = vxor.u32 %v1778, 2147483648
        %v1815 = vmul.f32 %v1814, 1.442695
        %v1816 = vpow.pop %v1815
        %v1817 = vadd.f32 %v1816, 1.0
        %v1818 = vrcp.pop %v1817
        %v1819 = vmul.f32 1.0, %v1818
        %v1820 = vmul.f32 %v1787, %v1598
        %v1821 = vmul.f32 %v1793, %v1794
        %v1822 = vadd.f32 %v1820, %v1821
        %v1823 = vmul.f32 %v1806, %v1601
        %v1824 = vmul.f32 %v1812, %v1813
        %v1825 = vadd.f32 %v1823, %v1824
        %v1826 = vtanh.pop %v1822
        %v1827 = vmul.f32 %v1800, %v1826
        %v1828 = vtanh.pop %v1825
        %v1829 = vmul.f32 %v1819, %v1828
        %v1830 = vadd.f32 %v1827, %v1829
        %s1831 = scalar_lea.vmem %s480, 8 [#allocation7]
        %1832 = vst [vmem:[%s1831] sm:$0xff] %v1830
        %v1833 = vpack.c.bf16 %v1830, %v1830
        %s1834 = scalar_lea.vmem [#allocation2], 128
        %v1835 = vld [vmem:[%s1834] sm:$0xff]
        %v1836 = vld [vmem:[%s1834 + $0x8] sm:$0xff]
        %v1837 = vld [vmem:[%s1834 + $0x10] sm:$0xff]
        %v1838 = vld [vmem:[%s1834 + $0x18] sm:$0xff]
        %v1839 = vld [vmem:[%s1834 + $0x20] sm:$0xff]
        %v1840 = vld [vmem:[%s1834 + $0x28] sm:$0xff]
        %v1841 = vld [vmem:[%s1834 + $0x30] sm:$0xff]
        %v1842 = vld [vmem:[%s1834 + $0x38] sm:$0xff]
        %1843 = vmatprep.subr.bf16.mxu0 %v1267
        %1844 = vmatpush1.bf16.msra.mxu0 %v1266
        %1845 = vmatprep.subr.bf16.mxu0 %v1275
        %1846 = vmatpush1.bf16.msra.mxu0 %v1274
        %1847 = vmatprep.subr.bf16.mxu0 %v1283
        %1848 = vmatpush1.bf16.msra.mxu0 %v1282
        %1849 = vmatprep.subr.bf16.mxu0 %v1291
        %1850 = vmatpush1.bf16.msra.mxu0 %v1290
        %1851 = vmatprep.subr.bf16.mxu0 %v1299
        %1852 = vmatpush1.bf16.msra.mxu0 %v1298
        %1853 = vmatprep.subr.bf16.mxu0 %v1307
        %1854 = vmatpush1.bf16.msra.mxu0 %v1306
        %1855 = vmatprep.subr.bf16.mxu0 %v1315
        %1856 = vmatpush1.bf16.msra.mxu0 %v1314
        %1857 = vmatprep.subr.bf16.mxu0 %v1323
        %1858 = vmatpush1.bf16.msra.mxu0 %v1322
        %1859 = vmatprep.subr.bf16.mxu0 0
        %1860 = vmatpush1.bf16.msra.mxu0 0
        %1861 = vmatprep.subr.bf16.mxu0 0
        %1862 = vmatpush1.bf16.msra.mxu0 0
        %1863 = vmatprep.subr.bf16.mxu0 0
        %1864 = vmatpush1.bf16.msra.mxu0 0
        %1865 = vmatprep.subr.bf16.mxu0 0
        %1866 = vmatpush1.bf16.msra.mxu0 0
        %1867 = vmatprep.subr.bf16.mxu0 0
        %1868 = vmatpush1.bf16.msra.mxu0 0
        %1869 = vmatprep.subr.bf16.mxu0 0
        %1870 = vmatpush1.bf16.msra.mxu0 0
        %1871 = vmatprep.subr.bf16.mxu0 0
        %1872 = vmatpush1.bf16.msra.mxu0 0
        %1873 = vmatprep.subr.bf16.mxu0 0
        %1874 = vmatpush1.bf16.msra.mxu0 0
        %1875 = vmatprep.mubr.bf16.mxu0 0
        %1876 = vmatmul.mubr.bf16.gmra.mrb[0].mxu0 %v1833
        %v1877 = vpop.f32.mrb[0].mxu0
        %v1878 = vadd.f32 %v1835, %v1877
        %v1879 = vpop.f32.mrb[0].mxu0
        %v1880 = vadd.f32 %v1836, %v1879
        %v1881 = vpop.f32.mrb[0].mxu0
        %v1882 = vpop.f32.mrb[0].mxu0
        %1883 = vdwg.mxu0
        %1884 = vmatprep.subr.bf16.mxu0 %v1269
        %1885 = vmatpush1.bf16.msra.mxu0 %v1268
        %1886 = vmatprep.subr.bf16.mxu0 %v1277
        %1887 = vmatpush1.bf16.msra.mxu0 %v1276
        %1888 = vmatprep.subr.bf16.mxu0 %v1285
        %1889 = vmatpush1.bf16.msra.mxu0 %v1284
        %1890 = vmatprep.subr.bf16.mxu0 %v1293
        %1891 = vmatpush1.bf16.msra.mxu0 %v1292
        %1892 = vmatprep.subr.bf16.mxu0 %v1301
        %1893 = vmatpush1.bf16.msra.mxu0 %v1300
        %1894 = vmatprep.subr.bf16.mxu0 %v1309
        %1895 = vmatpush1.bf16.msra.mxu0 %v1308
        %1896 = vmatprep.subr.bf16.mxu0 %v1317
        %1897 = vmatpush1.bf16.msra.mxu0 %v1316
        %1898 = vmatprep.subr.bf16.mxu0 %v1325
        %1899 = vmatpush1.bf16.msra.mxu0 %v1324
        %1900 = vmatprep.subr.bf16.mxu0 0
        %1901 = vmatpush1.bf16.msra.mxu0 0
        %1902 = vmatprep.subr.bf16.mxu0 0
        %1903 = vmatpush1.bf16.msra.mxu0 0
        %1904 = vmatprep.subr.bf16.mxu0 0
        %1905 = vmatpush1.bf16.msra.mxu0 0
        %1906 = vmatprep.subr.bf16.mxu0 0
        %1907 = vmatpush1.bf16.msra.mxu0 0
        %1908 = vmatprep.subr.bf16.mxu0 0
        %1909 = vmatpush1.bf16.msra.mxu0 0
        %1910 = vmatprep.subr.bf16.mxu0 0
        %1911 = vmatpush1.bf16.msra.mxu0 0
        %1912 = vmatprep.subr.bf16.mxu0 0
        %1913 = vmatpush1.bf16.msra.mxu0 0
        %1914 = vmatprep.subr.bf16.mxu0 0
        %1915 = vmatpush1.bf16.msra.mxu0 0
        %1916 = vmatprep.mubr.bf16.mxu0 0
        %1917 = vmatmul.mubr.bf16.gmra.mrb[0].mxu0 %v1833
        %v1918 = vpop.f32.mrb[0].mxu0
        %v1919 = vadd.f32 %v1837, %v1918
        %v1920 = vpop.f32.mrb[0].mxu0
        %v1921 = vadd.f32 %v1838, %v1920
        %v1922 = vpop.f32.mrb[0].mxu0
        %v1923 = vpop.f32.mrb[0].mxu0
        %1924 = vdwg.mxu0
        %1925 = vmatprep.subr.bf16.mxu0 %v1271
        %1926 = vmatpush1.bf16.msra.mxu0 %v1270
        %1927 = vmatprep.subr.bf16.mxu0 %v1279
        %1928 = vmatpush1.bf16.msra.mxu0 %v1278
        %1929 = vmatprep.subr.bf16.mxu0 %v1287
        %1930 = vmatpush1.bf16.msra.mxu0 %v1286
        %1931 = vmatprep.subr.bf16.mxu0 %v1295
        %1932 = vmatpush1.bf16.msra.mxu0 %v1294
        %1933 = vmatprep.subr.bf16.mxu0 %v1303
        %1934 = vmatpush1.bf16.msra.mxu0 %v1302
        %1935 = vmatprep.subr.bf16.mxu0 %v1311
        %1936 = vmatpush1.bf16.msra.mxu0 %v1310
        %1937 = vmatprep.subr.bf16.mxu0 %v1319
        %1938 = vmatpush1.bf16.msra.mxu0 %v1318
        %1939 = vmatprep.subr.bf16.mxu0 %v1327
        %1940 = vmatpush1.bf16.msra.mxu0 %v1326
        %1941 = vmatprep.subr.bf16.mxu0 0
        %1942 = vmatpush1.bf16.msra.mxu0 0
        %1943 = vmatprep.subr.bf16.mxu0 0
        %1944 = vmatpush1.bf16.msra.mxu0 0
        %1945 = vmatprep.subr.bf16.mxu0 0
        %1946 = vmatpush1.bf16.msra.mxu0 0
        %1947 = vmatprep.subr.bf16.mxu0 0
        %1948 = vmatpush1.bf16.msra.mxu0 0
        %1949 = vmatprep.subr.bf16.mxu0 0
        %1950 = vmatpush1.bf16.msra.mxu0 0
        %1951 = vmatprep.subr.bf16.mxu0 0
        %1952 = vmatpush1.bf16.msra.mxu0 0
        %1953 = vmatprep.subr.bf16.mxu0 0
        %1954 = vmatpush1.bf16.msra.mxu0 0
        %1955 = vmatprep.subr.bf16.mxu0 0
        %1956 = vmatpush1.bf16.msra.mxu0 0
        %1957 = vmatprep.mubr.bf16.mxu0 0
        %1958 = vmatmul.mubr.bf16.gmra.mrb[0].mxu0 %v1833
        %v1959 = vpop.f32.mrb[0].mxu0
        %v1960 = vadd.f32 %v1839, %v1959
        %v1961 = vpop.f32.mrb[0].mxu0
        %v1962 = vadd.f32 %v1840, %v1961
        %v1963 = vpop.f32.mrb[0].mxu0
        %v1964 = vpop.f32.mrb[0].mxu0
        %1965 = vdwg.mxu0
        %1966 = vmatprep.subr.bf16.mxu0 %v1273
        %1967 = vmatpush1.bf16.msra.mxu0 %v1272
        %1968 = vmatprep.subr.bf16.mxu0 %v1281
        %1969 = vmatpush1.bf16.msra.mxu0 %v1280
        %1970 = vmatprep.subr.bf16.mxu0 %v1289
        %1971 = vmatpush1.bf16.msra.mxu0 %v1288
        %1972 = vmatprep.subr.bf16.mxu0 %v1297
        %1973 = vmatpush1.bf16.msra.mxu0 %v1296
        %1974 = vmatprep.subr.bf16.mxu0 %v1305
        %1975 = vmatpush1.bf16.msra.mxu0 %v1304
        %1976 = vmatprep.subr.bf16.mxu0 %v1313
        %1977 = vmatpush1.bf16.msra.mxu0 %v1312
        %1978 = vmatprep.subr.bf16.mxu0 %v1321
        %1979 = vmatpush1.bf16.msra.mxu0 %v1320
        %1980 = vmatprep.subr.bf16.mxu0 %v1329
        %1981 = vmatpush1.bf16.msra.mxu0 %v1328
        %1982 = vmatprep.subr.bf16.mxu0 0
        %1983 = vmatpush1.bf16.msra.mxu0 0
        %1984 = vmatprep.subr.bf16.mxu0 0
        %1985 = vmatpush1.bf16.msra.mxu0 0
        %1986 = vmatprep.subr.bf16.mxu0 0
        %1987 = vmatpush1.bf16.msra.mxu0 0
        %1988 = vmatprep.subr.bf16.mxu0 0
        %1989 = vmatpush1.bf16.msra.mxu0 0
        %1990 = vmatprep.subr.bf16.mxu0 0
        %1991 = vmatpush1.bf16.msra.mxu0 0
        %1992 = vmatprep.subr.bf16.mxu0 0
        %1993 = vmatpush1.bf16.msra.mxu0 0
        %1994 = vmatprep.subr.bf16.mxu0 0
        %1995 = vmatpush1.bf16.msra.mxu0 0
        %1996 = vmatprep.subr.bf16.mxu0 0
        %1997 = vmatpush1.bf16.msra.mxu0 0
        %1998 = vmatprep.mubr.bf16.mxu0 0
        %1999 = vmatmul.mubr.bf16.gmra.mrb[0].mxu0 %v1833
        %v2000 = vpop.f32.mrb[0].mxu0
        %v2001 = vadd.f32 %v1841, %v2000
        %v2002 = vpop.f32.mrb[0].mxu0
        %v2003 = vadd.f32 %v1842, %v2002
        %v2004 = vpop.f32.mrb[0].mxu0
        %v2005 = vpop.f32.mrb[0].mxu0
        %2006 = vdwg.mxu0
        %v2007 = vxor.u32 %v1878, 2147483648
        %v2008 = vmul.f32 %v2007, 1.442695
        %v2009 = vpow.pop %v2008
        %v2010 = vadd.f32 %v2009, 1.0
        %v2011 = vrcp.pop %v2010
        %v2012 = vmul.f32 1.0, %v2011
        %v2013 = vxor.u32 %v1880, 2147483648
        %v2014 = vmul.f32 %v2013, 1.442695
        %v2015 = vpow.pop %v2014
        %v2016 = vadd.f32 %v2015, 1.0
        %v2017 = vrcp.pop %v2016
        %v2018 = vmul.f32 1.0, %v2017
        %v2019 = vtanh.pop %v1919
        %v2020 = vxor.u32 %v1921, 2147483648
        %v2021 = vmul.f32 %v2020, 1.442695
        %v2022 = vpow.pop %v2021
        %v2023 = vadd.f32 %v2022, 1.0
        %v2024 = vrcp.pop %v2023
        %v2025 = vmul.f32 1.0, %v2024
        %v2026 = vxor.u32 %v1960, 2147483648
        %v2027 = vmul.f32 %v2026, 1.442695
        %v2028 = vpow.pop %v2027
        %v2029 = vadd.f32 %v2028, 1.0
        %v2030 = vrcp.pop %v2029
        %v2031 = vmul.f32 1.0, %v2030
        %v2032 = vxor.u32 %v1962, 2147483648
        %v2033 = vmul.f32 %v2032, 1.442695
        %v2034 = vpow.pop %v2033
        %v2035 = vadd.f32 %v2034, 1.0
        %v2036 = vrcp.pop %v2035
        %v2037 = vmul.f32 1.0, %v2036
        %v2038 = vtanh.pop %v2001
        %v2039 = vxor.u32 %v2003, 2147483648
        %v2040 = vmul.f32 %v2039, 1.442695
        %v2041 = vpow.pop %v2040
        %v2042 = vadd.f32 %v2041, 1.0
        %v2043 = vrcp.pop %v2042
        %v2044 = vmul.f32 1.0, %v2043
        %v2045 = vmul.f32 %v2012, %v1822
        %v2046 = vmul.f32 %v2018, %v2019
        %v2047 = vadd.f32 %v2045, %v2046
        %v2048 = vmul.f32 %v2031, %v1825
        %v2049 = vmul.f32 %v2037, %v2038
        %v2050 = vadd.f32 %v2048, %v2049
        %v2051 = vtanh.pop %v2047
        %v2052 = vmul.f32 %v2025, %v2051
        %v2053 = vtanh.pop %v2050
        %v2054 = vmul.f32 %v2044, %v2053
        %v2055 = vadd.f32 %v2052, %v2054
        %s2056 = scalar_lea.vmem %s480, 16 [#allocation7]
        %2057 = vst [vmem:[%s2056] sm:$0xff] %v2055
        %v2058 = vpack.c.bf16 %v2055, %v2055
        %s2059 = scalar_lea.vmem [#allocation2], 192
        %v2060 = vld [vmem:[%s2059] sm:$0xff]
        %v2061 = vld [vmem:[%s2059 + $0x8] sm:$0xff]
        %v2062 = vld [vmem:[%s2059 + $0x10] sm:$0xff]
        %v2063 = vld [vmem:[%s2059 + $0x18] sm:$0xff]
        %v2064 = vld [vmem:[%s2059 + $0x20] sm:$0xff]
        %v2065 = vld [vmem:[%s2059 + $0x28] sm:$0xff]
        %v2066 = vld [vmem:[%s2059 + $0x30] sm:$0xff]
        %v2067 = vld [vmem:[%s2059 + $0x38] sm:$0xff]
        %2068 = vmatprep.subr.bf16.mxu0 %v1267
        %2069 = vmatpush1.bf16.msra.mxu0 %v1266
        %2070 = vmatprep.subr.bf16.mxu0 %v1275
        %2071 = vmatpush1.bf16.msra.mxu0 %v1274
        %2072 = vmatprep.subr.bf16.mxu0 %v1283
        %2073 = vmatpush1.bf16.msra.mxu0 %v1282
        %2074 = vmatprep.subr.bf16.mxu0 %v1291
        %2075 = vmatpush1.bf16.msra.mxu0 %v1290
        %2076 = vmatprep.subr.bf16.mxu0 %v1299
        %2077 = vmatpush1.bf16.msra.mxu0 %v1298
        %2078 = vmatprep.subr.bf16.mxu0 %v1307
        %2079 = vmatpush1.bf16.msra.mxu0 %v1306
        %2080 = vmatprep.subr.bf16.mxu0 %v1315
        %2081 = vmatpush1.bf16.msra.mxu0 %v1314
        %2082 = vmatprep.subr.bf16.mxu0 %v1323
        %2083 = vmatpush1.bf16.msra.mxu0 %v1322
        %2084 = vmatprep.subr.bf16.mxu0 0
        %2085 = vmatpush1.bf16.msra.mxu0 0
        %2086 = vmatprep.subr.bf16.mxu0 0
        %2087 = vmatpush1.bf16.msra.mxu0 0
        %2088 = vmatprep.subr.bf16.mxu0 0
        %2089 = vmatpush1.bf16.msra.mxu0 0
        %2090 = vmatprep.subr.bf16.mxu0 0
        %2091 = vmatpush1.bf16.msra.mxu0 0
        %2092 = vmatprep.subr.bf16.mxu0 0
        %2093 = vmatpush1.bf16.msra.mxu0 0
        %2094 = vmatprep.subr.bf16.mxu0 0
        %2095 = vmatpush1.bf16.msra.mxu0 0
        %2096 = vmatprep.subr.bf16.mxu0 0
        %2097 = vmatpush1.bf16.msra.mxu0 0
        %2098 = vmatprep.subr.bf16.mxu0 0
        %2099 = vmatpush1.bf16.msra.mxu0 0
        %2100 = vmatprep.mubr.bf16.mxu0 0
        %2101 = vmatmul.mubr.bf16.gmra.mrb[0].mxu0 %v2058
        %v2102 = vpop.f32.mrb[0].mxu0
        %v2103 = vadd.f32 %v2060, %v2102
        %v2104 = vpop.f32.mrb[0].mxu0
        %v2105 = vadd.f32 %v2061, %v2104
        %v2106 = vpop.f32.mrb[0].mxu0
        %v2107 = vpop.f32.mrb[0].mxu0
        %2108 = vdwg.mxu0
        %2109 = vmatprep.subr.bf16.mxu0 %v1269
        %2110 = vmatpush1.bf16.msra.mxu0 %v1268
        %2111 = vmatprep.subr.bf16.mxu0 %v1277
        %2112 = vmatpush1.bf16.msra.mxu0 %v1276
        %2113 = vmatprep.subr.bf16.mxu0 %v1285
        %2114 = vmatpush1.bf16.msra.mxu0 %v1284
        %2115 = vmatprep.subr.bf16.mxu0 %v1293
        %2116 = vmatpush1.bf16.msra.mxu0 %v1292
        %2117 = vmatprep.subr.bf16.mxu0 %v1301
        %2118 = vmatpush1.bf16.msra.mxu0 %v1300
        %2119 = vmatprep.subr.bf16.mxu0 %v1309
        %2120 = vmatpush1.bf16.msra.mxu0 %v1308
        %2121 = vmatprep.subr.bf16.mxu0 %v1317
        %2122 = vmatpush1.bf16.msra.mxu0 %v1316
        %2123 = vmatprep.subr.bf16.mxu0 %v1325
        %2124 = vmatpush1.bf16.msra.mxu0 %v1324
        %2125 = vmatprep.subr.bf16.mxu0 0
        %2126 = vmatpush1.bf16.msra.mxu0 0
        %2127 = vmatprep.subr.bf16.mxu0 0
        %2128 = vmatpush1.bf16.msra.mxu0 0
        %2129 = vmatprep.subr.bf16.mxu0 0
        %2130 = vmatpush1.bf16.msra.mxu0 0
        %2131 = vmatprep.subr.bf16.mxu0 0
        %2132 = vmatpush1.bf16.msra.mxu0 0
        %2133 = vmatprep.subr.bf16.mxu0 0
        %2134 = vmatpush1.bf16.msra.mxu0 0
        %2135 = vmatprep.subr.bf16.mxu0 0
        %2136 = vmatpush1.bf16.msra.mxu0 0
        %2137 = vmatprep.subr.bf16.mxu0 0
        %2138 = vmatpush1.bf16.msra.mxu0 0
        %2139 = vmatprep.subr.bf16.mxu0 0
        %2140 = vmatpush1.bf16.msra.mxu0 0
        %2141 = vmatprep.mubr.bf16.mxu0 0
        %2142 = vmatmul.mubr.bf16.gmra.mrb[0].mxu0 %v2058
        %v2143 = vpop.f32.mrb[0].mxu0
        %v2144 = vadd.f32 %v2062, %v2143
        %v2145 = vpop.f32.mrb[0].mxu0
        %v2146 = vadd.f32 %v2063, %v2145
        %v2147 = vpop.f32.mrb[0].mxu0
        %v2148 = vpop.f32.mrb[0].mxu0
        %2149 = vdwg.mxu0
        %2150 = vmatprep.subr.bf16.mxu0 %v1271
        %2151 = vmatpush1.bf16.msra.mxu0 %v1270
        %2152 = vmatprep.subr.bf16.mxu0 %v1279
        %2153 = vmatpush1.bf16.msra.mxu0 %v1278
        %2154 = vmatprep.subr.bf16.mxu0 %v1287
        %2155 = vmatpush1.bf16.msra.mxu0 %v1286
        %2156 = vmatprep.subr.bf16.mxu0 %v1295
        %2157 = vmatpush1.bf16.msra.mxu0 %v1294
        %2158 = vmatprep.subr.bf16.mxu0 %v1303
        %2159 = vmatpush1.bf16.msra.mxu0 %v1302
        %2160 = vmatprep.subr.bf16.mxu0 %v1311
        %2161 = vmatpush1.bf16.msra.mxu0 %v1310
        %2162 = vmatprep.subr.bf16.mxu0 %v1319
        %2163 = vmatpush1.bf16.msra.mxu0 %v1318
        %2164 = vmatprep.subr.bf16.mxu0 %v1327
        %2165 = vmatpush1.bf16.msra.mxu0 %v1326
        %2166 = vmatprep.subr.bf16.mxu0 0
        %2167 = vmatpush1.bf16.msra.mxu0 0
        %2168 = vmatprep.subr.bf16.mxu0 0
        %2169 = vmatpush1.bf16.msra.mxu0 0
        %2170 = vmatprep.subr.bf16.mxu0 0
        %2171 = vmatpush1.bf16.msra.mxu0 0
        %2172 = vmatprep.subr.bf16.mxu0 0
        %2173 = vmatpush1.bf16.msra.mxu0 0
        %2174 = vmatprep.subr.bf16.mxu0 0
        %2175 = vmatpush1.bf16.msra.mxu0 0
        %2176 = vmatprep.subr.bf16.mxu0 0
        %2177 = vmatpush1.bf16.msra.mxu0 0
        %2178 = vmatprep.subr.bf16.mxu0 0
        %2179 = vmatpush1.bf16.msra.mxu0 0
        %2180 = vmatprep.subr.bf16.mxu0 0
        %2181 = vmatpush1.bf16.msra.mxu0 0
        %2182 = vmatprep.mubr.bf16.mxu0 0
        %2183 = vmatmul.mubr.bf16.gmra.mrb[0].mxu0 %v2058
        %v2184 = vpop.f32.mrb[0].mxu0
        %v2185 = vadd.f32 %v2064, %v2184
        %v2186 = vpop.f32.mrb[0].mxu0
        %v2187 = vadd.f32 %v2065, %v2186
        %v2188 = vpop.f32.mrb[0].mxu0
        %v2189 = vpop.f32.mrb[0].mxu0
        %2190 = vdwg.mxu0
        %2191 = vmatprep.subr.bf16.mxu0 %v1273
        %2192 = vmatpush1.bf16.msra.mxu0 %v1272
        %2193 = vmatprep.subr.bf16.mxu0 %v1281
        %2194 = vmatpush1.bf16.msra.mxu0 %v1280
        %2195 = vmatprep.subr.bf16.mxu0 %v1289
        %2196 = vmatpush1.bf16.msra.mxu0 %v1288
        %2197 = vmatprep.subr.bf16.mxu0 %v1297
        %2198 = vmatpush1.bf16.msra.mxu0 %v1296
        %2199 = vmatprep.subr.bf16.mxu0 %v1305
        %2200 = vmatpush1.bf16.msra.mxu0 %v1304
        %2201 = vmatprep.subr.bf16.mxu0 %v1313
        %2202 = vmatpush1.bf16.msra.mxu0 %v1312
        %2203 = vmatprep.subr.bf16.mxu0 %v1321
        %2204 = vmatpush1.bf16.msra.mxu0 %v1320
        %2205 = vmatprep.subr.bf16.mxu0 %v1329
        %2206 = vmatpush1.bf16.msra.mxu0 %v1328
        %2207 = vmatprep.subr.bf16.mxu0 0
        %2208 = vmatpush1.bf16.msra.mxu0 0
        %2209 = vmatprep.subr.bf16.mxu0 0
        %2210 = vmatpush1.bf16.msra.mxu0 0
        %2211 = vmatprep.subr.bf16.mxu0 0
        %2212 = vmatpush1.bf16.msra.mxu0 0
        %2213 = vmatprep.subr.bf16.mxu0 0
        %2214 = vmatpush1.bf16.msra.mxu0 0
        %2215 = vmatprep.subr.bf16.mxu0 0
        %2216 = vmatpush1.bf16.msra.mxu0 0
        %2217 = vmatprep.subr.bf16.mxu0 0
        %2218 = vmatpush1.bf16.msra.mxu0 0
        %2219 = vmatprep.subr.bf16.mxu0 0
        %2220 = vmatpush1.bf16.msra.mxu0 0
        %2221 = vmatprep.subr.bf16.mxu0 0
        %2222 = vmatpush1.bf16.msra.mxu0 0
        %2223 = vmatprep.mubr.bf16.mxu0 0
        %2224 = vmatmul.mubr.bf16.gmra.mrb[0].mxu0 %v2058
        %v2225 = vpop.f32.mrb[0].mxu0
        %v2226 = vadd.f32 %v2066, %v2225
        %v2227 = vpop.f32.mrb[0].mxu0
        %v2228 = vadd.f32 %v2067, %v2227
        %v2229 = vpop.f32.mrb[0].mxu0
        %v2230 = vpop.f32.mrb[0].mxu0
        %2231 = vdwg.mxu0
        %v2232 = vxor.u32 %v2103, 2147483648
        %v2233 = vmul.f32 %v2232, 1.442695
        %v2234 = vpow.pop %v2233
        %v2235 = vadd.f32 %v2234, 1.0
        %v2236 = vrcp.pop %v2235
        %v2237 = vmul.f32 1.0, %v2236
        %v2238 = vxor.u32 %v2105, 2147483648
        %v2239 = vmul.f32 %v2238, 1.442695
        %v2240 = vpow.pop %v2239
        %v2241 = vadd.f32 %v2240, 1.0
        %v2242 = vrcp.pop %v2241
        %v2243 = vmul.f32 1.0, %v2242
        %v2244 = vtanh.pop %v2144
        %v2245 = vxor.u32 %v2146, 2147483648
        %v2246 = vmul.f32 %v2245, 1.442695
        %v2247 = vpow.pop %v2246
        %v2248 = vadd.f32 %v2247, 1.0
        %v2249 = vrcp.pop %v2248
        %v2250 = vmul.f32 1.0, %v2249
        %v2251 = vxor.u32 %v2185, 2147483648
        %v2252 = vmul.f32 %v2251, 1.442695
        %v2253 = vpow.pop %v2252
        %v2254 = vadd.f32 %v2253, 1.0
        %v2255 = vrcp.pop %v2254
        %v2256 = vmul.f32 1.0, %v2255
        %v2257 = vxor.u32 %v2187, 2147483648
        %v2258 = vmul.f32 %v2257, 1.442695
        %v2259 = vpow.pop %v2258
        %v2260 = vadd.f32 %v2259, 1.0
        %v2261 = vrcp.pop %v2260
        %v2262 = vmul.f32 1.0, %v2261
        %v2263 = vtanh.pop %v2226
        %v2264 = vxor.u32 %v2228, 2147483648
        %v2265 = vmul.f32 %v2264, 1.442695
        %v2266 = vpow.pop %v2265
        %v2267 = vadd.f32 %v2266, 1.0
        %v2268 = vrcp.pop %v2267
        %v2269 = vmul.f32 1.0, %v2268
        %v2270 = vmul.f32 %v2237, %v2047
        %v2271 = vmul.f32 %v2243, %v2244
        %v2272 = vadd.f32 %v2270, %v2271
        %v2273 = vmul.f32 %v2256, %v2050
        %v2274 = vmul.f32 %v2262, %v2263
        %v2275 = vadd.f32 %v2273, %v2274
        %v2276 = vtanh.pop %v2272
        %v2277 = vmul.f32 %v2250, %v2276
        %v2278 = vtanh.pop %v2275
        %v2279 = vmul.f32 %v2269, %v2278
        %v2280 = vadd.f32 %v2277, %v2279
        %s2281 = scalar_lea.vmem %s480, 24 [#allocation7]
        %2282 = vst [vmem:[%s2281] sm:$0xff] %v2280
        %v2283 = vpack.c.bf16 %v2280, %v2280
        %s2284 = scalar_lea.vmem [#allocation2], 256
        %v2285 = vld [vmem:[%s2284] sm:$0xff]
        %v2286 = vld [vmem:[%s2284 + $0x8] sm:$0xff]
        %v2287 = vld [vmem:[%s2284 + $0x10] sm:$0xff]
        %v2288 = vld [vmem:[%s2284 + $0x18] sm:$0xff]
        %v2289 = vld [vmem:[%s2284 + $0x20] sm:$0xff]
        %v2290 = vld [vmem:[%s2284 + $0x28] sm:$0xff]
        %v2291 = vld [vmem:[%s2284 + $0x30] sm:$0xff]
        %v2292 = vld [vmem:[%s2284 + $0x38] sm:$0xff]
        %2293 = vmatprep.subr.bf16.mxu0 %v1267
        %2294 = vmatpush1.bf16.msra.mxu0 %v1266
        %2295 = vmatprep.subr.bf16.mxu0 %v1275
        %2296 = vmatpush1.bf16.msra.mxu0 %v1274
        %2297 = vmatprep.subr.bf16.mxu0 %v1283
        %2298 = vmatpush1.bf16.msra.mxu0 %v1282
        %2299 = vmatprep.subr.bf16.mxu0 %v1291
        %2300 = vmatpush1.bf16.msra.mxu0 %v1290
        %2301 = vmatprep.subr.bf16.mxu0 %v1299
        %2302 = vmatpush1.bf16.msra.mxu0 %v1298
        %2303 = vmatprep.subr.bf16.mxu0 %v1307
        %2304 = vmatpush1.bf16.msra.mxu0 %v1306
        %2305 = vmatprep.subr.bf16.mxu0 %v1315
        %2306 = vmatpush1.bf16.msra.mxu0 %v1314
        %2307 = vmatprep.subr.bf16.mxu0 %v1323
        %2308 = vmatpush1.bf16.msra.mxu0 %v1322
        %2309 = vmatprep.subr.bf16.mxu0 0
        %2310 = vmatpush1.bf16.msra.mxu0 0
        %2311 = vmatprep.subr.bf16.mxu0 0
        %2312 = vmatpush1.bf16.msra.mxu0 0
        %2313 = vmatprep.subr.bf16.mxu0 0
        %2314 = vmatpush1.bf16.msra.mxu0 0
        %2315 = vmatprep.subr.bf16.mxu0 0
        %2316 = vmatpush1.bf16.msra.mxu0 0
        %2317 = vmatprep.subr.bf16.mxu0 0
        %2318 = vmatpush1.bf16.msra.mxu0 0
        %2319 = vmatprep.subr.bf16.mxu0 0
        %2320 = vmatpush1.bf16.msra.mxu0 0
        %2321 = vmatprep.subr.bf16.mxu0 0
        %2322 = vmatpush1.bf16.msra.mxu0 0
        %2323 = vmatprep.subr.bf16.mxu0 0
        %2324 = vmatpush1.bf16.msra.mxu0 0
        %2325 = vmatprep.mubr.bf16.mxu0 0
        %2326 = vmatmul.mubr.bf16.gmra.mrb[0].mxu0 %v2283
        %v2327 = vpop.f32.mrb[0].mxu0
        %v2328 = vadd.f32 %v2285, %v2327
        %v2329 = vpop.f32.mrb[0].mxu0
        %v2330 = vadd.f32 %v2286, %v2329
        %v2331 = vpop.f32.mrb[0].mxu0
        %v2332 = vpop.f32.mrb[0].mxu0
        %2333 = vdwg.mxu0
        %2334 = vmatprep.subr.bf16.mxu0 %v1269
        %2335 = vmatpush1.bf16.msra.mxu0 %v1268
        %2336 = vmatprep.subr.bf16.mxu0 %v1277
        %2337 = vmatpush1.bf16.msra.mxu0 %v1276
        %2338 = vmatprep.subr.bf16.mxu0 %v1285
        %2339 = vmatpush1.bf16.msra.mxu0 %v1284
        %2340 = vmatprep.subr.bf16.mxu0 %v1293
        %2341 = vmatpush1.bf16.msra.mxu0 %v1292
        %2342 = vmatprep.subr.bf16.mxu0 %v1301
        %2343 = vmatpush1.bf16.msra.mxu0 %v1300
        %2344 = vmatprep.subr.bf16.mxu0 %v1309
        %2345 = vmatpush1.bf16.msra.mxu0 %v1308
        %2346 = vmatprep.subr.bf16.mxu0 %v1317
        %2347 = vmatpush1.bf16.msra.mxu0 %v1316
        %2348 = vmatprep.subr.bf16.mxu0 %v1325
        %2349 = vmatpush1.bf16.msra.mxu0 %v1324
        %2350 = vmatprep.subr.bf16.mxu0 0
        %2351 = vmatpush1.bf16.msra.mxu0 0
        %2352 = vmatprep.subr.bf16.mxu0 0
        %2353 = vmatpush1.bf16.msra.mxu0 0
        %2354 = vmatprep.subr.bf16.mxu0 0
        %2355 = vmatpush1.bf16.msra.mxu0 0
        %2356 = vmatprep.subr.bf16.mxu0 0
        %2357 = vmatpush1.bf16.msra.mxu0 0
        %2358 = vmatprep.subr.bf16.mxu0 0
        %2359 = vmatpush1.bf16.msra.mxu0 0
        %2360 = vmatprep.subr.bf16.mxu0 0
        %2361 = vmatpush1.bf16.msra.mxu0 0
        %2362 = vmatprep.subr.bf16.mxu0 0
        %2363 = vmatpush1.bf16.msra.mxu0 0
        %2364 = vmatprep.subr.bf16.mxu0 0
        %2365 = vmatpush1.bf16.msra.mxu0 0
        %2366 = vmatprep.mubr.bf16.mxu0 0
        %2367 = vmatmul.mubr.bf16.gmra.mrb[0].mxu0 %v2283
        %v2368 = vpop.f32.mrb[0].mxu0
        %v2369 = vadd.f32 %v2287, %v2368
        %v2370 = vpop.f32.mrb[0].mxu0
        %v2371 = vadd.f32 %v2288, %v2370
        %v2372 = vpop.f32.mrb[0].mxu0
        %v2373 = vpop.f32.mrb[0].mxu0
        %2374 = vdwg.mxu0
        %2375 = vmatprep.subr.bf16.mxu0 %v1271
        %2376 = vmatpush1.bf16.msra.mxu0 %v1270
        %2377 = vmatprep.subr.bf16.mxu0 %v1279
        %2378 = vmatpush1.bf16.msra.mxu0 %v1278
        %2379 = vmatprep.subr.bf16.mxu0 %v1287
        %2380 = vmatpush1.bf16.msra.mxu0 %v1286
        %2381 = vmatprep.subr.bf16.mxu0 %v1295
        %2382 = vmatpush1.bf16.msra.mxu0 %v1294
        %2383 = vmatprep.subr.bf16.mxu0 %v1303
        %2384 = vmatpush1.bf16.msra.mxu0 %v1302
        %2385 = vmatprep.subr.bf16.mxu0 %v1311
        %2386 = vmatpush1.bf16.msra.mxu0 %v1310
        %2387 = vmatprep.subr.bf16.mxu0 %v1319
        %2388 = vmatpush1.bf16.msra.mxu0 %v1318
        %2389 = vmatprep.subr.bf16.mxu0 %v1327
        %2390 = vmatpush1.bf16.msra.mxu0 %v1326
        %2391 = vmatprep.subr.bf16.mxu0 0
        %2392 = vmatpush1.bf16.msra.mxu0 0
        %2393 = vmatprep.subr.bf16.mxu0 0
        %2394 = vmatpush1.bf16.msra.mxu0 0
        %2395 = vmatprep.subr.bf16.mxu0 0
        %2396 = vmatpush1.bf16.msra.mxu0 0
        %2397 = vmatprep.subr.bf16.mxu0 0
        %2398 = vmatpush1.bf16.msra.mxu0 0
        %2399 = vmatprep.subr.bf16.mxu0 0
        %2400 = vmatpush1.bf16.msra.mxu0 0
        %2401 = vmatprep.subr.bf16.mxu0 0
        %2402 = vmatpush1.bf16.msra.mxu0 0
        %2403 = vmatprep.subr.bf16.mxu0 0
        %2404 = vmatpush1.bf16.msra.mxu0 0
        %2405 = vmatprep.subr.bf16.mxu0 0
        %2406 = vmatpush1.bf16.msra.mxu0 0
        %2407 = vmatprep.mubr.bf16.mxu0 0
        %2408 = vmatmul.mubr.bf16.gmra.mrb[0].mxu0 %v2283
        %v2409 = vpop.f32.mrb[0].mxu0
        %v2410 = vadd.f32 %v2289, %v2409
        %v2411 = vpop.f32.mrb[0].mxu0
        %v2412 = vadd.f32 %v2290, %v2411
        %v2413 = vpop.f32.mrb[0].mxu0
        %v2414 = vpop.f32.mrb[0].mxu0
        %2415 = vdwg.mxu0
        %2416 = vmatprep.subr.bf16.mxu0 %v1273
        %2417 = vmatpush1.bf16.msra.mxu0 %v1272
        %2418 = vmatprep.subr.bf16.mxu0 %v1281
        %2419 = vmatpush1.bf16.msra.mxu0 %v1280
        %2420 = vmatprep.subr.bf16.mxu0 %v1289
        %2421 = vmatpush1.bf16.msra.mxu0 %v1288
        %2422 = vmatprep.subr.bf16.mxu0 %v1297
        %2423 = vmatpush1.bf16.msra.mxu0 %v1296
        %2424 = vmatprep.subr.bf16.mxu0 %v1305
        %2425 = vmatpush1.bf16.msra.mxu0 %v1304
        %2426 = vmatprep.subr.bf16.mxu0 %v1313
        %2427 = vmatpush1.bf16.msra.mxu0 %v1312
        %2428 = vmatprep.subr.bf16.mxu0 %v1321
        %2429 = vmatpush1.bf16.msra.mxu0 %v1320
        %2430 = vmatprep.subr.bf16.mxu0 %v1329
        %2431 = vmatpush1.bf16.msra.mxu0 %v1328
        %2432 = vmatprep.subr.bf16.mxu0 0
        %2433 = vmatpush1.bf16.msra.mxu0 0
        %2434 = vmatprep.subr.bf16.mxu0 0
        %2435 = vmatpush1.bf16.msra.mxu0 0
        %2436 = vmatprep.subr.bf16.mxu0 0
        %2437 = vmatpush1.bf16.msra.mxu0 0
        %2438 = vmatprep.subr.bf16.mxu0 0
        %2439 = vmatpush1.bf16.msra.mxu0 0
        %2440 = vmatprep.subr.bf16.mxu0 0
        %2441 = vmatpush1.bf16.msra.mxu0 0
        %2442 = vmatprep.subr.bf16.mxu0 0
        %2443 = vmatpush1.bf16.msra.mxu0 0
        %2444 = vmatprep.subr.bf16.mxu0 0
        %2445 = vmatpush1.bf16.msra.mxu0 0
        %2446 = vmatprep.subr.bf16.mxu0 0
        %2447 = vmatpush1.bf16.msra.mxu0 0
        %2448 = vmatprep.mubr.bf16.mxu0 0
        %2449 = vmatmul.mubr.bf16.gmra.mrb[0].mxu0 %v2283
        %v2450 = vpop.f32.mrb[0].mxu0
        %v2451 = vadd.f32 %v2291, %v2450
        %v2452 = vpop.f32.mrb[0].mxu0
        %v2453 = vadd.f32 %v2292, %v2452
        %v2454 = vpop.f32.mrb[0].mxu0
        %v2455 = vpop.f32.mrb[0].mxu0
        %2456 = vdwg.mxu0
        %v2457 = vxor.u32 %v2328, 2147483648
        %v2458 = vmul.f32 %v2457, 1.442695
        %v2459 = vpow.pop %v2458
        %v2460 = vadd.f32 %v2459, 1.0
        %v2461 = vrcp.pop %v2460
        %v2462 = vmul.f32 1.0, %v2461
        %v2463 = vxor.u32 %v2330, 2147483648
        %v2464 = vmul.f32 %v2463, 1.442695
        %v2465 = vpow.pop %v2464
        %v2466 = vadd.f32 %v2465, 1.0
        %v2467 = vrcp.pop %v2466
        %v2468 = vmul.f32 1.0, %v2467
        %v2469 = vtanh.pop %v2369
        %v2470 = vxor.u32 %v2371, 2147483648
        %v2471 = vmul.f32 %v2470, 1.442695
        %v2472 = vpow.pop %v2471
        %v2473 = vadd.f32 %v2472, 1.0
        %v2474 = vrcp.pop %v2473
        %v2475 = vmul.f32 1.0, %v2474
        %v2476 = vxor.u32 %v2410, 2147483648
        %v2477 = vmul.f32 %v2476, 1.442695
        %v2478 = vpow.pop %v2477
        %v2479 = vadd.f32 %v2478, 1.0
        %v2480 = vrcp.pop %v2479
        %v2481 = vmul.f32 1.0, %v2480
        %v2482 = vxor.u32 %v2412, 2147483648
        %v2483 = vmul.f32 %v2482, 1.442695
        %v2484 = vpow.pop %v2483
        %v2485 = vadd.f32 %v2484, 1.0
        %v2486 = vrcp.pop %v2485
        %v2487 = vmul.f32 1.0, %v2486
        %v2488 = vtanh.pop %v2451
        %v2489 = vxor.u32 %v2453, 2147483648
        %v2490 = vmul.f32 %v2489, 1.442695
        %v2491 = vpow.pop %v2490
        %v2492 = vadd.f32 %v2491, 1.0
        %v2493 = vrcp.pop %v2492
        %v2494 = vmul.f32 1.0, %v2493
        %v2495 = vmul.f32 %v2462, %v2272
        %v2496 = vmul.f32 %v2468, %v2469
        %v2497 = vadd.f32 %v2495, %v2496
        %v2498 = vmul.f32 %v2481, %v2275
        %v2499 = vmul.f32 %v2487, %v2488
        %v2500 = vadd.f32 %v2498, %v2499
        %v2501 = vtanh.pop %v2497
        %v2502 = vmul.f32 %v2475, %v2501
        %v2503 = vtanh.pop %v2500
        %v2504 = vmul.f32 %v2494, %v2503
        %v2505 = vadd.f32 %v2502, %v2504
        %s2506 = scalar_lea.vmem %s480, 32 [#allocation7]
        %2507 = vst [vmem:[%s2506] sm:$0xff] %v2505
        %v2508 = vpack.c.bf16 %v2505, %v2505
        %s2509 = scalar_lea.vmem [#allocation2], 320
        %v2510 = vld [vmem:[%s2509] sm:$0xff]
        %v2511 = vld [vmem:[%s2509 + $0x8] sm:$0xff]
        %v2512 = vld [vmem:[%s2509 + $0x10] sm:$0xff]
        %v2513 = vld [vmem:[%s2509 + $0x18] sm:$0xff]
        %v2514 = vld [vmem:[%s2509 + $0x20] sm:$0xff]
        %v2515 = vld [vmem:[%s2509 + $0x28] sm:$0xff]
        %v2516 = vld [vmem:[%s2509 + $0x30] sm:$0xff]
        %v2517 = vld [vmem:[%s2509 + $0x38] sm:$0xff]
        %2518 = vmatprep.subr.bf16.mxu0 %v1267
        %2519 = vmatpush1.bf16.msra.mxu0 %v1266
        %2520 = vmatprep.subr.bf16.mxu0 %v1275
        %2521 = vmatpush1.bf16.msra.mxu0 %v1274
        %2522 = vmatprep.subr.bf16.mxu0 %v1283
        %2523 = vmatpush1.bf16.msra.mxu0 %v1282
        %2524 = vmatprep.subr.bf16.mxu0 %v1291
        %2525 = vmatpush1.bf16.msra.mxu0 %v1290
        %2526 = vmatprep.subr.bf16.mxu0 %v1299
        %2527 = vmatpush1.bf16.msra.mxu0 %v1298
        %2528 = vmatprep.subr.bf16.mxu0 %v1307
        %2529 = vmatpush1.bf16.msra.mxu0 %v1306
        %2530 = vmatprep.subr.bf16.mxu0 %v1315
        %2531 = vmatpush1.bf16.msra.mxu0 %v1314
        %2532 = vmatprep.subr.bf16.mxu0 %v1323
        %2533 = vmatpush1.bf16.msra.mxu0 %v1322
        %2534 = vmatprep.subr.bf16.mxu0 0
        %2535 = vmatpush1.bf16.msra.mxu0 0
        %2536 = vmatprep.subr.bf16.mxu0 0
        %2537 = vmatpush1.bf16.msra.mxu0 0
        %2538 = vmatprep.subr.bf16.mxu0 0
        %2539 = vmatpush1.bf16.msra.mxu0 0
        %2540 = vmatprep.subr.bf16.mxu0 0
        %2541 = vmatpush1.bf16.msra.mxu0 0
        %2542 = vmatprep.subr.bf16.mxu0 0
        %2543 = vmatpush1.bf16.msra.mxu0 0
        %2544 = vmatprep.subr.bf16.mxu0 0
        %2545 = vmatpush1.bf16.msra.mxu0 0
        %2546 = vmatprep.subr.bf16.mxu0 0
        %2547 = vmatpush1.bf16.msra.mxu0 0
        %2548 = vmatprep.subr.bf16.mxu0 0
        %2549 = vmatpush1.bf16.msra.mxu0 0
        %2550 = vmatprep.mubr.bf16.mxu0 0
        %2551 = vmatmul.mubr.bf16.gmra.mrb[0].mxu0 %v2508
        %v2552 = vpop.f32.mrb[0].mxu0
        %v2553 = vadd.f32 %v2510, %v2552
        %v2554 = vpop.f32.mrb[0].mxu0
        %v2555 = vadd.f32 %v2511, %v2554
        %v2556 = vpop.f32.mrb[0].mxu0
        %v2557 = vpop.f32.mrb[0].mxu0
        %2558 = vdwg.mxu0
        %2559 = vmatprep.subr.bf16.mxu0 %v1269
        %2560 = vmatpush1.bf16.msra.mxu0 %v1268
        %2561 = vmatprep.subr.bf16.mxu0 %v1277
        %2562 = vmatpush1.bf16.msra.mxu0 %v1276
        %2563 = vmatprep.subr.bf16.mxu0 %v1285
        %2564 = vmatpush1.bf16.msra.mxu0 %v1284
        %2565 = vmatprep.subr.bf16.mxu0 %v1293
        %2566 = vmatpush1.bf16.msra.mxu0 %v1292
        %2567 = vmatprep.subr.bf16.mxu0 %v1301
        %2568 = vmatpush1.bf16.msra.mxu0 %v1300
        %2569 = vmatprep.subr.bf16.mxu0 %v1309
        %2570 = vmatpush1.bf16.msra.mxu0 %v1308
        %2571 = vmatprep.subr.bf16.mxu0 %v1317
        %2572 = vmatpush1.bf16.msra.mxu0 %v1316
        %2573 = vmatprep.subr.bf16.mxu0 %v1325
        %2574 = vmatpush1.bf16.msra.mxu0 %v1324
        %2575 = vmatprep.subr.bf16.mxu0 0
        %2576 = vmatpush1.bf16.msra.mxu0 0
        %2577 = vmatprep.subr.bf16.mxu0 0
        %2578 = vmatpush1.bf16.msra.mxu0 0
        %2579 = vmatprep.subr.bf16.mxu0 0
        %2580 = vmatpush1.bf16.msra.mxu0 0
        %2581 = vmatprep.subr.bf16.mxu0 0
        %2582 = vmatpush1.bf16.msra.mxu0 0
        %2583 = vmatprep.subr.bf16.mxu0 0
        %2584 = vmatpush1.bf16.msra.mxu0 0
        %2585 = vmatprep.subr.bf16.mxu0 0
        %2586 = vmatpush1.bf16.msra.mxu0 0
        %2587 = vmatprep.subr.bf16.mxu0 0
        %2588 = vmatpush1.bf16.msra.mxu0 0
        %2589 = vmatprep.subr.bf16.mxu0 0
        %2590 = vmatpush1.bf16.msra.mxu0 0
        %2591 = vmatprep.mubr.bf16.mxu0 0
        %2592 = vmatmul.mubr.bf16.gmra.mrb[0].mxu0 %v2508
        %v2593 = vpop.f32.mrb[0].mxu0
        %v2594 = vadd.f32 %v2512, %v2593
        %v2595 = vpop.f32.mrb[0].mxu0
        %v2596 = vadd.f32 %v2513, %v2595
        %v2597 = vpop.f32.mrb[0].mxu0
        %v2598 = vpop.f32.mrb[0].mxu0
        %2599 = vdwg.mxu0
        %2600 = vmatprep.subr.bf16.mxu0 %v1271
        %2601 = vmatpush1.bf16.msra.mxu0 %v1270
        %2602 = vmatprep.subr.bf16.mxu0 %v1279
        %2603 = vmatpush1.bf16.msra.mxu0 %v1278
        %2604 = vmatprep.subr.bf16.mxu0 %v1287
        %2605 = vmatpush1.bf16.msra.mxu0 %v1286
        %2606 = vmatprep.subr.bf16.mxu0 %v1295
        %2607 = vmatpush1.bf16.msra.mxu0 %v1294
        %2608 = vmatprep.subr.bf16.mxu0 %v1303
        %2609 = vmatpush1.bf16.msra.mxu0 %v1302
        %2610 = vmatprep.subr.bf16.mxu0 %v1311
        %2611 = vmatpush1.bf16.msra.mxu0 %v1310
        %2612 = vmatprep.subr.bf16.mxu0 %v1319
        %2613 = vmatpush1.bf16.msra.mxu0 %v1318
        %2614 = vmatprep.subr.bf16.mxu0 %v1327
        %2615 = vmatpush1.bf16.msra.mxu0 %v1326
        %2616 = vmatprep.subr.bf16.mxu0 0
        %2617 = vmatpush1.bf16.msra.mxu0 0
        %2618 = vmatprep.subr.bf16.mxu0 0
        %2619 = vmatpush1.bf16.msra.mxu0 0
        %2620 = vmatprep.subr.bf16.mxu0 0
        %2621 = vmatpush1.bf16.msra.mxu0 0
        %2622 = vmatprep.subr.bf16.mxu0 0
        %2623 = vmatpush1.bf16.msra.mxu0 0
        %2624 = vmatprep.subr.bf16.mxu0 0
        %2625 = vmatpush1.bf16.msra.mxu0 0
        %2626 = vmatprep.subr.bf16.mxu0 0
        %2627 = vmatpush1.bf16.msra.mxu0 0
        %2628 = vmatprep.subr.bf16.mxu0 0
        %2629 = vmatpush1.bf16.msra.mxu0 0
        %2630 = vmatprep.subr.bf16.mxu0 0
        %2631 = vmatpush1.bf16.msra.mxu0 0
        %2632 = vmatprep.mubr.bf16.mxu0 0
        %2633 = vmatmul.mubr.bf16.gmra.mrb[0].mxu0 %v2508
        %v2634 = vpop.f32.mrb[0].mxu0
        %v2635 = vadd.f32 %v2514, %v2634
        %v2636 = vpop.f32.mrb[0].mxu0
        %v2637 = vadd.f32 %v2515, %v2636
        %v2638 = vpop.f32.mrb[0].mxu0
        %v2639 = vpop.f32.mrb[0].mxu0
        %2640 = vdwg.mxu0
        %2641 = vmatprep.subr.bf16.mxu0 %v1273
        %2642 = vmatpush1.bf16.msra.mxu0 %v1272
        %2643 = vmatprep.subr.bf16.mxu0 %v1281
        %2644 = vmatpush1.bf16.msra.mxu0 %v1280
        %2645 = vmatprep.subr.bf16.mxu0 %v1289
        %2646 = vmatpush1.bf16.msra.mxu0 %v1288
        %2647 = vmatprep.subr.bf16.mxu0 %v1297
        %2648 = vmatpush1.bf16.msra.mxu0 %v1296
        %2649 = vmatprep.subr.bf16.mxu0 %v1305
        %2650 = vmatpush1.bf16.msra.mxu0 %v1304
        %2651 = vmatprep.subr.bf16.mxu0 %v1313
        %2652 = vmatpush1.bf16.msra.mxu0 %v1312
        %2653 = vmatprep.subr.bf16.mxu0 %v1321
        %2654 = vmatpush1.bf16.msra.mxu0 %v1320
        %2655 = vmatprep.subr.bf16.mxu0 %v1329
        %2656 = vmatpush1.bf16.msra.mxu0 %v1328
        %2657 = vmatprep.subr.bf16.mxu0 0
        %2658 = vmatpush1.bf16.msra.mxu0 0
        %2659 = vmatprep.subr.bf16.mxu0 0
        %2660 = vmatpush1.bf16.msra.mxu0 0
        %2661 = vmatprep.subr.bf16.mxu0 0
        %2662 = vmatpush1.bf16.msra.mxu0 0
        %2663 = vmatprep.subr.bf16.mxu0 0
        %2664 = vmatpush1.bf16.msra.mxu0 0
        %2665 = vmatprep.subr.bf16.mxu0 0
        %2666 = vmatpush1.bf16.msra.mxu0 0
        %2667 = vmatprep.subr.bf16.mxu0 0
        %2668 = vmatpush1.bf16.msra.mxu0 0
        %2669 = vmatprep.subr.bf16.mxu0 0
        %2670 = vmatpush1.bf16.msra.mxu0 0
        %2671 = vmatprep.subr.bf16.mxu0 0
        %2672 = vmatpush1.bf16.msra.mxu0 0
        %2673 = vmatprep.mubr.bf16.mxu0 0
        %2674 = vmatmul.mubr.bf16.gmra.mrb[0].mxu0 %v2508
        %v2675 = vpop.f32.mrb[0].mxu0
        %v2676 = vadd.f32 %v2516, %v2675
        %v2677 = vpop.f32.mrb[0].mxu0
        %v2678 = vadd.f32 %v2517, %v2677
        %v2679 = vpop.f32.mrb[0].mxu0
        %v2680 = vpop.f32.mrb[0].mxu0
        %2681 = vdwg.mxu0
        %v2682 = vxor.u32 %v2553, 2147483648
        %v2683 = vmul.f32 %v2682, 1.442695
        %v2684 = vpow.pop %v2683
        %v2685 = vadd.f32 %v2684, 1.0
        %v2686 = vrcp.pop %v2685
        %v2687 = vmul.f32 1.0, %v2686
        %v2688 = vxor.u32 %v2555, 2147483648
        %v2689 = vmul.f32 %v2688, 1.442695
        %v2690 = vpow.pop %v2689
        %v2691 = vadd.f32 %v2690, 1.0
        %v2692 = vrcp.pop %v2691
        %v2693 = vmul.f32 1.0, %v2692
        %v2694 = vtanh.pop %v2594
        %v2695 = vxor.u32 %v2596, 2147483648
        %v2696 = vmul.f32 %v2695, 1.442695
        %v2697 = vpow.pop %v2696
        %v2698 = vadd.f32 %v2697, 1.0
        %v2699 = vrcp.pop %v2698
        %v2700 = vmul.f32 1.0, %v2699
        %v2701 = vxor.u32 %v2635, 2147483648
        %v2702 = vmul.f32 %v2701, 1.442695
        %v2703 = vpow.pop %v2702
        %v2704 = vadd.f32 %v2703, 1.0
        %v2705 = vrcp.pop %v2704
        %v2706 = vmul.f32 1.0, %v2705
        %v2707 = vxor.u32 %v2637, 2147483648
        %v2708 = vmul.f32 %v2707, 1.442695
        %v2709 = vpow.pop %v2708
        %v2710 = vadd.f32 %v2709, 1.0
        %v2711 = vrcp.pop %v2710
        %v2712 = vmul.f32 1.0, %v2711
        %v2713 = vtanh.pop %v2676
        %v2714 = vxor.u32 %v2678, 2147483648
        %v2715 = vmul.f32 %v2714, 1.442695
        %v2716 = vpow.pop %v2715
        %v2717 = vadd.f32 %v2716, 1.0
        %v2718 = vrcp.pop %v2717
        %v2719 = vmul.f32 1.0, %v2718
        %v2720 = vmul.f32 %v2687, %v2497
        %v2721 = vmul.f32 %v2693, %v2694
        %v2722 = vadd.f32 %v2720, %v2721
        %v2723 = vmul.f32 %v2706, %v2500
        %v2724 = vmul.f32 %v2712, %v2713
        %v2725 = vadd.f32 %v2723, %v2724
        %v2726 = vtanh.pop %v2722
        %v2727 = vmul.f32 %v2700, %v2726
        %v2728 = vtanh.pop %v2725
        %v2729 = vmul.f32 %v2719, %v2728
        %v2730 = vadd.f32 %v2727, %v2729
        %s2731 = scalar_lea.vmem %s480, 40 [#allocation7]
        %2732 = vst [vmem:[%s2731] sm:$0xff] %v2730
        %v2733 = vpack.c.bf16 %v2730, %v2730
        %s2734 = scalar_lea.vmem [#allocation2], 384
        %v2735 = vld [vmem:[%s2734] sm:$0xff]
        %v2736 = vld [vmem:[%s2734 + $0x8] sm:$0xff]
        %v2737 = vld [vmem:[%s2734 + $0x10] sm:$0xff]
        %v2738 = vld [vmem:[%s2734 + $0x18] sm:$0xff]
        %v2739 = vld [vmem:[%s2734 + $0x20] sm:$0xff]
        %v2740 = vld [vmem:[%s2734 + $0x28] sm:$0xff]
        %v2741 = vld [vmem:[%s2734 + $0x30] sm:$0xff]
        %v2742 = vld [vmem:[%s2734 + $0x38] sm:$0xff]
        %2743 = vmatprep.subr.bf16.mxu0 %v1267
        %2744 = vmatpush1.bf16.msra.mxu0 %v1266
        %2745 = vmatprep.subr.bf16.mxu0 %v1275
        %2746 = vmatpush1.bf16.msra.mxu0 %v1274
        %2747 = vmatprep.subr.bf16.mxu0 %v1283
        %2748 = vmatpush1.bf16.msra.mxu0 %v1282
        %2749 = vmatprep.subr.bf16.mxu0 %v1291
        %2750 = vmatpush1.bf16.msra.mxu0 %v1290
        %2751 = vmatprep.subr.bf16.mxu0 %v1299
        %2752 = vmatpush1.bf16.msra.mxu0 %v1298
        %2753 = vmatprep.subr.bf16.mxu0 %v1307
        %2754 = vmatpush1.bf16.msra.mxu0 %v1306
        %2755 = vmatprep.subr.bf16.mxu0 %v1315
        %2756 = vmatpush1.bf16.msra.mxu0 %v1314
        %2757 = vmatprep.subr.bf16.mxu0 %v1323
        %2758 = vmatpush1.bf16.msra.mxu0 %v1322
        %2759 = vmatprep.subr.bf16.mxu0 0
        %2760 = vmatpush1.bf16.msra.mxu0 0
        %2761 = vmatprep.subr.bf16.mxu0 0
        %2762 = vmatpush1.bf16.msra.mxu0 0
        %2763 = vmatprep.subr.bf16.mxu0 0
        %2764 = vmatpush1.bf16.msra.mxu0 0
        %2765 = vmatprep.subr.bf16.mxu0 0
        %2766 = vmatpush1.bf16.msra.mxu0 0
        %2767 = vmatprep.subr.bf16.mxu0 0
        %2768 = vmatpush1.bf16.msra.mxu0 0
        %2769 = vmatprep.subr.bf16.mxu0 0
        %2770 = vmatpush1.bf16.msra.mxu0 0
        %2771 = vmatprep.subr.bf16.mxu0 0
        %2772 = vmatpush1.bf16.msra.mxu0 0
        %2773 = vmatprep.subr.bf16.mxu0 0
        %2774 = vmatpush1.bf16.msra.mxu0 0
        %2775 = vmatprep.mubr.bf16.mxu0 0
        %2776 = vmatmul.mubr.bf16.gmra.mrb[0].mxu0 %v2733
        %v2777 = vpop.f32.mrb[0].mxu0
        %v2778 = vadd.f32 %v2735, %v2777
        %v2779 = vpop.f32.mrb[0].mxu0
        %v2780 = vadd.f32 %v2736, %v2779
        %v2781 = vpop.f32.mrb[0].mxu0
        %v2782 = vpop.f32.mrb[0].mxu0
        %2783 = vdwg.mxu0
        %2784 = vmatprep.subr.bf16.mxu0 %v1269
        %2785 = vmatpush1.bf16.msra.mxu0 %v1268
        %2786 = vmatprep.subr.bf16.mxu0 %v1277
        %2787 = vmatpush1.bf16.msra.mxu0 %v1276
        %2788 = vmatprep.subr.bf16.mxu0 %v1285
        %2789 = vmatpush1.bf16.msra.mxu0 %v1284
        %2790 = vmatprep.subr.bf16.mxu0 %v1293
        %2791 = vmatpush1.bf16.msra.mxu0 %v1292
        %2792 = vmatprep.subr.bf16.mxu0 %v1301
        %2793 = vmatpush1.bf16.msra.mxu0 %v1300
        %2794 = vmatprep.subr.bf16.mxu0 %v1309
        %2795 = vmatpush1.bf16.msra.mxu0 %v1308
        %2796 = vmatprep.subr.bf16.mxu0 %v1317
        %2797 = vmatpush1.bf16.msra.mxu0 %v1316
        %2798 = vmatprep.subr.bf16.mxu0 %v1325
        %2799 = vmatpush1.bf16.msra.mxu0 %v1324
        %2800 = vmatprep.subr.bf16.mxu0 0
        %2801 = vmatpush1.bf16.msra.mxu0 0
        %2802 = vmatprep.subr.bf16.mxu0 0
        %2803 = vmatpush1.bf16.msra.mxu0 0
        %2804 = vmatprep.subr.bf16.mxu0 0
        %2805 = vmatpush1.bf16.msra.mxu0 0
        %2806 = vmatprep.subr.bf16.mxu0 0
        %2807 = vmatpush1.bf16.msra.mxu0 0
        %2808 = vmatprep.subr.bf16.mxu0 0
        %2809 = vmatpush1.bf16.msra.mxu0 0
        %2810 = vmatprep.subr.bf16.mxu0 0
        %2811 = vmatpush1.bf16.msra.mxu0 0
        %2812 = vmatprep.subr.bf16.mxu0 0
        %2813 = vmatpush1.bf16.msra.mxu0 0
        %2814 = vmatprep.subr.bf16.mxu0 0
        %2815 = vmatpush1.bf16.msra.mxu0 0
        %2816 = vmatprep.mubr.bf16.mxu0 0
        %2817 = vmatmul.mubr.bf16.gmra.mrb[0].mxu0 %v2733
        %v2818 = vpop.f32.mrb[0].mxu0
        %v2819 = vadd.f32 %v2737, %v2818
        %v2820 = vpop.f32.mrb[0].mxu0
        %v2821 = vadd.f32 %v2738, %v2820
        %v2822 = vpop.f32.mrb[0].mxu0
        %v2823 = vpop.f32.mrb[0].mxu0
        %2824 = vdwg.mxu0
        %2825 = vmatprep.subr.bf16.mxu0 %v1271
        %2826 = vmatpush1.bf16.msra.mxu0 %v1270
        %2827 = vmatprep.subr.bf16.mxu0 %v1279
        %2828 = vmatpush1.bf16.msra.mxu0 %v1278
        %2829 = vmatprep.subr.bf16.mxu0 %v1287
        %2830 = vmatpush1.bf16.msra.mxu0 %v1286
        %2831 = vmatprep.subr.bf16.mxu0 %v1295
        %2832 = vmatpush1.bf16.msra.mxu0 %v1294
        %2833 = vmatprep.subr.bf16.mxu0 %v1303
        %2834 = vmatpush1.bf16.msra.mxu0 %v1302
        %2835 = vmatprep.subr.bf16.mxu0 %v1311
        %2836 = vmatpush1.bf16.msra.mxu0 %v1310
        %2837 = vmatprep.subr.bf16.mxu0 %v1319
        %2838 = vmatpush1.bf16.msra.mxu0 %v1318
        %2839 = vmatprep.subr.bf16.mxu0 %v1327
        %2840 = vmatpush1.bf16.msra.mxu0 %v1326
        %2841 = vmatprep.subr.bf16.mxu0 0
        %2842 = vmatpush1.bf16.msra.mxu0 0
        %2843 = vmatprep.subr.bf16.mxu0 0
        %2844 = vmatpush1.bf16.msra.mxu0 0
        %2845 = vmatprep.subr.bf16.mxu0 0
        %2846 = vmatpush1.bf16.msra.mxu0 0
        %2847 = vmatprep.subr.bf16.mxu0 0
        %2848 = vmatpush1.bf16.msra.mxu0 0
        %2849 = vmatprep.subr.bf16.mxu0 0
        %2850 = vmatpush1.bf16.msra.mxu0 0
        %2851 = vmatprep.subr.bf16.mxu0 0
        %2852 = vmatpush1.bf16.msra.mxu0 0
        %2853 = vmatprep.subr.bf16.mxu0 0
        %2854 = vmatpush1.bf16.msra.mxu0 0
        %2855 = vmatprep.subr.bf16.mxu0 0
        %2856 = vmatpush1.bf16.msra.mxu0 0
        %2857 = vmatprep.mubr.bf16.mxu0 0
        %2858 = vmatmul.mubr.bf16.gmra.mrb[0].mxu0 %v2733
        %v2859 = vpop.f32.mrb[0].mxu0
        %v2860 = vadd.f32 %v2739, %v2859
        %v2861 = vpop.f32.mrb[0].mxu0
        %v2862 = vadd.f32 %v2740, %v2861
        %v2863 = vpop.f32.mrb[0].mxu0
        %v2864 = vpop.f32.mrb[0].mxu0
        %2865 = vdwg.mxu0
        %2866 = vmatprep.subr.bf16.mxu0 %v1273
        %2867 = vmatpush1.bf16.msra.mxu0 %v1272
        %2868 = vmatprep.subr.bf16.mxu0 %v1281
        %2869 = vmatpush1.bf16.msra.mxu0 %v1280
        %2870 = vmatprep.subr.bf16.mxu0 %v1289
        %2871 = vmatpush1.bf16.msra.mxu0 %v1288
        %2872 = vmatprep.subr.bf16.mxu0 %v1297
        %2873 = vmatpush1.bf16.msra.mxu0 %v1296
        %2874 = vmatprep.subr.bf16.mxu0 %v1305
        %2875 = vmatpush1.bf16.msra.mxu0 %v1304
        %2876 = vmatprep.subr.bf16.mxu0 %v1313
        %2877 = vmatpush1.bf16.msra.mxu0 %v1312
        %2878 = vmatprep.subr.bf16.mxu0 %v1321
        %2879 = vmatpush1.bf16.msra.mxu0 %v1320
        %2880 = vmatprep.subr.bf16.mxu0 %v1329
        %2881 = vmatpush1.bf16.msra.mxu0 %v1328
        %2882 = vmatprep.subr.bf16.mxu0 0
        %2883 = vmatpush1.bf16.msra.mxu0 0
        %2884 = vmatprep.subr.bf16.mxu0 0
        %2885 = vmatpush1.bf16.msra.mxu0 0
        %2886 = vmatprep.subr.bf16.mxu0 0
        %2887 = vmatpush1.bf16.msra.mxu0 0
        %2888 = vmatprep.subr.bf16.mxu0 0
        %2889 = vmatpush1.bf16.msra.mxu0 0
        %2890 = vmatprep.subr.bf16.mxu0 0
        %2891 = vmatpush1.bf16.msra.mxu0 0
        %2892 = vmatprep.subr.bf16.mxu0 0
        %2893 = vmatpush1.bf16.msra.mxu0 0
        %2894 = vmatprep.subr.bf16.mxu0 0
        %2895 = vmatpush1.bf16.msra.mxu0 0
        %2896 = vmatprep.subr.bf16.mxu0 0
        %2897 = vmatpush1.bf16.msra.mxu0 0
        %2898 = vmatprep.mubr.bf16.mxu0 0
        %2899 = vmatmul.mubr.bf16.gmra.mrb[0].mxu0 %v2733
        %v2900 = vpop.f32.mrb[0].mxu0
        %v2901 = vadd.f32 %v2741, %v2900
        %v2902 = vpop.f32.mrb[0].mxu0
        %v2903 = vadd.f32 %v2742, %v2902
        %v2904 = vpop.f32.mrb[0].mxu0
        %v2905 = vpop.f32.mrb[0].mxu0
        %2906 = vdwg.mxu0
        %v2907 = vxor.u32 %v2778, 2147483648
        %v2908 = vmul.f32 %v2907, 1.442695
        %v2909 = vpow.pop %v2908
        %v2910 = vadd.f32 %v2909, 1.0
        %v2911 = vrcp.pop %v2910
        %v2912 = vmul.f32 1.0, %v2911
        %v2913 = vxor.u32 %v2780, 2147483648
        %v2914 = vmul.f32 %v2913, 1.442695
        %v2915 = vpow.pop %v2914
        %v2916 = vadd.f32 %v2915, 1.0
        %v2917 = vrcp.pop %v2916
        %v2918 = vmul.f32 1.0, %v2917
        %v2919 = vtanh.pop %v2819
        %v2920 = vxor.u32 %v2821, 2147483648
        %v2921 = vmul.f32 %v2920, 1.442695
        %v2922 = vpow.pop %v2921
        %v2923 = vadd.f32 %v2922, 1.0
        %v2924 = vrcp.pop %v2923
        %v2925 = vmul.f32 1.0, %v2924
        %v2926 = vxor.u32 %v2860, 2147483648
        %v2927 = vmul.f32 %v2926, 1.442695
        %v2928 = vpow.pop %v2927
        %v2929 = vadd.f32 %v2928, 1.0
        %v2930 = vrcp.pop %v2929
        %v2931 = vmul.f32 1.0, %v2930
        %v2932 = vxor.u32 %v2862, 2147483648
        %v2933 = vmul.f32 %v2932, 1.442695
        %v2934 = vpow.pop %v2933
        %v2935 = vadd.f32 %v2934, 1.0
        %v2936 = vrcp.pop %v2935
        %v2937 = vmul.f32 1.0, %v2936
        %v2938 = vtanh.pop %v2901
        %v2939 = vxor.u32 %v2903, 2147483648
        %v2940 = vmul.f32 %v2939, 1.442695
        %v2941 = vpow.pop %v2940
        %v2942 = vadd.f32 %v2941, 1.0
        %v2943 = vrcp.pop %v2942
        %v2944 = vmul.f32 1.0, %v2943
        %v2945 = vmul.f32 %v2912, %v2722
        %v2946 = vmul.f32 %v2918, %v2919
        %v2947 = vadd.f32 %v2945, %v2946
        %v2948 = vmul.f32 %v2931, %v2725
        %v2949 = vmul.f32 %v2937, %v2938
        %v2950 = vadd.f32 %v2948, %v2949
        %v2951 = vtanh.pop %v2947
        %v2952 = vmul.f32 %v2925, %v2951
        %v2953 = vtanh.pop %v2950
        %v2954 = vmul.f32 %v2944, %v2953
        %v2955 = vadd.f32 %v2952, %v2954
        %s2956 = scalar_lea.vmem %s480, 48 [#allocation7]
        %2957 = vst [vmem:[%s2956] sm:$0xff] %v2955
        %v2958 = vpack.c.bf16 %v2955, %v2955
        %s2959 = scalar_lea.vmem [#allocation2], 448
        %v2960 = vld [vmem:[%s2959] sm:$0xff]
        %v2961 = vld [vmem:[%s2959 + $0x8] sm:$0xff]
        %v2962 = vld [vmem:[%s2959 + $0x10] sm:$0xff]
        %v2963 = vld [vmem:[%s2959 + $0x18] sm:$0xff]
        %v2964 = vld [vmem:[%s2959 + $0x20] sm:$0xff]
        %v2965 = vld [vmem:[%s2959 + $0x28] sm:$0xff]
        %v2966 = vld [vmem:[%s2959 + $0x30] sm:$0xff]
        %v2967 = vld [vmem:[%s2959 + $0x38] sm:$0xff]
        %2968 = vmatprep.subr.bf16.mxu0 %v1267
        %2969 = vmatpush1.bf16.msra.mxu0 %v1266
        %2970 = vmatprep.subr.bf16.mxu0 %v1275
        %2971 = vmatpush1.bf16.msra.mxu0 %v1274
        %2972 = vmatprep.subr.bf16.mxu0 %v1283
        %2973 = vmatpush1.bf16.msra.mxu0 %v1282
        %2974 = vmatprep.subr.bf16.mxu0 %v1291
        %2975 = vmatpush1.bf16.msra.mxu0 %v1290
        %2976 = vmatprep.subr.bf16.mxu0 %v1299
        %2977 = vmatpush1.bf16.msra.mxu0 %v1298
        %2978 = vmatprep.subr.bf16.mxu0 %v1307
        %2979 = vmatpush1.bf16.msra.mxu0 %v1306
        %2980 = vmatprep.subr.bf16.mxu0 %v1315
        %2981 = vmatpush1.bf16.msra.mxu0 %v1314
        %2982 = vmatprep.subr.bf16.mxu0 %v1323
        %2983 = vmatpush1.bf16.msra.mxu0 %v1322
        %2984 = vmatprep.subr.bf16.mxu0 0
        %2985 = vmatpush1.bf16.msra.mxu0 0
        %2986 = vmatprep.subr.bf16.mxu0 0
        %2987 = vmatpush1.bf16.msra.mxu0 0
        %2988 = vmatprep.subr.bf16.mxu0 0
        %2989 = vmatpush1.bf16.msra.mxu0 0
        %2990 = vmatprep.subr.bf16.mxu0 0
        %2991 = vmatpush1.bf16.msra.mxu0 0
        %2992 = vmatprep.subr.bf16.mxu0 0
        %2993 = vmatpush1.bf16.msra.mxu0 0
        %2994 = vmatprep.subr.bf16.mxu0 0
        %2995 = vmatpush1.bf16.msra.mxu0 0
        %2996 = vmatprep.subr.bf16.mxu0 0
        %2997 = vmatpush1.bf16.msra.mxu0 0
        %2998 = vmatprep.subr.bf16.mxu0 0
        %2999 = vmatpush1.bf16.msra.mxu0 0
        %3000 = vmatprep.mubr.bf16.mxu0 0
        %3001 = vmatmul.mubr.bf16.gmra.mrb[0].mxu0 %v2958
        %v3002 = vpop.f32.mrb[0].mxu0
        %v3003 = vadd.f32 %v2960, %v3002
        %v3004 = vpop.f32.mrb[0].mxu0
        %v3005 = vadd.f32 %v2961, %v3004
        %v3006 = vpop.f32.mrb[0].mxu0
        %v3007 = vpop.f32.mrb[0].mxu0
        %3008 = vdwg.mxu0
        %3009 = vmatprep.subr.bf16.mxu0 %v1269
        %3010 = vmatpush1.bf16.msra.mxu0 %v1268
        %3011 = vmatprep.subr.bf16.mxu0 %v1277
        %3012 = vmatpush1.bf16.msra.mxu0 %v1276
        %3013 = vmatprep.subr.bf16.mxu0 %v1285
        %3014 = vmatpush1.bf16.msra.mxu0 %v1284
        %3015 = vmatprep.subr.bf16.mxu0 %v1293
        %3016 = vmatpush1.bf16.msra.mxu0 %v1292
        %3017 = vmatprep.subr.bf16.mxu0 %v1301
        %3018 = vmatpush1.bf16.msra.mxu0 %v1300
        %3019 = vmatprep.subr.bf16.mxu0 %v1309
        %3020 = vmatpush1.bf16.msra.mxu0 %v1308
        %3021 = vmatprep.subr.bf16.mxu0 %v1317
        %3022 = vmatpush1.bf16.msra.mxu0 %v1316
        %3023 = vmatprep.subr.bf16.mxu0 %v1325
        %3024 = vmatpush1.bf16.msra.mxu0 %v1324
        %3025 = vmatprep.subr.bf16.mxu0 0
        %3026 = vmatpush1.bf16.msra.mxu0 0
        %3027 = vmatprep.subr.bf16.mxu0 0
        %3028 = vmatpush1.bf16.msra.mxu0 0
        %3029 = vmatprep.subr.bf16.mxu0 0
        %3030 = vmatpush1.bf16.msra.mxu0 0
        %3031 = vmatprep.subr.bf16.mxu0 0
        %3032 = vmatpush1.bf16.msra.mxu0 0
        %3033 = vmatprep.subr.bf16.mxu0 0
        %3034 = vmatpush1.bf16.msra.mxu0 0
        %3035 = vmatprep.subr.bf16.mxu0 0
        %3036 = vmatpush1.bf16.msra.mxu0 0
        %3037 = vmatprep.subr.bf16.mxu0 0
        %3038 = vmatpush1.bf16.msra.mxu0 0
        %3039 = vmatprep.subr.bf16.mxu0 0
        %3040 = vmatpush1.bf16.msra.mxu0 0
        %3041 = vmatprep.mubr.bf16.mxu0 0
        %3042 = vmatmul.mubr.bf16.gmra.mrb[0].mxu0 %v2958
        %v3043 = vpop.f32.mrb[0].mxu0
        %v3044 = vadd.f32 %v2962, %v3043
        %v3045 = vpop.f32.mrb[0].mxu0
        %v3046 = vadd.f32 %v2963, %v3045
        %v3047 = vpop.f32.mrb[0].mxu0
        %v3048 = vpop.f32.mrb[0].mxu0
        %3049 = vdwg.mxu0
        %3050 = vmatprep.subr.bf16.mxu0 %v1271
        %3051 = vmatpush1.bf16.msra.mxu0 %v1270
        %3052 = vmatprep.subr.bf16.mxu0 %v1279
        %3053 = vmatpush1.bf16.msra.mxu0 %v1278
        %3054 = vmatprep.subr.bf16.mxu0 %v1287
        %3055 = vmatpush1.bf16.msra.mxu0 %v1286
        %3056 = vmatprep.subr.bf16.mxu0 %v1295
        %3057 = vmatpush1.bf16.msra.mxu0 %v1294
        %3058 = vmatprep.subr.bf16.mxu0 %v1303
        %3059 = vmatpush1.bf16.msra.mxu0 %v1302
        %3060 = vmatprep.subr.bf16.mxu0 %v1311
        %3061 = vmatpush1.bf16.msra.mxu0 %v1310
        %3062 = vmatprep.subr.bf16.mxu0 %v1319
        %3063 = vmatpush1.bf16.msra.mxu0 %v1318
        %3064 = vmatprep.subr.bf16.mxu0 %v1327
        %3065 = vmatpush1.bf16.msra.mxu0 %v1326
        %3066 = vmatprep.subr.bf16.mxu0 0
        %3067 = vmatpush1.bf16.msra.mxu0 0
        %3068 = vmatprep.subr.bf16.mxu0 0
        %3069 = vmatpush1.bf16.msra.mxu0 0
        %3070 = vmatprep.subr.bf16.mxu0 0
        %3071 = vmatpush1.bf16.msra.mxu0 0
        %3072 = vmatprep.subr.bf16.mxu0 0
        %3073 = vmatpush1.bf16.msra.mxu0 0
        %3074 = vmatprep.subr.bf16.mxu0 0
        %3075 = vmatpush1.bf16.msra.mxu0 0
        %3076 = vmatprep.subr.bf16.mxu0 0
        %3077 = vmatpush1.bf16.msra.mxu0 0
        %3078 = vmatprep.subr.bf16.mxu0 0
        %3079 = vmatpush1.bf16.msra.mxu0 0
        %3080 = vmatprep.subr.bf16.mxu0 0
        %3081 = vmatpush1.bf16.msra.mxu0 0
        %3082 = vmatprep.mubr.bf16.mxu0 0
        %3083 = vmatmul.mubr.bf16.gmra.mrb[0].mxu0 %v2958
        %v3084 = vpop.f32.mrb[0].mxu0
        %v3085 = vadd.f32 %v2964, %v3084
        %v3086 = vpop.f32.mrb[0].mxu0
        %v3087 = vadd.f32 %v2965, %v3086
        %v3088 = vpop.f32.mrb[0].mxu0
        %v3089 = vpop.f32.mrb[0].mxu0
        %3090 = vdwg.mxu0
        %3091 = vmatprep.subr.bf16.mxu0 %v1273
        %3092 = vmatpush1.bf16.msra.mxu0 %v1272
        %3093 = vmatprep.subr.bf16.mxu0 %v1281
        %3094 = vmatpush1.bf16.msra.mxu0 %v1280
        %3095 = vmatprep.subr.bf16.mxu0 %v1289
        %3096 = vmatpush1.bf16.msra.mxu0 %v1288
        %3097 = vmatprep.subr.bf16.mxu0 %v1297
        %3098 = vmatpush1.bf16.msra.mxu0 %v1296
        %3099 = vmatprep.subr.bf16.mxu0 %v1305
        %3100 = vmatpush1.bf16.msra.mxu0 %v1304
        %3101 = vmatprep.subr.bf16.mxu0 %v1313
        %3102 = vmatpush1.bf16.msra.mxu0 %v1312
        %3103 = vmatprep.subr.bf16.mxu0 %v1321
        %3104 = vmatpush1.bf16.msra.mxu0 %v1320
        %3105 = vmatprep.subr.bf16.mxu0 %v1329
        %3106 = vmatpush1.bf16.msra.mxu0 %v1328
        %3107 = vmatprep.subr.bf16.mxu0 0
        %3108 = vmatpush1.bf16.msra.mxu0 0
        %3109 = vmatprep.subr.bf16.mxu0 0
        %3110 = vmatpush1.bf16.msra.mxu0 0
        %3111 = vmatprep.subr.bf16.mxu0 0
        %3112 = vmatpush1.bf16.msra.mxu0 0
        %3113 = vmatprep.subr.bf16.mxu0 0
        %3114 = vmatpush1.bf16.msra.mxu0 0
        %3115 = vmatprep.subr.bf16.mxu0 0
        %3116 = vmatpush1.bf16.msra.mxu0 0
        %3117 = vmatprep.subr.bf16.mxu0 0
        %3118 = vmatpush1.bf16.msra.mxu0 0
        %3119 = vmatprep.subr.bf16.mxu0 0
        %3120 = vmatpush1.bf16.msra.mxu0 0
        %3121 = vmatprep.subr.bf16.mxu0 0
        %3122 = vmatpush1.bf16.msra.mxu0 0
        %3123 = vmatprep.mubr.bf16.mxu0 0
        %3124 = vmatmul.mubr.bf16.gmra.mrb[0].mxu0 %v2958
        %v3125 = vpop.f32.mrb[0].mxu0
        %v3126 = vadd.f32 %v2966, %v3125
        %v3127 = vpop.f32.mrb[0].mxu0
        %v3128 = vadd.f32 %v2967, %v3127
        %v3129 = vpop.f32.mrb[0].mxu0
        %v3130 = vpop.f32.mrb[0].mxu0
        %3131 = vdwg.mxu0
        %v3132 = vxor.u32 %v3003, 2147483648
        %v3133 = vmul.f32 %v3132, 1.442695
        %v3134 = vpow.pop %v3133
        %v3135 = vadd.f32 %v3134, 1.0
        %v3136 = vrcp.pop %v3135
        %v3137 = vmul.f32 1.0, %v3136
        %v3138 = vxor.u32 %v3005, 2147483648
        %v3139 = vmul.f32 %v3138, 1.442695
        %v3140 = vpow.pop %v3139
        %v3141 = vadd.f32 %v3140, 1.0
        %v3142 = vrcp.pop %v3141
        %v3143 = vmul.f32 1.0, %v3142
        %v3144 = vtanh.pop %v3044
        %v3145 = vxor.u32 %v3046, 2147483648
        %v3146 = vmul.f32 %v3145, 1.442695
        %v3147 = vpow.pop %v3146
        %v3148 = vadd.f32 %v3147, 1.0
        %v3149 = vrcp.pop %v3148
        %v3150 = vmul.f32 1.0, %v3149
        %v3151 = vxor.u32 %v3085, 2147483648
        %v3152 = vmul.f32 %v3151, 1.442695
        %v3153 = vpow.pop %v3152
        %v3154 = vadd.f32 %v3153, 1.0
        %v3155 = vrcp.pop %v3154
        %v3156 = vmul.f32 1.0, %v3155
        %v3157 = vxor.u32 %v3087, 2147483648
        %v3158 = vmul.f32 %v3157, 1.442695
        %v3159 = vpow.pop %v3158
        %v3160 = vadd.f32 %v3159, 1.0
        %v3161 = vrcp.pop %v3160
        %v3162 = vmul.f32 1.0, %v3161
        %v3163 = vtanh.pop %v3126
        %v3164 = vxor.u32 %v3128, 2147483648
        %v3165 = vmul.f32 %v3164, 1.442695
        %v3166 = vpow.pop %v3165
        %v3167 = vadd.f32 %v3166, 1.0
        %v3168 = vrcp.pop %v3167
        %v3169 = vmul.f32 1.0, %v3168
        %v3170 = vmul.f32 %v3137, %v2947
        %v3171 = vmul.f32 %v3143, %v3144
        %v3172 = vadd.f32 %v3170, %v3171
        %v3173 = vmul.f32 %v3156, %v2950
        %v3174 = vmul.f32 %v3162, %v3163
        %v3175 = vadd.f32 %v3173, %v3174
        %v3176 = vtanh.pop %v3172
        %v3177 = vmul.f32 %v3150, %v3176
        %v3178 = vtanh.pop %v3175
        %v3179 = vmul.f32 %v3169, %v3178
        %v3180 = vadd.f32 %v3177, %v3179
        %s3181 = scalar_lea.vmem %s480, 56 [#allocation7]
        %3182 = vst [vmem:[%s3181] sm:$0xff] %v3180
        %3183 = vst [vmem:[#allocation3] sm:$0xff] %v3180
        %3184 = vst [vmem:[#allocation4] sm:$0xff] %v3172
        %3185 = vst [vmem:[#allocation5] sm:$0xff] %v3175
        // Predicated region
        $region91: #{cerebral_lstm_forward.2} parent=81 // pred_check
          %p3186 = pneg %p517
        $region92: #{cerebral_lstm_forward.2} parent=81 // pred_check_branch
          %3188 = sbr.rel (%p3186) target = $region94
        $region93: #{cerebral_lstm_forward.2} parent=81 // pred_region
          %3189 = vst [vmem:[%s487] sm:$0xff] %v3180
          %3190 = vst [vmem:[%s494] sm:$0xff] %v3172
          %3191 = vst [vmem:[%s501] sm:$0xff] %v3175
        $region94: #{cerebral_lstm_forward.2} parent=81 // pred_fallthru
          _
        %s3192 = sand.u32 %s219, 1
        %s3193 = sand.u32 %s219, 1
        %s3194 = smul.addr %s3193, 64
        %s3195 = scalar_lea.vmem [#allocation7], %s3194
        %s3196 = sand.u32 %s245, 1
        %s3197 = scalar_lea.sflag [#allocation9], %s3196
        %s3198 = sand.u32 %s245, 1
        %s3199 = smul.addr %s3198, 8
        %s3200 = scalar_lea.vmem [#allocation8], %s3199
        %s3201 = sand.u32 %s28, 1
        %s3202 = scalar_lea.sflag [#allocation11], %s3201
        %s3203 = sand.u32 %s271, 1
        %s3204 = smul.addr %s3203, 8
        %s3205 = scalar_lea.vmem [#allocation10], %s3204
        %s3206 = sand.u32 %s28, 1
        %s3207 = scalar_lea.sflag [#allocation11], %s3206
        %s3208 = sand.u32 %s297, 1
        %s3209 = smul.addr %s3208, 8
        %s3210 = scalar_lea.vmem [#allocation12], %s3209
        // Predicated region
        $region95: #{cerebral_lstm_forward.2} parent=81 // pred_check
          %p3211 = pneg %p229
        $region96: #{cerebral_lstm_forward.2} parent=81 // pred_check_branch
          %3213 = sbr.rel (%p3211) target = $region98
        $region97: #{cerebral_lstm_forward.2} parent=81 // pred_region
          %s3214 = smul.u32 8, %s33
          %s3215 = smul.addr %s3214, 2
          %s3216 = sadd.s32 %s32, %s3215
          %s3217 = smul.addr %s3216, 8
          %s3218 = scalar_lea.vmem %s7, %s3217
          // Predicated region
          $region99: #{cerebral_lstm_forward.2} parent=97 // pred_check
            _
          $region100: #{cerebral_lstm_forward.2} parent=97 // pred_check_branch
            %3220 = sbr.rel (0) target = $region102
          $region101: #{cerebral_lstm_forward.2} parent=97 // pred_region
            // Predicated region
            $region103: #{cerebral_lstm_forward.2} parent=101 // pred_check
              _
            $region104: #{cerebral_lstm_forward.2} parent=101 // pred_check_branch
              %3222 = sbr.rel (0) target = $region106
            $region105: #{cerebral_lstm_forward.2} parent=101 // pred_region
              // Predicated region
              $region118: #{cerebral_lstm_forward.2} parent=105 // pred_check
                _
              $region119: #{cerebral_lstm_forward.2} parent=105 // pred_check_branch
                %3251 = sbr.rel (0) target = $region121
              $region120: #{cerebral_lstm_forward.2} parent=105 // pred_region
                loop: start=0, step=1, limit=1
                $region122: #{cerebral_lstm_forward.2} parent=120 // loop_pre_header
                  _
                $region123: #{cerebral_lstm_forward.2} parent=120 // loop_header
                  %s3253 = sphi 0, %s3257
                  %p3254 = scmp.ge.s32.totalorder %s3253, 1
                  %s3258 = sphi %s3195, %s3195
                  %s3259 = sphi %s3218, %s3218
                $region124: #{cerebral_lstm_forward.2} parent=120 // loop_header_branch
                  %3256 = sbr.rel (%p3254) target = $region128
                $region125: #{cerebral_lstm_forward.2} parent=120 // loop_body
                  %v3260 = vld [vmem:[%s3258] sm:$0xff]
                  %3261 = vst [vmem:[%s3259] sm:$0xff] %v3260
                  %v3262 = vld [vmem:[%s3258 + $0x8] sm:$0xff]
                  %3263 = vst [vmem:[%s3259 + $0x10] sm:$0xff] %v3262
                  %v3264 = vld [vmem:[%s3258 + $0x10] sm:$0xff]
                  %3265 = vst [vmem:[%s3259 + $0x20] sm:$0xff] %v3264
                  %v3266 = vld [vmem:[%s3258 + $0x18] sm:$0xff]
                  %3267 = vst [vmem:[%s3259 + $0x30] sm:$0xff] %v3266
                  %v3268 = vld [vmem:[%s3258 + $0x20] sm:$0xff]
                  %3269 = vst [vmem:[%s3259 + $0x40] sm:$0xff] %v3268
                  %v3270 = vld [vmem:[%s3258 + $0x28] sm:$0xff]
                  %3271 = vst [vmem:[%s3259 + $0x50] sm:$0xff] %v3270
                  %v3272 = vld [vmem:[%s3258 + $0x30] sm:$0xff]
                  %3273 = vst [vmem:[%s3259 + $0x60] sm:$0xff] %v3272
                  %v3274 = vld [vmem:[%s3258 + $0x38] sm:$0xff]
                  %3275 = vst [vmem:[%s3259 + $0x70] sm:$0xff] %v3274
                $region126: #{cerebral_lstm_forward.2} parent=120 // loop_footer
                  %s3257 = sadd.s32 1, %s3253
                $region127: #{cerebral_lstm_forward.2} parent=120 // loop_footer_branch
                  %3252 = sbr.rel target = $region123
                $region128: #{cerebral_lstm_forward.2} parent=120 // loop_exit
                  _
              $region121: #{cerebral_lstm_forward.2} parent=105 // pred_fallthru
                _
              // Predicated region
              $region129: #{cerebral_lstm_forward.2} parent=105 // pred_check
                _
              $region130: #{cerebral_lstm_forward.2} parent=105 // pred_check_branch
                %3277 = sbr.rel target = $region132
              $region131: #{cerebral_lstm_forward.2} parent=105 // pred_region
                _
              $region132: #{cerebral_lstm_forward.2} parent=105 // pred_fallthru
                _
            $region106: #{cerebral_lstm_forward.2} parent=101 // pred_fallthru
              _
            // Predicated region
            $region107: #{cerebral_lstm_forward.2} parent=101 // pred_check
              _
            $region108: #{cerebral_lstm_forward.2} parent=101 // pred_check_branch
              %3224 = sbr.rel target = $region110
            $region109: #{cerebral_lstm_forward.2} parent=101 // pred_region
              loop: start=0, step=1, limit=1
              $region111: #{cerebral_lstm_forward.2} parent=109 // loop_pre_header
                _
              $region112: #{cerebral_lstm_forward.2} parent=109 // loop_header
                %s3227 = sphi 0, %s3231
                %p3228 = scmp.ge.s32.totalorder %s3227, 1
                %s3232 = sphi %s3195, %s3195
                %s3233 = sphi %s3218, %s3218
              $region113: #{cerebral_lstm_forward.2} parent=109 // loop_header_branch
                %3230 = sbr.rel (%p3228) target = $region117
              $region114: #{cerebral_lstm_forward.2} parent=109 // loop_body
                %v3234 = vld [vmem:[%s3232] sm:$0xff]
                %3235 = vst [vmem:[%s3233] sm:$0xff] %v3234
                %v3236 = vld [vmem:[%s3232 + $0x8] sm:$0xff]
                %3237 = vst [vmem:[%s3233 + $0x10] sm:$0xff] %v3236
                %v3238 = vld [vmem:[%s3232 + $0x10] sm:$0xff]
                %3239 = vst [vmem:[%s3233 + $0x20] sm:$0xff] %v3238
                %v3240 = vld [vmem:[%s3232 + $0x18] sm:$0xff]
                %3241 = vst [vmem:[%s3233 + $0x30] sm:$0xff] %v3240
                %v3242 = vld [vmem:[%s3232 + $0x20] sm:$0xff]
                %3243 = vst [vmem:[%s3233 + $0x40] sm:$0xff] %v3242
                %v3244 = vld [vmem:[%s3232 + $0x28] sm:$0xff]
                %3245 = vst [vmem:[%s3233 + $0x50] sm:$0xff] %v3244
                %v3246 = vld [vmem:[%s3232 + $0x30] sm:$0xff]
                %3247 = vst [vmem:[%s3233 + $0x60] sm:$0xff] %v3246
                %v3248 = vld [vmem:[%s3232 + $0x38] sm:$0xff]
                %3249 = vst [vmem:[%s3233 + $0x70] sm:$0xff] %v3248
              $region115: #{cerebral_lstm_forward.2} parent=109 // loop_footer
                %s3231 = sadd.s32 1, %s3227
              $region116: #{cerebral_lstm_forward.2} parent=109 // loop_footer_branch
                %3226 = sbr.rel target = $region112
              $region117: #{cerebral_lstm_forward.2} parent=109 // loop_exit
                _
            $region110: #{cerebral_lstm_forward.2} parent=101 // pred_fallthru
              _
          $region102: #{cerebral_lstm_forward.2} parent=97 // pred_fallthru
            _
          %3278 = vnop
        $region98: #{cerebral_lstm_forward.2} parent=81 // pred_fallthru
          _
        // Predicated region
        $region133: #{cerebral_lstm_forward.2} parent=81 // pred_check
          %p3279 = pneg %p255
        $region134: #{cerebral_lstm_forward.2} parent=81 // pred_check_branch
          %3281 = sbr.rel (%p3279) target = $region136
        $region135: #{cerebral_lstm_forward.2} parent=81 // pred_region
          %s3283 = ssub.s32 128, 128
          %3284 = vsyncadd %s3197, %s3283
          %s3285 = smul.addr %s32, 128
          %s3286 = scalar_lea.hbm %s8, %s3285
          %s3288 = sshll.u32 %s3200, 4
          %s3289 = int_to_ptr.vmem [resolvable:$true] %s3288
          %3291 = dma.vmem_to_hbm [thread:$0]  %s3289, 128, %s3286, %s3197
        $region136: #{cerebral_lstm_forward.2} parent=81 // pred_fallthru
          _
        // Predicated region
        $region137: #{cerebral_lstm_forward.2} parent=81 // pred_check
          %p3292 = pneg %p281
        $region138: #{cerebral_lstm_forward.2} parent=81 // pred_check_branch
          %3294 = sbr.rel (%p3292) target = $region140
        $region139: #{cerebral_lstm_forward.2} parent=81 // pred_region
          %s3296 = ssub.s32 128, 128
          %3297 = vsyncadd %s3202, %s3296
          %s3298 = smul.addr %s32, 128
          %s3299 = scalar_lea.hbm %s9, %s3298
          %s3301 = sshll.u32 %s3205, 4
          %s3302 = int_to_ptr.vmem [resolvable:$true] %s3301
          %3304 = dma.vmem_to_hbm [thread:$0]  %s3302, 128, %s3299, %s3202
        $region140: #{cerebral_lstm_forward.2} parent=81 // pred_fallthru
          _
        // Predicated region
        $region141: #{cerebral_lstm_forward.2} parent=81 // pred_check
          %p3305 = pneg %p307
        $region142: #{cerebral_lstm_forward.2} parent=81 // pred_check_branch
          %3307 = sbr.rel (%p3305) target = $region144
        $region143: #{cerebral_lstm_forward.2} parent=81 // pred_region
          %s3309 = ssub.s32 128, 128
          %3310 = vsyncadd %s3207, %s3309
          %s3311 = smul.addr %s32, 128
          %s3312 = scalar_lea.hbm %s10, %s3311
          %s3314 = sshll.u32 %s3210, 4
          %s3315 = int_to_ptr.vmem [resolvable:$true] %s3314
          %3317 = dma.vmem_to_hbm [thread:$0]  %s3315, 128, %s3312, %s3207
        $region144: #{cerebral_lstm_forward.2} parent=81 // pred_fallthru
          _
      $region82: #{cerebral_lstm_forward.2} parent=5 // pred_fallthru
        _
      %p3318 = scmp.le.s32.totalorder 2, %s23
      // Predicated region
      $region145: #{cerebral_lstm_forward.2} parent=5 // pred_check
        %p3319 = pneg %p3318
      $region146: #{cerebral_lstm_forward.2} parent=5 // pred_check_branch
        %3321 = sbr.rel (%p3319) target = $region148
      $region147: #{cerebral_lstm_forward.2} parent=5 // pred_region
        %s3322 = ssub.s32 %s23, 2
        // Predicated region
        $region149: #{cerebral_lstm_forward.2} parent=147 // pred_check
          %p3323 = pneg %p235
        $region150: #{cerebral_lstm_forward.2} parent=147 // pred_check_branch
          %3325 = sbr.rel (%p3323) target = $region152
        $region151: #{cerebral_lstm_forward.2} parent=147 // pred_region
          %s3326 = sand.u32 %s220, 1
          %s3327 = sand.u32 %s220, 1
          %s3328 = smul.addr %s3327, 64
          %s3329 = scalar_lea.vmem [#allocation7], %s3328
        $region152: #{cerebral_lstm_forward.2} parent=147 // pred_fallthru
          _
        // Predicated region
        $region153: #{cerebral_lstm_forward.2} parent=147 // pred_check
          %p3330 = pneg %p261
        $region154: #{cerebral_lstm_forward.2} parent=147 // pred_check_branch
          %3332 = sbr.rel (%p3330) target = $region156
        $region155: #{cerebral_lstm_forward.2} parent=147 // pred_region
          %s3333 = sand.u32 %s246, 1
          %s3334 = scalar_lea.sflag [#allocation9], %s3333
          %s3335 = sand.u32 %s246, 1
          %s3336 = smul.addr %s3335, 8
          %s3337 = scalar_lea.vmem [#allocation8], %s3336
          %3338 = dma.done %s3334, 128
        $region156: #{cerebral_lstm_forward.2} parent=147 // pred_fallthru
          _
        // Predicated region
        $region157: #{cerebral_lstm_forward.2} parent=147 // pred_check
          %p3339 = pneg %p287
        $region158: #{cerebral_lstm_forward.2} parent=147 // pred_check_branch
          %3341 = sbr.rel (%p3339) target = $region160
        $region159: #{cerebral_lstm_forward.2} parent=147 // pred_region
          %s3342 = sand.u32 %s29, 1
          %s3343 = scalar_lea.sflag [#allocation11], %s3342
          %s3344 = sand.u32 %s272, 1
          %s3345 = smul.addr %s3344, 8
          %s3346 = scalar_lea.vmem [#allocation10], %s3345
          %3347 = dma.done %s3343, 128
        $region160: #{cerebral_lstm_forward.2} parent=147 // pred_fallthru
          _
        // Predicated region
        $region161: #{cerebral_lstm_forward.2} parent=147 // pred_check
          %p3348 = pneg %p313
        $region162: #{cerebral_lstm_forward.2} parent=147 // pred_check_branch
          %3350 = sbr.rel (%p3348) target = $region164
        $region163: #{cerebral_lstm_forward.2} parent=147 // pred_region
          %s3351 = sand.u32 %s29, 1
          %s3352 = scalar_lea.sflag [#allocation11], %s3351
          %s3353 = sand.u32 %s298, 1
          %s3354 = smul.addr %s3353, 8
          %s3355 = scalar_lea.vmem [#allocation12], %s3354
          %3356 = dma.done %s3352, 128
        $region164: #{cerebral_lstm_forward.2} parent=147 // pred_fallthru
          _
      $region148: #{cerebral_lstm_forward.2} parent=5 // pred_fallthru
        _
    $region6: #{cerebral_lstm_forward.2} parent=1 // loop_footer
      %s27 = sadd.s32 1, %s23
    $region7: #{cerebral_lstm_forward.2} parent=1 // loop_footer_branch
      %22 = sbr.rel target = $region3
    $region8: #{cerebral_lstm_forward.2} parent=1 // loop_exit
      _
    %3357 = vsyncpa [#allocation9], 1
    %s3358 = scalar_lea.sflag [#allocation9], 1
    %3359 = vsyncpa %s3358, 1
    %3360 = vsyncpa [#allocation11], 1
    %s3361 = scalar_lea.sflag [#allocation11], 1
    %3362 = vsyncpa %s3361, 1

// kernel: cerebral_lstm_forward.3
$region0: #{cerebral_lstm_forward.3}
  #allocation0 [shape = 'u32[]', space=smem, size = 0x4, offset = 0x4, fixed_abs, tag = 'smem constant byte address 0x4 - core index']
  #allocation1 [shape = 'u32[144,128]{1,0:T(1,128)}', space=vmem, size = 0x12000, scoped, tag = 'internal scratch']
  #allocation2 [shape = 'f32[8,8,1024]{2,1,0:T(8,128)}', space=vmem, size = 0x40000, scoped, tag = 'scratch operand']
  #allocation3 [shape = 'f32[8,128]{1,0:T(8,128)}', space=vmem, size = 0x1000, scoped, tag = 'scratch operand']
  #allocation4 [shape = 'f32[8,128]{1,0:T(8,128)}', space=vmem, size = 0x1000, scoped, tag = 'scratch operand']
  #allocation5 [shape = 'f32[8,128]{1,0:T(8,128)}', space=vmem, size = 0x1000, scoped, tag = 'scratch operand']
  %s0 = inlined_call_operand.vmem [shape: f32[8,16,128], index: 0, kind: input, shape index: {}]
  %s1 = inlined_call_operand.vmem [shape: f32[16,128], index: 1, kind: input, shape index: {}, may-alias: {1,2,3}]
  %s2 = inlined_call_operand.vmem [shape: f32[16,128], index: 2, kind: input, shape index: {}, may-alias: {1,2,3}]
  %s3 = inlined_call_operand.vmem [shape: f32[16,128], index: 3, kind: input, shape index: {}, may-alias: {1,2,3}]
  %s4 = inlined_call_operand.vmem [shape: bf16[128,1024], index: 4, kind: input, shape index: {}]
  %s5 = inlined_call_operand.vmem [shape: bf16[128,1024], index: 5, kind: input, shape index: {}]
  %s6 = inlined_call_operand.vmem [shape: f32[1,1024], index: 6, kind: input, shape index: {}]
  %s7 = inlined_call_operand.hbm [shape: f32[8,16,128], index: 7, kind: output, shape index: {0}]
  %s8 = inlined_call_operand.hbm [shape: f32[16,128], index: 8, kind: output, shape index: {1}]
  %s9 = inlined_call_operand.hbm [shape: f32[16,128], index: 9, kind: output, shape index: {2}]
  %s10 = inlined_call_operand.hbm [shape: f32[16,128], index: 10, kind: output, shape index: {3}]
  %11 = xla_tuple %s7, %s8, %s9, %s10
  %s12 = sld [smem:[#allocation0]]
  $region131: #{cerebral_lstm_forward.3} parent=0
    _
  %s14 = ssub.s32 1, %s12
  %s15 = scalar_select 0, %s14, %s12
  $region1: #{cerebral_lstm_forward.3} parent=0
    #allocation6 [shape = 'u8[65536]{0}', space=vmem, size = 0x10000, scoped, tag = 'input window, operand 0']
    #allocation7 [shape = 'u8[65536]{0}', space=vmem, size = 0x10000, scoped, tag = 'output window, operand 0']
    #allocation8 [shape = 's32[2]{0}', space=sflag, size = 0x8, scoped, tag = 'scoped memory for cerebral_lstm_forward.3']
    #allocation9 [shape = 'u8[8192]{0}', space=vmem, size = 0x2000, scoped, tag = 'output window, operand 1']
    #allocation10 [shape = 's32[2]{0}', space=sflag, size = 0x8, scoped, tag = 'scoped memory for cerebral_lstm_forward.3']
    #allocation11 [shape = 'u8[8192]{0}', space=vmem, size = 0x2000, scoped, tag = 'output window, operand 2']
    #allocation12 [shape = 'u8[8192]{0}', space=vmem, size = 0x2000, scoped, tag = 'output window, operand 3']
    #allocation13 [shape = 's32[2]{0}', space=sflag, size = 0x8, scoped, tag = 'scoped memory for cerebral_lstm_forward.3']
    %16 = vsyncpa [#allocation8], 0
    %s17 = scalar_lea.sflag [#allocation8], 1
    %18 = vsyncpa %s17, 0
    %19 = vsyncpa [#allocation10], 0
    %s20 = scalar_lea.sflag [#allocation10], 1
    %21 = vsyncpa %s20, 0
    %22 = vsyncpa [#allocation13], 0
    %s23 = scalar_lea.sflag [#allocation13], 1
    %24 = vsyncpa %s23, 0
    loop: start=0, step=1, limit=4
    $region2: #{cerebral_lstm_forward.3} parent=1 // loop_pre_header
      _
    $region3: #{cerebral_lstm_forward.3} parent=1 // loop_header
      %s26 = sphi 0, %s30
      %p27 = scmp.ge.s32.totalorder %s26, 4
      %s33 = sphi 0, %s45
      %s34 = sphi 0, %s41
      %s35 = sphi 0, %s33
      %s36 = sphi 0, %s34
      %s37 = sphi 0, %s35
      %s38 = sphi 0, %s36
      %s50 = sphi 0, %s52
      %s53 = sphi 0, %s50
      %s54 = sphi 0, %s53
      %s70 = sphi 0, %s54
      %s76 = sphi 0, %s78
      %s79 = sphi 0, %s76
      %s80 = sphi 0, %s79
      %s96 = sphi 0, %s80
      %s102 = sphi 0, %s104
      %s105 = sphi 0, %s102
      %s106 = sphi 0, %s105
      %s122 = sphi 0, %s106
      %s128 = sphi 0, %s130
      %s131 = sphi 0, %s128
      %s132 = sphi 0, %s131
      %s148 = sphi 0, %s132
      %s152 = sphi 0, %s152
      %s154 = sphi 0, %s152
      %s155 = sphi 0, %s154
      %s169 = sphi 0, %s155
      %s173 = sphi 0, %s173
      %s175 = sphi 0, %s173
      %s176 = sphi 0, %s175
      %s190 = sphi 0, %s176
      %s194 = sphi 0, %s194
      %s196 = sphi 0, %s194
      %s197 = sphi 0, %s196
      %s211 = sphi 0, %s197
      %s219 = sphi 0, %s221
      %s222 = sphi 0, %s219
      %s223 = sphi 0, %s222
      %s239 = sphi 0, %s223
      %s245 = sphi 0, %s247
      %s248 = sphi 0, %s245
      %s249 = sphi 0, %s248
      %s265 = sphi 0, %s249
      %s271 = sphi 0, %s273
      %s274 = sphi 0, %s271
      %s275 = sphi 0, %s274
      %s291 = sphi 0, %s275
      %s297 = sphi 0, %s299
      %s300 = sphi 0, %s297
      %s301 = sphi 0, %s300
      %s317 = sphi 0, %s301
    $region4: #{cerebral_lstm_forward.3} parent=1 // loop_header_branch
      %29 = sbr.rel (%p27) target = $region8
    $region5: #{cerebral_lstm_forward.3} parent=1 // loop_body
      %s31 = ssub.s32 %s26, 1
      %s32 = ssub.s32 %s26, 2
      %s39 = sadd.s32 1, %s34
      %p40 = scmp.ge.s32.totalorder %s39, 1
      %s41 = scalar_select %p40, 0, %s39
      %s42 = sadd.s32 1, %s33
      %s43 = scalar_select %p40, %s42, %s33
      %p44 = scmp.ge.s32.totalorder %s43, 2
      %s45 = scalar_select %p44, 0, %s43
      %s46 = ssub.s32 %s34, %s41
      %s47 = ssub.s32 %s33, %s45
      %s48 = sor.u32 %s46, %s47
      %p49 = scmp.eq.s32.totalorder %s48, 0
      %s51 = sadd.s32 %s50, 1
      %s52 = scalar_select %p49, %s50, %s51
      %p55 = pneg %p49
      %p56 = scmp.eq.s32.totalorder %s26, 1
      %p57 = por %p55, %p56
      %p58 = scmp.ne.s32.totalorder %s50, %s53
      %p59 = scmp.eq.s32.totalorder %s26, 0
      %p60 = por %p58, %p59
      %p61 = scmp.ne.s32.totalorder %s50, %s53
      %p62 = scmp.eq.s32.totalorder %s31, 1
      %p63 = por %p61, %p62
      %p64 = scmp.ne.s32.totalorder %s53, %s54
      %p65 = scmp.eq.s32.totalorder %s31, 0
      %p66 = por %p64, %p65
      %p67 = scmp.ne.s32.totalorder %s53, %s54
      %p68 = scmp.eq.s32.totalorder %s32, 1
      %p69 = por %p67, %p68
      %p71 = scmp.ne.s32.totalorder %s54, %s70
      %p72 = scmp.eq.s32.totalorder %s32, 0
      %p73 = por %p71, %p72
      %s74 = ssub.s32 %s33, %s45
      %p75 = scmp.eq.s32.totalorder %s74, 0
      %s77 = sadd.s32 %s76, 1
      %s78 = scalar_select %p75, %s76, %s77
      %p81 = pneg %p75
      %p82 = scmp.eq.s32.totalorder %s26, 1
      %p83 = por %p81, %p82
      %p84 = scmp.ne.s32.totalorder %s76, %s79
      %p85 = scmp.eq.s32.totalorder %s26, 0
      %p86 = por %p84, %p85
      %p87 = scmp.ne.s32.totalorder %s76, %s79
      %p88 = scmp.eq.s32.totalorder %s31, 1
      %p89 = por %p87, %p88
      %p90 = scmp.ne.s32.totalorder %s79, %s80
      %p91 = scmp.eq.s32.totalorder %s31, 0
      %p92 = por %p90, %p91
      %p93 = scmp.ne.s32.totalorder %s79, %s80
      %p94 = scmp.eq.s32.totalorder %s32, 1
      %p95 = por %p93, %p94
      %p97 = scmp.ne.s32.totalorder %s80, %s96
      %p98 = scmp.eq.s32.totalorder %s32, 0
      %p99 = por %p97, %p98
      %s100 = ssub.s32 %s33, %s45
      %p101 = scmp.eq.s32.totalorder %s100, 0
      %s103 = sadd.s32 %s102, 1
      %s104 = scalar_select %p101, %s102, %s103
      %p107 = pneg %p101
      %p108 = scmp.eq.s32.totalorder %s26, 1
      %p109 = por %p107, %p108
      %p110 = scmp.ne.s32.totalorder %s102, %s105
      %p111 = scmp.eq.s32.totalorder %s26, 0
      %p112 = por %p110, %p111
      %p113 = scmp.ne.s32.totalorder %s102, %s105
      %p114 = scmp.eq.s32.totalorder %s31, 1
      %p115 = por %p113, %p114
      %p116 = scmp.ne.s32.totalorder %s105, %s106
      %p117 = scmp.eq.s32.totalorder %s31, 0
      %p118 = por %p116, %p117
      %p119 = scmp.ne.s32.totalorder %s105, %s106
      %p120 = scmp.eq.s32.totalorder %s32, 1
      %p121 = por %p119, %p120
      %p123 = scmp.ne.s32.totalorder %s106, %s122
      %p124 = scmp.eq.s32.totalorder %s32, 0
      %p125 = por %p123, %p124
      %s126 = ssub.s32 %s33, %s45
      %p127 = scmp.eq.s32.totalorder %s126, 0
      %s129 = sadd.s32 %s128, 1
      %s130 = scalar_select %p127, %s128, %s129
      %p133 = pneg %p127
      %p134 = scmp.eq.s32.totalorder %s26, 1
      %p135 = por %p133, %p134
      %p136 = scmp.ne.s32.totalorder %s128, %s131
      %p137 = scmp.eq.s32.totalorder %s26, 0
      %p138 = por %p136, %p137
      %p139 = scmp.ne.s32.totalorder %s128, %s131
      %p140 = scmp.eq.s32.totalorder %s31, 1
      %p141 = por %p139, %p140
      %p142 = scmp.ne.s32.totalorder %s131, %s132
      %p143 = scmp.eq.s32.totalorder %s31, 0
      %p144 = por %p142, %p143
      %p145 = scmp.ne.s32.totalorder %s131, %s132
      %p146 = scmp.eq.s32.totalorder %s32, 1
      %p147 = por %p145, %p146
      %p149 = scmp.ne.s32.totalorder %s132, %s148
      %p150 = scmp.eq.s32.totalorder %s32, 0
      %p151 = por %p149, %p150
      %s153 = sadd.s32 %s152, 1
      %p156 = scmp.eq.s32.totalorder %s26, 1
      %p157 = scmp.ne.s32.totalorder %s152, %s154
      %p158 = scmp.eq.s32.totalorder %s26, 0
      %p159 = por %p157, %p158
      %p160 = scmp.ne.s32.totalorder %s152, %s154
      %p161 = scmp.eq.s32.totalorder %s31, 1
      %p162 = por %p160, %p161
      %p163 = scmp.ne.s32.totalorder %s154, %s155
      %p164 = scmp.eq.s32.totalorder %s31, 0
      %p165 = por %p163, %p164
      %p166 = scmp.ne.s32.totalorder %s154, %s155
      %p167 = scmp.eq.s32.totalorder %s32, 1
      %p168 = por %p166, %p167
      %p170 = scmp.ne.s32.totalorder %s155, %s169
      %p171 = scmp.eq.s32.totalorder %s32, 0
      %p172 = por %p170, %p171
      %s174 = sadd.s32 %s173, 1
      %p177 = scmp.eq.s32.totalorder %s26, 1
      %p178 = scmp.ne.s32.totalorder %s173, %s175
      %p179 = scmp.eq.s32.totalorder %s26, 0
      %p180 = por %p178, %p179
      %p181 = scmp.ne.s32.totalorder %s173, %s175
      %p182 = scmp.eq.s32.totalorder %s31, 1
      %p183 = por %p181, %p182
      %p184 = scmp.ne.s32.totalorder %s175, %s176
      %p185 = scmp.eq.s32.totalorder %s31, 0
      %p186 = por %p184, %p185
      %p187 = scmp.ne.s32.totalorder %s175, %s176
      %p188 = scmp.eq.s32.totalorder %s32, 1
      %p189 = por %p187, %p188
      %p191 = scmp.ne.s32.totalorder %s176, %s190
      %p192 = scmp.eq.s32.totalorder %s32, 0
      %p193 = por %p191, %p192
      %s195 = sadd.s32 %s194, 1
      %p198 = scmp.eq.s32.totalorder %s26, 1
      %p199 = scmp.ne.s32.totalorder %s194, %s196
      %p200 = scmp.eq.s32.totalorder %s26, 0
      %p201 = por %p199, %p200
      %p202 = scmp.ne.s32.totalorder %s194, %s196
      %p203 = scmp.eq.s32.totalorder %s31, 1
      %p204 = por %p202, %p203
      %p205 = scmp.ne.s32.totalorder %s196, %s197
      %p206 = scmp.eq.s32.totalorder %s31, 0
      %p207 = por %p205, %p206
      %p208 = scmp.ne.s32.totalorder %s196, %s197
      %p209 = scmp.eq.s32.totalorder %s32, 1
      %p210 = por %p208, %p209
      %p212 = scmp.ne.s32.totalorder %s197, %s211
      %p213 = scmp.eq.s32.totalorder %s32, 0
      %p214 = por %p212, %p213
      %s215 = ssub.s32 %s34, %s41
      %s216 = ssub.s32 %s33, %s45
      %s217 = sor.u32 %s215, %s216
      %p218 = scmp.eq.s32.totalorder %s217, 0
      %s220 = sadd.s32 %s219, 1
      %s221 = scalar_select %p218, %s219, %s220
      %p224 = pneg %p218
      %p225 = scmp.eq.s32.totalorder %s26, 1
      %p226 = por %p224, %p225
      %p227 = scmp.ne.s32.totalorder %s219, %s222
      %p228 = scmp.eq.s32.totalorder %s26, 0
      %p229 = por %p227, %p228
      %p230 = scmp.ne.s32.totalorder %s219, %s222
      %p231 = scmp.eq.s32.totalorder %s31, 1
      %p232 = por %p230, %p231
      %p233 = scmp.ne.s32.totalorder %s222, %s223
      %p234 = scmp.eq.s32.totalorder %s31, 0
      %p235 = por %p233, %p234
      %p236 = scmp.ne.s32.totalorder %s222, %s223
      %p237 = scmp.eq.s32.totalorder %s32, 1
      %p238 = por %p236, %p237
      %p240 = scmp.ne.s32.totalorder %s223, %s239
      %p241 = scmp.eq.s32.totalorder %s32, 0
      %p242 = por %p240, %p241
      %s243 = ssub.s32 %s33, %s45
      %p244 = scmp.eq.s32.totalorder %s243, 0
      %s246 = sadd.s32 %s245, 1
      %s247 = scalar_select %p244, %s245, %s246
      %p250 = pneg %p244
      %p251 = scmp.eq.s32.totalorder %s26, 1
      %p252 = por %p250, %p251
      %p253 = scmp.ne.s32.totalorder %s245, %s248
      %p254 = scmp.eq.s32.totalorder %s26, 0
      %p255 = por %p253, %p254
      %p256 = scmp.ne.s32.totalorder %s245, %s248
      %p257 = scmp.eq.s32.totalorder %s31, 1
      %p258 = por %p256, %p257
      %p259 = scmp.ne.s32.totalorder %s248, %s249
      %p260 = scmp.eq.s32.totalorder %s31, 0
      %p261 = por %p259, %p260
      %p262 = scmp.ne.s32.totalorder %s248, %s249
      %p263 = scmp.eq.s32.totalorder %s32, 1
      %p264 = por %p262, %p263
      %p266 = scmp.ne.s32.totalorder %s249, %s265
      %p267 = scmp.eq.s32.totalorder %s32, 0
      %p268 = por %p266, %p267
      %s269 = ssub.s32 %s33, %s45
      %p270 = scmp.eq.s32.totalorder %s269, 0
      %s272 = sadd.s32 %s271, 1
      %s273 = scalar_select %p270, %s271, %s272
      %p276 = pneg %p270
      %p277 = scmp.eq.s32.totalorder %s26, 1
      %p278 = por %p276, %p277
      %p279 = scmp.ne.s32.totalorder %s271, %s274
      %p280 = scmp.eq.s32.totalorder %s26, 0
      %p281 = por %p279, %p280
      %p282 = scmp.ne.s32.totalorder %s271, %s274
      %p283 = scmp.eq.s32.totalorder %s31, 1
      %p284 = por %p282, %p283
      %p285 = scmp.ne.s32.totalorder %s274, %s275
      %p286 = scmp.eq.s32.totalorder %s31, 0
      %p287 = por %p285, %p286
      %p288 = scmp.ne.s32.totalorder %s274, %s275
      %p289 = scmp.eq.s32.totalorder %s32, 1
      %p290 = por %p288, %p289
      %p292 = scmp.ne.s32.totalorder %s275, %s291
      %p293 = scmp.eq.s32.totalorder %s32, 0
      %p294 = por %p292, %p293
      %s295 = ssub.s32 %s33, %s45
      %p296 = scmp.eq.s32.totalorder %s295, 0
      %s298 = sadd.s32 %s297, 1
      %s299 = scalar_select %p296, %s297, %s298
      %p302 = pneg %p296
      %p303 = scmp.eq.s32.totalorder %s26, 1
      %p304 = por %p302, %p303
      %p305 = scmp.ne.s32.totalorder %s297, %s300
      %p306 = scmp.eq.s32.totalorder %s26, 0
      %p307 = por %p305, %p306
      %p308 = scmp.ne.s32.totalorder %s297, %s300
      %p309 = scmp.eq.s32.totalorder %s31, 1
      %p310 = por %p308, %p309
      %p311 = scmp.ne.s32.totalorder %s300, %s301
      %p312 = scmp.eq.s32.totalorder %s31, 0
      %p313 = por %p311, %p312
      %p314 = scmp.ne.s32.totalorder %s300, %s301
      %p315 = scmp.eq.s32.totalorder %s32, 1
      %p316 = por %p314, %p315
      %p318 = scmp.ne.s32.totalorder %s301, %s317
      %p319 = scmp.eq.s32.totalorder %s32, 0
      %p320 = por %p318, %p319
      %p321 = scmp.le.s32.totalorder 1, %s26
      %p322 = scmp.lt.s32.totalorder %s26, 3
      %p323 = pnand %p321, %p322
      %p324 = pneg %p323
      // Predicated region
      $region9: #{cerebral_lstm_forward.3} parent=5 // pred_check
        _
      $region10: #{cerebral_lstm_forward.3} parent=5 // pred_check_branch
        %326 = sbr.rel (%p323) target = $region12
      $region11: #{cerebral_lstm_forward.3} parent=5 // pred_region
        %s327 = ssub.s32 %s26, 1
        // Predicated region
        $region13: #{cerebral_lstm_forward.3} parent=11 // pred_check
          %p328 = pneg %p165
        $region14: #{cerebral_lstm_forward.3} parent=11 // pred_check_branch
          %330 = sbr.rel (%p328) target = $region16
        $region15: #{cerebral_lstm_forward.3} parent=11 // pred_region
          _
        $region16: #{cerebral_lstm_forward.3} parent=11 // pred_fallthru
          _
        // Predicated region
        $region17: #{cerebral_lstm_forward.3} parent=11 // pred_check
          %p331 = pneg %p186
        $region18: #{cerebral_lstm_forward.3} parent=11 // pred_check_branch
          %333 = sbr.rel (%p331) target = $region20
        $region19: #{cerebral_lstm_forward.3} parent=11 // pred_region
          _
        $region20: #{cerebral_lstm_forward.3} parent=11 // pred_fallthru
          _
        // Predicated region
        $region21: #{cerebral_lstm_forward.3} parent=11 // pred_check
          %p334 = pneg %p207
        $region22: #{cerebral_lstm_forward.3} parent=11 // pred_check_branch
          %336 = sbr.rel (%p334) target = $region24
        $region23: #{cerebral_lstm_forward.3} parent=11 // pred_region
          _
        $region24: #{cerebral_lstm_forward.3} parent=11 // pred_fallthru
          _
      $region12: #{cerebral_lstm_forward.3} parent=5 // pred_fallthru
        _
      %p337 = scmp.lt.s32.totalorder %s26, 2
      // Predicated region
      $region25: #{cerebral_lstm_forward.3} parent=5 // pred_check
        %p338 = pneg %p337
      $region26: #{cerebral_lstm_forward.3} parent=5 // pred_check_branch
        %340 = sbr.rel (%p338) target = $region28
      $region27: #{cerebral_lstm_forward.3} parent=5 // pred_region
        // Predicated region
        $region29: #{cerebral_lstm_forward.3} parent=27 // pred_check
          %p341 = pneg %p60
        $region30: #{cerebral_lstm_forward.3} parent=27 // pred_check_branch
          %343 = sbr.rel (%p341) target = $region32
        $region31: #{cerebral_lstm_forward.3} parent=27 // pred_region
          %s344 = sand.u32 %s50, 1
          %s345 = sand.u32 %s50, 1
          %s346 = smul.addr %s345, 64
          %s347 = scalar_lea.vmem [#allocation6], %s346
          %s348 = smul.u32 8, %s34
          %s349 = smul.addr %s348, 2
          %s350 = sadd.s32 %s33, %s349
          %s351 = smul.addr %s350, 8
          %s352 = scalar_lea.vmem %s0, %s351
          // Predicated region
          $region33: #{cerebral_lstm_forward.3} parent=31 // pred_check
            _
          $region34: #{cerebral_lstm_forward.3} parent=31 // pred_check_branch
            %354 = sbr.rel (0) target = $region36
          $region35: #{cerebral_lstm_forward.3} parent=31 // pred_region
            // Predicated region
            $region37: #{cerebral_lstm_forward.3} parent=35 // pred_check
              _
            $region38: #{cerebral_lstm_forward.3} parent=35 // pred_check_branch
              %356 = sbr.rel (0) target = $region40
            $region39: #{cerebral_lstm_forward.3} parent=35 // pred_region
              // Predicated region
              $region52: #{cerebral_lstm_forward.3} parent=39 // pred_check
                _
              $region53: #{cerebral_lstm_forward.3} parent=39 // pred_check_branch
                %385 = sbr.rel (0) target = $region55
              $region54: #{cerebral_lstm_forward.3} parent=39 // pred_region
                loop: start=0, step=1, limit=1
                $region56: #{cerebral_lstm_forward.3} parent=54 // loop_pre_header
                  _
                $region57: #{cerebral_lstm_forward.3} parent=54 // loop_header
                  %s387 = sphi 0, %s391
                  %p388 = scmp.ge.s32.totalorder %s387, 1
                  %s392 = sphi %s352, %s352
                  %s393 = sphi %s347, %s347
                $region58: #{cerebral_lstm_forward.3} parent=54 // loop_header_branch
                  %390 = sbr.rel (%p388) target = $region62
                $region59: #{cerebral_lstm_forward.3} parent=54 // loop_body
                  %v394 = vld [vmem:[%s392] sm:$0xff]
                  %395 = vst [vmem:[%s393] sm:$0xff] %v394
                  %v396 = vld [vmem:[%s392 + $0x10] sm:$0xff]
                  %397 = vst [vmem:[%s393 + $0x8] sm:$0xff] %v396
                  %v398 = vld [vmem:[%s392 + $0x20] sm:$0xff]
                  %399 = vst [vmem:[%s393 + $0x10] sm:$0xff] %v398
                  %v400 = vld [vmem:[%s392 + $0x30] sm:$0xff]
                  %401 = vst [vmem:[%s393 + $0x18] sm:$0xff] %v400
                  %v402 = vld [vmem:[%s392 + $0x40] sm:$0xff]
                  %403 = vst [vmem:[%s393 + $0x20] sm:$0xff] %v402
                  %v404 = vld [vmem:[%s392 + $0x50] sm:$0xff]
                  %405 = vst [vmem:[%s393 + $0x28] sm:$0xff] %v404
                  %v406 = vld [vmem:[%s392 + $0x60] sm:$0xff]
                  %407 = vst [vmem:[%s393 + $0x30] sm:$0xff] %v406
                  %v408 = vld [vmem:[%s392 + $0x70] sm:$0xff]
                  %409 = vst [vmem:[%s393 + $0x38] sm:$0xff] %v408
                $region60: #{cerebral_lstm_forward.3} parent=54 // loop_footer
                  %s391 = sadd.s32 1, %s387
                $region61: #{cerebral_lstm_forward.3} parent=54 // loop_footer_branch
                  %386 = sbr.rel target = $region57
                $region62: #{cerebral_lstm_forward.3} parent=54 // loop_exit
                  _
              $region55: #{cerebral_lstm_forward.3} parent=39 // pred_fallthru
                _
              // Predicated region
              $region63: #{cerebral_lstm_forward.3} parent=39 // pred_check
                _
              $region64: #{cerebral_lstm_forward.3} parent=39 // pred_check_branch
                %411 = sbr.rel target = $region66
              $region65: #{cerebral_lstm_forward.3} parent=39 // pred_region
                _
              $region66: #{cerebral_lstm_forward.3} parent=39 // pred_fallthru
                _
            $region40: #{cerebral_lstm_forward.3} parent=35 // pred_fallthru
              _
            // Predicated region
            $region41: #{cerebral_lstm_forward.3} parent=35 // pred_check
              _
            $region42: #{cerebral_lstm_forward.3} parent=35 // pred_check_branch
              %358 = sbr.rel target = $region44
            $region43: #{cerebral_lstm_forward.3} parent=35 // pred_region
              loop: start=0, step=1, limit=1
              $region45: #{cerebral_lstm_forward.3} parent=43 // loop_pre_header
                _
              $region46: #{cerebral_lstm_forward.3} parent=43 // loop_header
                %s361 = sphi 0, %s365
                %p362 = scmp.ge.s32.totalorder %s361, 1
                %s366 = sphi %s352, %s352
                %s367 = sphi %s347, %s347
              $region47: #{cerebral_lstm_forward.3} parent=43 // loop_header_branch
                %364 = sbr.rel (%p362) target = $region51
              $region48: #{cerebral_lstm_forward.3} parent=43 // loop_body
                %v368 = vld [vmem:[%s366] sm:$0xff]
                %369 = vst [vmem:[%s367] sm:$0xff] %v368
                %v370 = vld [vmem:[%s366 + $0x10] sm:$0xff]
                %371 = vst [vmem:[%s367 + $0x8] sm:$0xff] %v370
                %v372 = vld [vmem:[%s366 + $0x20] sm:$0xff]
                %373 = vst [vmem:[%s367 + $0x10] sm:$0xff] %v372
                %v374 = vld [vmem:[%s366 + $0x30] sm:$0xff]
                %375 = vst [vmem:[%s367 + $0x18] sm:$0xff] %v374
                %v376 = vld [vmem:[%s366 + $0x40] sm:$0xff]
                %377 = vst [vmem:[%s367 + $0x20] sm:$0xff] %v376
                %v378 = vld [vmem:[%s366 + $0x50] sm:$0xff]
                %379 = vst [vmem:[%s367 + $0x28] sm:$0xff] %v378
                %v380 = vld [vmem:[%s366 + $0x60] sm:$0xff]
                %381 = vst [vmem:[%s367 + $0x30] sm:$0xff] %v380
                %v382 = vld [vmem:[%s366 + $0x70] sm:$0xff]
                %383 = vst [vmem:[%s367 + $0x38] sm:$0xff] %v382
              $region49: #{cerebral_lstm_forward.3} parent=43 // loop_footer
                %s365 = sadd.s32 1, %s361
              $region50: #{cerebral_lstm_forward.3} parent=43 // loop_footer_branch
                %360 = sbr.rel target = $region46
              $region51: #{cerebral_lstm_forward.3} parent=43 // loop_exit
                _
            $region44: #{cerebral_lstm_forward.3} parent=35 // pred_fallthru
              _
          $region36: #{cerebral_lstm_forward.3} parent=31 // pred_fallthru
            _
          %412 = vnop
        $region32: #{cerebral_lstm_forward.3} parent=27 // pred_fallthru
          _
        // Predicated region
        $region67: #{cerebral_lstm_forward.3} parent=27 // pred_check
          %p413 = pneg %p86
        $region68: #{cerebral_lstm_forward.3} parent=27 // pred_check_branch
          %415 = sbr.rel (%p413) target = $region70
        $region69: #{cerebral_lstm_forward.3} parent=27 // pred_region
          %p416 = scmp.lt.s32.totalorder %s33, 1
          %s417 = scalar_select %p416, %s33, 1
          %s418 = smul.addr %s417, 8
          %s419 = scalar_lea.vmem %s1, %s418
        $region70: #{cerebral_lstm_forward.3} parent=27 // pred_fallthru
          _
        // Predicated region
        $region71: #{cerebral_lstm_forward.3} parent=27 // pred_check
          %p420 = pneg %p112
        $region72: #{cerebral_lstm_forward.3} parent=27 // pred_check_branch
          %422 = sbr.rel (%p420) target = $region74
        $region73: #{cerebral_lstm_forward.3} parent=27 // pred_region
          %p423 = scmp.lt.s32.totalorder %s33, 1
          %s424 = scalar_select %p423, %s33, 1
          %s425 = smul.addr %s424, 8
          %s426 = scalar_lea.vmem %s2, %s425
        $region74: #{cerebral_lstm_forward.3} parent=27 // pred_fallthru
          _
        // Predicated region
        $region75: #{cerebral_lstm_forward.3} parent=27 // pred_check
          %p427 = pneg %p138
        $region76: #{cerebral_lstm_forward.3} parent=27 // pred_check_branch
          %429 = sbr.rel (%p427) target = $region78
        $region77: #{cerebral_lstm_forward.3} parent=27 // pred_region
          %p430 = scmp.lt.s32.totalorder %s33, 1
          %s431 = scalar_select %p430, %s33, 1
          %s432 = smul.addr %s431, 8
          %s433 = scalar_lea.vmem %s3, %s432
        $region78: #{cerebral_lstm_forward.3} parent=27 // pred_fallthru
          _
      $region28: #{cerebral_lstm_forward.3} parent=5 // pred_fallthru
        _
      %p434 = scmp.le.s32.totalorder 1, %s26
      %p435 = scmp.lt.s32.totalorder %s26, 3
      %p436 = pnand %p434, %p435
      %p437 = pneg %p436
      // Predicated region
      $region79: #{cerebral_lstm_forward.3} parent=5 // pred_check
        _
      $region80: #{cerebral_lstm_forward.3} parent=5 // pred_check_branch
        %439 = sbr.rel (%p436) target = $region82
      $region81: #{cerebral_lstm_forward.3} parent=5 // pred_region
        %s440 = ssub.s32 %s26, 1
        %s441 = sand.u32 %s53, 1
        %s442 = sand.u32 %s53, 1
        %s443 = smul.addr %s442, 64
        %s444 = scalar_lea.vmem [#allocation6], %s443
        // Predicated region
        $region83: #{cerebral_lstm_forward.3} parent=81 // pred_check
          %p445 = pneg %p66
        $region84: #{cerebral_lstm_forward.3} parent=81 // pred_check_branch
          %447 = sbr.rel (%p445) target = $region86
        $region85: #{cerebral_lstm_forward.3} parent=81 // pred_region
          _
        $region86: #{cerebral_lstm_forward.3} parent=81 // pred_fallthru
          _
        %s448 = sand.u32 %s53, 1
        %s449 = sand.u32 %s53, 1
        %s450 = smul.addr %s449, 64
        %s451 = scalar_lea.vmem [#allocation6], %s450
        %p452 = pneg %p66
        %p453 = pneg %p63
        %p454 = scmp.lt.s32.totalorder %s35, 1
        %s455 = scalar_select %p454, %s35, 1
        %s456 = smul.addr %s455, 8
        %s457 = scalar_lea.vmem %s1, %s456
        %p458 = pneg %p92
        %p459 = pneg %p89
        %p460 = scmp.lt.s32.totalorder %s35, 1
        %s461 = scalar_select %p460, %s35, 1
        %s462 = smul.addr %s461, 8
        %s463 = scalar_lea.vmem %s2, %s462
        %p464 = pneg %p118
        %p465 = pneg %p115
        %p466 = scmp.lt.s32.totalorder %s35, 1
        %s467 = scalar_select %p466, %s35, 1
        %s468 = smul.addr %s467, 8
        %s469 = scalar_lea.vmem %s3, %s468
        %p470 = pneg %p144
        %p471 = pneg %p141
        %p472 = pneg %p165
        %p473 = pneg %p162
        %p474 = pneg %p186
        %p475 = pneg %p183
        %p476 = pneg %p207
        %p477 = pneg %p204
        %p478 = pneg %p235
        %p479 = pneg %p232
        %s480 = sand.u32 %s222, 1
        %s481 = scalar_lea.sflag [#allocation8], %s480
        %s482 = sand.u32 %s222, 1
        %s483 = smul.addr %s482, 64
        %s484 = scalar_lea.vmem [#allocation7], %s483
        %p485 = pneg %p261
        %p486 = pneg %p258
        %s487 = sand.u32 %s31, 1
        %s488 = scalar_lea.sflag [#allocation10], %s487
        %s489 = sand.u32 %s248, 1
        %s490 = smul.addr %s489, 8
        %s491 = scalar_lea.vmem [#allocation9], %s490
        %p492 = pneg %p287
        %p493 = pneg %p284
        %s494 = sand.u32 %s31, 1
        %s495 = scalar_lea.sflag [#allocation10], %s494
        %s496 = sand.u32 %s274, 1
        %s497 = smul.addr %s496, 8
        %s498 = scalar_lea.vmem [#allocation11], %s497
        %p499 = pneg %p313
        %p500 = pneg %p310
        %s501 = sand.u32 %s300, 1
        %s502 = scalar_lea.sflag [#allocation13], %s501
        %s503 = sand.u32 %s300, 1
        %s504 = smul.addr %s503, 8
        %s505 = scalar_lea.vmem [#allocation12], %s504
        %s506 = smul.u32 8, %s36
        %p507 = scmp.lt.s32.totalorder %s35, 1
        %s508 = scalar_select %p507, %s35, 1
        %s509 = smul.addr %s508, 8
        %s510 = scalar_lea.vmem %s1, %s509
        %p511 = scmp.lt.s32.totalorder %s35, 1
        %s512 = scalar_select %p511, %s35, 1
        %s513 = smul.addr %s512, 8
        %s514 = scalar_lea.vmem %s2, %s513
        %p515 = scmp.lt.s32.totalorder %s35, 1
        %s516 = scalar_select %p515, %s35, 1
        %s517 = smul.addr %s516, 8
        %s518 = scalar_lea.vmem %s3, %s517
        %s519 = smul.u32 8, %s36
        %p521 = scmp.eq.s32.totalorder %s36, 0
        // Predicated region
        $region87: #{cerebral_lstm_forward.3} parent=81 // pred_check
          %p522 = pneg %p521
        $region88: #{cerebral_lstm_forward.3} parent=81 // pred_check_branch
          %524 = sbr.rel (%p522) target = $region90
        $region89: #{cerebral_lstm_forward.3} parent=81 // pred_region
          %v525 = vld [vmem:[%s510] sm:$0xff]
          %526 = vst [vmem:[#allocation3] sm:$0xff] %v525
          %v527 = vld [vmem:[%s514] sm:$0xff]
          %528 = vst [vmem:[#allocation4] sm:$0xff] %v527
          %v529 = vld [vmem:[%s518] sm:$0xff]
          %530 = vst [vmem:[#allocation5] sm:$0xff] %v529
        $region90: #{cerebral_lstm_forward.3} parent=81 // pred_fallthru
          _
        %v531 = vld [vmem:[%s444] sm:$0xff]
        %v532 = vld [vmem:[%s444 + $0x8] sm:$0xff]
        %v533 = vld [vmem:[%s444 + $0x10] sm:$0xff]
        %v534 = vld [vmem:[%s444 + $0x18] sm:$0xff]
        %v535 = vld [vmem:[%s444 + $0x20] sm:$0xff]
        %v536 = vld [vmem:[%s444 + $0x28] sm:$0xff]
        %v537 = vld [vmem:[%s444 + $0x30] sm:$0xff]
        %v538 = vld [vmem:[%s444 + $0x38] sm:$0xff]
        %v539 = vpack.c.bf16 %v532, %v531
        %v540 = vpack.c.bf16 %v534, %v533
        %v541 = vpack.c.bf16 %v536, %v535
        %v542 = vpack.c.bf16 %v538, %v537
        %v543 = vld [vmem:[%s4] sm:$0xff]
        %v544 = vld [vmem:[%s4 + $0x8] sm:$0xff]
        %v545 = vld [vmem:[%s4 + $0x10] sm:$0xff]
        %v546 = vld [vmem:[%s4 + $0x18] sm:$0xff]
        %v547 = vld [vmem:[%s4 + $0x20] sm:$0xff]
        %v548 = vld [vmem:[%s4 + $0x28] sm:$0xff]
        %v549 = vld [vmem:[%s4 + $0x30] sm:$0xff]
        %v550 = vld [vmem:[%s4 + $0x38] sm:$0xff]
        %v551 = vld [vmem:[%s4 + $0x40] sm:$0xff]
        %v552 = vld [vmem:[%s4 + $0x48] sm:$0xff]
        %v553 = vld [vmem:[%s4 + $0x50] sm:$0xff]
        %v554 = vld [vmem:[%s4 + $0x58] sm:$0xff]
        %v555 = vld [vmem:[%s4 + $0x60] sm:$0xff]
        %v556 = vld [vmem:[%s4 + $0x68] sm:$0xff]
        %v557 = vld [vmem:[%s4 + $0x70] sm:$0xff]
        %v558 = vld [vmem:[%s4 + $0x78] sm:$0xff]
        %v559 = vld [vmem:[%s4 + $0x80] sm:$0xff]
        %v560 = vld [vmem:[%s4 + $0x88] sm:$0xff]
        %v561 = vld [vmem:[%s4 + $0x90] sm:$0xff]
        %v562 = vld [vmem:[%s4 + $0x98] sm:$0xff]
        %v563 = vld [vmem:[%s4 + $0xa0] sm:$0xff]
        %v564 = vld [vmem:[%s4 + $0xa8] sm:$0xff]
        %v565 = vld [vmem:[%s4 + $0xb0] sm:$0xff]
        %v566 = vld [vmem:[%s4 + $0xb8] sm:$0xff]
        %v567 = vld [vmem:[%s4 + $0xc0] sm:$0xff]
        %v568 = vld [vmem:[%s4 + $0xc8] sm:$0xff]
        %v569 = vld [vmem:[%s4 + $0xd0] sm:$0xff]
        %v570 = vld [vmem:[%s4 + $0xd8] sm:$0xff]
        %v571 = vld [vmem:[%s4 + $0xe0] sm:$0xff]
        %v572 = vld [vmem:[%s4 + $0xe8] sm:$0xff]
        %v573 = vld [vmem:[%s4 + $0xf0] sm:$0xff]
        %v574 = vld [vmem:[%s4 + $0xf8] sm:$0xff]
        %v575 = vld [vmem:[%s4 + $0x100] sm:$0xff]
        %v576 = vld [vmem:[%s4 + $0x108] sm:$0xff]
        %v577 = vld [vmem:[%s4 + $0x110] sm:$0xff]
        %v578 = vld [vmem:[%s4 + $0x118] sm:$0xff]
        %v579 = vld [vmem:[%s4 + $0x120] sm:$0xff]
        %v580 = vld [vmem:[%s4 + $0x128] sm:$0xff]
        %v581 = vld [vmem:[%s4 + $0x130] sm:$0xff]
        %v582 = vld [vmem:[%s4 + $0x138] sm:$0xff]
        %v583 = vld [vmem:[%s4 + $0x140] sm:$0xff]
        %v584 = vld [vmem:[%s4 + $0x148] sm:$0xff]
        %v585 = vld [vmem:[%s4 + $0x150] sm:$0xff]
        %v586 = vld [vmem:[%s4 + $0x158] sm:$0xff]
        %v587 = vld [vmem:[%s4 + $0x160] sm:$0xff]
        %v588 = vld [vmem:[%s4 + $0x168] sm:$0xff]
        %v589 = vld [vmem:[%s4 + $0x170] sm:$0xff]
        %v590 = vld [vmem:[%s4 + $0x178] sm:$0xff]
        %v591 = vld [vmem:[%s4 + $0x180] sm:$0xff]
        %v592 = vld [vmem:[%s4 + $0x188] sm:$0xff]
        %v593 = vld [vmem:[%s4 + $0x190] sm:$0xff]
        %v594 = vld [vmem:[%s4 + $0x198] sm:$0xff]
        %v595 = vld [vmem:[%s4 + $0x1a0] sm:$0xff]
        %v596 = vld [vmem:[%s4 + $0x1a8] sm:$0xff]
        %v597 = vld [vmem:[%s4 + $0x1b0] sm:$0xff]
        %v598 = vld [vmem:[%s4 + $0x1b8] sm:$0xff]
        %v599 = vld [vmem:[%s4 + $0x1c0] sm:$0xff]
        %v600 = vld [vmem:[%s4 + $0x1c8] sm:$0xff]
        %v601 = vld [vmem:[%s4 + $0x1d0] sm:$0xff]
        %v602 = vld [vmem:[%s4 + $0x1d8] sm:$0xff]
        %v603 = vld [vmem:[%s4 + $0x1e0] sm:$0xff]
        %v604 = vld [vmem:[%s4 + $0x1e8] sm:$0xff]
        %v605 = vld [vmem:[%s4 + $0x1f0] sm:$0xff]
        %v606 = vld [vmem:[%s4 + $0x1f8] sm:$0xff]
        %v607 = vld [vmem:[%s6] sm:$0xff]
        %v609 = vlaneseq
        %v610 = vshrl.u32 %v609, 7
        %v611 = vsub.s32 0, %v610
        %v612 = vrot.slane %v607, %v611
        %v613 = vlaneseq
        %v614 = vshrl.u32 %v613, 7
        %v615 = vsub.s32 1, %v614
        %v616 = vrot.slane %v607, %v615
        %v617 = vlaneseq
        %v618 = vshrl.u32 %v617, 7
        %v619 = vsub.s32 2, %v618
        %v620 = vrot.slane %v607, %v619
        %v621 = vlaneseq
        %v622 = vshrl.u32 %v621, 7
        %v623 = vsub.s32 3, %v622
        %v624 = vrot.slane %v607, %v623
        %v625 = vlaneseq
        %v626 = vshrl.u32 %v625, 7
        %v627 = vsub.s32 4, %v626
        %v628 = vrot.slane %v607, %v627
        %v629 = vlaneseq
        %v630 = vshrl.u32 %v629, 7
        %v631 = vsub.s32 5, %v630
        %v632 = vrot.slane %v607, %v631
        %v633 = vlaneseq
        %v634 = vshrl.u32 %v633, 7
        %v635 = vsub.s32 6, %v634
        %v636 = vrot.slane %v607, %v635
        %v637 = vlaneseq
        %v638 = vshrl.u32 %v637, 7
        %v639 = vsub.s32 7, %v638
        %v640 = vrot.slane %v607, %v639
        %v713 = vunpack.c.l.b16 %v543
        %v714 = vunpack.c.h.b16 %v543
        %v715 = vunpack.c.l.b16 %v544
        %v716 = vunpack.c.h.b16 %v544
        %v717 = vunpack.c.l.b16 %v545
        %v718 = vunpack.c.h.b16 %v545
        %v719 = vunpack.c.l.b16 %v546
        %v720 = vunpack.c.h.b16 %v546
        %v721 = vunpack.c.l.b16 %v547
        %v722 = vunpack.c.h.b16 %v547
        %v723 = vunpack.c.l.b16 %v548
        %v724 = vunpack.c.h.b16 %v548
        %v725 = vunpack.c.l.b16 %v549
        %v726 = vunpack.c.h.b16 %v549
        %v727 = vunpack.c.l.b16 %v550
        %v728 = vunpack.c.h.b16 %v550
        %v729 = vunpack.c.l.b16 %v551
        %v730 = vunpack.c.h.b16 %v551
        %v731 = vunpack.c.l.b16 %v552
        %v732 = vunpack.c.h.b16 %v552
        %v733 = vunpack.c.l.b16 %v553
        %v734 = vunpack.c.h.b16 %v553
        %v735 = vunpack.c.l.b16 %v554
        %v736 = vunpack.c.h.b16 %v554
        %v737 = vunpack.c.l.b16 %v555
        %v738 = vunpack.c.h.b16 %v555
        %v739 = vunpack.c.l.b16 %v556
        %v740 = vunpack.c.h.b16 %v556
        %v741 = vunpack.c.l.b16 %v557
        %v742 = vunpack.c.h.b16 %v557
        %v743 = vunpack.c.l.b16 %v558
        %v744 = vunpack.c.h.b16 %v558
        %v745 = vunpack.c.l.b16 %v559
        %v746 = vunpack.c.h.b16 %v559
        %v747 = vunpack.c.l.b16 %v560
        %v748 = vunpack.c.h.b16 %v560
        %v749 = vunpack.c.l.b16 %v561
        %v750 = vunpack.c.h.b16 %v561
        %v751 = vunpack.c.l.b16 %v562
        %v752 = vunpack.c.h.b16 %v562
        %v753 = vunpack.c.l.b16 %v563
        %v754 = vunpack.c.h.b16 %v563
        %v755 = vunpack.c.l.b16 %v564
        %v756 = vunpack.c.h.b16 %v564
        %v757 = vunpack.c.l.b16 %v565
        %v758 = vunpack.c.h.b16 %v565
        %v759 = vunpack.c.l.b16 %v566
        %v760 = vunpack.c.h.b16 %v566
        %v761 = vunpack.c.l.b16 %v567
        %v762 = vunpack.c.h.b16 %v567
        %v763 = vunpack.c.l.b16 %v568
        %v764 = vunpack.c.h.b16 %v568
        %v765 = vunpack.c.l.b16 %v569
        %v766 = vunpack.c.h.b16 %v569
        %v767 = vunpack.c.l.b16 %v570
        %v768 = vunpack.c.h.b16 %v570
        %v769 = vunpack.c.l.b16 %v571
        %v770 = vunpack.c.h.b16 %v571
        %v771 = vunpack.c.l.b16 %v572
        %v772 = vunpack.c.h.b16 %v572
        %v773 = vunpack.c.l.b16 %v573
        %v774 = vunpack.c.h.b16 %v573
        %v775 = vunpack.c.l.b16 %v574
        %v776 = vunpack.c.h.b16 %v574
        %v777 = vunpack.c.l.b16 %v575
        %v778 = vunpack.c.h.b16 %v575
        %v779 = vunpack.c.l.b16 %v576
        %v780 = vunpack.c.h.b16 %v576
        %v781 = vunpack.c.l.b16 %v577
        %v782 = vunpack.c.h.b16 %v577
        %v783 = vunpack.c.l.b16 %v578
        %v784 = vunpack.c.h.b16 %v578
        %v785 = vunpack.c.l.b16 %v579
        %v786 = vunpack.c.h.b16 %v579
        %v787 = vunpack.c.l.b16 %v580
        %v788 = vunpack.c.h.b16 %v580
        %v789 = vunpack.c.l.b16 %v581
        %v790 = vunpack.c.h.b16 %v581
        %v791 = vunpack.c.l.b16 %v582
        %v792 = vunpack.c.h.b16 %v582
        %v793 = vunpack.c.l.b16 %v583
        %v794 = vunpack.c.h.b16 %v583
        %v795 = vunpack.c.l.b16 %v584
        %v796 = vunpack.c.h.b16 %v584
        %v797 = vunpack.c.l.b16 %v585
        %v798 = vunpack.c.h.b16 %v585
        %v799 = vunpack.c.l.b16 %v586
        %v800 = vunpack.c.h.b16 %v586
        %v801 = vunpack.c.l.b16 %v587
        %v802 = vunpack.c.h.b16 %v587
        %v803 = vunpack.c.l.b16 %v588
        %v804 = vunpack.c.h.b16 %v588
        %v805 = vunpack.c.l.b16 %v589
        %v806 = vunpack.c.h.b16 %v589
        %v807 = vunpack.c.l.b16 %v590
        %v808 = vunpack.c.h.b16 %v590
        %v809 = vunpack.c.l.b16 %v591
        %v810 = vunpack.c.h.b16 %v591
        %v811 = vunpack.c.l.b16 %v592
        %v812 = vunpack.c.h.b16 %v592
        %v813 = vunpack.c.l.b16 %v593
        %v814 = vunpack.c.h.b16 %v593
        %v815 = vunpack.c.l.b16 %v594
        %v816 = vunpack.c.h.b16 %v594
        %v817 = vunpack.c.l.b16 %v595
        %v818 = vunpack.c.h.b16 %v595
        %v819 = vunpack.c.l.b16 %v596
        %v820 = vunpack.c.h.b16 %v596
        %v821 = vunpack.c.l.b16 %v597
        %v822 = vunpack.c.h.b16 %v597
        %v823 = vunpack.c.l.b16 %v598
        %v824 = vunpack.c.h.b16 %v598
        %v825 = vunpack.c.l.b16 %v599
        %v826 = vunpack.c.h.b16 %v599
        %v827 = vunpack.c.l.b16 %v600
        %v828 = vunpack.c.h.b16 %v600
        %v829 = vunpack.c.l.b16 %v601
        %v830 = vunpack.c.h.b16 %v601
        %v831 = vunpack.c.l.b16 %v602
        %v832 = vunpack.c.h.b16 %v602
        %v833 = vunpack.c.l.b16 %v603
        %v834 = vunpack.c.h.b16 %v603
        %v835 = vunpack.c.l.b16 %v604
        %v836 = vunpack.c.h.b16 %v604
        %v837 = vunpack.c.l.b16 %v605
        %v838 = vunpack.c.h.b16 %v605
        %v839 = vunpack.c.l.b16 %v606
        %v840 = vunpack.c.h.b16 %v606
        %v841 = vpack.c.b16 %v721, %v713
        %v842 = vpack.c.b16 %v722, %v714
        %v843 = vpack.c.b16 %v723, %v715
        %v844 = vpack.c.b16 %v724, %v716
        %v845 = vpack.c.b16 %v725, %v717
        %v846 = vpack.c.b16 %v726, %v718
        %v847 = vpack.c.b16 %v727, %v719
        %v848 = vpack.c.b16 %v728, %v720
        %v849 = vpack.c.b16 %v737, %v729
        %v850 = vpack.c.b16 %v738, %v730
        %v851 = vpack.c.b16 %v739, %v731
        %v852 = vpack.c.b16 %v740, %v732
        %v853 = vpack.c.b16 %v741, %v733
        %v854 = vpack.c.b16 %v742, %v734
        %v855 = vpack.c.b16 %v743, %v735
        %v856 = vpack.c.b16 %v744, %v736
        %v857 = vpack.c.b16 %v753, %v745
        %v858 = vpack.c.b16 %v754, %v746
        %v859 = vpack.c.b16 %v755, %v747
        %v860 = vpack.c.b16 %v756, %v748
        %v861 = vpack.c.b16 %v757, %v749
        %v862 = vpack.c.b16 %v758, %v750
        %v863 = vpack.c.b16 %v759, %v751
        %v864 = vpack.c.b16 %v760, %v752
        %v865 = vpack.c.b16 %v769, %v761
        %v866 = vpack.c.b16 %v770, %v762
        %v867 = vpack.c.b16 %v771, %v763
        %v868 = vpack.c.b16 %v772, %v764
        %v869 = vpack.c.b16 %v773, %v765
        %v870 = vpack.c.b16 %v774, %v766
        %v871 = vpack.c.b16 %v775, %v767
        %v872 = vpack.c.b16 %v776, %v768
        %v873 = vpack.c.b16 %v785, %v777
        %v874 = vpack.c.b16 %v786, %v778
        %v875 = vpack.c.b16 %v787, %v779
        %v876 = vpack.c.b16 %v788, %v780
        %v877 = vpack.c.b16 %v789, %v781
        %v878 = vpack.c.b16 %v790, %v782
        %v879 = vpack.c.b16 %v791, %v783
        %v880 = vpack.c.b16 %v792, %v784
        %v881 = vpack.c.b16 %v801, %v793
        %v882 = vpack.c.b16 %v802, %v794
        %v883 = vpack.c.b16 %v803, %v795
        %v884 = vpack.c.b16 %v804, %v796
        %v885 = vpack.c.b16 %v805, %v797
        %v886 = vpack.c.b16 %v806, %v798
        %v887 = vpack.c.b16 %v807, %v799
        %v888 = vpack.c.b16 %v808, %v800
        %v889 = vpack.c.b16 %v817, %v809
        %v890 = vpack.c.b16 %v818, %v810
        %v891 = vpack.c.b16 %v819, %v811
        %v892 = vpack.c.b16 %v820, %v812
        %v893 = vpack.c.b16 %v821, %v813
        %v894 = vpack.c.b16 %v822, %v814
        %v895 = vpack.c.b16 %v823, %v815
        %v896 = vpack.c.b16 %v824, %v816
        %v897 = vpack.c.b16 %v833, %v825
        %v898 = vpack.c.b16 %v834, %v826
        %v899 = vpack.c.b16 %v835, %v827
        %v900 = vpack.c.b16 %v836, %v828
        %v901 = vpack.c.b16 %v837, %v829
        %v902 = vpack.c.b16 %v838, %v830
        %v903 = vpack.c.b16 %v839, %v831
        %v904 = vpack.c.b16 %v840, %v832
        %969 = vmatprep.subr.bf16.mxu0 %v842
        %970 = vmatpush1.bf16.msra.mxu0 %v841
        %971 = vmatprep.subr.bf16.mxu0 %v850
        %972 = vmatpush1.bf16.msra.mxu0 %v849
        %973 = vmatprep.subr.bf16.mxu0 %v858
        %974 = vmatpush1.bf16.msra.mxu0 %v857
        %975 = vmatprep.subr.bf16.mxu0 %v866
        %976 = vmatpush1.bf16.msra.mxu0 %v865
        %977 = vmatprep.subr.bf16.mxu0 %v874
        %978 = vmatpush1.bf16.msra.mxu0 %v873
        %979 = vmatprep.subr.bf16.mxu0 %v882
        %980 = vmatpush1.bf16.msra.mxu0 %v881
        %981 = vmatprep.subr.bf16.mxu0 %v890
        %982 = vmatpush1.bf16.msra.mxu0 %v889
        %983 = vmatprep.subr.bf16.mxu0 %v898
        %984 = vmatpush1.bf16.msra.mxu0 %v897
        %985 = vmatprep.subr.bf16.mxu0 0
        %986 = vmatpush1.bf16.msra.mxu0 0
        %987 = vmatprep.subr.bf16.mxu0 0
        %988 = vmatpush1.bf16.msra.mxu0 0
        %989 = vmatprep.subr.bf16.mxu0 0
        %990 = vmatpush1.bf16.msra.mxu0 0
        %991 = vmatprep.subr.bf16.mxu0 0
        %992 = vmatpush1.bf16.msra.mxu0 0
        %993 = vmatprep.subr.bf16.mxu0 0
        %994 = vmatpush1.bf16.msra.mxu0 0
        %995 = vmatprep.subr.bf16.mxu0 0
        %996 = vmatpush1.bf16.msra.mxu0 0
        %997 = vmatprep.subr.bf16.mxu0 0
        %998 = vmatpush1.bf16.msra.mxu0 0
        %999 = vmatprep.subr.bf16.mxu0 0
        %1000 = vmatpush1.bf16.msra.mxu0 0
        %1001 = vmatprep.mubr.bf16.mxu0 0
        %1002 = vmatmul.mubr.bf16.gmra.mrb[0].mxu0 %v539
        %v1003 = vpop.f32.mrb[0].mxu0
        %v1004 = vadd.f32 %v612, %v1003
        %v1005 = vpop.f32.mrb[0].mxu0
        %v1006 = vadd.f32 %v616, %v1005
        %v1007 = vpop.f32.mrb[0].mxu0
        %v1008 = vadd.f32 %v612, %v1007
        %v1009 = vpop.f32.mrb[0].mxu0
        %v1010 = vadd.f32 %v616, %v1009
        %1011 = vmatprep.mubr.bf16.mxu0 0
        %1012 = vmatmul.mubr.bf16.gmra.mrb[0].mxu0 %v540
        %v1013 = vpop.f32.mrb[0].mxu0
        %v1014 = vadd.f32 %v612, %v1013
        %v1015 = vpop.f32.mrb[0].mxu0
        %v1016 = vadd.f32 %v616, %v1015
        %v1017 = vpop.f32.mrb[0].mxu0
        %v1018 = vadd.f32 %v612, %v1017
        %v1019 = vpop.f32.mrb[0].mxu0
        %v1020 = vadd.f32 %v616, %v1019
        %1021 = vmatprep.mubr.bf16.mxu0 0
        %1022 = vmatmul.mubr.bf16.gmra.mrb[0].mxu0 %v541
        %v1023 = vpop.f32.mrb[0].mxu0
        %v1024 = vadd.f32 %v612, %v1023
        %v1025 = vpop.f32.mrb[0].mxu0
        %v1026 = vadd.f32 %v616, %v1025
        %v1027 = vpop.f32.mrb[0].mxu0
        %v1028 = vadd.f32 %v612, %v1027
        %v1029 = vpop.f32.mrb[0].mxu0
        %v1030 = vadd.f32 %v616, %v1029
        %1031 = vmatprep.mubr.bf16.mxu0 0
        %1032 = vmatmul.mubr.bf16.gmra.mrb[0].mxu0 %v542
        %v1033 = vpop.f32.mrb[0].mxu0
        %v1034 = vadd.f32 %v612, %v1033
        %v1035 = vpop.f32.mrb[0].mxu0
        %v1036 = vadd.f32 %v616, %v1035
        %v1037 = vpop.f32.mrb[0].mxu0
        %v1038 = vadd.f32 %v612, %v1037
        %v1039 = vpop.f32.mrb[0].mxu0
        %v1040 = vadd.f32 %v616, %v1039
        %1041 = vdwg.mxu0
        %1042 = vmatprep.subr.bf16.mxu0 %v844
        %1043 = vmatpush1.bf16.msra.mxu0 %v843
        %1044 = vmatprep.subr.bf16.mxu0 %v852
        %1045 = vmatpush1.bf16.msra.mxu0 %v851
        %1046 = vmatprep.subr.bf16.mxu0 %v860
        %1047 = vmatpush1.bf16.msra.mxu0 %v859
        %1048 = vmatprep.subr.bf16.mxu0 %v868
        %1049 = vmatpush1.bf16.msra.mxu0 %v867
        %1050 = vmatprep.subr.bf16.mxu0 %v876
        %1051 = vmatpush1.bf16.msra.mxu0 %v875
        %1052 = vmatprep.subr.bf16.mxu0 %v884
        %1053 = vmatpush1.bf16.msra.mxu0 %v883
        %1054 = vmatprep.subr.bf16.mxu0 %v892
        %1055 = vmatpush1.bf16.msra.mxu0 %v891
        %1056 = vmatprep.subr.bf16.mxu0 %v900
        %1057 = vmatpush1.bf16.msra.mxu0 %v899
        %1058 = vmatprep.subr.bf16.mxu0 0
        %1059 = vmatpush1.bf16.msra.mxu0 0
        %1060 = vmatprep.subr.bf16.mxu0 0
        %1061 = vmatpush1.bf16.msra.mxu0 0
        %1062 = vmatprep.subr.bf16.mxu0 0
        %1063 = vmatpush1.bf16.msra.mxu0 0
        %1064 = vmatprep.subr.bf16.mxu0 0
        %1065 = vmatpush1.bf16.msra.mxu0 0
        %1066 = vmatprep.subr.bf16.mxu0 0
        %1067 = vmatpush1.bf16.msra.mxu0 0
        %1068 = vmatprep.subr.bf16.mxu0 0
        %1069 = vmatpush1.bf16.msra.mxu0 0
        %1070 = vmatprep.subr.bf16.mxu0 0
        %1071 = vmatpush1.bf16.msra.mxu0 0
        %1072 = vmatprep.subr.bf16.mxu0 0
        %1073 = vmatpush1.bf16.msra.mxu0 0
        %1074 = vmatprep.mubr.bf16.mxu0 0
        %1075 = vmatmul.mubr.bf16.gmra.mrb[0].mxu0 %v539
        %v1076 = vpop.f32.mrb[0].mxu0
        %v1077 = vadd.f32 %v620, %v1076
        %v1078 = vpop.f32.mrb[0].mxu0
        %v1079 = vadd.f32 %v624, %v1078
        %v1080 = vpop.f32.mrb[0].mxu0
        %v1081 = vadd.f32 %v620, %v1080
        %v1082 = vpop.f32.mrb[0].mxu0
        %v1083 = vadd.f32 %v624, %v1082
        %1084 = vmatprep.mubr.bf16.mxu0 0
        %1085 = vmatmul.mubr.bf16.gmra.mrb[0].mxu0 %v540
        %v1086 = vpop.f32.mrb[0].mxu0
        %v1087 = vadd.f32 %v620, %v1086
        %v1088 = vpop.f32.mrb[0].mxu0
        %v1089 = vadd.f32 %v624, %v1088
        %v1090 = vpop.f32.mrb[0].mxu0
        %v1091 = vadd.f32 %v620, %v1090
        %v1092 = vpop.f32.mrb[0].mxu0
        %v1093 = vadd.f32 %v624, %v1092
        %1094 = vmatprep.mubr.bf16.mxu0 0
        %1095 = vmatmul.mubr.bf16.gmra.mrb[0].mxu0 %v541
        %v1096 = vpop.f32.mrb[0].mxu0
        %v1097 = vadd.f32 %v620, %v1096
        %v1098 = vpop.f32.mrb[0].mxu0
        %v1099 = vadd.f32 %v624, %v1098
        %v1100 = vpop.f32.mrb[0].mxu0
        %v1101 = vadd.f32 %v620, %v1100
        %v1102 = vpop.f32.mrb[0].mxu0
        %v1103 = vadd.f32 %v624, %v1102
        %1104 = vmatprep.mubr.bf16.mxu0 0
        %1105 = vmatmul.mubr.bf16.gmra.mrb[0].mxu0 %v542
        %v1106 = vpop.f32.mrb[0].mxu0
        %v1107 = vadd.f32 %v620, %v1106
        %v1108 = vpop.f32.mrb[0].mxu0
        %v1109 = vadd.f32 %v624, %v1108
        %v1110 = vpop.f32.mrb[0].mxu0
        %v1111 = vadd.f32 %v620, %v1110
        %v1112 = vpop.f32.mrb[0].mxu0
        %v1113 = vadd.f32 %v624, %v1112
        %1114 = vdwg.mxu0
        %1115 = vmatprep.subr.bf16.mxu0 %v846
        %1116 = vmatpush1.bf16.msra.mxu0 %v845
        %1117 = vmatprep.subr.bf16.mxu0 %v854
        %1118 = vmatpush1.bf16.msra.mxu0 %v853
        %1119 = vmatprep.subr.bf16.mxu0 %v862
        %1120 = vmatpush1.bf16.msra.mxu0 %v861
        %1121 = vmatprep.subr.bf16.mxu0 %v870
        %1122 = vmatpush1.bf16.msra.mxu0 %v869
        %1123 = vmatprep.subr.bf16.mxu0 %v878
        %1124 = vmatpush1.bf16.msra.mxu0 %v877
        %1125 = vmatprep.subr.bf16.mxu0 %v886
        %1126 = vmatpush1.bf16.msra.mxu0 %v885
        %1127 = vmatprep.subr.bf16.mxu0 %v894
        %1128 = vmatpush1.bf16.msra.mxu0 %v893
        %1129 = vmatprep.subr.bf16.mxu0 %v902
        %1130 = vmatpush1.bf16.msra.mxu0 %v901
        %1131 = vmatprep.subr.bf16.mxu0 0
        %1132 = vmatpush1.bf16.msra.mxu0 0
        %1133 = vmatprep.subr.bf16.mxu0 0
        %1134 = vmatpush1.bf16.msra.mxu0 0
        %1135 = vmatprep.subr.bf16.mxu0 0
        %1136 = vmatpush1.bf16.msra.mxu0 0
        %1137 = vmatprep.subr.bf16.mxu0 0
        %1138 = vmatpush1.bf16.msra.mxu0 0
        %1139 = vmatprep.subr.bf16.mxu0 0
        %1140 = vmatpush1.bf16.msra.mxu0 0
        %1141 = vmatprep.subr.bf16.mxu0 0
        %1142 = vmatpush1.bf16.msra.mxu0 0
        %1143 = vmatprep.subr.bf16.mxu0 0
        %1144 = vmatpush1.bf16.msra.mxu0 0
        %1145 = vmatprep.subr.bf16.mxu0 0
        %1146 = vmatpush1.bf16.msra.mxu0 0
        %1147 = vmatprep.mubr.bf16.mxu0 0
        %1148 = vmatmul.mubr.bf16.gmra.mrb[0].mxu0 %v539
        %v1149 = vpop.f32.mrb[0].mxu0
        %v1150 = vadd.f32 %v628, %v1149
        %v1151 = vpop.f32.mrb[0].mxu0
        %v1152 = vadd.f32 %v632, %v1151
        %v1153 = vpop.f32.mrb[0].mxu0
        %v1154 = vadd.f32 %v628, %v1153
        %v1155 = vpop.f32.mrb[0].mxu0
        %v1156 = vadd.f32 %v632, %v1155
        %1157 = vmatprep.mubr.bf16.mxu0 0
        %1158 = vmatmul.mubr.bf16.gmra.mrb[0].mxu0 %v540
        %v1159 = vpop.f32.mrb[0].mxu0
        %v1160 = vadd.f32 %v628, %v1159
        %v1161 = vpop.f32.mrb[0].mxu0
        %v1162 = vadd.f32 %v632, %v1161
        %v1163 = vpop.f32.mrb[0].mxu0
        %v1164 = vadd.f32 %v628, %v1163
        %v1165 = vpop.f32.mrb[0].mxu0
        %v1166 = vadd.f32 %v632, %v1165
        %1167 = vmatprep.mubr.bf16.mxu0 0
        %1168 = vmatmul.mubr.bf16.gmra.mrb[0].mxu0 %v541
        %v1169 = vpop.f32.mrb[0].mxu0
        %v1170 = vadd.f32 %v628, %v1169
        %v1171 = vpop.f32.mrb[0].mxu0
        %v1172 = vadd.f32 %v632, %v1171
        %v1173 = vpop.f32.mrb[0].mxu0
        %v1174 = vadd.f32 %v628, %v1173
        %v1175 = vpop.f32.mrb[0].mxu0
        %v1176 = vadd.f32 %v632, %v1175
        %1177 = vmatprep.mubr.bf16.mxu0 0
        %1178 = vmatmul.mubr.bf16.gmra.mrb[0].mxu0 %v542
        %v1179 = vpop.f32.mrb[0].mxu0
        %v1180 = vadd.f32 %v628, %v1179
        %v1181 = vpop.f32.mrb[0].mxu0
        %v1182 = vadd.f32 %v632, %v1181
        %v1183 = vpop.f32.mrb[0].mxu0
        %v1184 = vadd.f32 %v628, %v1183
        %v1185 = vpop.f32.mrb[0].mxu0
        %v1186 = vadd.f32 %v632, %v1185
        %1187 = vdwg.mxu0
        %1188 = vmatprep.subr.bf16.mxu0 %v848
        %1189 = vmatpush1.bf16.msra.mxu0 %v847
        %1190 = vmatprep.subr.bf16.mxu0 %v856
        %1191 = vmatpush1.bf16.msra.mxu0 %v855
        %1192 = vmatprep.subr.bf16.mxu0 %v864
        %1193 = vmatpush1.bf16.msra.mxu0 %v863
        %1194 = vmatprep.subr.bf16.mxu0 %v872
        %1195 = vmatpush1.bf16.msra.mxu0 %v871
        %1196 = vmatprep.subr.bf16.mxu0 %v880
        %1197 = vmatpush1.bf16.msra.mxu0 %v879
        %1198 = vmatprep.subr.bf16.mxu0 %v888
        %1199 = vmatpush1.bf16.msra.mxu0 %v887
        %1200 = vmatprep.subr.bf16.mxu0 %v896
        %1201 = vmatpush1.bf16.msra.mxu0 %v895
        %1202 = vmatprep.subr.bf16.mxu0 %v904
        %1203 = vmatpush1.bf16.msra.mxu0 %v903
        %1204 = vmatprep.subr.bf16.mxu0 0
        %1205 = vmatpush1.bf16.msra.mxu0 0
        %1206 = vmatprep.subr.bf16.mxu0 0
        %1207 = vmatpush1.bf16.msra.mxu0 0
        %1208 = vmatprep.subr.bf16.mxu0 0
        %1209 = vmatpush1.bf16.msra.mxu0 0
        %1210 = vmatprep.subr.bf16.mxu0 0
        %1211 = vmatpush1.bf16.msra.mxu0 0
        %1212 = vmatprep.subr.bf16.mxu0 0
        %1213 = vmatpush1.bf16.msra.mxu0 0
        %1214 = vmatprep.subr.bf16.mxu0 0
        %1215 = vmatpush1.bf16.msra.mxu0 0
        %1216 = vmatprep.subr.bf16.mxu0 0
        %1217 = vmatpush1.bf16.msra.mxu0 0
        %1218 = vmatprep.subr.bf16.mxu0 0
        %1219 = vmatpush1.bf16.msra.mxu0 0
        %1220 = vmatprep.mubr.bf16.mxu0 0
        %1221 = vmatmul.mubr.bf16.gmra.mrb[0].mxu0 %v539
        %v1222 = vpop.f32.mrb[0].mxu0
        %v1223 = vadd.f32 %v636, %v1222
        %v1224 = vpop.f32.mrb[0].mxu0
        %v1225 = vadd.f32 %v640, %v1224
        %v1226 = vpop.f32.mrb[0].mxu0
        %v1227 = vadd.f32 %v636, %v1226
        %v1228 = vpop.f32.mrb[0].mxu0
        %v1229 = vadd.f32 %v640, %v1228
        %1230 = vmatprep.mubr.bf16.mxu0 0
        %1231 = vmatmul.mubr.bf16.gmra.mrb[0].mxu0 %v540
        %v1232 = vpop.f32.mrb[0].mxu0
        %v1233 = vadd.f32 %v636, %v1232
        %v1234 = vpop.f32.mrb[0].mxu0
        %v1235 = vadd.f32 %v640, %v1234
        %v1236 = vpop.f32.mrb[0].mxu0
        %v1237 = vadd.f32 %v636, %v1236
        %v1238 = vpop.f32.mrb[0].mxu0
        %v1239 = vadd.f32 %v640, %v1238
        %1240 = vmatprep.mubr.bf16.mxu0 0
        %1241 = vmatmul.mubr.bf16.gmra.mrb[0].mxu0 %v541
        %v1242 = vpop.f32.mrb[0].mxu0
        %v1243 = vadd.f32 %v636, %v1242
        %v1244 = vpop.f32.mrb[0].mxu0
        %v1245 = vadd.f32 %v640, %v1244
        %v1246 = vpop.f32.mrb[0].mxu0
        %v1247 = vadd.f32 %v636, %v1246
        %v1248 = vpop.f32.mrb[0].mxu0
        %v1249 = vadd.f32 %v640, %v1248
        %1250 = vmatprep.mubr.bf16.mxu0 0
        %1251 = vmatmul.mubr.bf16.gmra.mrb[0].mxu0 %v542
        %v1252 = vpop.f32.mrb[0].mxu0
        %v1253 = vadd.f32 %v636, %v1252
        %v1254 = vpop.f32.mrb[0].mxu0
        %v1255 = vadd.f32 %v640, %v1254
        %v1256 = vpop.f32.mrb[0].mxu0
        %v1257 = vadd.f32 %v636, %v1256
        %v1258 = vpop.f32.mrb[0].mxu0
        %v1259 = vadd.f32 %v640, %v1258
        %1260 = vdwg.mxu0
        %1261 = vst [vmem:[#allocation2] sm:$0xff] %v1004
        %1262 = vst [vmem:[#allocation2 + $0x8] sm:$0xff] %v1006
        %1263 = vst [vmem:[#allocation2 + $0x10] sm:$0xff] %v1077
        %1264 = vst [vmem:[#allocation2 + $0x18] sm:$0xff] %v1079
        %1265 = vst [vmem:[#allocation2 + $0x20] sm:$0xff] %v1150
        %1266 = vst [vmem:[#allocation2 + $0x28] sm:$0xff] %v1152
        %1267 = vst [vmem:[#allocation2 + $0x30] sm:$0xff] %v1223
        %1268 = vst [vmem:[#allocation2 + $0x38] sm:$0xff] %v1225
        %1269 = vst [vmem:[#allocation2 + $0x40] sm:$0xff] %v1008
        %1270 = vst [vmem:[#allocation2 + $0x48] sm:$0xff] %v1010
        %1271 = vst [vmem:[#allocation2 + $0x50] sm:$0xff] %v1081
        %1272 = vst [vmem:[#allocation2 + $0x58] sm:$0xff] %v1083
        %1273 = vst [vmem:[#allocation2 + $0x60] sm:$0xff] %v1154
        %1274 = vst [vmem:[#allocation2 + $0x68] sm:$0xff] %v1156
        %1275 = vst [vmem:[#allocation2 + $0x70] sm:$0xff] %v1227
        %1276 = vst [vmem:[#allocation2 + $0x78] sm:$0xff] %v1229
        %1277 = vst [vmem:[#allocation2 + $0x80] sm:$0xff] %v1014
        %1278 = vst [vmem:[#allocation2 + $0x88] sm:$0xff] %v1016
        %1279 = vst [vmem:[#allocation2 + $0x90] sm:$0xff] %v1087
        %1280 = vst [vmem:[#allocation2 + $0x98] sm:$0xff] %v1089
        %1281 = vst [vmem:[#allocation2 + $0xa0] sm:$0xff] %v1160
        %1282 = vst [vmem:[#allocation2 + $0xa8] sm:$0xff] %v1162
        %1283 = vst [vmem:[#allocation2 + $0xb0] sm:$0xff] %v1233
        %1284 = vst [vmem:[#allocation2 + $0xb8] sm:$0xff] %v1235
        %1285 = vst [vmem:[#allocation2 + $0xc0] sm:$0xff] %v1018
        %1286 = vst [vmem:[#allocation2 + $0xc8] sm:$0xff] %v1020
        %1287 = vst [vmem:[#allocation2 + $0xd0] sm:$0xff] %v1091
        %1288 = vst [vmem:[#allocation2 + $0xd8] sm:$0xff] %v1093
        %1289 = vst [vmem:[#allocation2 + $0xe0] sm:$0xff] %v1164
        %1290 = vst [vmem:[#allocation2 + $0xe8] sm:$0xff] %v1166
        %1291 = vst [vmem:[#allocation2 + $0xf0] sm:$0xff] %v1237
        %1292 = vst [vmem:[#allocation2 + $0xf8] sm:$0xff] %v1239
        %1293 = vst [vmem:[#allocation2 + $0x100] sm:$0xff] %v1024
        %1294 = vst [vmem:[#allocation2 + $0x108] sm:$0xff] %v1026
        %1295 = vst [vmem:[#allocation2 + $0x110] sm:$0xff] %v1097
        %1296 = vst [vmem:[#allocation2 + $0x118] sm:$0xff] %v1099
        %1297 = vst [vmem:[#allocation2 + $0x120] sm:$0xff] %v1170
        %1298 = vst [vmem:[#allocation2 + $0x128] sm:$0xff] %v1172
        %1299 = vst [vmem:[#allocation2 + $0x130] sm:$0xff] %v1243
        %1300 = vst [vmem:[#allocation2 + $0x138] sm:$0xff] %v1245
        %1301 = vst [vmem:[#allocation2 + $0x140] sm:$0xff] %v1028
        %1302 = vst [vmem:[#allocation2 + $0x148] sm:$0xff] %v1030
        %1303 = vst [vmem:[#allocation2 + $0x150] sm:$0xff] %v1101
        %1304 = vst [vmem:[#allocation2 + $0x158] sm:$0xff] %v1103
        %1305 = vst [vmem:[#allocation2 + $0x160] sm:$0xff] %v1174
        %1306 = vst [vmem:[#allocation2 + $0x168] sm:$0xff] %v1176
        %1307 = vst [vmem:[#allocation2 + $0x170] sm:$0xff] %v1247
        %1308 = vst [vmem:[#allocation2 + $0x178] sm:$0xff] %v1249
        %1309 = vst [vmem:[#allocation2 + $0x180] sm:$0xff] %v1034
        %1310 = vst [vmem:[#allocation2 + $0x188] sm:$0xff] %v1036
        %1311 = vst [vmem:[#allocation2 + $0x190] sm:$0xff] %v1107
        %1312 = vst [vmem:[#allocation2 + $0x198] sm:$0xff] %v1109
        %1313 = vst [vmem:[#allocation2 + $0x1a0] sm:$0xff] %v1180
        %1314 = vst [vmem:[#allocation2 + $0x1a8] sm:$0xff] %v1182
        %1315 = vst [vmem:[#allocation2 + $0x1b0] sm:$0xff] %v1253
        %1316 = vst [vmem:[#allocation2 + $0x1b8] sm:$0xff] %v1255
        %1317 = vst [vmem:[#allocation2 + $0x1c0] sm:$0xff] %v1038
        %1318 = vst [vmem:[#allocation2 + $0x1c8] sm:$0xff] %v1040
        %1319 = vst [vmem:[#allocation2 + $0x1d0] sm:$0xff] %v1111
        %1320 = vst [vmem:[#allocation2 + $0x1d8] sm:$0xff] %v1113
        %1321 = vst [vmem:[#allocation2 + $0x1e0] sm:$0xff] %v1184
        %1322 = vst [vmem:[#allocation2 + $0x1e8] sm:$0xff] %v1186
        %1323 = vst [vmem:[#allocation2 + $0x1f0] sm:$0xff] %v1257
        %1324 = vst [vmem:[#allocation2 + $0x1f8] sm:$0xff] %v1259
        %v1325 = vld [vmem:[%s5] sm:$0xff]
        %v1326 = vld [vmem:[%s5 + $0x8] sm:$0xff]
        %v1327 = vld [vmem:[%s5 + $0x10] sm:$0xff]
        %v1328 = vld [vmem:[%s5 + $0x18] sm:$0xff]
        %v1329 = vld [vmem:[%s5 + $0x20] sm:$0xff]
        %v1330 = vld [vmem:[%s5 + $0x28] sm:$0xff]
        %v1331 = vld [vmem:[%s5 + $0x30] sm:$0xff]
        %v1332 = vld [vmem:[%s5 + $0x38] sm:$0xff]
        %v1333 = vld [vmem:[%s5 + $0x40] sm:$0xff]
        %v1334 = vld [vmem:[%s5 + $0x48] sm:$0xff]
        %v1335 = vld [vmem:[%s5 + $0x50] sm:$0xff]
        %v1336 = vld [vmem:[%s5 + $0x58] sm:$0xff]
        %v1337 = vld [vmem:[%s5 + $0x60] sm:$0xff]
        %v1338 = vld [vmem:[%s5 + $0x68] sm:$0xff]
        %v1339 = vld [vmem:[%s5 + $0x70] sm:$0xff]
        %v1340 = vld [vmem:[%s5 + $0x78] sm:$0xff]
        %v1341 = vld [vmem:[%s5 + $0x80] sm:$0xff]
        %v1342 = vld [vmem:[%s5 + $0x88] sm:$0xff]
        %v1343 = vld [vmem:[%s5 + $0x90] sm:$0xff]
        %v1344 = vld [vmem:[%s5 + $0x98] sm:$0xff]
        %v1345 = vld [vmem:[%s5 + $0xa0] sm:$0xff]
        %v1346 = vld [vmem:[%s5 + $0xa8] sm:$0xff]
        %v1347 = vld [vmem:[%s5 + $0xb0] sm:$0xff]
        %v1348 = vld [vmem:[%s5 + $0xb8] sm:$0xff]
        %v1349 = vld [vmem:[%s5 + $0xc0] sm:$0xff]
        %v1350 = vld [vmem:[%s5 + $0xc8] sm:$0xff]
        %v1351 = vld [vmem:[%s5 + $0xd0] sm:$0xff]
        %v1352 = vld [vmem:[%s5 + $0xd8] sm:$0xff]
        %v1353 = vld [vmem:[%s5 + $0xe0] sm:$0xff]
        %v1354 = vld [vmem:[%s5 + $0xe8] sm:$0xff]
        %v1355 = vld [vmem:[%s5 + $0xf0] sm:$0xff]
        %v1356 = vld [vmem:[%s5 + $0xf8] sm:$0xff]
        %v1357 = vld [vmem:[%s5 + $0x100] sm:$0xff]
        %v1358 = vld [vmem:[%s5 + $0x108] sm:$0xff]
        %v1359 = vld [vmem:[%s5 + $0x110] sm:$0xff]
        %v1360 = vld [vmem:[%s5 + $0x118] sm:$0xff]
        %v1361 = vld [vmem:[%s5 + $0x120] sm:$0xff]
        %v1362 = vld [vmem:[%s5 + $0x128] sm:$0xff]
        %v1363 = vld [vmem:[%s5 + $0x130] sm:$0xff]
        %v1364 = vld [vmem:[%s5 + $0x138] sm:$0xff]
        %v1365 = vld [vmem:[%s5 + $0x140] sm:$0xff]
        %v1366 = vld [vmem:[%s5 + $0x148] sm:$0xff]
        %v1367 = vld [vmem:[%s5 + $0x150] sm:$0xff]
        %v1368 = vld [vmem:[%s5 + $0x158] sm:$0xff]
        %v1369 = vld [vmem:[%s5 + $0x160] sm:$0xff]
        %v1370 = vld [vmem:[%s5 + $0x168] sm:$0xff]
        %v1371 = vld [vmem:[%s5 + $0x170] sm:$0xff]
        %v1372 = vld [vmem:[%s5 + $0x178] sm:$0xff]
        %v1373 = vld [vmem:[%s5 + $0x180] sm:$0xff]
        %v1374 = vld [vmem:[%s5 + $0x188] sm:$0xff]
        %v1375 = vld [vmem:[%s5 + $0x190] sm:$0xff]
        %v1376 = vld [vmem:[%s5 + $0x198] sm:$0xff]
        %v1377 = vld [vmem:[%s5 + $0x1a0] sm:$0xff]
        %v1378 = vld [vmem:[%s5 + $0x1a8] sm:$0xff]
        %v1379 = vld [vmem:[%s5 + $0x1b0] sm:$0xff]
        %v1380 = vld [vmem:[%s5 + $0x1b8] sm:$0xff]
        %v1381 = vld [vmem:[%s5 + $0x1c0] sm:$0xff]
        %v1382 = vld [vmem:[%s5 + $0x1c8] sm:$0xff]
        %v1383 = vld [vmem:[%s5 + $0x1d0] sm:$0xff]
        %v1384 = vld [vmem:[%s5 + $0x1d8] sm:$0xff]
        %v1385 = vld [vmem:[%s5 + $0x1e0] sm:$0xff]
        %v1386 = vld [vmem:[%s5 + $0x1e8] sm:$0xff]
        %v1387 = vld [vmem:[%s5 + $0x1f0] sm:$0xff]
        %v1388 = vld [vmem:[%s5 + $0x1f8] sm:$0xff]
        %v1389 = vld [vmem:[#allocation3] sm:$0xff]
        %v1390 = vld [vmem:[#allocation4] sm:$0xff]
        %v1391 = vld [vmem:[#allocation5] sm:$0xff]
        %v1392 = vpack.c.bf16 %v1389, %v1389
        %v1393 = vld [vmem:[#allocation2] sm:$0xff]
        %v1394 = vld [vmem:[#allocation2 + $0x8] sm:$0xff]
        %v1395 = vld [vmem:[#allocation2 + $0x10] sm:$0xff]
        %v1396 = vld [vmem:[#allocation2 + $0x18] sm:$0xff]
        %v1397 = vld [vmem:[#allocation2 + $0x20] sm:$0xff]
        %v1398 = vld [vmem:[#allocation2 + $0x28] sm:$0xff]
        %v1399 = vld [vmem:[#allocation2 + $0x30] sm:$0xff]
        %v1400 = vld [vmem:[#allocation2 + $0x38] sm:$0xff]
        %v1465 = vunpack.c.l.b16 %v1325
        %v1466 = vunpack.c.h.b16 %v1325
        %v1467 = vunpack.c.l.b16 %v1326
        %v1468 = vunpack.c.h.b16 %v1326
        %v1469 = vunpack.c.l.b16 %v1327
        %v1470 = vunpack.c.h.b16 %v1327
        %v1471 = vunpack.c.l.b16 %v1328
        %v1472 = vunpack.c.h.b16 %v1328
        %v1473 = vunpack.c.l.b16 %v1329
        %v1474 = vunpack.c.h.b16 %v1329
        %v1475 = vunpack.c.l.b16 %v1330
        %v1476 = vunpack.c.h.b16 %v1330
        %v1477 = vunpack.c.l.b16 %v1331
        %v1478 = vunpack.c.h.b16 %v1331
        %v1479 = vunpack.c.l.b16 %v1332
        %v1480 = vunpack.c.h.b16 %v1332
        %v1481 = vunpack.c.l.b16 %v1333
        %v1482 = vunpack.c.h.b16 %v1333
        %v1483 = vunpack.c.l.b16 %v1334
        %v1484 = vunpack.c.h.b16 %v1334
        %v1485 = vunpack.c.l.b16 %v1335
        %v1486 = vunpack.c.h.b16 %v1335
        %v1487 = vunpack.c.l.b16 %v1336
        %v1488 = vunpack.c.h.b16 %v1336
        %v1489 = vunpack.c.l.b16 %v1337
        %v1490 = vunpack.c.h.b16 %v1337
        %v1491 = vunpack.c.l.b16 %v1338
        %v1492 = vunpack.c.h.b16 %v1338
        %v1493 = vunpack.c.l.b16 %v1339
        %v1494 = vunpack.c.h.b16 %v1339
        %v1495 = vunpack.c.l.b16 %v1340
        %v1496 = vunpack.c.h.b16 %v1340
        %v1497 = vunpack.c.l.b16 %v1341
        %v1498 = vunpack.c.h.b16 %v1341
        %v1499 = vunpack.c.l.b16 %v1342
        %v1500 = vunpack.c.h.b16 %v1342
        %v1501 = vunpack.c.l.b16 %v1343
        %v1502 = vunpack.c.h.b16 %v1343
        %v1503 = vunpack.c.l.b16 %v1344
        %v1504 = vunpack.c.h.b16 %v1344
        %v1505 = vunpack.c.l.b16 %v1345
        %v1506 = vunpack.c.h.b16 %v1345
        %v1507 = vunpack.c.l.b16 %v1346
        %v1508 = vunpack.c.h.b16 %v1346
        %v1509 = vunpack.c.l.b16 %v1347
        %v1510 = vunpack.c.h.b16 %v1347
        %v1511 = vunpack.c.l.b16 %v1348
        %v1512 = vunpack.c.h.b16 %v1348
        %v1513 = vunpack.c.l.b16 %v1349
        %v1514 = vunpack.c.h.b16 %v1349
        %v1515 = vunpack.c.l.b16 %v1350
        %v1516 = vunpack.c.h.b16 %v1350
        %v1517 = vunpack.c.l.b16 %v1351
        %v1518 = vunpack.c.h.b16 %v1351
        %v1519 = vunpack.c.l.b16 %v1352
        %v1520 = vunpack.c.h.b16 %v1352
        %v1521 = vunpack.c.l.b16 %v1353
        %v1522 = vunpack.c.h.b16 %v1353
        %v1523 = vunpack.c.l.b16 %v1354
        %v1524 = vunpack.c.h.b16 %v1354
        %v1525 = vunpack.c.l.b16 %v1355
        %v1526 = vunpack.c.h.b16 %v1355
        %v1527 = vunpack.c.l.b16 %v1356
        %v1528 = vunpack.c.h.b16 %v1356
        %v1529 = vunpack.c.l.b16 %v1357
        %v1530 = vunpack.c.h.b16 %v1357
        %v1531 = vunpack.c.l.b16 %v1358
        %v1532 = vunpack.c.h.b16 %v1358
        %v1533 = vunpack.c.l.b16 %v1359
        %v1534 = vunpack.c.h.b16 %v1359
        %v1535 = vunpack.c.l.b16 %v1360
        %v1536 = vunpack.c.h.b16 %v1360
        %v1537 = vunpack.c.l.b16 %v1361
        %v1538 = vunpack.c.h.b16 %v1361
        %v1539 = vunpack.c.l.b16 %v1362
        %v1540 = vunpack.c.h.b16 %v1362
        %v1541 = vunpack.c.l.b16 %v1363
        %v1542 = vunpack.c.h.b16 %v1363
        %v1543 = vunpack.c.l.b16 %v1364
        %v1544 = vunpack.c.h.b16 %v1364
        %v1545 = vunpack.c.l.b16 %v1365
        %v1546 = vunpack.c.h.b16 %v1365
        %v1547 = vunpack.c.l.b16 %v1366
        %v1548 = vunpack.c.h.b16 %v1366
        %v1549 = vunpack.c.l.b16 %v1367
        %v1550 = vunpack.c.h.b16 %v1367
        %v1551 = vunpack.c.l.b16 %v1368
        %v1552 = vunpack.c.h.b16 %v1368
        %v1553 = vunpack.c.l.b16 %v1369
        %v1554 = vunpack.c.h.b16 %v1369
        %v1555 = vunpack.c.l.b16 %v1370
        %v1556 = vunpack.c.h.b16 %v1370
        %v1557 = vunpack.c.l.b16 %v1371
        %v1558 = vunpack.c.h.b16 %v1371
        %v1559 = vunpack.c.l.b16 %v1372
        %v1560 = vunpack.c.h.b16 %v1372
        %v1561 = vunpack.c.l.b16 %v1373
        %v1562 = vunpack.c.h.b16 %v1373
        %v1563 = vunpack.c.l.b16 %v1374
        %v1564 = vunpack.c.h.b16 %v1374
        %v1565 = vunpack.c.l.b16 %v1375
        %v1566 = vunpack.c.h.b16 %v1375
        %v1567 = vunpack.c.l.b16 %v1376
        %v1568 = vunpack.c.h.b16 %v1376
        %v1569 = vunpack.c.l.b16 %v1377
        %v1570 = vunpack.c.h.b16 %v1377
        %v1571 = vunpack.c.l.b16 %v1378
        %v1572 = vunpack.c.h.b16 %v1378
        %v1573 = vunpack.c.l.b16 %v1379
        %v1574 = vunpack.c.h.b16 %v1379
        %v1575 = vunpack.c.l.b16 %v1380
        %v1576 = vunpack.c.h.b16 %v1380
        %v1577 = vunpack.c.l.b16 %v1381
        %v1578 = vunpack.c.h.b16 %v1381
        %v1579 = vunpack.c.l.b16 %v1382
        %v1580 = vunpack.c.h.b16 %v1382
        %v1581 = vunpack.c.l.b16 %v1383
        %v1582 = vunpack.c.h.b16 %v1383
        %v1583 = vunpack.c.l.b16 %v1384
        %v1584 = vunpack.c.h.b16 %v1384
        %v1585 = vunpack.c.l.b16 %v1385
        %v1586 = vunpack.c.h.b16 %v1385
        %v1587 = vunpack.c.l.b16 %v1386
        %v1588 = vunpack.c.h.b16 %v1386
        %v1589 = vunpack.c.l.b16 %v1387
        %v1590 = vunpack.c.h.b16 %v1387
        %v1591 = vunpack.c.l.b16 %v1388
        %v1592 = vunpack.c.h.b16 %v1388
        %v1593 = vpack.c.b16 %v1473, %v1465
        %v1594 = vpack.c.b16 %v1474, %v1466
        %v1595 = vpack.c.b16 %v1475, %v1467
        %v1596 = vpack.c.b16 %v1476, %v1468
        %v1597 = vpack.c.b16 %v1477, %v1469
        %v1598 = vpack.c.b16 %v1478, %v1470
        %v1599 = vpack.c.b16 %v1479, %v1471
        %v1600 = vpack.c.b16 %v1480, %v1472
        %v1601 = vpack.c.b16 %v1489, %v1481
        %v1602 = vpack.c.b16 %v1490, %v1482
        %v1603 = vpack.c.b16 %v1491, %v1483
        %v1604 = vpack.c.b16 %v1492, %v1484
        %v1605 = vpack.c.b16 %v1493, %v1485
        %v1606 = vpack.c.b16 %v1494, %v1486
        %v1607 = vpack.c.b16 %v1495, %v1487
        %v1608 = vpack.c.b16 %v1496, %v1488
        %v1609 = vpack.c.b16 %v1505, %v1497
        %v1610 = vpack.c.b16 %v1506, %v1498
        %v1611 = vpack.c.b16 %v1507, %v1499
        %v1612 = vpack.c.b16 %v1508, %v1500
        %v1613 = vpack.c.b16 %v1509, %v1501
        %v1614 = vpack.c.b16 %v1510, %v1502
        %v1615 = vpack.c.b16 %v1511, %v1503
        %v1616 = vpack.c.b16 %v1512, %v1504
        %v1617 = vpack.c.b16 %v1521, %v1513
        %v1618 = vpack.c.b16 %v1522, %v1514
        %v1619 = vpack.c.b16 %v1523, %v1515
        %v1620 = vpack.c.b16 %v1524, %v1516
        %v1621 = vpack.c.b16 %v1525, %v1517
        %v1622 = vpack.c.b16 %v1526, %v1518
        %v1623 = vpack.c.b16 %v1527, %v1519
        %v1624 = vpack.c.b16 %v1528, %v1520
        %v1625 = vpack.c.b16 %v1537, %v1529
        %v1626 = vpack.c.b16 %v1538, %v1530
        %v1627 = vpack.c.b16 %v1539, %v1531
        %v1628 = vpack.c.b16 %v1540, %v1532
        %v1629 = vpack.c.b16 %v1541, %v1533
        %v1630 = vpack.c.b16 %v1542, %v1534
        %v1631 = vpack.c.b16 %v1543, %v1535
        %v1632 = vpack.c.b16 %v1544, %v1536
        %v1633 = vpack.c.b16 %v1553, %v1545
        %v1634 = vpack.c.b16 %v1554, %v1546
        %v1635 = vpack.c.b16 %v1555, %v1547
        %v1636 = vpack.c.b16 %v1556, %v1548
        %v1637 = vpack.c.b16 %v1557, %v1549
        %v1638 = vpack.c.b16 %v1558, %v1550
        %v1639 = vpack.c.b16 %v1559, %v1551
        %v1640 = vpack.c.b16 %v1560, %v1552
        %v1641 = vpack.c.b16 %v1569, %v1561
        %v1642 = vpack.c.b16 %v1570, %v1562
        %v1643 = vpack.c.b16 %v1571, %v1563
        %v1644 = vpack.c.b16 %v1572, %v1564
        %v1645 = vpack.c.b16 %v1573, %v1565
        %v1646 = vpack.c.b16 %v1574, %v1566
        %v1647 = vpack.c.b16 %v1575, %v1567
        %v1648 = vpack.c.b16 %v1576, %v1568
        %v1649 = vpack.c.b16 %v1585, %v1577
        %v1650 = vpack.c.b16 %v1586, %v1578
        %v1651 = vpack.c.b16 %v1587, %v1579
        %v1652 = vpack.c.b16 %v1588, %v1580
        %v1653 = vpack.c.b16 %v1589, %v1581
        %v1654 = vpack.c.b16 %v1590, %v1582
        %v1655 = vpack.c.b16 %v1591, %v1583
        %v1656 = vpack.c.b16 %v1592, %v1584
        %1721 = vmatprep.subr.bf16.mxu0 %v1594
        %1722 = vmatpush1.bf16.msra.mxu0 %v1593
        %1723 = vmatprep.subr.bf16.mxu0 %v1602
        %1724 = vmatpush1.bf16.msra.mxu0 %v1601
        %1725 = vmatprep.subr.bf16.mxu0 %v1610
        %1726 = vmatpush1.bf16.msra.mxu0 %v1609
        %1727 = vmatprep.subr.bf16.mxu0 %v1618
        %1728 = vmatpush1.bf16.msra.mxu0 %v1617
        %1729 = vmatprep.subr.bf16.mxu0 %v1626
        %1730 = vmatpush1.bf16.msra.mxu0 %v1625
        %1731 = vmatprep.subr.bf16.mxu0 %v1634
        %1732 = vmatpush1.bf16.msra.mxu0 %v1633
        %1733 = vmatprep.subr.bf16.mxu0 %v1642
        %1734 = vmatpush1.bf16.msra.mxu0 %v1641
        %1735 = vmatprep.subr.bf16.mxu0 %v1650
        %1736 = vmatpush1.bf16.msra.mxu0 %v1649
        %1737 = vmatprep.subr.bf16.mxu0 0
        %1738 = vmatpush1.bf16.msra.mxu0 0
        %1739 = vmatprep.subr.bf16.mxu0 0
        %1740 = vmatpush1.bf16.msra.mxu0 0
        %1741 = vmatprep.subr.bf16.mxu0 0
        %1742 = vmatpush1.bf16.msra.mxu0 0
        %1743 = vmatprep.subr.bf16.mxu0 0
        %1744 = vmatpush1.bf16.msra.mxu0 0
        %1745 = vmatprep.subr.bf16.mxu0 0
        %1746 = vmatpush1.bf16.msra.mxu0 0
        %1747 = vmatprep.subr.bf16.mxu0 0
        %1748 = vmatpush1.bf16.msra.mxu0 0
        %1749 = vmatprep.subr.bf16.mxu0 0
        %1750 = vmatpush1.bf16.msra.mxu0 0
        %1751 = vmatprep.subr.bf16.mxu0 0
        %1752 = vmatpush1.bf16.msra.mxu0 0
        %1753 = vmatprep.mubr.bf16.mxu0 0
        %1754 = vmatmul.mubr.bf16.gmra.mrb[0].mxu0 %v1392
        %v1755 = vpop.f32.mrb[0].mxu0
        %v1756 = vadd.f32 %v1393, %v1755
        %v1757 = vpop.f32.mrb[0].mxu0
        %v1758 = vadd.f32 %v1394, %v1757
        %v1759 = vpop.f32.mrb[0].mxu0
        %v1760 = vpop.f32.mrb[0].mxu0
        %1761 = vdwg.mxu0
        %1762 = vmatprep.subr.bf16.mxu0 %v1596
        %1763 = vmatpush1.bf16.msra.mxu0 %v1595
        %1764 = vmatprep.subr.bf16.mxu0 %v1604
        %1765 = vmatpush1.bf16.msra.mxu0 %v1603
        %1766 = vmatprep.subr.bf16.mxu0 %v1612
        %1767 = vmatpush1.bf16.msra.mxu0 %v1611
        %1768 = vmatprep.subr.bf16.mxu0 %v1620
        %1769 = vmatpush1.bf16.msra.mxu0 %v1619
        %1770 = vmatprep.subr.bf16.mxu0 %v1628
        %1771 = vmatpush1.bf16.msra.mxu0 %v1627
        %1772 = vmatprep.subr.bf16.mxu0 %v1636
        %1773 = vmatpush1.bf16.msra.mxu0 %v1635
        %1774 = vmatprep.subr.bf16.mxu0 %v1644
        %1775 = vmatpush1.bf16.msra.mxu0 %v1643
        %1776 = vmatprep.subr.bf16.mxu0 %v1652
        %1777 = vmatpush1.bf16.msra.mxu0 %v1651
        %1778 = vmatprep.subr.bf16.mxu0 0
        %1779 = vmatpush1.bf16.msra.mxu0 0
        %1780 = vmatprep.subr.bf16.mxu0 0
        %1781 = vmatpush1.bf16.msra.mxu0 0
        %1782 = vmatprep.subr.bf16.mxu0 0
        %1783 = vmatpush1.bf16.msra.mxu0 0
        %1784 = vmatprep.subr.bf16.mxu0 0
        %1785 = vmatpush1.bf16.msra.mxu0 0
        %1786 = vmatprep.subr.bf16.mxu0 0
        %1787 = vmatpush1.bf16.msra.mxu0 0
        %1788 = vmatprep.subr.bf16.mxu0 0
        %1789 = vmatpush1.bf16.msra.mxu0 0
        %1790 = vmatprep.subr.bf16.mxu0 0
        %1791 = vmatpush1.bf16.msra.mxu0 0
        %1792 = vmatprep.subr.bf16.mxu0 0
        %1793 = vmatpush1.bf16.msra.mxu0 0
        %1794 = vmatprep.mubr.bf16.mxu0 0
        %1795 = vmatmul.mubr.bf16.gmra.mrb[0].mxu0 %v1392
        %v1796 = vpop.f32.mrb[0].mxu0
        %v1797 = vadd.f32 %v1395, %v1796
        %v1798 = vpop.f32.mrb[0].mxu0
        %v1799 = vadd.f32 %v1396, %v1798
        %v1800 = vpop.f32.mrb[0].mxu0
        %v1801 = vpop.f32.mrb[0].mxu0
        %1802 = vdwg.mxu0
        %1803 = vmatprep.subr.bf16.mxu0 %v1598
        %1804 = vmatpush1.bf16.msra.mxu0 %v1597
        %1805 = vmatprep.subr.bf16.mxu0 %v1606
        %1806 = vmatpush1.bf16.msra.mxu0 %v1605
        %1807 = vmatprep.subr.bf16.mxu0 %v1614
        %1808 = vmatpush1.bf16.msra.mxu0 %v1613
        %1809 = vmatprep.subr.bf16.mxu0 %v1622
        %1810 = vmatpush1.bf16.msra.mxu0 %v1621
        %1811 = vmatprep.subr.bf16.mxu0 %v1630
        %1812 = vmatpush1.bf16.msra.mxu0 %v1629
        %1813 = vmatprep.subr.bf16.mxu0 %v1638
        %1814 = vmatpush1.bf16.msra.mxu0 %v1637
        %1815 = vmatprep.subr.bf16.mxu0 %v1646
        %1816 = vmatpush1.bf16.msra.mxu0 %v1645
        %1817 = vmatprep.subr.bf16.mxu0 %v1654
        %1818 = vmatpush1.bf16.msra.mxu0 %v1653
        %1819 = vmatprep.subr.bf16.mxu0 0
        %1820 = vmatpush1.bf16.msra.mxu0 0
        %1821 = vmatprep.subr.bf16.mxu0 0
        %1822 = vmatpush1.bf16.msra.mxu0 0
        %1823 = vmatprep.subr.bf16.mxu0 0
        %1824 = vmatpush1.bf16.msra.mxu0 0
        %1825 = vmatprep.subr.bf16.mxu0 0
        %1826 = vmatpush1.bf16.msra.mxu0 0
        %1827 = vmatprep.subr.bf16.mxu0 0
        %1828 = vmatpush1.bf16.msra.mxu0 0
        %1829 = vmatprep.subr.bf16.mxu0 0
        %1830 = vmatpush1.bf16.msra.mxu0 0
        %1831 = vmatprep.subr.bf16.mxu0 0
        %1832 = vmatpush1.bf16.msra.mxu0 0
        %1833 = vmatprep.subr.bf16.mxu0 0
        %1834 = vmatpush1.bf16.msra.mxu0 0
        %1835 = vmatprep.mubr.bf16.mxu0 0
        %1836 = vmatmul.mubr.bf16.gmra.mrb[0].mxu0 %v1392
        %v1837 = vpop.f32.mrb[0].mxu0
        %v1838 = vadd.f32 %v1397, %v1837
        %v1839 = vpop.f32.mrb[0].mxu0
        %v1840 = vadd.f32 %v1398, %v1839
        %v1841 = vpop.f32.mrb[0].mxu0
        %v1842 = vpop.f32.mrb[0].mxu0
        %1843 = vdwg.mxu0
        %1844 = vmatprep.subr.bf16.mxu0 %v1600
        %1845 = vmatpush1.bf16.msra.mxu0 %v1599
        %1846 = vmatprep.subr.bf16.mxu0 %v1608
        %1847 = vmatpush1.bf16.msra.mxu0 %v1607
        %1848 = vmatprep.subr.bf16.mxu0 %v1616
        %1849 = vmatpush1.bf16.msra.mxu0 %v1615
        %1850 = vmatprep.subr.bf16.mxu0 %v1624
        %1851 = vmatpush1.bf16.msra.mxu0 %v1623
        %1852 = vmatprep.subr.bf16.mxu0 %v1632
        %1853 = vmatpush1.bf16.msra.mxu0 %v1631
        %1854 = vmatprep.subr.bf16.mxu0 %v1640
        %1855 = vmatpush1.bf16.msra.mxu0 %v1639
        %1856 = vmatprep.subr.bf16.mxu0 %v1648
        %1857 = vmatpush1.bf16.msra.mxu0 %v1647
        %1858 = vmatprep.subr.bf16.mxu0 %v1656
        %1859 = vmatpush1.bf16.msra.mxu0 %v1655
        %1860 = vmatprep.subr.bf16.mxu0 0
        %1861 = vmatpush1.bf16.msra.mxu0 0
        %1862 = vmatprep.subr.bf16.mxu0 0
        %1863 = vmatpush1.bf16.msra.mxu0 0
        %1864 = vmatprep.subr.bf16.mxu0 0
        %1865 = vmatpush1.bf16.msra.mxu0 0
        %1866 = vmatprep.subr.bf16.mxu0 0
        %1867 = vmatpush1.bf16.msra.mxu0 0
        %1868 = vmatprep.subr.bf16.mxu0 0
        %1869 = vmatpush1.bf16.msra.mxu0 0
        %1870 = vmatprep.subr.bf16.mxu0 0
        %1871 = vmatpush1.bf16.msra.mxu0 0
        %1872 = vmatprep.subr.bf16.mxu0 0
        %1873 = vmatpush1.bf16.msra.mxu0 0
        %1874 = vmatprep.subr.bf16.mxu0 0
        %1875 = vmatpush1.bf16.msra.mxu0 0
        %1876 = vmatprep.mubr.bf16.mxu0 0
        %1877 = vmatmul.mubr.bf16.gmra.mrb[0].mxu0 %v1392
        %v1878 = vpop.f32.mrb[0].mxu0
        %v1879 = vadd.f32 %v1399, %v1878
        %v1880 = vpop.f32.mrb[0].mxu0
        %v1881 = vadd.f32 %v1400, %v1880
        %v1882 = vpop.f32.mrb[0].mxu0
        %v1883 = vpop.f32.mrb[0].mxu0
        %1884 = vdwg.mxu0
        %v1885 = vxor.u32 %v1756, 2147483648
        %v1886 = vmul.f32 %v1885, 1.442695
        %v1887 = vpow.pop %v1886
        %v1888 = vadd.f32 %v1887, 1.0
        %v1889 = vrcp.pop %v1888
        %v1890 = vmul.f32 1.0, %v1889
        %v1891 = vxor.u32 %v1758, 2147483648
        %v1892 = vmul.f32 %v1891, 1.442695
        %v1893 = vpow.pop %v1892
        %v1894 = vadd.f32 %v1893, 1.0
        %v1895 = vrcp.pop %v1894
        %v1896 = vmul.f32 1.0, %v1895
        %v1897 = vtanh.pop %v1797
        %v1898 = vxor.u32 %v1799, 2147483648
        %v1899 = vmul.f32 %v1898, 1.442695
        %v1900 = vpow.pop %v1899
        %v1901 = vadd.f32 %v1900, 1.0
        %v1902 = vrcp.pop %v1901
        %v1903 = vmul.f32 1.0, %v1902
        %v1904 = vxor.u32 %v1838, 2147483648
        %v1905 = vmul.f32 %v1904, 1.442695
        %v1906 = vpow.pop %v1905
        %v1907 = vadd.f32 %v1906, 1.0
        %v1908 = vrcp.pop %v1907
        %v1909 = vmul.f32 1.0, %v1908
        %v1910 = vxor.u32 %v1840, 2147483648
        %v1911 = vmul.f32 %v1910, 1.442695
        %v1912 = vpow.pop %v1911
        %v1913 = vadd.f32 %v1912, 1.0
        %v1914 = vrcp.pop %v1913
        %v1915 = vmul.f32 1.0, %v1914
        %v1916 = vtanh.pop %v1879
        %v1917 = vxor.u32 %v1881, 2147483648
        %v1918 = vmul.f32 %v1917, 1.442695
        %v1919 = vpow.pop %v1918
        %v1920 = vadd.f32 %v1919, 1.0
        %v1921 = vrcp.pop %v1920
        %v1922 = vmul.f32 1.0, %v1921
        %v1923 = vmul.f32 %v1890, %v1390
        %v1924 = vmul.f32 %v1896, %v1897
        %v1925 = vadd.f32 %v1923, %v1924
        %v1926 = vmul.f32 %v1909, %v1391
        %v1927 = vmul.f32 %v1915, %v1916
        %v1928 = vadd.f32 %v1926, %v1927
        %v1929 = vtanh.pop %v1925
        %v1930 = vmul.f32 %v1903, %v1929
        %v1931 = vtanh.pop %v1928
        %v1932 = vmul.f32 %v1922, %v1931
        %v1933 = vadd.f32 %v1930, %v1932
        %1934 = vst [vmem:[%s484] sm:$0xff] %v1933
        %v1935 = vpack.c.bf16 %v1933, %v1933
        %s1936 = scalar_lea.vmem [#allocation2], 64
        %v1937 = vld [vmem:[%s1936] sm:$0xff]
        %v1938 = vld [vmem:[%s1936 + $0x8] sm:$0xff]
        %v1939 = vld [vmem:[%s1936 + $0x10] sm:$0xff]
        %v1940 = vld [vmem:[%s1936 + $0x18] sm:$0xff]
        %v1941 = vld [vmem:[%s1936 + $0x20] sm:$0xff]
        %v1942 = vld [vmem:[%s1936 + $0x28] sm:$0xff]
        %v1943 = vld [vmem:[%s1936 + $0x30] sm:$0xff]
        %v1944 = vld [vmem:[%s1936 + $0x38] sm:$0xff]
        %1945 = vmatprep.subr.bf16.mxu0 %v1594
        %1946 = vmatpush1.bf16.msra.mxu0 %v1593
        %1947 = vmatprep.subr.bf16.mxu0 %v1602
        %1948 = vmatpush1.bf16.msra.mxu0 %v1601
        %1949 = vmatprep.subr.bf16.mxu0 %v1610
        %1950 = vmatpush1.bf16.msra.mxu0 %v1609
        %1951 = vmatprep.subr.bf16.mxu0 %v1618
        %1952 = vmatpush1.bf16.msra.mxu0 %v1617
        %1953 = vmatprep.subr.bf16.mxu0 %v1626
        %1954 = vmatpush1.bf16.msra.mxu0 %v1625
        %1955 = vmatprep.subr.bf16.mxu0 %v1634
        %1956 = vmatpush1.bf16.msra.mxu0 %v1633
        %1957 = vmatprep.subr.bf16.mxu0 %v1642
        %1958 = vmatpush1.bf16.msra.mxu0 %v1641
        %1959 = vmatprep.subr.bf16.mxu0 %v1650
        %1960 = vmatpush1.bf16.msra.mxu0 %v1649
        %1961 = vmatprep.subr.bf16.mxu0 0
        %1962 = vmatpush1.bf16.msra.mxu0 0
        %1963 = vmatprep.subr.bf16.mxu0 0
        %1964 = vmatpush1.bf16.msra.mxu0 0
        %1965 = vmatprep.subr.bf16.mxu0 0
        %1966 = vmatpush1.bf16.msra.mxu0 0
        %1967 = vmatprep.subr.bf16.mxu0 0
        %1968 = vmatpush1.bf16.msra.mxu0 0
        %1969 = vmatprep.subr.bf16.mxu0 0
        %1970 = vmatpush1.bf16.msra.mxu0 0
        %1971 = vmatprep.subr.bf16.mxu0 0
        %1972 = vmatpush1.bf16.msra.mxu0 0
        %1973 = vmatprep.subr.bf16.mxu0 0
        %1974 = vmatpush1.bf16.msra.mxu0 0
        %1975 = vmatprep.subr.bf16.mxu0 0
        %1976 = vmatpush1.bf16.msra.mxu0 0
        %1977 = vmatprep.mubr.bf16.mxu0 0
        %1978 = vmatmul.mubr.bf16.gmra.mrb[0].mxu0 %v1935
        %v1979 = vpop.f32.mrb[0].mxu0
        %v1980 = vadd.f32 %v1937, %v1979
        %v1981 = vpop.f32.mrb[0].mxu0
        %v1982 = vadd.f32 %v1938, %v1981
        %v1983 = vpop.f32.mrb[0].mxu0
        %v1984 = vpop.f32.mrb[0].mxu0
        %1985 = vdwg.mxu0
        %1986 = vmatprep.subr.bf16.mxu0 %v1596
        %1987 = vmatpush1.bf16.msra.mxu0 %v1595
        %1988 = vmatprep.subr.bf16.mxu0 %v1604
        %1989 = vmatpush1.bf16.msra.mxu0 %v1603
        %1990 = vmatprep.subr.bf16.mxu0 %v1612
        %1991 = vmatpush1.bf16.msra.mxu0 %v1611
        %1992 = vmatprep.subr.bf16.mxu0 %v1620
        %1993 = vmatpush1.bf16.msra.mxu0 %v1619
        %1994 = vmatprep.subr.bf16.mxu0 %v1628
        %1995 = vmatpush1.bf16.msra.mxu0 %v1627
        %1996 = vmatprep.subr.bf16.mxu0 %v1636
        %1997 = vmatpush1.bf16.msra.mxu0 %v1635
        %1998 = vmatprep.subr.bf16.mxu0 %v1644
        %1999 = vmatpush1.bf16.msra.mxu0 %v1643
        %2000 = vmatprep.subr.bf16.mxu0 %v1652
        %2001 = vmatpush1.bf16.msra.mxu0 %v1651
        %2002 = vmatprep.subr.bf16.mxu0 0
        %2003 = vmatpush1.bf16.msra.mxu0 0
        %2004 = vmatprep.subr.bf16.mxu0 0
        %2005 = vmatpush1.bf16.msra.mxu0 0
        %2006 = vmatprep.subr.bf16.mxu0 0
        %2007 = vmatpush1.bf16.msra.mxu0 0
        %2008 = vmatprep.subr.bf16.mxu0 0
        %2009 = vmatpush1.bf16.msra.mxu0 0
        %2010 = vmatprep.subr.bf16.mxu0 0
        %2011 = vmatpush1.bf16.msra.mxu0 0
        %2012 = vmatprep.subr.bf16.mxu0 0
        %2013 = vmatpush1.bf16.msra.mxu0 0
        %2014 = vmatprep.subr.bf16.mxu0 0
        %2015 = vmatpush1.bf16.msra.mxu0 0
        %2016 = vmatprep.subr.bf16.mxu0 0
        %2017 = vmatpush1.bf16.msra.mxu0 0
        %2018 = vmatprep.mubr.bf16.mxu0 0
        %2019 = vmatmul.mubr.bf16.gmra.mrb[0].mxu0 %v1935
        %v2020 = vpop.f32.mrb[0].mxu0
        %v2021 = vadd.f32 %v1939, %v2020
        %v2022 = vpop.f32.mrb[0].mxu0
        %v2023 = vadd.f32 %v1940, %v2022
        %v2024 = vpop.f32.mrb[0].mxu0
        %v2025 = vpop.f32.mrb[0].mxu0
        %2026 = vdwg.mxu0
        %2027 = vmatprep.subr.bf16.mxu0 %v1598
        %2028 = vmatpush1.bf16.msra.mxu0 %v1597
        %2029 = vmatprep.subr.bf16.mxu0 %v1606
        %2030 = vmatpush1.bf16.msra.mxu0 %v1605
        %2031 = vmatprep.subr.bf16.mxu0 %v1614
        %2032 = vmatpush1.bf16.msra.mxu0 %v1613
        %2033 = vmatprep.subr.bf16.mxu0 %v1622
        %2034 = vmatpush1.bf16.msra.mxu0 %v1621
        %2035 = vmatprep.subr.bf16.mxu0 %v1630
        %2036 = vmatpush1.bf16.msra.mxu0 %v1629
        %2037 = vmatprep.subr.bf16.mxu0 %v1638
        %2038 = vmatpush1.bf16.msra.mxu0 %v1637
        %2039 = vmatprep.subr.bf16.mxu0 %v1646
        %2040 = vmatpush1.bf16.msra.mxu0 %v1645
        %2041 = vmatprep.subr.bf16.mxu0 %v1654
        %2042 = vmatpush1.bf16.msra.mxu0 %v1653
        %2043 = vmatprep.subr.bf16.mxu0 0
        %2044 = vmatpush1.bf16.msra.mxu0 0
        %2045 = vmatprep.subr.bf16.mxu0 0
        %2046 = vmatpush1.bf16.msra.mxu0 0
        %2047 = vmatprep.subr.bf16.mxu0 0
        %2048 = vmatpush1.bf16.msra.mxu0 0
        %2049 = vmatprep.subr.bf16.mxu0 0
        %2050 = vmatpush1.bf16.msra.mxu0 0
        %2051 = vmatprep.subr.bf16.mxu0 0
        %2052 = vmatpush1.bf16.msra.mxu0 0
        %2053 = vmatprep.subr.bf16.mxu0 0
        %2054 = vmatpush1.bf16.msra.mxu0 0
        %2055 = vmatprep.subr.bf16.mxu0 0
        %2056 = vmatpush1.bf16.msra.mxu0 0
        %2057 = vmatprep.subr.bf16.mxu0 0
        %2058 = vmatpush1.bf16.msra.mxu0 0
        %2059 = vmatprep.mubr.bf16.mxu0 0
        %2060 = vmatmul.mubr.bf16.gmra.mrb[0].mxu0 %v1935
        %v2061 = vpop.f32.mrb[0].mxu0
        %v2062 = vadd.f32 %v1941, %v2061
        %v2063 = vpop.f32.mrb[0].mxu0
        %v2064 = vadd.f32 %v1942, %v2063
        %v2065 = vpop.f32.mrb[0].mxu0
        %v2066 = vpop.f32.mrb[0].mxu0
        %2067 = vdwg.mxu0
        %2068 = vmatprep.subr.bf16.mxu0 %v1600
        %2069 = vmatpush1.bf16.msra.mxu0 %v1599
        %2070 = vmatprep.subr.bf16.mxu0 %v1608
        %2071 = vmatpush1.bf16.msra.mxu0 %v1607
        %2072 = vmatprep.subr.bf16.mxu0 %v1616
        %2073 = vmatpush1.bf16.msra.mxu0 %v1615
        %2074 = vmatprep.subr.bf16.mxu0 %v1624
        %2075 = vmatpush1.bf16.msra.mxu0 %v1623
        %2076 = vmatprep.subr.bf16.mxu0 %v1632
        %2077 = vmatpush1.bf16.msra.mxu0 %v1631
        %2078 = vmatprep.subr.bf16.mxu0 %v1640
        %2079 = vmatpush1.bf16.msra.mxu0 %v1639
        %2080 = vmatprep.subr.bf16.mxu0 %v1648
        %2081 = vmatpush1.bf16.msra.mxu0 %v1647
        %2082 = vmatprep.subr.bf16.mxu0 %v1656
        %2083 = vmatpush1.bf16.msra.mxu0 %v1655
        %2084 = vmatprep.subr.bf16.mxu0 0
        %2085 = vmatpush1.bf16.msra.mxu0 0
        %2086 = vmatprep.subr.bf16.mxu0 0
        %2087 = vmatpush1.bf16.msra.mxu0 0
        %2088 = vmatprep.subr.bf16.mxu0 0
        %2089 = vmatpush1.bf16.msra.mxu0 0
        %2090 = vmatprep.subr.bf16.mxu0 0
        %2091 = vmatpush1.bf16.msra.mxu0 0
        %2092 = vmatprep.subr.bf16.mxu0 0
        %2093 = vmatpush1.bf16.msra.mxu0 0
        %2094 = vmatprep.subr.bf16.mxu0 0
        %2095 = vmatpush1.bf16.msra.mxu0 0
        %2096 = vmatprep.subr.bf16.mxu0 0
        %2097 = vmatpush1.bf16.msra.mxu0 0
        %2098 = vmatprep.subr.bf16.mxu0 0
        %2099 = vmatpush1.bf16.msra.mxu0 0
        %2100 = vmatprep.mubr.bf16.mxu0 0
        %2101 = vmatmul.mubr.bf16.gmra.mrb[0].mxu0 %v1935
        %v2102 = vpop.f32.mrb[0].mxu0
        %v2103 = vadd.f32 %v1943, %v2102
        %v2104 = vpop.f32.mrb[0].mxu0
        %v2105 = vadd.f32 %v1944, %v2104
        %v2106 = vpop.f32.mrb[0].mxu0
        %v2107 = vpop.f32.mrb[0].mxu0
        %2108 = vdwg.mxu0
        %v2109 = vxor.u32 %v1980, 2147483648
        %v2110 = vmul.f32 %v2109, 1.442695
        %v2111 = vpow.pop %v2110
        %v2112 = vadd.f32 %v2111, 1.0
        %v2113 = vrcp.pop %v2112
        %v2114 = vmul.f32 1.0, %v2113
        %v2115 = vxor.u32 %v1982, 2147483648
        %v2116 = vmul.f32 %v2115, 1.442695
        %v2117 = vpow.pop %v2116
        %v2118 = vadd.f32 %v2117, 1.0
        %v2119 = vrcp.pop %v2118
        %v2120 = vmul.f32 1.0, %v2119
        %v2121 = vtanh.pop %v2021
        %v2122 = vxor.u32 %v2023, 2147483648
        %v2123 = vmul.f32 %v2122, 1.442695
        %v2124 = vpow.pop %v2123
        %v2125 = vadd.f32 %v2124, 1.0
        %v2126 = vrcp.pop %v2125
        %v2127 = vmul.f32 1.0, %v2126
        %v2128 = vxor.u32 %v2062, 2147483648
        %v2129 = vmul.f32 %v2128, 1.442695
        %v2130 = vpow.pop %v2129
        %v2131 = vadd.f32 %v2130, 1.0
        %v2132 = vrcp.pop %v2131
        %v2133 = vmul.f32 1.0, %v2132
        %v2134 = vxor.u32 %v2064, 2147483648
        %v2135 = vmul.f32 %v2134, 1.442695
        %v2136 = vpow.pop %v2135
        %v2137 = vadd.f32 %v2136, 1.0
        %v2138 = vrcp.pop %v2137
        %v2139 = vmul.f32 1.0, %v2138
        %v2140 = vtanh.pop %v2103
        %v2141 = vxor.u32 %v2105, 2147483648
        %v2142 = vmul.f32 %v2141, 1.442695
        %v2143 = vpow.pop %v2142
        %v2144 = vadd.f32 %v2143, 1.0
        %v2145 = vrcp.pop %v2144
        %v2146 = vmul.f32 1.0, %v2145
        %v2147 = vmul.f32 %v2114, %v1925
        %v2148 = vmul.f32 %v2120, %v2121
        %v2149 = vadd.f32 %v2147, %v2148
        %v2150 = vmul.f32 %v2133, %v1928
        %v2151 = vmul.f32 %v2139, %v2140
        %v2152 = vadd.f32 %v2150, %v2151
        %v2153 = vtanh.pop %v2149
        %v2154 = vmul.f32 %v2127, %v2153
        %v2155 = vtanh.pop %v2152
        %v2156 = vmul.f32 %v2146, %v2155
        %v2157 = vadd.f32 %v2154, %v2156
        %s2158 = scalar_lea.vmem %s484, 8 [#allocation7]
        %2159 = vst [vmem:[%s2158] sm:$0xff] %v2157
        %v2160 = vpack.c.bf16 %v2157, %v2157
        %s2161 = scalar_lea.vmem [#allocation2], 128
        %v2162 = vld [vmem:[%s2161] sm:$0xff]
        %v2163 = vld [vmem:[%s2161 + $0x8] sm:$0xff]
        %v2164 = vld [vmem:[%s2161 + $0x10] sm:$0xff]
        %v2165 = vld [vmem:[%s2161 + $0x18] sm:$0xff]
        %v2166 = vld [vmem:[%s2161 + $0x20] sm:$0xff]
        %v2167 = vld [vmem:[%s2161 + $0x28] sm:$0xff]
        %v2168 = vld [vmem:[%s2161 + $0x30] sm:$0xff]
        %v2169 = vld [vmem:[%s2161 + $0x38] sm:$0xff]
        %2170 = vmatprep.subr.bf16.mxu0 %v1594
        %2171 = vmatpush1.bf16.msra.mxu0 %v1593
        %2172 = vmatprep.subr.bf16.mxu0 %v1602
        %2173 = vmatpush1.bf16.msra.mxu0 %v1601
        %2174 = vmatprep.subr.bf16.mxu0 %v1610
        %2175 = vmatpush1.bf16.msra.mxu0 %v1609
        %2176 = vmatprep.subr.bf16.mxu0 %v1618
        %2177 = vmatpush1.bf16.msra.mxu0 %v1617
        %2178 = vmatprep.subr.bf16.mxu0 %v1626
        %2179 = vmatpush1.bf16.msra.mxu0 %v1625
        %2180 = vmatprep.subr.bf16.mxu0 %v1634
        %2181 = vmatpush1.bf16.msra.mxu0 %v1633
        %2182 = vmatprep.subr.bf16.mxu0 %v1642
        %2183 = vmatpush1.bf16.msra.mxu0 %v1641
        %2184 = vmatprep.subr.bf16.mxu0 %v1650
        %2185 = vmatpush1.bf16.msra.mxu0 %v1649
        %2186 = vmatprep.subr.bf16.mxu0 0
        %2187 = vmatpush1.bf16.msra.mxu0 0
        %2188 = vmatprep.subr.bf16.mxu0 0
        %2189 = vmatpush1.bf16.msra.mxu0 0
        %2190 = vmatprep.subr.bf16.mxu0 0
        %2191 = vmatpush1.bf16.msra.mxu0 0
        %2192 = vmatprep.subr.bf16.mxu0 0
        %2193 = vmatpush1.bf16.msra.mxu0 0
        %2194 = vmatprep.subr.bf16.mxu0 0
        %2195 = vmatpush1.bf16.msra.mxu0 0
        %2196 = vmatprep.subr.bf16.mxu0 0
        %2197 = vmatpush1.bf16.msra.mxu0 0
        %2198 = vmatprep.subr.bf16.mxu0 0
        %2199 = vmatpush1.bf16.msra.mxu0 0
        %2200 = vmatprep.subr.bf16.mxu0 0
        %2201 = vmatpush1.bf16.msra.mxu0 0
        %2202 = vmatprep.mubr.bf16.mxu0 0
        %2203 = vmatmul.mubr.bf16.gmra.mrb[0].mxu0 %v2160
        %v2204 = vpop.f32.mrb[0].mxu0
        %v2205 = vadd.f32 %v2162, %v2204
        %v2206 = vpop.f32.mrb[0].mxu0
        %v2207 = vadd.f32 %v2163, %v2206
        %v2208 = vpop.f32.mrb[0].mxu0
        %v2209 = vpop.f32.mrb[0].mxu0
        %2210 = vdwg.mxu0
        %2211 = vmatprep.subr.bf16.mxu0 %v1596
        %2212 = vmatpush1.bf16.msra.mxu0 %v1595
        %2213 = vmatprep.subr.bf16.mxu0 %v1604
        %2214 = vmatpush1.bf16.msra.mxu0 %v1603
        %2215 = vmatprep.subr.bf16.mxu0 %v1612
        %2216 = vmatpush1.bf16.msra.mxu0 %v1611
        %2217 = vmatprep.subr.bf16.mxu0 %v1620
        %2218 = vmatpush1.bf16.msra.mxu0 %v1619
        %2219 = vmatprep.subr.bf16.mxu0 %v1628
        %2220 = vmatpush1.bf16.msra.mxu0 %v1627
        %2221 = vmatprep.subr.bf16.mxu0 %v1636
        %2222 = vmatpush1.bf16.msra.mxu0 %v1635
        %2223 = vmatprep.subr.bf16.mxu0 %v1644
        %2224 = vmatpush1.bf16.msra.mxu0 %v1643
        %2225 = vmatprep.subr.bf16.mxu0 %v1652
        %2226 = vmatpush1.bf16.msra.mxu0 %v1651
        %2227 = vmatprep.subr.bf16.mxu0 0
        %2228 = vmatpush1.bf16.msra.mxu0 0
        %2229 = vmatprep.subr.bf16.mxu0 0
        %2230 = vmatpush1.bf16.msra.mxu0 0
        %2231 = vmatprep.subr.bf16.mxu0 0
        %2232 = vmatpush1.bf16.msra.mxu0 0
        %2233 = vmatprep.subr.bf16.mxu0 0
        %2234 = vmatpush1.bf16.msra.mxu0 0
        %2235 = vmatprep.subr.bf16.mxu0 0
        %2236 = vmatpush1.bf16.msra.mxu0 0
        %2237 = vmatprep.subr.bf16.mxu0 0
        %2238 = vmatpush1.bf16.msra.mxu0 0
        %2239 = vmatprep.subr.bf16.mxu0 0
        %2240 = vmatpush1.bf16.msra.mxu0 0
        %2241 = vmatprep.subr.bf16.mxu0 0
        %2242 = vmatpush1.bf16.msra.mxu0 0
        %2243 = vmatprep.mubr.bf16.mxu0 0
        %2244 = vmatmul.mubr.bf16.gmra.mrb[0].mxu0 %v2160
        %v2245 = vpop.f32.mrb[0].mxu0
        %v2246 = vadd.f32 %v2164, %v2245
        %v2247 = vpop.f32.mrb[0].mxu0
        %v2248 = vadd.f32 %v2165, %v2247
        %v2249 = vpop.f32.mrb[0].mxu0
        %v2250 = vpop.f32.mrb[0].mxu0
        %2251 = vdwg.mxu0
        %2252 = vmatprep.subr.bf16.mxu0 %v1598
        %2253 = vmatpush1.bf16.msra.mxu0 %v1597
        %2254 = vmatprep.subr.bf16.mxu0 %v1606
        %2255 = vmatpush1.bf16.msra.mxu0 %v1605
        %2256 = vmatprep.subr.bf16.mxu0 %v1614
        %2257 = vmatpush1.bf16.msra.mxu0 %v1613
        %2258 = vmatprep.subr.bf16.mxu0 %v1622
        %2259 = vmatpush1.bf16.msra.mxu0 %v1621
        %2260 = vmatprep.subr.bf16.mxu0 %v1630
        %2261 = vmatpush1.bf16.msra.mxu0 %v1629
        %2262 = vmatprep.subr.bf16.mxu0 %v1638
        %2263 = vmatpush1.bf16.msra.mxu0 %v1637
        %2264 = vmatprep.subr.bf16.mxu0 %v1646
        %2265 = vmatpush1.bf16.msra.mxu0 %v1645
        %2266 = vmatprep.subr.bf16.mxu0 %v1654
        %2267 = vmatpush1.bf16.msra.mxu0 %v1653
        %2268 = vmatprep.subr.bf16.mxu0 0
        %2269 = vmatpush1.bf16.msra.mxu0 0
        %2270 = vmatprep.subr.bf16.mxu0 0
        %2271 = vmatpush1.bf16.msra.mxu0 0
        %2272 = vmatprep.subr.bf16.mxu0 0
        %2273 = vmatpush1.bf16.msra.mxu0 0
        %2274 = vmatprep.subr.bf16.mxu0 0
        %2275 = vmatpush1.bf16.msra.mxu0 0
        %2276 = vmatprep.subr.bf16.mxu0 0
        %2277 = vmatpush1.bf16.msra.mxu0 0
        %2278 = vmatprep.subr.bf16.mxu0 0
        %2279 = vmatpush1.bf16.msra.mxu0 0
        %2280 = vmatprep.subr.bf16.mxu0 0
        %2281 = vmatpush1.bf16.msra.mxu0 0
        %2282 = vmatprep.subr.bf16.mxu0 0
        %2283 = vmatpush1.bf16.msra.mxu0 0
        %2284 = vmatprep.mubr.bf16.mxu0 0
        %2285 = vmatmul.mubr.bf16.gmra.mrb[0].mxu0 %v2160
        %v2286 = vpop.f32.mrb[0].mxu0
        %v2287 = vadd.f32 %v2166, %v2286
        %v2288 = vpop.f32.mrb[0].mxu0
        %v2289 = vadd.f32 %v2167, %v2288
        %v2290 = vpop.f32.mrb[0].mxu0
        %v2291 = vpop.f32.mrb[0].mxu0
        %2292 = vdwg.mxu0
        %2293 = vmatprep.subr.bf16.mxu0 %v1600
        %2294 = vmatpush1.bf16.msra.mxu0 %v1599
        %2295 = vmatprep.subr.bf16.mxu0 %v1608
        %2296 = vmatpush1.bf16.msra.mxu0 %v1607
        %2297 = vmatprep.subr.bf16.mxu0 %v1616
        %2298 = vmatpush1.bf16.msra.mxu0 %v1615
        %2299 = vmatprep.subr.bf16.mxu0 %v1624
        %2300 = vmatpush1.bf16.msra.mxu0 %v1623
        %2301 = vmatprep.subr.bf16.mxu0 %v1632
        %2302 = vmatpush1.bf16.msra.mxu0 %v1631
        %2303 = vmatprep.subr.bf16.mxu0 %v1640
        %2304 = vmatpush1.bf16.msra.mxu0 %v1639
        %2305 = vmatprep.subr.bf16.mxu0 %v1648
        %2306 = vmatpush1.bf16.msra.mxu0 %v1647
        %2307 = vmatprep.subr.bf16.mxu0 %v1656
        %2308 = vmatpush1.bf16.msra.mxu0 %v1655
        %2309 = vmatprep.subr.bf16.mxu0 0
        %2310 = vmatpush1.bf16.msra.mxu0 0
        %2311 = vmatprep.subr.bf16.mxu0 0
        %2312 = vmatpush1.bf16.msra.mxu0 0
        %2313 = vmatprep.subr.bf16.mxu0 0
        %2314 = vmatpush1.bf16.msra.mxu0 0
        %2315 = vmatprep.subr.bf16.mxu0 0
        %2316 = vmatpush1.bf16.msra.mxu0 0
        %2317 = vmatprep.subr.bf16.mxu0 0
        %2318 = vmatpush1.bf16.msra.mxu0 0
        %2319 = vmatprep.subr.bf16.mxu0 0
        %2320 = vmatpush1.bf16.msra.mxu0 0
        %2321 = vmatprep.subr.bf16.mxu0 0
        %2322 = vmatpush1.bf16.msra.mxu0 0
        %2323 = vmatprep.subr.bf16.mxu0 0
        %2324 = vmatpush1.bf16.msra.mxu0 0
        %2325 = vmatprep.mubr.bf16.mxu0 0
        %2326 = vmatmul.mubr.bf16.gmra.mrb[0].mxu0 %v2160
        %v2327 = vpop.f32.mrb[0].mxu0
        %v2328 = vadd.f32 %v2168, %v2327
        %v2329 = vpop.f32.mrb[0].mxu0
        %v2330 = vadd.f32 %v2169, %v2329
        %v2331 = vpop.f32.mrb[0].mxu0
        %v2332 = vpop.f32.mrb[0].mxu0
        %2333 = vdwg.mxu0
        %v2334 = vxor.u32 %v2205, 2147483648
        %v2335 = vmul.f32 %v2334, 1.442695
        %v2336 = vpow.pop %v2335
        %v2337 = vadd.f32 %v2336, 1.0
        %v2338 = vrcp.pop %v2337
        %v2339 = vmul.f32 1.0, %v2338
        %v2340 = vxor.u32 %v2207, 2147483648
        %v2341 = vmul.f32 %v2340, 1.442695
        %v2342 = vpow.pop %v2341
        %v2343 = vadd.f32 %v2342, 1.0
        %v2344 = vrcp.pop %v2343
        %v2345 = vmul.f32 1.0, %v2344
        %v2346 = vtanh.pop %v2246
        %v2347 = vxor.u32 %v2248, 2147483648
        %v2348 = vmul.f32 %v2347, 1.442695
        %v2349 = vpow.pop %v2348
        %v2350 = vadd.f32 %v2349, 1.0
        %v2351 = vrcp.pop %v2350
        %v2352 = vmul.f32 1.0, %v2351
        %v2353 = vxor.u32 %v2287, 2147483648
        %v2354 = vmul.f32 %v2353, 1.442695
        %v2355 = vpow.pop %v2354
        %v2356 = vadd.f32 %v2355, 1.0
        %v2357 = vrcp.pop %v2356
        %v2358 = vmul.f32 1.0, %v2357
        %v2359 = vxor.u32 %v2289, 2147483648
        %v2360 = vmul.f32 %v2359, 1.442695
        %v2361 = vpow.pop %v2360
        %v2362 = vadd.f32 %v2361, 1.0
        %v2363 = vrcp.pop %v2362
        %v2364 = vmul.f32 1.0, %v2363
        %v2365 = vtanh.pop %v2328
        %v2366 = vxor.u32 %v2330, 2147483648
        %v2367 = vmul.f32 %v2366, 1.442695
        %v2368 = vpow.pop %v2367
        %v2369 = vadd.f32 %v2368, 1.0
        %v2370 = vrcp.pop %v2369
        %v2371 = vmul.f32 1.0, %v2370
        %v2372 = vmul.f32 %v2339, %v2149
        %v2373 = vmul.f32 %v2345, %v2346
        %v2374 = vadd.f32 %v2372, %v2373
        %v2375 = vmul.f32 %v2358, %v2152
        %v2376 = vmul.f32 %v2364, %v2365
        %v2377 = vadd.f32 %v2375, %v2376
        %v2378 = vtanh.pop %v2374
        %v2379 = vmul.f32 %v2352, %v2378
        %v2380 = vtanh.pop %v2377
        %v2381 = vmul.f32 %v2371, %v2380
        %v2382 = vadd.f32 %v2379, %v2381
        %s2383 = scalar_lea.vmem %s484, 16 [#allocation7]
        %2384 = vst [vmem:[%s2383] sm:$0xff] %v2382
        %v2385 = vpack.c.bf16 %v2382, %v2382
        %s2386 = scalar_lea.vmem [#allocation2], 192
        %v2387 = vld [vmem:[%s2386] sm:$0xff]
        %v2388 = vld [vmem:[%s2386 + $0x8] sm:$0xff]
        %v2389 = vld [vmem:[%s2386 + $0x10] sm:$0xff]
        %v2390 = vld [vmem:[%s2386 + $0x18] sm:$0xff]
        %v2391 = vld [vmem:[%s2386 + $0x20] sm:$0xff]
        %v2392 = vld [vmem:[%s2386 + $0x28] sm:$0xff]
        %v2393 = vld [vmem:[%s2386 + $0x30] sm:$0xff]
        %v2394 = vld [vmem:[%s2386 + $0x38] sm:$0xff]
        %2395 = vmatprep.subr.bf16.mxu0 %v1594
        %2396 = vmatpush1.bf16.msra.mxu0 %v1593
        %2397 = vmatprep.subr.bf16.mxu0 %v1602
        %2398 = vmatpush1.bf16.msra.mxu0 %v1601
        %2399 = vmatprep.subr.bf16.mxu0 %v1610
        %2400 = vmatpush1.bf16.msra.mxu0 %v1609
        %2401 = vmatprep.subr.bf16.mxu0 %v1618
        %2402 = vmatpush1.bf16.msra.mxu0 %v1617
        %2403 = vmatprep.subr.bf16.mxu0 %v1626
        %2404 = vmatpush1.bf16.msra.mxu0 %v1625
        %2405 = vmatprep.subr.bf16.mxu0 %v1634
        %2406 = vmatpush1.bf16.msra.mxu0 %v1633
        %2407 = vmatprep.subr.bf16.mxu0 %v1642
        %2408 = vmatpush1.bf16.msra.mxu0 %v1641
        %2409 = vmatprep.subr.bf16.mxu0 %v1650
        %2410 = vmatpush1.bf16.msra.mxu0 %v1649
        %2411 = vmatprep.subr.bf16.mxu0 0
        %2412 = vmatpush1.bf16.msra.mxu0 0
        %2413 = vmatprep.subr.bf16.mxu0 0
        %2414 = vmatpush1.bf16.msra.mxu0 0
        %2415 = vmatprep.subr.bf16.mxu0 0
        %2416 = vmatpush1.bf16.msra.mxu0 0
        %2417 = vmatprep.subr.bf16.mxu0 0
        %2418 = vmatpush1.bf16.msra.mxu0 0
        %2419 = vmatprep.subr.bf16.mxu0 0
        %2420 = vmatpush1.bf16.msra.mxu0 0
        %2421 = vmatprep.subr.bf16.mxu0 0
        %2422 = vmatpush1.bf16.msra.mxu0 0
        %2423 = vmatprep.subr.bf16.mxu0 0
        %2424 = vmatpush1.bf16.msra.mxu0 0
        %2425 = vmatprep.subr.bf16.mxu0 0
        %2426 = vmatpush1.bf16.msra.mxu0 0
        %2427 = vmatprep.mubr.bf16.mxu0 0
        %2428 = vmatmul.mubr.bf16.gmra.mrb[0].mxu0 %v2385
        %v2429 = vpop.f32.mrb[0].mxu0
        %v2430 = vadd.f32 %v2387, %v2429
        %v2431 = vpop.f32.mrb[0].mxu0
        %v2432 = vadd.f32 %v2388, %v2431
        %v2433 = vpop.f32.mrb[0].mxu0
        %v2434 = vpop.f32.mrb[0].mxu0
        %2435 = vdwg.mxu0
        %2436 = vmatprep.subr.bf16.mxu0 %v1596
        %2437 = vmatpush1.bf16.msra.mxu0 %v1595
        %2438 = vmatprep.subr.bf16.mxu0 %v1604
        %2439 = vmatpush1.bf16.msra.mxu0 %v1603
        %2440 = vmatprep.subr.bf16.mxu0 %v1612
        %2441 = vmatpush1.bf16.msra.mxu0 %v1611
        %2442 = vmatprep.subr.bf16.mxu0 %v1620
        %2443 = vmatpush1.bf16.msra.mxu0 %v1619
        %2444 = vmatprep.subr.bf16.mxu0 %v1628
        %2445 = vmatpush1.bf16.msra.mxu0 %v1627
        %2446 = vmatprep.subr.bf16.mxu0 %v1636
        %2447 = vmatpush1.bf16.msra.mxu0 %v1635
        %2448 = vmatprep.subr.bf16.mxu0 %v1644
        %2449 = vmatpush1.bf16.msra.mxu0 %v1643
        %2450 = vmatprep.subr.bf16.mxu0 %v1652
        %2451 = vmatpush1.bf16.msra.mxu0 %v1651
        %2452 = vmatprep.subr.bf16.mxu0 0
        %2453 = vmatpush1.bf16.msra.mxu0 0
        %2454 = vmatprep.subr.bf16.mxu0 0
        %2455 = vmatpush1.bf16.msra.mxu0 0
        %2456 = vmatprep.subr.bf16.mxu0 0
        %2457 = vmatpush1.bf16.msra.mxu0 0
        %2458 = vmatprep.subr.bf16.mxu0 0
        %2459 = vmatpush1.bf16.msra.mxu0 0
        %2460 = vmatprep.subr.bf16.mxu0 0
        %2461 = vmatpush1.bf16.msra.mxu0 0
        %2462 = vmatprep.subr.bf16.mxu0 0
        %2463 = vmatpush1.bf16.msra.mxu0 0
        %2464 = vmatprep.subr.bf16.mxu0 0
        %2465 = vmatpush1.bf16.msra.mxu0 0
        %2466 = vmatprep.subr.bf16.mxu0 0
        %2467 = vmatpush1.bf16.msra.mxu0 0
        %2468 = vmatprep.mubr.bf16.mxu0 0
        %2469 = vmatmul.mubr.bf16.gmra.mrb[0].mxu0 %v2385
        %v2470 = vpop.f32.mrb[0].mxu0
        %v2471 = vadd.f32 %v2389, %v2470
        %v2472 = vpop.f32.mrb[0].mxu0
        %v2473 = vadd.f32 %v2390, %v2472
        %v2474 = vpop.f32.mrb[0].mxu0
        %v2475 = vpop.f32.mrb[0].mxu0
        %2476 = vdwg.mxu0
        %2477 = vmatprep.subr.bf16.mxu0 %v1598
        %2478 = vmatpush1.bf16.msra.mxu0 %v1597
        %2479 = vmatprep.subr.bf16.mxu0 %v1606
        %2480 = vmatpush1.bf16.msra.mxu0 %v1605
        %2481 = vmatprep.subr.bf16.mxu0 %v1614
        %2482 = vmatpush1.bf16.msra.mxu0 %v1613
        %2483 = vmatprep.subr.bf16.mxu0 %v1622
        %2484 = vmatpush1.bf16.msra.mxu0 %v1621
        %2485 = vmatprep.subr.bf16.mxu0 %v1630
        %2486 = vmatpush1.bf16.msra.mxu0 %v1629
        %2487 = vmatprep.subr.bf16.mxu0 %v1638
        %2488 = vmatpush1.bf16.msra.mxu0 %v1637
        %2489 = vmatprep.subr.bf16.mxu0 %v1646
        %2490 = vmatpush1.bf16.msra.mxu0 %v1645
        %2491 = vmatprep.subr.bf16.mxu0 %v1654
        %2492 = vmatpush1.bf16.msra.mxu0 %v1653
        %2493 = vmatprep.subr.bf16.mxu0 0
        %2494 = vmatpush1.bf16.msra.mxu0 0
        %2495 = vmatprep.subr.bf16.mxu0 0
        %2496 = vmatpush1.bf16.msra.mxu0 0
        %2497 = vmatprep.subr.bf16.mxu0 0
        %2498 = vmatpush1.bf16.msra.mxu0 0
        %2499 = vmatprep.subr.bf16.mxu0 0
        %2500 = vmatpush1.bf16.msra.mxu0 0
        %2501 = vmatprep.subr.bf16.mxu0 0
        %2502 = vmatpush1.bf16.msra.mxu0 0
        %2503 = vmatprep.subr.bf16.mxu0 0
        %2504 = vmatpush1.bf16.msra.mxu0 0
        %2505 = vmatprep.subr.bf16.mxu0 0
        %2506 = vmatpush1.bf16.msra.mxu0 0
        %2507 = vmatprep.subr.bf16.mxu0 0
        %2508 = vmatpush1.bf16.msra.mxu0 0
        %2509 = vmatprep.mubr.bf16.mxu0 0
        %2510 = vmatmul.mubr.bf16.gmra.mrb[0].mxu0 %v2385
        %v2511 = vpop.f32.mrb[0].mxu0
        %v2512 = vadd.f32 %v2391, %v2511
        %v2513 = vpop.f32.mrb[0].mxu0
        %v2514 = vadd.f32 %v2392, %v2513
        %v2515 = vpop.f32.mrb[0].mxu0
        %v2516 = vpop.f32.mrb[0].mxu0
        %2517 = vdwg.mxu0
        %2518 = vmatprep.subr.bf16.mxu0 %v1600
        %2519 = vmatpush1.bf16.msra.mxu0 %v1599
        %2520 = vmatprep.subr.bf16.mxu0 %v1608
        %2521 = vmatpush1.bf16.msra.mxu0 %v1607
        %2522 = vmatprep.subr.bf16.mxu0 %v1616
        %2523 = vmatpush1.bf16.msra.mxu0 %v1615
        %2524 = vmatprep.subr.bf16.mxu0 %v1624
        %2525 = vmatpush1.bf16.msra.mxu0 %v1623
        %2526 = vmatprep.subr.bf16.mxu0 %v1632
        %2527 = vmatpush1.bf16.msra.mxu0 %v1631
        %2528 = vmatprep.subr.bf16.mxu0 %v1640
        %2529 = vmatpush1.bf16.msra.mxu0 %v1639
        %2530 = vmatprep.subr.bf16.mxu0 %v1648
        %2531 = vmatpush1.bf16.msra.mxu0 %v1647
        %2532 = vmatprep.subr.bf16.mxu0 %v1656
        %2533 = vmatpush1.bf16.msra.mxu0 %v1655
        %2534 = vmatprep.subr.bf16.mxu0 0
        %2535 = vmatpush1.bf16.msra.mxu0 0
        %2536 = vmatprep.subr.bf16.mxu0 0
        %2537 = vmatpush1.bf16.msra.mxu0 0
        %2538 = vmatprep.subr.bf16.mxu0 0
        %2539 = vmatpush1.bf16.msra.mxu0 0
        %2540 = vmatprep.subr.bf16.mxu0 0
        %2541 = vmatpush1.bf16.msra.mxu0 0
        %2542 = vmatprep.subr.bf16.mxu0 0
        %2543 = vmatpush1.bf16.msra.mxu0 0
        %2544 = vmatprep.subr.bf16.mxu0 0
        %2545 = vmatpush1.bf16.msra.mxu0 0
        %2546 = vmatprep.subr.bf16.mxu0 0
        %2547 = vmatpush1.bf16.msra.mxu0 0
        %2548 = vmatprep.subr.bf16.mxu0 0
        %2549 = vmatpush1.bf16.msra.mxu0 0
        %2550 = vmatprep.mubr.bf16.mxu0 0
        %2551 = vmatmul.mubr.bf16.gmra.mrb[0].mxu0 %v2385
        %v2552 = vpop.f32.mrb[0].mxu0
        %v2553 = vadd.f32 %v2393, %v2552
        %v2554 = vpop.f32.mrb[0].mxu0
        %v2555 = vadd.f32 %v2394, %v2554
        %v2556 = vpop.f32.mrb[0].mxu0
        %v2557 = vpop.f32.mrb[0].mxu0
        %2558 = vdwg.mxu0
        %v2559 = vxor.u32 %v2430, 2147483648
        %v2560 = vmul.f32 %v2559, 1.442695
        %v2561 = vpow.pop %v2560
        %v2562 = vadd.f32 %v2561, 1.0
        %v2563 = vrcp.pop %v2562
        %v2564 = vmul.f32 1.0, %v2563
        %v2565 = vxor.u32 %v2432, 2147483648
        %v2566 = vmul.f32 %v2565, 1.442695
        %v2567 = vpow.pop %v2566
        %v2568 = vadd.f32 %v2567, 1.0
        %v2569 = vrcp.pop %v2568
        %v2570 = vmul.f32 1.0, %v2569
        %v2571 = vtanh.pop %v2471
        %v2572 = vxor.u32 %v2473, 2147483648
        %v2573 = vmul.f32 %v2572, 1.442695
        %v2574 = vpow.pop %v2573
        %v2575 = vadd.f32 %v2574, 1.0
        %v2576 = vrcp.pop %v2575
        %v2577 = vmul.f32 1.0, %v2576
        %v2578 = vxor.u32 %v2512, 2147483648
        %v2579 = vmul.f32 %v2578, 1.442695
        %v2580 = vpow.pop %v2579
        %v2581 = vadd.f32 %v2580, 1.0
        %v2582 = vrcp.pop %v2581
        %v2583 = vmul.f32 1.0, %v2582
        %v2584 = vxor.u32 %v2514, 2147483648
        %v2585 = vmul.f32 %v2584, 1.442695
        %v2586 = vpow.pop %v2585
        %v2587 = vadd.f32 %v2586, 1.0
        %v2588 = vrcp.pop %v2587
        %v2589 = vmul.f32 1.0, %v2588
        %v2590 = vtanh.pop %v2553
        %v2591 = vxor.u32 %v2555, 2147483648
        %v2592 = vmul.f32 %v2591, 1.442695
        %v2593 = vpow.pop %v2592
        %v2594 = vadd.f32 %v2593, 1.0
        %v2595 = vrcp.pop %v2594
        %v2596 = vmul.f32 1.0, %v2595
        %v2597 = vmul.f32 %v2564, %v2374
        %v2598 = vmul.f32 %v2570, %v2571
        %v2599 = vadd.f32 %v2597, %v2598
        %v2600 = vmul.f32 %v2583, %v2377
        %v2601 = vmul.f32 %v2589, %v2590
        %v2602 = vadd.f32 %v2600, %v2601
        %v2603 = vtanh.pop %v2599
        %v2604 = vmul.f32 %v2577, %v2603
        %v2605 = vtanh.pop %v2602
        %v2606 = vmul.f32 %v2596, %v2605
        %v2607 = vadd.f32 %v2604, %v2606
        %s2608 = scalar_lea.vmem %s484, 24 [#allocation7]
        %2609 = vst [vmem:[%s2608] sm:$0xff] %v2607
        %v2610 = vpack.c.bf16 %v2607, %v2607
        %s2611 = scalar_lea.vmem [#allocation2], 256
        %v2612 = vld [vmem:[%s2611] sm:$0xff]
        %v2613 = vld [vmem:[%s2611 + $0x8] sm:$0xff]
        %v2614 = vld [vmem:[%s2611 + $0x10] sm:$0xff]
        %v2615 = vld [vmem:[%s2611 + $0x18] sm:$0xff]
        %v2616 = vld [vmem:[%s2611 + $0x20] sm:$0xff]
        %v2617 = vld [vmem:[%s2611 + $0x28] sm:$0xff]
        %v2618 = vld [vmem:[%s2611 + $0x30] sm:$0xff]
        %v2619 = vld [vmem:[%s2611 + $0x38] sm:$0xff]
        %2620 = vmatprep.subr.bf16.mxu0 %v1594
        %2621 = vmatpush1.bf16.msra.mxu0 %v1593
        %2622 = vmatprep.subr.bf16.mxu0 %v1602
        %2623 = vmatpush1.bf16.msra.mxu0 %v1601
        %2624 = vmatprep.subr.bf16.mxu0 %v1610
        %2625 = vmatpush1.bf16.msra.mxu0 %v1609
        %2626 = vmatprep.subr.bf16.mxu0 %v1618
        %2627 = vmatpush1.bf16.msra.mxu0 %v1617
        %2628 = vmatprep.subr.bf16.mxu0 %v1626
        %2629 = vmatpush1.bf16.msra.mxu0 %v1625
        %2630 = vmatprep.subr.bf16.mxu0 %v1634
        %2631 = vmatpush1.bf16.msra.mxu0 %v1633
        %2632 = vmatprep.subr.bf16.mxu0 %v1642
        %2633 = vmatpush1.bf16.msra.mxu0 %v1641
        %2634 = vmatprep.subr.bf16.mxu0 %v1650
        %2635 = vmatpush1.bf16.msra.mxu0 %v1649
        %2636 = vmatprep.subr.bf16.mxu0 0
        %2637 = vmatpush1.bf16.msra.mxu0 0
        %2638 = vmatprep.subr.bf16.mxu0 0
        %2639 = vmatpush1.bf16.msra.mxu0 0
        %2640 = vmatprep.subr.bf16.mxu0 0
        %2641 = vmatpush1.bf16.msra.mxu0 0
        %2642 = vmatprep.subr.bf16.mxu0 0
        %2643 = vmatpush1.bf16.msra.mxu0 0
        %2644 = vmatprep.subr.bf16.mxu0 0
        %2645 = vmatpush1.bf16.msra.mxu0 0
        %2646 = vmatprep.subr.bf16.mxu0 0
        %2647 = vmatpush1.bf16.msra.mxu0 0
        %2648 = vmatprep.subr.bf16.mxu0 0
        %2649 = vmatpush1.bf16.msra.mxu0 0
        %2650 = vmatprep.subr.bf16.mxu0 0
        %2651 = vmatpush1.bf16.msra.mxu0 0
        %2652 = vmatprep.mubr.bf16.mxu0 0
        %2653 = vmatmul.mubr.bf16.gmra.mrb[0].mxu0 %v2610
        %v2654 = vpop.f32.mrb[0].mxu0
        %v2655 = vadd.f32 %v2612, %v2654
        %v2656 = vpop.f32.mrb[0].mxu0
        %v2657 = vadd.f32 %v2613, %v2656
        %v2658 = vpop.f32.mrb[0].mxu0
        %v2659 = vpop.f32.mrb[0].mxu0
        %2660 = vdwg.mxu0
        %2661 = vmatprep.subr.bf16.mxu0 %v1596
        %2662 = vmatpush1.bf16.msra.mxu0 %v1595
        %2663 = vmatprep.subr.bf16.mxu0 %v1604
        %2664 = vmatpush1.bf16.msra.mxu0 %v1603
        %2665 = vmatprep.subr.bf16.mxu0 %v1612
        %2666 = vmatpush1.bf16.msra.mxu0 %v1611
        %2667 = vmatprep.subr.bf16.mxu0 %v1620
        %2668 = vmatpush1.bf16.msra.mxu0 %v1619
        %2669 = vmatprep.subr.bf16.mxu0 %v1628
        %2670 = vmatpush1.bf16.msra.mxu0 %v1627
        %2671 = vmatprep.subr.bf16.mxu0 %v1636
        %2672 = vmatpush1.bf16.msra.mxu0 %v1635
        %2673 = vmatprep.subr.bf16.mxu0 %v1644
        %2674 = vmatpush1.bf16.msra.mxu0 %v1643
        %2675 = vmatprep.subr.bf16.mxu0 %v1652
        %2676 = vmatpush1.bf16.msra.mxu0 %v1651
        %2677 = vmatprep.subr.bf16.mxu0 0
        %2678 = vmatpush1.bf16.msra.mxu0 0
        %2679 = vmatprep.subr.bf16.mxu0 0
        %2680 = vmatpush1.bf16.msra.mxu0 0
        %2681 = vmatprep.subr.bf16.mxu0 0
        %2682 = vmatpush1.bf16.msra.mxu0 0
        %2683 = vmatprep.subr.bf16.mxu0 0
        %2684 = vmatpush1.bf16.msra.mxu0 0
        %2685 = vmatprep.subr.bf16.mxu0 0
        %2686 = vmatpush1.bf16.msra.mxu0 0
        %2687 = vmatprep.subr.bf16.mxu0 0
        %2688 = vmatpush1.bf16.msra.mxu0 0
        %2689 = vmatprep.subr.bf16.mxu0 0
        %2690 = vmatpush1.bf16.msra.mxu0 0
        %2691 = vmatprep.subr.bf16.mxu0 0
        %2692 = vmatpush1.bf16.msra.mxu0 0
        %2693 = vmatprep.mubr.bf16.mxu0 0
        %2694 = vmatmul.mubr.bf16.gmra.mrb[0].mxu0 %v2610
        %v2695 = vpop.f32.mrb[0].mxu0
        %v2696 = vadd.f32 %v2614, %v2695
        %v2697 = vpop.f32.mrb[0].mxu0
        %v2698 = vadd.f32 %v2615, %v2697
        %v2699 = vpop.f32.mrb[0].mxu0
        %v2700 = vpop.f32.mrb[0].mxu0
        %2701 = vdwg.mxu0
        %2702 = vmatprep.subr.bf16.mxu0 %v1598
        %2703 = vmatpush1.bf16.msra.mxu0 %v1597
        %2704 = vmatprep.subr.bf16.mxu0 %v1606
        %2705 = vmatpush1.bf16.msra.mxu0 %v1605
        %2706 = vmatprep.subr.bf16.mxu0 %v1614
        %2707 = vmatpush1.bf16.msra.mxu0 %v1613
        %2708 = vmatprep.subr.bf16.mxu0 %v1622
        %2709 = vmatpush1.bf16.msra.mxu0 %v1621
        %2710 = vmatprep.subr.bf16.mxu0 %v1630
        %2711 = vmatpush1.bf16.msra.mxu0 %v1629
        %2712 = vmatprep.subr.bf16.mxu0 %v1638
        %2713 = vmatpush1.bf16.msra.mxu0 %v1637
        %2714 = vmatprep.subr.bf16.mxu0 %v1646
        %2715 = vmatpush1.bf16.msra.mxu0 %v1645
        %2716 = vmatprep.subr.bf16.mxu0 %v1654
        %2717 = vmatpush1.bf16.msra.mxu0 %v1653
        %2718 = vmatprep.subr.bf16.mxu0 0
        %2719 = vmatpush1.bf16.msra.mxu0 0
        %2720 = vmatprep.subr.bf16.mxu0 0
        %2721 = vmatpush1.bf16.msra.mxu0 0
        %2722 = vmatprep.subr.bf16.mxu0 0
        %2723 = vmatpush1.bf16.msra.mxu0 0
        %2724 = vmatprep.subr.bf16.mxu0 0
        %2725 = vmatpush1.bf16.msra.mxu0 0
        %2726 = vmatprep.subr.bf16.mxu0 0
        %2727 = vmatpush1.bf16.msra.mxu0 0
        %2728 = vmatprep.subr.bf16.mxu0 0
        %2729 = vmatpush1.bf16.msra.mxu0 0
        %2730 = vmatprep.subr.bf16.mxu0 0
        %2731 = vmatpush1.bf16.msra.mxu0 0
        %2732 = vmatprep.subr.bf16.mxu0 0
        %2733 = vmatpush1.bf16.msra.mxu0 0
        %2734 = vmatprep.mubr.bf16.mxu0 0
        %2735 = vmatmul.mubr.bf16.gmra.mrb[0].mxu0 %v2610
        %v2736 = vpop.f32.mrb[0].mxu0
        %v2737 = vadd.f32 %v2616, %v2736
        %v2738 = vpop.f32.mrb[0].mxu0
        %v2739 = vadd.f32 %v2617, %v2738
        %v2740 = vpop.f32.mrb[0].mxu0
        %v2741 = vpop.f32.mrb[0].mxu0
        %2742 = vdwg.mxu0
        %2743 = vmatprep.subr.bf16.mxu0 %v1600
        %2744 = vmatpush1.bf16.msra.mxu0 %v1599
        %2745 = vmatprep.subr.bf16.mxu0 %v1608
        %2746 = vmatpush1.bf16.msra.mxu0 %v1607
        %2747 = vmatprep.subr.bf16.mxu0 %v1616
        %2748 = vmatpush1.bf16.msra.mxu0 %v1615
        %2749 = vmatprep.subr.bf16.mxu0 %v1624
        %2750 = vmatpush1.bf16.msra.mxu0 %v1623
        %2751 = vmatprep.subr.bf16.mxu0 %v1632
        %2752 = vmatpush1.bf16.msra.mxu0 %v1631
        %2753 = vmatprep.subr.bf16.mxu0 %v1640
        %2754 = vmatpush1.bf16.msra.mxu0 %v1639
        %2755 = vmatprep.subr.bf16.mxu0 %v1648
        %2756 = vmatpush1.bf16.msra.mxu0 %v1647
        %2757 = vmatprep.subr.bf16.mxu0 %v1656
        %2758 = vmatpush1.bf16.msra.mxu0 %v1655
        %2759 = vmatprep.subr.bf16.mxu0 0
        %2760 = vmatpush1.bf16.msra.mxu0 0
        %2761 = vmatprep.subr.bf16.mxu0 0
        %2762 = vmatpush1.bf16.msra.mxu0 0
        %2763 = vmatprep.subr.bf16.mxu0 0
        %2764 = vmatpush1.bf16.msra.mxu0 0
        %2765 = vmatprep.subr.bf16.mxu0 0
        %2766 = vmatpush1.bf16.msra.mxu0 0
        %2767 = vmatprep.subr.bf16.mxu0 0
        %2768 = vmatpush1.bf16.msra.mxu0 0
        %2769 = vmatprep.subr.bf16.mxu0 0
        %2770 = vmatpush1.bf16.msra.mxu0 0
        %2771 = vmatprep.subr.bf16.mxu0 0
        %2772 = vmatpush1.bf16.msra.mxu0 0
        %2773 = vmatprep.subr.bf16.mxu0 0
        %2774 = vmatpush1.bf16.msra.mxu0 0
        %2775 = vmatprep.mubr.bf16.mxu0 0
        %2776 = vmatmul.mubr.bf16.gmra.mrb[0].mxu0 %v2610
        %v2777 = vpop.f32.mrb[0].mxu0
        %v2778 = vadd.f32 %v2618, %v2777
        %v2779 = vpop.f32.mrb[0].mxu0
        %v2780 = vadd.f32 %v2619, %v2779
        %v2781 = vpop.f32.mrb[0].mxu0
        %v2782 = vpop.f32.mrb[0].mxu0
        %2783 = vdwg.mxu0
        %v2784 = vxor.u32 %v2655, 2147483648
        %v2785 = vmul.f32 %v2784, 1.442695
        %v2786 = vpow.pop %v2785
        %v2787 = vadd.f32 %v2786, 1.0
        %v2788 = vrcp.pop %v2787
        %v2789 = vmul.f32 1.0, %v2788
        %v2790 = vxor.u32 %v2657, 2147483648
        %v2791 = vmul.f32 %v2790, 1.442695
        %v2792 = vpow.pop %v2791
        %v2793 = vadd.f32 %v2792, 1.0
        %v2794 = vrcp.pop %v2793
        %v2795 = vmul.f32 1.0, %v2794
        %v2796 = vtanh.pop %v2696
        %v2797 = vxor.u32 %v2698, 2147483648
        %v2798 = vmul.f32 %v2797, 1.442695
        %v2799 = vpow.pop %v2798
        %v2800 = vadd.f32 %v2799, 1.0
        %v2801 = vrcp.pop %v2800
        %v2802 = vmul.f32 1.0, %v2801
        %v2803 = vxor.u32 %v2737, 2147483648
        %v2804 = vmul.f32 %v2803, 1.442695
        %v2805 = vpow.pop %v2804
        %v2806 = vadd.f32 %v2805, 1.0
        %v2807 = vrcp.pop %v2806
        %v2808 = vmul.f32 1.0, %v2807
        %v2809 = vxor.u32 %v2739, 2147483648
        %v2810 = vmul.f32 %v2809, 1.442695
        %v2811 = vpow.pop %v2810
        %v2812 = vadd.f32 %v2811, 1.0
        %v2813 = vrcp.pop %v2812
        %v2814 = vmul.f32 1.0, %v2813
        %v2815 = vtanh.pop %v2778
        %v2816 = vxor.u32 %v2780, 2147483648
        %v2817 = vmul.f32 %v2816, 1.442695
        %v2818 = vpow.pop %v2817
        %v2819 = vadd.f32 %v2818, 1.0
        %v2820 = vrcp.pop %v2819
        %v2821 = vmul.f32 1.0, %v2820
        %v2822 = vmul.f32 %v2789, %v2599
        %v2823 = vmul.f32 %v2795, %v2796
        %v2824 = vadd.f32 %v2822, %v2823
        %v2825 = vmul.f32 %v2808, %v2602
        %v2826 = vmul.f32 %v2814, %v2815
        %v2827 = vadd.f32 %v2825, %v2826
        %v2828 = vtanh.pop %v2824
        %v2829 = vmul.f32 %v2802, %v2828
        %v2830 = vtanh.pop %v2827
        %v2831 = vmul.f32 %v2821, %v2830
        %v2832 = vadd.f32 %v2829, %v2831
        %s2833 = scalar_lea.vmem %s484, 32 [#allocation7]
        %2834 = vst [vmem:[%s2833] sm:$0xff] %v2832
        %v2835 = vpack.c.bf16 %v2832, %v2832
        %s2836 = scalar_lea.vmem [#allocation2], 320
        %v2837 = vld [vmem:[%s2836] sm:$0xff]
        %v2838 = vld [vmem:[%s2836 + $0x8] sm:$0xff]
        %v2839 = vld [vmem:[%s2836 + $0x10] sm:$0xff]
        %v2840 = vld [vmem:[%s2836 + $0x18] sm:$0xff]
        %v2841 = vld [vmem:[%s2836 + $0x20] sm:$0xff]
        %v2842 = vld [vmem:[%s2836 + $0x28] sm:$0xff]
        %v2843 = vld [vmem:[%s2836 + $0x30] sm:$0xff]
        %v2844 = vld [vmem:[%s2836 + $0x38] sm:$0xff]
        %2845 = vmatprep.subr.bf16.mxu0 %v1594
        %2846 = vmatpush1.bf16.msra.mxu0 %v1593
        %2847 = vmatprep.subr.bf16.mxu0 %v1602
        %2848 = vmatpush1.bf16.msra.mxu0 %v1601
        %2849 = vmatprep.subr.bf16.mxu0 %v1610
        %2850 = vmatpush1.bf16.msra.mxu0 %v1609
        %2851 = vmatprep.subr.bf16.mxu0 %v1618
        %2852 = vmatpush1.bf16.msra.mxu0 %v1617
        %2853 = vmatprep.subr.bf16.mxu0 %v1626
        %2854 = vmatpush1.bf16.msra.mxu0 %v1625
        %2855 = vmatprep.subr.bf16.mxu0 %v1634
        %2856 = vmatpush1.bf16.msra.mxu0 %v1633
        %2857 = vmatprep.subr.bf16.mxu0 %v1642
        %2858 = vmatpush1.bf16.msra.mxu0 %v1641
        %2859 = vmatprep.subr.bf16.mxu0 %v1650
        %2860 = vmatpush1.bf16.msra.mxu0 %v1649
        %2861 = vmatprep.subr.bf16.mxu0 0
        %2862 = vmatpush1.bf16.msra.mxu0 0
        %2863 = vmatprep.subr.bf16.mxu0 0
        %2864 = vmatpush1.bf16.msra.mxu0 0
        %2865 = vmatprep.subr.bf16.mxu0 0
        %2866 = vmatpush1.bf16.msra.mxu0 0
        %2867 = vmatprep.subr.bf16.mxu0 0
        %2868 = vmatpush1.bf16.msra.mxu0 0
        %2869 = vmatprep.subr.bf16.mxu0 0
        %2870 = vmatpush1.bf16.msra.mxu0 0
        %2871 = vmatprep.subr.bf16.mxu0 0
        %2872 = vmatpush1.bf16.msra.mxu0 0
        %2873 = vmatprep.subr.bf16.mxu0 0
        %2874 = vmatpush1.bf16.msra.mxu0 0
        %2875 = vmatprep.subr.bf16.mxu0 0
        %2876 = vmatpush1.bf16.msra.mxu0 0
        %2877 = vmatprep.mubr.bf16.mxu0 0
        %2878 = vmatmul.mubr.bf16.gmra.mrb[0].mxu0 %v2835
        %v2879 = vpop.f32.mrb[0].mxu0
        %v2880 = vadd.f32 %v2837, %v2879
        %v2881 = vpop.f32.mrb[0].mxu0
        %v2882 = vadd.f32 %v2838, %v2881
        %v2883 = vpop.f32.mrb[0].mxu0
        %v2884 = vpop.f32.mrb[0].mxu0
        %2885 = vdwg.mxu0
        %2886 = vmatprep.subr.bf16.mxu0 %v1596
        %2887 = vmatpush1.bf16.msra.mxu0 %v1595
        %2888 = vmatprep.subr.bf16.mxu0 %v1604
        %2889 = vmatpush1.bf16.msra.mxu0 %v1603
        %2890 = vmatprep.subr.bf16.mxu0 %v1612
        %2891 = vmatpush1.bf16.msra.mxu0 %v1611
        %2892 = vmatprep.subr.bf16.mxu0 %v1620
        %2893 = vmatpush1.bf16.msra.mxu0 %v1619
        %2894 = vmatprep.subr.bf16.mxu0 %v1628
        %2895 = vmatpush1.bf16.msra.mxu0 %v1627
        %2896 = vmatprep.subr.bf16.mxu0 %v1636
        %2897 = vmatpush1.bf16.msra.mxu0 %v1635
        %2898 = vmatprep.subr.bf16.mxu0 %v1644
        %2899 = vmatpush1.bf16.msra.mxu0 %v1643
        %2900 = vmatprep.subr.bf16.mxu0 %v1652
        %2901 = vmatpush1.bf16.msra.mxu0 %v1651
        %2902 = vmatprep.subr.bf16.mxu0 0
        %2903 = vmatpush1.bf16.msra.mxu0 0
        %2904 = vmatprep.subr.bf16.mxu0 0
        %2905 = vmatpush1.bf16.msra.mxu0 0
        %2906 = vmatprep.subr.bf16.mxu0 0
        %2907 = vmatpush1.bf16.msra.mxu0 0
        %2908 = vmatprep.subr.bf16.mxu0 0
        %2909 = vmatpush1.bf16.msra.mxu0 0
        %2910 = vmatprep.subr.bf16.mxu0 0
        %2911 = vmatpush1.bf16.msra.mxu0 0
        %2912 = vmatprep.subr.bf16.mxu0 0
        %2913 = vmatpush1.bf16.msra.mxu0 0
        %2914 = vmatprep.subr.bf16.mxu0 0
        %2915 = vmatpush1.bf16.msra.mxu0 0
        %2916 = vmatprep.subr.bf16.mxu0 0
        %2917 = vmatpush1.bf16.msra.mxu0 0
        %2918 = vmatprep.mubr.bf16.mxu0 0
        %2919 = vmatmul.mubr.bf16.gmra.mrb[0].mxu0 %v2835
        %v2920 = vpop.f32.mrb[0].mxu0
        %v2921 = vadd.f32 %v2839, %v2920
        %v2922 = vpop.f32.mrb[0].mxu0
        %v2923 = vadd.f32 %v2840, %v2922
        %v2924 = vpop.f32.mrb[0].mxu0
        %v2925 = vpop.f32.mrb[0].mxu0
        %2926 = vdwg.mxu0
        %2927 = vmatprep.subr.bf16.mxu0 %v1598
        %2928 = vmatpush1.bf16.msra.mxu0 %v1597
        %2929 = vmatprep.subr.bf16.mxu0 %v1606
        %2930 = vmatpush1.bf16.msra.mxu0 %v1605
        %2931 = vmatprep.subr.bf16.mxu0 %v1614
        %2932 = vmatpush1.bf16.msra.mxu0 %v1613
        %2933 = vmatprep.subr.bf16.mxu0 %v1622
        %2934 = vmatpush1.bf16.msra.mxu0 %v1621
        %2935 = vmatprep.subr.bf16.mxu0 %v1630
        %2936 = vmatpush1.bf16.msra.mxu0 %v1629
        %2937 = vmatprep.subr.bf16.mxu0 %v1638
        %2938 = vmatpush1.bf16.msra.mxu0 %v1637
        %2939 = vmatprep.subr.bf16.mxu0 %v1646
        %2940 = vmatpush1.bf16.msra.mxu0 %v1645
        %2941 = vmatprep.subr.bf16.mxu0 %v1654
        %2942 = vmatpush1.bf16.msra.mxu0 %v1653
        %2943 = vmatprep.subr.bf16.mxu0 0
        %2944 = vmatpush1.bf16.msra.mxu0 0
        %2945 = vmatprep.subr.bf16.mxu0 0
        %2946 = vmatpush1.bf16.msra.mxu0 0
        %2947 = vmatprep.subr.bf16.mxu0 0
        %2948 = vmatpush1.bf16.msra.mxu0 0
        %2949 = vmatprep.subr.bf16.mxu0 0
        %2950 = vmatpush1.bf16.msra.mxu0 0
        %2951 = vmatprep.subr.bf16.mxu0 0
        %2952 = vmatpush1.bf16.msra.mxu0 0
        %2953 = vmatprep.subr.bf16.mxu0 0
        %2954 = vmatpush1.bf16.msra.mxu0 0
        %2955 = vmatprep.subr.bf16.mxu0 0
        %2956 = vmatpush1.bf16.msra.mxu0 0
        %2957 = vmatprep.subr.bf16.mxu0 0
        %2958 = vmatpush1.bf16.msra.mxu0 0
        %2959 = vmatprep.mubr.bf16.mxu0 0
        %2960 = vmatmul.mubr.bf16.gmra.mrb[0].mxu0 %v2835
        %v2961 = vpop.f32.mrb[0].mxu0
        %v2962 = vadd.f32 %v2841, %v2961
        %v2963 = vpop.f32.mrb[0].mxu0
        %v2964 = vadd.f32 %v2842, %v2963
        %v2965 = vpop.f32.mrb[0].mxu0
        %v2966 = vpop.f32.mrb[0].mxu0
        %2967 = vdwg.mxu0
        %2968 = vmatprep.subr.bf16.mxu0 %v1600
        %2969 = vmatpush1.bf16.msra.mxu0 %v1599
        %2970 = vmatprep.subr.bf16.mxu0 %v1608
        %2971 = vmatpush1.bf16.msra.mxu0 %v1607
        %2972 = vmatprep.subr.bf16.mxu0 %v1616
        %2973 = vmatpush1.bf16.msra.mxu0 %v1615
        %2974 = vmatprep.subr.bf16.mxu0 %v1624
        %2975 = vmatpush1.bf16.msra.mxu0 %v1623
        %2976 = vmatprep.subr.bf16.mxu0 %v1632
        %2977 = vmatpush1.bf16.msra.mxu0 %v1631
        %2978 = vmatprep.subr.bf16.mxu0 %v1640
        %2979 = vmatpush1.bf16.msra.mxu0 %v1639
        %2980 = vmatprep.subr.bf16.mxu0 %v1648
        %2981 = vmatpush1.bf16.msra.mxu0 %v1647
        %2982 = vmatprep.subr.bf16.mxu0 %v1656
        %2983 = vmatpush1.bf16.msra.mxu0 %v1655
        %2984 = vmatprep.subr.bf16.mxu0 0
        %2985 = vmatpush1.bf16.msra.mxu0 0
        %2986 = vmatprep.subr.bf16.mxu0 0
        %2987 = vmatpush1.bf16.msra.mxu0 0
        %2988 = vmatprep.subr.bf16.mxu0 0
        %2989 = vmatpush1.bf16.msra.mxu0 0
        %2990 = vmatprep.subr.bf16.mxu0 0
        %2991 = vmatpush1.bf16.msra.mxu0 0
        %2992 = vmatprep.subr.bf16.mxu0 0
        %2993 = vmatpush1.bf16.msra.mxu0 0
        %2994 = vmatprep.subr.bf16.mxu0 0
        %2995 = vmatpush1.bf16.msra.mxu0 0
        %2996 = vmatprep.subr.bf16.mxu0 0
        %2997 = vmatpush1.bf16.msra.mxu0 0
        %2998 = vmatprep.subr.bf16.mxu0 0
        %2999 = vmatpush1.bf16.msra.mxu0 0
        %3000 = vmatprep.mubr.bf16.mxu0 0
        %3001 = vmatmul.mubr.bf16.gmra.mrb[0].mxu0 %v2835
        %v3002 = vpop.f32.mrb[0].mxu0
        %v3003 = vadd.f32 %v2843, %v3002
        %v3004 = vpop.f32.mrb[0].mxu0
        %v3005 = vadd.f32 %v2844, %v3004
        %v3006 = vpop.f32.mrb[0].mxu0
        %v3007 = vpop.f32.mrb[0].mxu0
        %3008 = vdwg.mxu0
        %v3009 = vxor.u32 %v2880, 2147483648
        %v3010 = vmul.f32 %v3009, 1.442695
        %v3011 = vpow.pop %v3010
        %v3012 = vadd.f32 %v3011, 1.0
        %v3013 = vrcp.pop %v3012
        %v3014 = vmul.f32 1.0, %v3013
        %v3015 = vxor.u32 %v2882, 2147483648
        %v3016 = vmul.f32 %v3015, 1.442695
        %v3017 = vpow.pop %v3016
        %v3018 = vadd.f32 %v3017, 1.0
        %v3019 = vrcp.pop %v3018
        %v3020 = vmul.f32 1.0, %v3019
        %v3021 = vtanh.pop %v2921
        %v3022 = vxor.u32 %v2923, 2147483648
        %v3023 = vmul.f32 %v3022, 1.442695
        %v3024 = vpow.pop %v3023
        %v3025 = vadd.f32 %v3024, 1.0
        %v3026 = vrcp.pop %v3025
        %v3027 = vmul.f32 1.0, %v3026
        %v3028 = vxor.u32 %v2962, 2147483648
        %v3029 = vmul.f32 %v3028, 1.442695
        %v3030 = vpow.pop %v3029
        %v3031 = vadd.f32 %v3030, 1.0
        %v3032 = vrcp.pop %v3031
        %v3033 = vmul.f32 1.0, %v3032
        %v3034 = vxor.u32 %v2964, 2147483648
        %v3035 = vmul.f32 %v3034, 1.442695
        %v3036 = vpow.pop %v3035
        %v3037 = vadd.f32 %v3036, 1.0
        %v3038 = vrcp.pop %v3037
        %v3039 = vmul.f32 1.0, %v3038
        %v3040 = vtanh.pop %v3003
        %v3041 = vxor.u32 %v3005, 2147483648
        %v3042 = vmul.f32 %v3041, 1.442695
        %v3043 = vpow.pop %v3042
        %v3044 = vadd.f32 %v3043, 1.0
        %v3045 = vrcp.pop %v3044
        %v3046 = vmul.f32 1.0, %v3045
        %v3047 = vmul.f32 %v3014, %v2824
        %v3048 = vmul.f32 %v3020, %v3021
        %v3049 = vadd.f32 %v3047, %v3048
        %v3050 = vmul.f32 %v3033, %v2827
        %v3051 = vmul.f32 %v3039, %v3040
        %v3052 = vadd.f32 %v3050, %v3051
        %v3053 = vtanh.pop %v3049
        %v3054 = vmul.f32 %v3027, %v3053
        %v3055 = vtanh.pop %v3052
        %v3056 = vmul.f32 %v3046, %v3055
        %v3057 = vadd.f32 %v3054, %v3056
        %s3058 = scalar_lea.vmem %s484, 40 [#allocation7]
        %3059 = vst [vmem:[%s3058] sm:$0xff] %v3057
        %v3060 = vpack.c.bf16 %v3057, %v3057
        %s3061 = scalar_lea.vmem [#allocation2], 384
        %v3062 = vld [vmem:[%s3061] sm:$0xff]
        %v3063 = vld [vmem:[%s3061 + $0x8] sm:$0xff]
        %v3064 = vld [vmem:[%s3061 + $0x10] sm:$0xff]
        %v3065 = vld [vmem:[%s3061 + $0x18] sm:$0xff]
        %v3066 = vld [vmem:[%s3061 + $0x20] sm:$0xff]
        %v3067 = vld [vmem:[%s3061 + $0x28] sm:$0xff]
        %v3068 = vld [vmem:[%s3061 + $0x30] sm:$0xff]
        %v3069 = vld [vmem:[%s3061 + $0x38] sm:$0xff]
        %3070 = vmatprep.subr.bf16.mxu0 %v1594
        %3071 = vmatpush1.bf16.msra.mxu0 %v1593
        %3072 = vmatprep.subr.bf16.mxu0 %v1602
        %3073 = vmatpush1.bf16.msra.mxu0 %v1601
        %3074 = vmatprep.subr.bf16.mxu0 %v1610
        %3075 = vmatpush1.bf16.msra.mxu0 %v1609
        %3076 = vmatprep.subr.bf16.mxu0 %v1618
        %3077 = vmatpush1.bf16.msra.mxu0 %v1617
        %3078 = vmatprep.subr.bf16.mxu0 %v1626
        %3079 = vmatpush1.bf16.msra.mxu0 %v1625
        %3080 = vmatprep.subr.bf16.mxu0 %v1634
        %3081 = vmatpush1.bf16.msra.mxu0 %v1633
        %3082 = vmatprep.subr.bf16.mxu0 %v1642
        %3083 = vmatpush1.bf16.msra.mxu0 %v1641
        %3084 = vmatprep.subr.bf16.mxu0 %v1650
        %3085 = vmatpush1.bf16.msra.mxu0 %v1649
        %3086 = vmatprep.subr.bf16.mxu0 0
        %3087 = vmatpush1.bf16.msra.mxu0 0
        %3088 = vmatprep.subr.bf16.mxu0 0
        %3089 = vmatpush1.bf16.msra.mxu0 0
        %3090 = vmatprep.subr.bf16.mxu0 0
        %3091 = vmatpush1.bf16.msra.mxu0 0
        %3092 = vmatprep.subr.bf16.mxu0 0
        %3093 = vmatpush1.bf16.msra.mxu0 0
        %3094 = vmatprep.subr.bf16.mxu0 0
        %3095 = vmatpush1.bf16.msra.mxu0 0
        %3096 = vmatprep.subr.bf16.mxu0 0
        %3097 = vmatpush1.bf16.msra.mxu0 0
        %3098 = vmatprep.subr.bf16.mxu0 0
        %3099 = vmatpush1.bf16.msra.mxu0 0
        %3100 = vmatprep.subr.bf16.mxu0 0
        %3101 = vmatpush1.bf16.msra.mxu0 0
        %3102 = vmatprep.mubr.bf16.mxu0 0
        %3103 = vmatmul.mubr.bf16.gmra.mrb[0].mxu0 %v3060
        %v3104 = vpop.f32.mrb[0].mxu0
        %v3105 = vadd.f32 %v3062, %v3104
        %v3106 = vpop.f32.mrb[0].mxu0
        %v3107 = vadd.f32 %v3063, %v3106
        %v3108 = vpop.f32.mrb[0].mxu0
        %v3109 = vpop.f32.mrb[0].mxu0
        %3110 = vdwg.mxu0
        %3111 = vmatprep.subr.bf16.mxu0 %v1596
        %3112 = vmatpush1.bf16.msra.mxu0 %v1595
        %3113 = vmatprep.subr.bf16.mxu0 %v1604
        %3114 = vmatpush1.bf16.msra.mxu0 %v1603
        %3115 = vmatprep.subr.bf16.mxu0 %v1612
        %3116 = vmatpush1.bf16.msra.mxu0 %v1611
        %3117 = vmatprep.subr.bf16.mxu0 %v1620
        %3118 = vmatpush1.bf16.msra.mxu0 %v1619
        %3119 = vmatprep.subr.bf16.mxu0 %v1628
        %3120 = vmatpush1.bf16.msra.mxu0 %v1627
        %3121 = vmatprep.subr.bf16.mxu0 %v1636
        %3122 = vmatpush1.bf16.msra.mxu0 %v1635
        %3123 = vmatprep.subr.bf16.mxu0 %v1644
        %3124 = vmatpush1.bf16.msra.mxu0 %v1643
        %3125 = vmatprep.subr.bf16.mxu0 %v1652
        %3126 = vmatpush1.bf16.msra.mxu0 %v1651
        %3127 = vmatprep.subr.bf16.mxu0 0
        %3128 = vmatpush1.bf16.msra.mxu0 0
        %3129 = vmatprep.subr.bf16.mxu0 0
        %3130 = vmatpush1.bf16.msra.mxu0 0
        %3131 = vmatprep.subr.bf16.mxu0 0
        %3132 = vmatpush1.bf16.msra.mxu0 0
        %3133 = vmatprep.subr.bf16.mxu0 0
        %3134 = vmatpush1.bf16.msra.mxu0 0
        %3135 = vmatprep.subr.bf16.mxu0 0
        %3136 = vmatpush1.bf16.msra.mxu0 0
        %3137 = vmatprep.subr.bf16.mxu0 0
        %3138 = vmatpush1.bf16.msra.mxu0 0
        %3139 = vmatprep.subr.bf16.mxu0 0
        %3140 = vmatpush1.bf16.msra.mxu0 0
        %3141 = vmatprep.subr.bf16.mxu0 0
        %3142 = vmatpush1.bf16.msra.mxu0 0
        %3143 = vmatprep.mubr.bf16.mxu0 0
        %3144 = vmatmul.mubr.bf16.gmra.mrb[0].mxu0 %v3060
        %v3145 = vpop.f32.mrb[0].mxu0
        %v3146 = vadd.f32 %v3064, %v3145
        %v3147 = vpop.f32.mrb[0].mxu0
        %v3148 = vadd.f32 %v3065, %v3147
        %v3149 = vpop.f32.mrb[0].mxu0
        %v3150 = vpop.f32.mrb[0].mxu0
        %3151 = vdwg.mxu0
        %3152 = vmatprep.subr.bf16.mxu0 %v1598
        %3153 = vmatpush1.bf16.msra.mxu0 %v1597
        %3154 = vmatprep.subr.bf16.mxu0 %v1606
        %3155 = vmatpush1.bf16.msra.mxu0 %v1605
        %3156 = vmatprep.subr.bf16.mxu0 %v1614
        %3157 = vmatpush1.bf16.msra.mxu0 %v1613
        %3158 = vmatprep.subr.bf16.mxu0 %v1622
        %3159 = vmatpush1.bf16.msra.mxu0 %v1621
        %3160 = vmatprep.subr.bf16.mxu0 %v1630
        %3161 = vmatpush1.bf16.msra.mxu0 %v1629
        %3162 = vmatprep.subr.bf16.mxu0 %v1638
        %3163 = vmatpush1.bf16.msra.mxu0 %v1637
        %3164 = vmatprep.subr.bf16.mxu0 %v1646
        %3165 = vmatpush1.bf16.msra.mxu0 %v1645
        %3166 = vmatprep.subr.bf16.mxu0 %v1654
        %3167 = vmatpush1.bf16.msra.mxu0 %v1653
        %3168 = vmatprep.subr.bf16.mxu0 0
        %3169 = vmatpush1.bf16.msra.mxu0 0
        %3170 = vmatprep.subr.bf16.mxu0 0
        %3171 = vmatpush1.bf16.msra.mxu0 0
        %3172 = vmatprep.subr.bf16.mxu0 0
        %3173 = vmatpush1.bf16.msra.mxu0 0
        %3174 = vmatprep.subr.bf16.mxu0 0
        %3175 = vmatpush1.bf16.msra.mxu0 0
        %3176 = vmatprep.subr.bf16.mxu0 0
        %3177 = vmatpush1.bf16.msra.mxu0 0
        %3178 = vmatprep.subr.bf16.mxu0 0
        %3179 = vmatpush1.bf16.msra.mxu0 0
        %3180 = vmatprep.subr.bf16.mxu0 0
        %3181 = vmatpush1.bf16.msra.mxu0 0
        %3182 = vmatprep.subr.bf16.mxu0 0
        %3183 = vmatpush1.bf16.msra.mxu0 0
        %3184 = vmatprep.mubr.bf16.mxu0 0
        %3185 = vmatmul.mubr.bf16.gmra.mrb[0].mxu0 %v3060
        %v3186 = vpop.f32.mrb[0].mxu0
        %v3187 = vadd.f32 %v3066, %v3186
        %v3188 = vpop.f32.mrb[0].mxu0
        %v3189 = vadd.f32 %v3067, %v3188
        %v3190 = vpop.f32.mrb[0].mxu0
        %v3191 = vpop.f32.mrb[0].mxu0
        %3192 = vdwg.mxu0
        %3193 = vmatprep.subr.bf16.mxu0 %v1600
        %3194 = vmatpush1.bf16.msra.mxu0 %v1599
        %3195 = vmatprep.subr.bf16.mxu0 %v1608
        %3196 = vmatpush1.bf16.msra.mxu0 %v1607
        %3197 = vmatprep.subr.bf16.mxu0 %v1616
        %3198 = vmatpush1.bf16.msra.mxu0 %v1615
        %3199 = vmatprep.subr.bf16.mxu0 %v1624
        %3200 = vmatpush1.bf16.msra.mxu0 %v1623
        %3201 = vmatprep.subr.bf16.mxu0 %v1632
        %3202 = vmatpush1.bf16.msra.mxu0 %v1631
        %3203 = vmatprep.subr.bf16.mxu0 %v1640
        %3204 = vmatpush1.bf16.msra.mxu0 %v1639
        %3205 = vmatprep.subr.bf16.mxu0 %v1648
        %3206 = vmatpush1.bf16.msra.mxu0 %v1647
        %3207 = vmatprep.subr.bf16.mxu0 %v1656
        %3208 = vmatpush1.bf16.msra.mxu0 %v1655
        %3209 = vmatprep.subr.bf16.mxu0 0
        %3210 = vmatpush1.bf16.msra.mxu0 0
        %3211 = vmatprep.subr.bf16.mxu0 0
        %3212 = vmatpush1.bf16.msra.mxu0 0
        %3213 = vmatprep.subr.bf16.mxu0 0
        %3214 = vmatpush1.bf16.msra.mxu0 0
        %3215 = vmatprep.subr.bf16.mxu0 0
        %3216 = vmatpush1.bf16.msra.mxu0 0
        %3217 = vmatprep.subr.bf16.mxu0 0
        %3218 = vmatpush1.bf16.msra.mxu0 0
        %3219 = vmatprep.subr.bf16.mxu0 0
        %3220 = vmatpush1.bf16.msra.mxu0 0
        %3221 = vmatprep.subr.bf16.mxu0 0
        %3222 = vmatpush1.bf16.msra.mxu0 0
        %3223 = vmatprep.subr.bf16.mxu0 0
        %3224 = vmatpush1.bf16.msra.mxu0 0
        %3225 = vmatprep.mubr.bf16.mxu0 0
        %3226 = vmatmul.mubr.bf16.gmra.mrb[0].mxu0 %v3060
        %v3227 = vpop.f32.mrb[0].mxu0
        %v3228 = vadd.f32 %v3068, %v3227
        %v3229 = vpop.f32.mrb[0].mxu0
        %v3230 = vadd.f32 %v3069, %v3229
        %v3231 = vpop.f32.mrb[0].mxu0
        %v3232 = vpop.f32.mrb[0].mxu0
        %3233 = vdwg.mxu0
        %v3234 = vxor.u32 %v3105, 2147483648
        %v3235 = vmul.f32 %v3234, 1.442695
        %v3236 = vpow.pop %v3235
        %v3237 = vadd.f32 %v3236, 1.0
        %v3238 = vrcp.pop %v3237
        %v3239 = vmul.f32 1.0, %v3238
        %v3240 = vxor.u32 %v3107, 2147483648
        %v3241 = vmul.f32 %v3240, 1.442695
        %v3242 = vpow.pop %v3241
        %v3243 = vadd.f32 %v3242, 1.0
        %v3244 = vrcp.pop %v3243
        %v3245 = vmul.f32 1.0, %v3244
        %v3246 = vtanh.pop %v3146
        %v3247 = vxor.u32 %v3148, 2147483648
        %v3248 = vmul.f32 %v3247, 1.442695
        %v3249 = vpow.pop %v3248
        %v3250 = vadd.f32 %v3249, 1.0
        %v3251 = vrcp.pop %v3250
        %v3252 = vmul.f32 1.0, %v3251
        %v3253 = vxor.u32 %v3187, 2147483648
        %v3254 = vmul.f32 %v3253, 1.442695
        %v3255 = vpow.pop %v3254
        %v3256 = vadd.f32 %v3255, 1.0
        %v3257 = vrcp.pop %v3256
        %v3258 = vmul.f32 1.0, %v3257
        %v3259 = vxor.u32 %v3189, 2147483648
        %v3260 = vmul.f32 %v3259, 1.442695
        %v3261 = vpow.pop %v3260
        %v3262 = vadd.f32 %v3261, 1.0
        %v3263 = vrcp.pop %v3262
        %v3264 = vmul.f32 1.0, %v3263
        %v3265 = vtanh.pop %v3228
        %v3266 = vxor.u32 %v3230, 2147483648
        %v3267 = vmul.f32 %v3266, 1.442695
        %v3268 = vpow.pop %v3267
        %v3269 = vadd.f32 %v3268, 1.0
        %v3270 = vrcp.pop %v3269
        %v3271 = vmul.f32 1.0, %v3270
        %v3272 = vmul.f32 %v3239, %v3049
        %v3273 = vmul.f32 %v3245, %v3246
        %v3274 = vadd.f32 %v3272, %v3273
        %v3275 = vmul.f32 %v3258, %v3052
        %v3276 = vmul.f32 %v3264, %v3265
        %v3277 = vadd.f32 %v3275, %v3276
        %v3278 = vtanh.pop %v3274
        %v3279 = vmul.f32 %v3252, %v3278
        %v3280 = vtanh.pop %v3277
        %v3281 = vmul.f32 %v3271, %v3280
        %v3282 = vadd.f32 %v3279, %v3281
        %s3283 = scalar_lea.vmem %s484, 48 [#allocation7]
        %3284 = vst [vmem:[%s3283] sm:$0xff] %v3282
        %v3285 = vpack.c.bf16 %v3282, %v3282
        %s3286 = scalar_lea.vmem [#allocation2], 448
        %v3287 = vld [vmem:[%s3286] sm:$0xff]
        %v3288 = vld [vmem:[%s3286 + $0x8] sm:$0xff]
        %v3289 = vld [vmem:[%s3286 + $0x10] sm:$0xff]
        %v3290 = vld [vmem:[%s3286 + $0x18] sm:$0xff]
        %v3291 = vld [vmem:[%s3286 + $0x20] sm:$0xff]
        %v3292 = vld [vmem:[%s3286 + $0x28] sm:$0xff]
        %v3293 = vld [vmem:[%s3286 + $0x30] sm:$0xff]
        %v3294 = vld [vmem:[%s3286 + $0x38] sm:$0xff]
        %3295 = vmatprep.subr.bf16.mxu0 %v1594
        %3296 = vmatpush1.bf16.msra.mxu0 %v1593
        %3297 = vmatprep.subr.bf16.mxu0 %v1602
        %3298 = vmatpush1.bf16.msra.mxu0 %v1601
        %3299 = vmatprep.subr.bf16.mxu0 %v1610
        %3300 = vmatpush1.bf16.msra.mxu0 %v1609
        %3301 = vmatprep.subr.bf16.mxu0 %v1618
        %3302 = vmatpush1.bf16.msra.mxu0 %v1617
        %3303 = vmatprep.subr.bf16.mxu0 %v1626
        %3304 = vmatpush1.bf16.msra.mxu0 %v1625
        %3305 = vmatprep.subr.bf16.mxu0 %v1634
        %3306 = vmatpush1.bf16.msra.mxu0 %v1633
        %3307 = vmatprep.subr.bf16.mxu0 %v1642
        %3308 = vmatpush1.bf16.msra.mxu0 %v1641
        %3309 = vmatprep.subr.bf16.mxu0 %v1650
        %3310 = vmatpush1.bf16.msra.mxu0 %v1649
        %3311 = vmatprep.subr.bf16.mxu0 0
        %3312 = vmatpush1.bf16.msra.mxu0 0
        %3313 = vmatprep.subr.bf16.mxu0 0
        %3314 = vmatpush1.bf16.msra.mxu0 0
        %3315 = vmatprep.subr.bf16.mxu0 0
        %3316 = vmatpush1.bf16.msra.mxu0 0
        %3317 = vmatprep.subr.bf16.mxu0 0
        %3318 = vmatpush1.bf16.msra.mxu0 0
        %3319 = vmatprep.subr.bf16.mxu0 0
        %3320 = vmatpush1.bf16.msra.mxu0 0
        %3321 = vmatprep.subr.bf16.mxu0 0
        %3322 = vmatpush1.bf16.msra.mxu0 0
        %3323 = vmatprep.subr.bf16.mxu0 0
        %3324 = vmatpush1.bf16.msra.mxu0 0
        %3325 = vmatprep.subr.bf16.mxu0 0
        %3326 = vmatpush1.bf16.msra.mxu0 0
        %3327 = vmatprep.mubr.bf16.mxu0 0
        %3328 = vmatmul.mubr.bf16.gmra.mrb[0].mxu0 %v3285
        %v3329 = vpop.f32.mrb[0].mxu0
        %v3330 = vadd.f32 %v3287, %v3329
        %v3331 = vpop.f32.mrb[0].mxu0
        %v3332 = vadd.f32 %v3288, %v3331
        %v3333 = vpop.f32.mrb[0].mxu0
        %v3334 = vpop.f32.mrb[0].mxu0
        %3335 = vdwg.mxu0
        %3336 = vmatprep.subr.bf16.mxu0 %v1596
        %3337 = vmatpush1.bf16.msra.mxu0 %v1595
        %3338 = vmatprep.subr.bf16.mxu0 %v1604
        %3339 = vmatpush1.bf16.msra.mxu0 %v1603
        %3340 = vmatprep.subr.bf16.mxu0 %v1612
        %3341 = vmatpush1.bf16.msra.mxu0 %v1611
        %3342 = vmatprep.subr.bf16.mxu0 %v1620
        %3343 = vmatpush1.bf16.msra.mxu0 %v1619
        %3344 = vmatprep.subr.bf16.mxu0 %v1628
        %3345 = vmatpush1.bf16.msra.mxu0 %v1627
        %3346 = vmatprep.subr.bf16.mxu0 %v1636
        %3347 = vmatpush1.bf16.msra.mxu0 %v1635
        %3348 = vmatprep.subr.bf16.mxu0 %v1644
        %3349 = vmatpush1.bf16.msra.mxu0 %v1643
        %3350 = vmatprep.subr.bf16.mxu0 %v1652
        %3351 = vmatpush1.bf16.msra.mxu0 %v1651
        %3352 = vmatprep.subr.bf16.mxu0 0
        %3353 = vmatpush1.bf16.msra.mxu0 0
        %3354 = vmatprep.subr.bf16.mxu0 0
        %3355 = vmatpush1.bf16.msra.mxu0 0
        %3356 = vmatprep.subr.bf16.mxu0 0
        %3357 = vmatpush1.bf16.msra.mxu0 0
        %3358 = vmatprep.subr.bf16.mxu0 0
        %3359 = vmatpush1.bf16.msra.mxu0 0
        %3360 = vmatprep.subr.bf16.mxu0 0
        %3361 = vmatpush1.bf16.msra.mxu0 0
        %3362 = vmatprep.subr.bf16.mxu0 0
        %3363 = vmatpush1.bf16.msra.mxu0 0
        %3364 = vmatprep.subr.bf16.mxu0 0
        %3365 = vmatpush1.bf16.msra.mxu0 0
        %3366 = vmatprep.subr.bf16.mxu0 0
        %3367 = vmatpush1.bf16.msra.mxu0 0
        %3368 = vmatprep.mubr.bf16.mxu0 0
        %3369 = vmatmul.mubr.bf16.gmra.mrb[0].mxu0 %v3285
        %v3370 = vpop.f32.mrb[0].mxu0
        %v3371 = vadd.f32 %v3289, %v3370
        %v3372 = vpop.f32.mrb[0].mxu0
        %v3373 = vadd.f32 %v3290, %v3372
        %v3374 = vpop.f32.mrb[0].mxu0
        %v3375 = vpop.f32.mrb[0].mxu0
        %3376 = vdwg.mxu0
        %3377 = vmatprep.subr.bf16.mxu0 %v1598
        %3378 = vmatpush1.bf16.msra.mxu0 %v1597
        %3379 = vmatprep.subr.bf16.mxu0 %v1606
        %3380 = vmatpush1.bf16.msra.mxu0 %v1605
        %3381 = vmatprep.subr.bf16.mxu0 %v1614
        %3382 = vmatpush1.bf16.msra.mxu0 %v1613
        %3383 = vmatprep.subr.bf16.mxu0 %v1622
        %3384 = vmatpush1.bf16.msra.mxu0 %v1621
        %3385 = vmatprep.subr.bf16.mxu0 %v1630
        %3386 = vmatpush1.bf16.msra.mxu0 %v1629
        %3387 = vmatprep.subr.bf16.mxu0 %v1638
        %3388 = vmatpush1.bf16.msra.mxu0 %v1637
        %3389 = vmatprep.subr.bf16.mxu0 %v1646
        %3390 = vmatpush1.bf16.msra.mxu0 %v1645
        %3391 = vmatprep.subr.bf16.mxu0 %v1654
        %3392 = vmatpush1.bf16.msra.mxu0 %v1653
        %3393 = vmatprep.subr.bf16.mxu0 0
        %3394 = vmatpush1.bf16.msra.mxu0 0
        %3395 = vmatprep.subr.bf16.mxu0 0
        %3396 = vmatpush1.bf16.msra.mxu0 0
        %3397 = vmatprep.subr.bf16.mxu0 0
        %3398 = vmatpush1.bf16.msra.mxu0 0
        %3399 = vmatprep.subr.bf16.mxu0 0
        %3400 = vmatpush1.bf16.msra.mxu0 0
        %3401 = vmatprep.subr.bf16.mxu0 0
        %3402 = vmatpush1.bf16.msra.mxu0 0
        %3403 = vmatprep.subr.bf16.mxu0 0
        %3404 = vmatpush1.bf16.msra.mxu0 0
        %3405 = vmatprep.subr.bf16.mxu0 0
        %3406 = vmatpush1.bf16.msra.mxu0 0
        %3407 = vmatprep.subr.bf16.mxu0 0
        %3408 = vmatpush1.bf16.msra.mxu0 0
        %3409 = vmatprep.mubr.bf16.mxu0 0
        %3410 = vmatmul.mubr.bf16.gmra.mrb[0].mxu0 %v3285
        %v3411 = vpop.f32.mrb[0].mxu0
        %v3412 = vadd.f32 %v3291, %v3411
        %v3413 = vpop.f32.mrb[0].mxu0
        %v3414 = vadd.f32 %v3292, %v3413
        %v3415 = vpop.f32.mrb[0].mxu0
        %v3416 = vpop.f32.mrb[0].mxu0
        %3417 = vdwg.mxu0
        %3418 = vmatprep.subr.bf16.mxu0 %v1600
        %3419 = vmatpush1.bf16.msra.mxu0 %v1599
        %3420 = vmatprep.subr.bf16.mxu0 %v1608
        %3421 = vmatpush1.bf16.msra.mxu0 %v1607
        %3422 = vmatprep.subr.bf16.mxu0 %v1616
        %3423 = vmatpush1.bf16.msra.mxu0 %v1615
        %3424 = vmatprep.subr.bf16.mxu0 %v1624
        %3425 = vmatpush1.bf16.msra.mxu0 %v1623
        %3426 = vmatprep.subr.bf16.mxu0 %v1632
        %3427 = vmatpush1.bf16.msra.mxu0 %v1631
        %3428 = vmatprep.subr.bf16.mxu0 %v1640
        %3429 = vmatpush1.bf16.msra.mxu0 %v1639
        %3430 = vmatprep.subr.bf16.mxu0 %v1648
        %3431 = vmatpush1.bf16.msra.mxu0 %v1647
        %3432 = vmatprep.subr.bf16.mxu0 %v1656
        %3433 = vmatpush1.bf16.msra.mxu0 %v1655
        %3434 = vmatprep.subr.bf16.mxu0 0
        %3435 = vmatpush1.bf16.msra.mxu0 0
        %3436 = vmatprep.subr.bf16.mxu0 0
        %3437 = vmatpush1.bf16.msra.mxu0 0
        %3438 = vmatprep.subr.bf16.mxu0 0
        %3439 = vmatpush1.bf16.msra.mxu0 0
        %3440 = vmatprep.subr.bf16.mxu0 0
        %3441 = vmatpush1.bf16.msra.mxu0 0
        %3442 = vmatprep.subr.bf16.mxu0 0
        %3443 = vmatpush1.bf16.msra.mxu0 0
        %3444 = vmatprep.subr.bf16.mxu0 0
        %3445 = vmatpush1.bf16.msra.mxu0 0
        %3446 = vmatprep.subr.bf16.mxu0 0
        %3447 = vmatpush1.bf16.msra.mxu0 0
        %3448 = vmatprep.subr.bf16.mxu0 0
        %3449 = vmatpush1.bf16.msra.mxu0 0
        %3450 = vmatprep.mubr.bf16.mxu0 0
        %3451 = vmatmul.mubr.bf16.gmra.mrb[0].mxu0 %v3285
        %v3452 = vpop.f32.mrb[0].mxu0
        %v3453 = vadd.f32 %v3293, %v3452
        %v3454 = vpop.f32.mrb[0].mxu0
        %v3455 = vadd.f32 %v3294, %v3454
        %v3456 = vpop.f32.mrb[0].mxu0
        %v3457 = vpop.f32.mrb[0].mxu0
        %3458 = vdwg.mxu0
        %v3459 = vxor.u32 %v3330, 2147483648
        %v3460 = vmul.f32 %v3459, 1.442695
        %v3461 = vpow.pop %v3460
        %v3462 = vadd.f32 %v3461, 1.0
        %v3463 = vrcp.pop %v3462
        %v3464 = vmul.f32 1.0, %v3463
        %v3465 = vxor.u32 %v3332, 2147483648
        %v3466 = vmul.f32 %v3465, 1.442695
        %v3467 = vpow.pop %v3466
        %v3468 = vadd.f32 %v3467, 1.0
        %v3469 = vrcp.pop %v3468
        %v3470 = vmul.f32 1.0, %v3469
        %v3471 = vtanh.pop %v3371
        %v3472 = vxor.u32 %v3373, 2147483648
        %v3473 = vmul.f32 %v3472, 1.442695
        %v3474 = vpow.pop %v3473
        %v3475 = vadd.f32 %v3474, 1.0
        %v3476 = vrcp.pop %v3475
        %v3477 = vmul.f32 1.0, %v3476
        %v3478 = vxor.u32 %v3412, 2147483648
        %v3479 = vmul.f32 %v3478, 1.442695
        %v3480 = vpow.pop %v3479
        %v3481 = vadd.f32 %v3480, 1.0
        %v3482 = vrcp.pop %v3481
        %v3483 = vmul.f32 1.0, %v3482
        %v3484 = vxor.u32 %v3414, 2147483648
        %v3485 = vmul.f32 %v3484, 1.442695
        %v3486 = vpow.pop %v3485
        %v3487 = vadd.f32 %v3486, 1.0
        %v3488 = vrcp.pop %v3487
        %v3489 = vmul.f32 1.0, %v3488
        %v3490 = vtanh.pop %v3453
        %v3491 = vxor.u32 %v3455, 2147483648
        %v3492 = vmul.f32 %v3491, 1.442695
        %v3493 = vpow.pop %v3492
        %v3494 = vadd.f32 %v3493, 1.0
        %v3495 = vrcp.pop %v3494
        %v3496 = vmul.f32 1.0, %v3495
        %v3497 = vmul.f32 %v3464, %v3274
        %v3498 = vmul.f32 %v3470, %v3471
        %v3499 = vadd.f32 %v3497, %v3498
        %v3500 = vmul.f32 %v3483, %v3277
        %v3501 = vmul.f32 %v3489, %v3490
        %v3502 = vadd.f32 %v3500, %v3501
        %v3503 = vtanh.pop %v3499
        %v3504 = vmul.f32 %v3477, %v3503
        %v3505 = vtanh.pop %v3502
        %v3506 = vmul.f32 %v3496, %v3505
        %v3507 = vadd.f32 %v3504, %v3506
        %s3508 = scalar_lea.vmem %s484, 56 [#allocation7]
        %3509 = vst [vmem:[%s3508] sm:$0xff] %v3507
        %3510 = vst [vmem:[#allocation3] sm:$0xff] %v3507
        %3511 = vst [vmem:[#allocation4] sm:$0xff] %v3499
        %3512 = vst [vmem:[#allocation5] sm:$0xff] %v3502
        // Predicated region
        $region91: #{cerebral_lstm_forward.3} parent=81 // pred_check
          %p3513 = pneg %p521
        $region92: #{cerebral_lstm_forward.3} parent=81 // pred_check_branch
          %3515 = sbr.rel (%p3513) target = $region94
        $region93: #{cerebral_lstm_forward.3} parent=81 // pred_region
          %3516 = vst [vmem:[%s491] sm:$0xff] %v3507
          %3517 = vst [vmem:[%s498] sm:$0xff] %v3499
          %3518 = vst [vmem:[%s505] sm:$0xff] %v3502
        $region94: #{cerebral_lstm_forward.3} parent=81 // pred_fallthru
          _
        %s3519 = sand.u32 %s222, 1
        %s3520 = scalar_lea.sflag [#allocation8], %s3519
        %s3521 = sand.u32 %s222, 1
        %s3522 = smul.addr %s3521, 64
        %s3523 = scalar_lea.vmem [#allocation7], %s3522
        %s3524 = sand.u32 %s31, 1
        %s3525 = scalar_lea.sflag [#allocation10], %s3524
        %s3526 = sand.u32 %s248, 1
        %s3527 = smul.addr %s3526, 8
        %s3528 = scalar_lea.vmem [#allocation9], %s3527
        %s3529 = sand.u32 %s31, 1
        %s3530 = scalar_lea.sflag [#allocation10], %s3529
        %s3531 = sand.u32 %s274, 1
        %s3532 = smul.addr %s3531, 8
        %s3533 = scalar_lea.vmem [#allocation11], %s3532
        %s3534 = sand.u32 %s300, 1
        %s3535 = scalar_lea.sflag [#allocation13], %s3534
        %s3536 = sand.u32 %s300, 1
        %s3537 = smul.addr %s3536, 8
        %s3538 = scalar_lea.vmem [#allocation12], %s3537
        // Predicated region
        $region95: #{cerebral_lstm_forward.3} parent=81 // pred_check
          %p3539 = pneg %p232
        $region96: #{cerebral_lstm_forward.3} parent=81 // pred_check_branch
          %3541 = sbr.rel (%p3539) target = $region98
        $region97: #{cerebral_lstm_forward.3} parent=81 // pred_region
          %s3542 = smul.u32 8, %s36
          %s3544 = ssub.s32 1024, 1024
          %3545 = vsyncadd %s3520, %s3544
          %s3546 = smul.addr %s3542, 2
          %s3547 = sadd.s32 %s35, %s3546
          %s3548 = smul.addr %s3547, 128
          %s3549 = scalar_lea.hbm %s7, %s3548
          %s3550 = sshll.u32 %s3523, 4
          %s3551 = int_to_ptr.vmem [resolvable:$true] %s3550
          %3556 = dma.vmem_to_hbm [thread:$0]  %s3551, 1024, %s3549, %s3520, 128, 256, 8
        $region98: #{cerebral_lstm_forward.3} parent=81 // pred_fallthru
          _
        // Predicated region
        $region99: #{cerebral_lstm_forward.3} parent=81 // pred_check
          %p3557 = pneg %p258
        $region100: #{cerebral_lstm_forward.3} parent=81 // pred_check_branch
          %3559 = sbr.rel (%p3557) target = $region102
        $region101: #{cerebral_lstm_forward.3} parent=81 // pred_region
          %s3561 = ssub.s32 128, 128
          %3562 = vsyncadd %s3525, %s3561
          %s3563 = smul.addr %s35, 128
          %s3564 = scalar_lea.hbm %s8, %s3563
          %s3566 = sshll.u32 %s3528, 4
          %s3567 = int_to_ptr.vmem [resolvable:$true] %s3566
          %3569 = dma.vmem_to_hbm [thread:$0]  %s3567, 128, %s3564, %s3525
        $region102: #{cerebral_lstm_forward.3} parent=81 // pred_fallthru
          _
        // Predicated region
        $region103: #{cerebral_lstm_forward.3} parent=81 // pred_check
          %p3570 = pneg %p284
        $region104: #{cerebral_lstm_forward.3} parent=81 // pred_check_branch
          %3572 = sbr.rel (%p3570) target = $region106
        $region105: #{cerebral_lstm_forward.3} parent=81 // pred_region
          %s3574 = ssub.s32 128, 128
          %3575 = vsyncadd %s3530, %s3574
          %s3576 = smul.addr %s35, 128
          %s3577 = scalar_lea.hbm %s9, %s3576
          %s3579 = sshll.u32 %s3533, 4
          %s3580 = int_to_ptr.vmem [resolvable:$true] %s3579
          %3582 = dma.vmem_to_hbm [thread:$0]  %s3580, 128, %s3577, %s3530
        $region106: #{cerebral_lstm_forward.3} parent=81 // pred_fallthru
          _
        // Predicated region
        $region107: #{cerebral_lstm_forward.3} parent=81 // pred_check
          %p3583 = pneg %p310
        $region108: #{cerebral_lstm_forward.3} parent=81 // pred_check_branch
          %3585 = sbr.rel (%p3583) target = $region110
        $region109: #{cerebral_lstm_forward.3} parent=81 // pred_region
          %s3587 = ssub.s32 128, 128
          %3588 = vsyncadd %s3535, %s3587
          %s3589 = smul.addr %s35, 128
          %s3590 = scalar_lea.hbm %s10, %s3589
          %s3592 = sshll.u32 %s3538, 4
          %s3593 = int_to_ptr.vmem [resolvable:$true] %s3592
          %3595 = dma.vmem_to_hbm [thread:$0]  %s3593, 128, %s3590, %s3535
        $region110: #{cerebral_lstm_forward.3} parent=81 // pred_fallthru
          _
      $region82: #{cerebral_lstm_forward.3} parent=5 // pred_fallthru
        _
      %p3596 = scmp.le.s32.totalorder 2, %s26
      // Predicated region
      $region111: #{cerebral_lstm_forward.3} parent=5 // pred_check
        %p3597 = pneg %p3596
      $region112: #{cerebral_lstm_forward.3} parent=5 // pred_check_branch
        %3599 = sbr.rel (%p3597) target = $region114
      $region113: #{cerebral_lstm_forward.3} parent=5 // pred_region
        %s3600 = ssub.s32 %s26, 2
        // Predicated region
        $region115: #{cerebral_lstm_forward.3} parent=113 // pred_check
          %p3601 = pneg %p238
        $region116: #{cerebral_lstm_forward.3} parent=113 // pred_check_branch
          %3603 = sbr.rel (%p3601) target = $region118
        $region117: #{cerebral_lstm_forward.3} parent=113 // pred_region
          %s3604 = sand.u32 %s223, 1
          %s3605 = scalar_lea.sflag [#allocation8], %s3604
          %s3606 = sand.u32 %s223, 1
          %s3607 = smul.addr %s3606, 64
          %s3608 = scalar_lea.vmem [#allocation7], %s3607
          %3609 = dma.done %s3605, 1024
        $region118: #{cerebral_lstm_forward.3} parent=113 // pred_fallthru
          _
        // Predicated region
        $region119: #{cerebral_lstm_forward.3} parent=113 // pred_check
          %p3610 = pneg %p264
        $region120: #{cerebral_lstm_forward.3} parent=113 // pred_check_branch
          %3612 = sbr.rel (%p3610) target = $region122
        $region121: #{cerebral_lstm_forward.3} parent=113 // pred_region
          %s3613 = sand.u32 %s32, 1
          %s3614 = scalar_lea.sflag [#allocation10], %s3613
          %s3615 = sand.u32 %s249, 1
          %s3616 = smul.addr %s3615, 8
          %s3617 = scalar_lea.vmem [#allocation9], %s3616
          %3618 = dma.done %s3614, 128
        $region122: #{cerebral_lstm_forward.3} parent=113 // pred_fallthru
          _
        // Predicated region
        $region123: #{cerebral_lstm_forward.3} parent=113 // pred_check
          %p3619 = pneg %p290
        $region124: #{cerebral_lstm_forward.3} parent=113 // pred_check_branch
          %3621 = sbr.rel (%p3619) target = $region126
        $region125: #{cerebral_lstm_forward.3} parent=113 // pred_region
          %s3622 = sand.u32 %s32, 1
          %s3623 = scalar_lea.sflag [#allocation10], %s3622
          %s3624 = sand.u32 %s275, 1
          %s3625 = smul.addr %s3624, 8
          %s3626 = scalar_lea.vmem [#allocation11], %s3625
          %3627 = dma.done %s3623, 128
        $region126: #{cerebral_lstm_forward.3} parent=113 // pred_fallthru
          _
        // Predicated region
        $region127: #{cerebral_lstm_forward.3} parent=113 // pred_check
          %p3628 = pneg %p316
        $region128: #{cerebral_lstm_forward.3} parent=113 // pred_check_branch
          %3630 = sbr.rel (%p3628) target = $region130
        $region129: #{cerebral_lstm_forward.3} parent=113 // pred_region
          %s3631 = sand.u32 %s301, 1
          %s3632 = scalar_lea.sflag [#allocation13], %s3631
          %s3633 = sand.u32 %s301, 1
          %s3634 = smul.addr %s3633, 8
          %s3635 = scalar_lea.vmem [#allocation12], %s3634
          %3636 = dma.done %s3632, 128
        $region130: #{cerebral_lstm_forward.3} parent=113 // pred_fallthru
          _
      $region114: #{cerebral_lstm_forward.3} parent=5 // pred_fallthru
        _
    $region6: #{cerebral_lstm_forward.3} parent=1 // loop_footer
      %s30 = sadd.s32 1, %s26
    $region7: #{cerebral_lstm_forward.3} parent=1 // loop_footer_branch
      %25 = sbr.rel target = $region3
    $region8: #{cerebral_lstm_forward.3} parent=1 // loop_exit
      _
    %3637 = vsyncpa [#allocation8], 1
    %s3638 = scalar_lea.sflag [#allocation8], 1
    %3639 = vsyncpa %s3638, 1
    %3640 = vsyncpa [#allocation10], 1
    %s3641 = scalar_lea.sflag [#allocation10], 1
    %3642 = vsyncpa %s3641, 1
    %3643 = vsyncpa [#allocation13], 1
    %s3644 = scalar_lea.sflag [#allocation13], 1
    %3645 = vsyncpa %s3644, 1

</llo_original>
